<compile_context>
chip_gen: v7x
topology: tpu7x:2x2x1
jax: 0.10.0
libtpu: 0.0.40
codegen_flags: <defaults>
</compile_context>

<pallas_src>
import numpy as np
import jax
import jax.numpy as jnp
from jax.experimental import pallas as pl
from jax.experimental.pallas import tpu as pltpu

HID_DIM = 128
N_HEADS = 8
HEAD_DIM = HID_DIM // N_HEADS        # 16
PF_DIM = 2048                        # module default
LN_EPS = 1e-5
MM_DTYPE = jnp.bfloat16              # MXU operand dtype (f32 accumulation)
# TODO(synk): training-mode nn.Dropout RNG is not reproduced; dropout is the
#             eval-mode identity here (matches inference semantics).


# ---------------------------------------------------------------------------
# In-kernel helpers (traced inside the Pallas body)
# ---------------------------------------------------------------------------
def _layer_norm(x, g, b):
    # f32 vector math (v5e VPU has no bf16 path).
    mu = jnp.mean(x, axis=-1, keepdims=True)
    var = jnp.mean(jnp.square(x - mu), axis=-1, keepdims=True)
    return (x - mu) * jax.lax.rsqrt(var + LN_EPS) * g + b


def _mha(xq, xkv, wq, bq, wk, bk, wv, bv, wo, bo, bias, bt, lq, lk):
    """Multi-head attention over a flattened batch block.

    xq: (bt*lq, H) f32, xkv: (bt*lk, H) f32, weights: bf16 (H, H),
    biases: f32 (H,), bias: additive mask bias (bt, lq or 1, lk) with
    0.0 = keep, -1e10 = masked (== masked_fill(mask == 0, -1e10))."""
    inv_scale = jnp.float32(1.0 / np.sqrt(HEAD_DIM))

    xq_m = xq.astype(MM_DTYPE)
    xkv_m = xkv.astype(MM_DTYPE)
    # Full-width, lane-dense QKV projections (one big MXU matmul each);
    # scale folded into q once instead of dividing each per-head energy.
    q = (jnp.dot(xq_m, wq, preferred_element_type=jnp.float32) + bq) * inv_scale
    k = jnp.dot(xkv_m, wk, preferred_element_type=jnp.float32) + bk
    v = jnp.dot(xkv_m, wv, preferred_element_type=jnp.float32) + bv
    q = q.astype(MM_DTYPE)
    k = k.astype(MM_DTYPE)
    v = v.astype(MM_DTYPE)

    # Per-head accumulation directly into the output projection: keeps the
    # accumulator 128-lane dense and avoids the 8-way concatenate/relayout.
    acc = jnp.zeros((bt * lq, HID_DIM), jnp.float32)
    for h in range(N_HEADS):                       # static unrolled head loop
        sl = slice(h * HEAD_DIM, (h + 1) * HEAD_DIM)
        qh = q[:, sl].reshape(bt, lq, HEAD_DIM)
        kh = k[:, sl].reshape(bt, lk, HEAD_DIM)
        vh = v[:, sl].reshape(bt, lk, HEAD_DIM)
        e = jnp.einsum('bqd,bkd->bqk', qh, kh,
                       preferred_element_type=jnp.float32) + bias
        m = jnp.max(e, axis=-1, keepdims=True)
        p = jnp.exp(e - m)
        s = jnp.sum(p, axis=-1, keepdims=True)
        attn = (p * pl.reciprocal(s, approx=True)).astype(MM_DTYPE)
        ctx = jnp.einsum('bqk,bkd->bqd', attn, vh,
                         preferred_element_type=jnp.float32)      # (bt, lq, hd)
        acc = acc + jnp.dot(ctx.reshape(bt * lq, HEAD_DIM).astype(MM_DTYPE),
                            wo[sl, :], preferred_element_type=jnp.float32)
    return acc + bo


# ---------------------------------------------------------------------------
# Pallas kernel: one batch block (default: the whole batch) per grid step
# ---------------------------------------------------------------------------
def decoder_layer_kernel(trg_ref, src_ref, tmask_ref, smask_ref,
                         w_attn_ref, b_attn_ref, ln_g_ref, ln_b_ref,
                         fc1_w_ref, fc1_b_ref, fc2_w_ref, fc2_b_ref,
                         out_ref):
    bt, lt, hd = trg_ref.shape
    ls = src_ref.shape[1]

    # Flatten (bt, L, H) -> (bt*L, H) so every projection / FFN matmul sees
    # M = bt*L rows instead of L.
    trg2 = trg_ref[...].reshape(bt * lt, hd)
    src2 = src_ref[...].reshape(bt * ls, hd)

    # Masks -> additive biases, computed once per step (not per head):
    # mask == 1 -> 0, mask == 0 -> -1e10.
    # NOTE: for long sequences, generate the causal part of trg_mask in-kernel
    # with lax.broadcasted_iota instead of DMAing an O(Lt^2) mask; kept as an
    # input here to preserve the module's forward(trg, src, trg_mask, src_mask)
    # interface.
    tbias = (tmask_ref[...] - 1.0) * jnp.float32(1e10)   # (bt, lt, lt)
    sbias = (smask_ref[...] - 1.0) * jnp.float32(1e10)   # (bt, 1,  ls)

    w_attn = w_attn_ref[...]      # (2, 4, H, H) bf16   [sa/ea] x [q,k,v,o]
    b_attn = b_attn_ref[...]      # (2, 4, H)    f32
    ln_g = ln_g_ref[0]            # (H,)
    ln_b = ln_b_ref[0]            # (H,)

    # --- self-attention + residual + shared LayerNorm -----------------------
    sa = _mha(trg2, trg2,
              w_attn[0, 0], b_attn[0, 0], w_attn[0, 1], b_attn[0, 1],
              w_attn[0, 2], b_attn[0, 2], w_attn[0, 3], b_attn[0, 3],
              tbias, bt, lt, lt)
    x = _layer_norm(trg2 + sa, ln_g, ln_b)

    # --- encoder-decoder attention + residual + LayerNorm -------------------
    ea = _mha(x, src2,
              w_attn[1, 0], b_attn[1, 0], w_attn[1, 1], b_attn[1, 1],
              w_attn[1, 2], b_attn[1, 2], w_attn[1, 3], b_attn[1, 3],
              sbias, bt, lt, ls)
    x = _layer_norm(x + ea, ln_g, ln_b)

    # --- position-wise feed-forward + residual + LayerNorm ------------------
    h1 = jnp.maximum(
        jnp.dot(x.astype(MM_DTYPE), fc1_w_ref[...],
                preferred_element_type=jnp.float32) + fc1_b_ref[0], 0.0)
    ff = jnp.dot(h1.astype(MM_DTYPE), fc2_w_ref[...],
                 preferred_element_type=jnp.float32) + fc2_b_ref[0]
    x = _layer_norm(x + ff, ln_g, ln_b)

    out_ref[...] = x.reshape(bt, lt, hd)


# ---------------------------------------------------------------------------
# Wrapper
# ---------------------------------------------------------------------------
def decoder_layer(trg, src, trg_mask, src_mask, params, batch_block=None):
    B, Lt, H = trg.shape
    Ls = src.shape[1]
    (w_attn, b_attn, ln_g, ln_b, fc1_w, fc1_b, fc2_w, fc2_b) = params

    bt = B if batch_block is None else batch_block
    assert B % bt == 0
    grid = (B // bt,)

    # Weight matrices are fed to the MXU in bf16 (f32 accumulation in-kernel);
    # biases / LayerNorm params stay f32.
    w_attn = w_attn.astype(MM_DTYPE)
    fc1_w = fc1_w.astype(MM_DTYPE)
    fc2_w = fc2_w.astype(MM_DTYPE)

    def full_spec(arr):
        # Weights: whole array per step, constant index map (grid-invariant).
        nd = arr.ndim
        return pl.BlockSpec(arr.shape, lambda i, _nd=nd: (0,) * _nd)

    grid_spec = pltpu.PrefetchScalarGridSpec(
        num_scalar_prefetch=0,
        grid=grid,
        in_specs=[
            pl.BlockSpec((bt, Lt, H), lambda i: (i, 0, 0)),    # trg
            pl.BlockSpec((bt, Ls, H), lambda i: (i, 0, 0)),    # src
            pl.BlockSpec((bt, Lt, Lt), lambda i: (i, 0, 0)),   # trg_mask
            pl.BlockSpec((bt, 1, Ls), lambda i: (i, 0, 0)),    # src_mask
            full_spec(w_attn), full_spec(b_attn),
            full_spec(ln_g), full_spec(ln_b),
            full_spec(fc1_w), full_spec(fc1_b),
            full_spec(fc2_w), full_spec(fc2_b),
        ],
        out_specs=pl.BlockSpec((bt, Lt, H), lambda i: (i, 0, 0)),
    )
    return pl.pallas_call(
        decoder_layer_kernel,
        out_shape=jax.ShapeDtypeStruct((B, Lt, H), jnp.float32),
        grid_spec=grid_spec,
        compiler_params=pltpu.CompilerParams(
            # batch blocks are independent -> shardable across the 2 v7x TCs
            dimension_semantics=("parallel",)),
    )(trg, src, trg_mask, src_mask,
      w_attn, b_attn, ln_g, ln_b, fc1_w, fc1_b, fc2_w, fc2_b)


# ---------------------------------------------------------------------------
# Pure-JAX f32 reference (same math, HIGHEST precision) for correctness check
# ---------------------------------------------------------------------------
def reference(trg, src, trg_mask, src_mask, params):
    (w_attn, b_attn, ln_g, ln_b, fc1_w, fc1_b, fc2_w, fc2_b) = params
    scale = np.sqrt(HEAD_DIM)
    hi = jax.lax.Precision.HIGHEST

    def ln(x):
        mu = x.mean(-1, keepdims=True)
        var = ((x - mu) ** 2).mean(-1, keepdims=True)
        return (x - mu) / jnp.sqrt(var + LN_EPS) * ln_g[0] + ln_b[0]

    def mha(xq, xkv, w, b, mask):
        B, Lq, H = xq.shape
        Lk = xkv.shape[1]
        q = jnp.einsum('bld,do->blo', xq, w[0], precision=hi) + b[0]
        k = jnp.einsum('bld,do->blo', xkv, w[1], precision=hi) + b[1]
        v = jnp.einsum('bld,do->blo', xkv, w[2], precision=hi) + b[2]
        q = q.reshape(B, Lq, N_HEADS, HEAD_DIM).transpose(0, 2, 1, 3)
        k = k.reshape(B, Lk, N_HEADS, HEAD_DIM).transpose(0, 2, 1, 3)
        v = v.reshape(B, Lk, N_HEADS, HEAD_DIM).transpose(0, 2, 1, 3)
        energy = jnp.einsum('bhqd,bhkd->bhqk', q, k, precision=hi) / scale
        energy = jnp.where(mask[:, None] == 0.0, -1e10, energy)
        attn = jax.nn.softmax(energy, axis=-1)
        o = jnp.einsum('bhqk,bhkd->bhqd', attn, v, precision=hi)
        o = o.transpose(0, 2, 1, 3).reshape(B, Lq, H)
        return jnp.einsum('bld,do->blo', o, w[3], precision=hi) + b[3]

    x = ln(trg + mha(trg, trg, w_attn[0], b_attn[0], trg_mask))
    x = ln(x + mha(x, src, w_attn[1], b_attn[1], src_mask))
    h = jnp.maximum(jnp.einsum('bld,dp->blp', x, fc1_w, precision=hi)
                    + fc1_b[0], 0.0)
    ff = jnp.einsum('blp,pd->bld', h, fc2_w, precision=hi) + fc2_b[0]
    return ln(x + ff)


# ---------------------------------------------------------------------------
if __name__ == "__main__":
    B, Lt, Ls = 2, 8, 8
    key = jax.random.PRNGKey(0)
    keys = jax.random.split(key, 12)

    trg = jax.random.normal(keys[0], (B, Lt, HID_DIM), dtype=jnp.float32)
    src = jax.random.normal(keys[1], (B, Ls, HID_DIM), dtype=jnp.float32)

    # causal target mask, padding source mask (batch 1 has 2 padded positions)
    trg_mask = jnp.broadcast_to(jnp.tril(jnp.ones((Lt, Lt), jnp.float32)),
                                (B, Lt, Lt))
    src_mask = jnp.ones((B, 1, Ls), jnp.float32).at[1, 0, -2:].set(0.0)

    # deterministic synthetic parameters (PyTorch-Linear-equivalent, stored as
    # [in, out] so the kernel computes x @ W + b)
    w_attn = 0.05 * jax.random.normal(keys[2], (2, 4, HID_DIM, HID_DIM),
                                      dtype=jnp.float32)
    b_attn = 0.05 * jax.random.normal(keys[3], (2, 4, HID_DIM),
                                      dtype=jnp.float32)
    ln_g = 1.0 + 0.1 * jax.random.normal(keys[4], (1, HID_DIM), jnp.float32)
    ln_b = 0.1 * jax.random.normal(keys[5], (1, HID_DIM), jnp.float32)
    fc1_w = 0.05 * jax.random.normal(keys[6], (HID_DIM, PF_DIM), jnp.float32)
    fc1_b = 0.05 * jax.random.normal(keys[7], (1, PF_DIM), jnp.float32)
    fc2_w = 0.05 * jax.random.normal(keys[8], (PF_DIM, HID_DIM), jnp.float32)
    fc2_b = 0.05 * jax.random.normal(keys[9], (1, HID_DIM), jnp.float32)

    params = (w_attn, b_attn, ln_g, ln_b, fc1_w, fc1_b, fc2_w, fc2_b)

    out = jax.block_until_ready(
        decoder_layer(trg, src, trg_mask, src_mask, params))
    ref = jax.block_until_ready(
        reference(trg, src, trg_mask, src_mask, params))

    # bf16 MXU operands vs f32 HIGHEST reference -> a few-percent tolerance
    np.testing.assert_allclose(np.asarray(out), np.asarray(ref),
                               rtol=2.5e-2, atol=2.5e-2)
    assert out.shape == (B, Lt, HID_DIM)
    print("KERNEL_OK")
</pallas_src>

<mosaic_0001>
module attributes {stable_mosaic.version = 11 : i64} {
  func.func @decoder_layer_kernel(%arg0: i32, %arg1: memref<2x8x128xf32, #tpu.memory_space<vmem>>, %arg2: memref<2x8x128xf32, #tpu.memory_space<vmem>>, %arg3: memref<2x8x8xf32, #tpu.memory_space<vmem>>, %arg4: memref<2x1x8xf32, #tpu.memory_space<vmem>>, %arg5: memref<2x4x128x128xbf16, #tpu.memory_space<vmem>>, %arg6: memref<2x4x128xf32, #tpu.memory_space<vmem>>, %arg7: memref<1x128xf32, #tpu.memory_space<vmem>>, %arg8: memref<1x128xf32, #tpu.memory_space<vmem>>, %arg9: memref<128x2048xbf16, #tpu.memory_space<vmem>>, %arg10: memref<1x2048xf32, #tpu.memory_space<vmem>>, %arg11: memref<2048x128xbf16, #tpu.memory_space<vmem>>, %arg12: memref<1x128xf32, #tpu.memory_space<vmem>>, %arg13: memref<2x8x128xf32, #tpu.memory_space<vmem>>) attributes {dimension_semantics = [#tpu.dimension_semantics<parallel>], iteration_bounds = array<i64: 1>, scalar_prefetch = 0 : i64, scratch_operands = 0 : i64, tpu.core_type = #tpu.core_type<tc>, window_params = [{transform_indices = @transform_0, window_bounds = array<i64: 2, 8, 128>}, {transform_indices = @transform_1, window_bounds = array<i64: 2, 8, 128>}, {transform_indices = @transform_2, window_bounds = array<i64: 2, 8, 8>}, {transform_indices = @transform_3, window_bounds = array<i64: 2, 1, 8>}, {pipeline_mode = #tpu.pipeline_mode<synchronous>, transform_indices = @transform_4, window_bounds = array<i64: 2, 4, 128, 128>}, {pipeline_mode = #tpu.pipeline_mode<synchronous>, transform_indices = @transform_5, window_bounds = array<i64: 2, 4, 128>}, {pipeline_mode = #tpu.pipeline_mode<synchronous>, transform_indices = @transform_6, window_bounds = array<i64: 1, 128>}, {pipeline_mode = #tpu.pipeline_mode<synchronous>, transform_indices = @transform_7, window_bounds = array<i64: 1, 128>}, {pipeline_mode = #tpu.pipeline_mode<synchronous>, transform_indices = @transform_8, window_bounds = array<i64: 128, 2048>}, {pipeline_mode = #tpu.pipeline_mode<synchronous>, transform_indices = @transform_9, window_bounds = array<i64: 1, 2048>}, {pipeline_mode = #tpu.pipeline_mode<synchronous>, transform_indices = @transform_10, window_bounds = array<i64: 2048, 128>}, {pipeline_mode = #tpu.pipeline_mode<synchronous>, transform_indices = @transform_11, window_bounds = array<i64: 1, 128>}, {transform_indices = @transform_12, window_bounds = array<i64: 2, 8, 128>}]} {
    %c0 = arith.constant 0 : index
    %c0_0 = arith.constant 0 : index
    %c0_1 = arith.constant 0 : index
    %0 = vector.load %arg1[%c0, %c0_0, %c0_1] : memref<2x8x128xf32, #tpu.memory_space<vmem>>, vector<2x8x128xf32>
    %1 = vector.shape_cast %0 : vector<2x8x128xf32> to vector<16x128xf32>
    %c0_2 = arith.constant 0 : index
    %c0_3 = arith.constant 0 : index
    %c0_4 = arith.constant 0 : index
    %2 = vector.load %arg2[%c0_2, %c0_3, %c0_4] : memref<2x8x128xf32, #tpu.memory_space<vmem>>, vector<2x8x128xf32>
    %3 = vector.shape_cast %2 : vector<2x8x128xf32> to vector<16x128xf32>
    %c0_5 = arith.constant 0 : index
    %c0_6 = arith.constant 0 : index
    %c0_7 = arith.constant 0 : index
    %4 = vector.load %arg3[%c0_5, %c0_6, %c0_7] : memref<2x8x8xf32, #tpu.memory_space<vmem>>, vector<2x8x8xf32>
    %cst = arith.constant 1.000000e+00 : f32
    %5 = vector.broadcast %cst : f32 to vector<2x8x8xf32>
    %6 = arith.subf %4, %5 : vector<2x8x8xf32>
    %cst_8 = arith.constant 1.000000e+10 : f32
    %7 = vector.broadcast %cst_8 : f32 to vector<2x8x8xf32>
    %8 = arith.mulf %6, %7 : vector<2x8x8xf32>
    %c0_9 = arith.constant 0 : index
    %c0_10 = arith.constant 0 : index
    %c0_11 = arith.constant 0 : index
    %9 = vector.load %arg4[%c0_9, %c0_10, %c0_11] : memref<2x1x8xf32, #tpu.memory_space<vmem>>, vector<2x1x8xf32>
    %cst_12 = arith.constant 1.000000e+00 : f32
    %10 = vector.broadcast %cst_12 : f32 to vector<2x1x8xf32>
    %11 = arith.subf %9, %10 : vector<2x1x8xf32>
    %cst_13 = arith.constant 1.000000e+10 : f32
    %12 = vector.broadcast %cst_13 : f32 to vector<2x1x8xf32>
    %13 = arith.mulf %11, %12 : vector<2x1x8xf32>
    %c0_14 = arith.constant 0 : index
    %c0_15 = arith.constant 0 : index
    %c0_16 = arith.constant 0 : index
    %c0_17 = arith.constant 0 : index
    %14 = vector.load %arg5[%c0_14, %c0_15, %c0_16, %c0_17] : memref<2x4x128x128xbf16, #tpu.memory_space<vmem>>, vector<2x4x128x128xbf16>
    %c0_18 = arith.constant 0 : index
    %c0_19 = arith.constant 0 : index
    %c0_20 = arith.constant 0 : index
    %15 = vector.load %arg6[%c0_18, %c0_19, %c0_20] : memref<2x4x128xf32, #tpu.memory_space<vmem>>, vector<2x4x128xf32>
    %c0_21 = arith.constant 0 : index
    %c0_22 = arith.constant 0 : index
    %16 = vector.load %arg7[%c0_21, %c0_22] : memref<1x128xf32, #tpu.memory_space<vmem>>, vector<1x128xf32>
    %17 = vector.shape_cast %16 : vector<1x128xf32> to vector<128xf32>
    %c0_23 = arith.constant 0 : index
    %c0_24 = arith.constant 0 : index
    %18 = vector.load %arg8[%c0_23, %c0_24] : memref<1x128xf32, #tpu.memory_space<vmem>>, vector<1x128xf32>
    %19 = vector.shape_cast %18 : vector<1x128xf32> to vector<128xf32>
    %20 = vector.extract_strided_slice %14 {offsets = [0, 0, 0, 0], sizes = [1, 1, 128, 128], strides = [1, 1, 1, 1]} : vector<2x4x128x128xbf16> to vector<1x1x128x128xbf16>
    %21 = vector.shape_cast %20 : vector<1x1x128x128xbf16> to vector<128x128xbf16>
    %22 = vector.extract_strided_slice %15 {offsets = [0, 0, 0], sizes = [1, 1, 128], strides = [1, 1, 1]} : vector<2x4x128xf32> to vector<1x1x128xf32>
    %23 = vector.shape_cast %22 : vector<1x1x128xf32> to vector<128xf32>
    %24 = vector.extract_strided_slice %14 {offsets = [0, 1, 0, 0], sizes = [1, 1, 128, 128], strides = [1, 1, 1, 1]} : vector<2x4x128x128xbf16> to vector<1x1x128x128xbf16>
    %25 = vector.shape_cast %24 : vector<1x1x128x128xbf16> to vector<128x128xbf16>
    %26 = vector.extract_strided_slice %15 {offsets = [0, 1, 0], sizes = [1, 1, 128], strides = [1, 1, 1]} : vector<2x4x128xf32> to vector<1x1x128xf32>
    %27 = vector.shape_cast %26 : vector<1x1x128xf32> to vector<128xf32>
    %28 = vector.extract_strided_slice %14 {offsets = [0, 2, 0, 0], sizes = [1, 1, 128, 128], strides = [1, 1, 1, 1]} : vector<2x4x128x128xbf16> to vector<1x1x128x128xbf16>
    %29 = vector.shape_cast %28 : vector<1x1x128x128xbf16> to vector<128x128xbf16>
    %30 = vector.extract_strided_slice %15 {offsets = [0, 2, 0], sizes = [1, 1, 128], strides = [1, 1, 1]} : vector<2x4x128xf32> to vector<1x1x128xf32>
    %31 = vector.shape_cast %30 : vector<1x1x128xf32> to vector<128xf32>
    %32 = vector.extract_strided_slice %14 {offsets = [0, 3, 0, 0], sizes = [1, 1, 128, 128], strides = [1, 1, 1, 1]} : vector<2x4x128x128xbf16> to vector<1x1x128x128xbf16>
    %33 = vector.shape_cast %32 : vector<1x1x128x128xbf16> to vector<128x128xbf16>
    %34 = vector.extract_strided_slice %15 {offsets = [0, 3, 0], sizes = [1, 1, 128], strides = [1, 1, 1]} : vector<2x4x128xf32> to vector<1x1x128xf32>
    %35 = vector.shape_cast %34 : vector<1x1x128xf32> to vector<128xf32>
    %36 = arith.truncf %1 : vector<16x128xf32> to vector<16x128xbf16>
    %37 = arith.truncf %1 : vector<16x128xf32> to vector<16x128xbf16>
    %cst_25 = arith.constant dense<0.000000e+00> : vector<16x128xf32>
    %38 = tpu.matmul %36, %21, %cst_25 {dimension_numbers = #tpu.dot_dimension_numbers<[1], [0], [0], [1], [0, 0, 1, 1], [], []>} : vector<16x128xbf16>, vector<128x128xbf16>, vector<16x128xf32> -> vector<16x128xf32>
    %39 = vector.shape_cast %23 : vector<128xf32> to vector<1x128xf32>
    %40 = vector.broadcast %39 : vector<1x128xf32> to vector<16x128xf32>
    %41 = arith.addf %38, %40 : vector<16x128xf32>
    %cst_26 = arith.constant 2.500000e-01 : f32
    %42 = vector.broadcast %cst_26 : f32 to vector<16x128xf32>
    %43 = arith.mulf %41, %42 : vector<16x128xf32>
    %cst_27 = arith.constant dense<0.000000e+00> : vector<16x128xf32>
    %44 = tpu.matmul %37, %25, %cst_27 {dimension_numbers = #tpu.dot_dimension_numbers<[1], [0], [0], [1], [0, 0, 1, 1], [], []>} : vector<16x128xbf16>, vector<128x128xbf16>, vector<16x128xf32> -> vector<16x128xf32>
    %45 = vector.shape_cast %27 : vector<128xf32> to vector<1x128xf32>
    %46 = vector.broadcast %45 : vector<1x128xf32> to vector<16x128xf32>
    %47 = arith.addf %44, %46 : vector<16x128xf32>
    %cst_28 = arith.constant dense<0.000000e+00> : vector<16x128xf32>
    %48 = tpu.matmul %37, %29, %cst_28 {dimension_numbers = #tpu.dot_dimension_numbers<[1], [0], [0], [1], [0, 0, 1, 1], [], []>} : vector<16x128xbf16>, vector<128x128xbf16>, vector<16x128xf32> -> vector<16x128xf32>
    %49 = vector.shape_cast %31 : vector<128xf32> to vector<1x128xf32>
    %50 = vector.broadcast %49 : vector<1x128xf32> to vector<16x128xf32>
    %51 = arith.addf %48, %50 : vector<16x128xf32>
    %52 = arith.truncf %43 : vector<16x128xf32> to vector<16x128xbf16>
    %53 = arith.truncf %47 : vector<16x128xf32> to vector<16x128xbf16>
    %54 = arith.truncf %51 : vector<16x128xf32> to vector<16x128xbf16>
    %cst_29 = arith.constant 0.000000e+00 : f32
    %55 = vector.broadcast %cst_29 : f32 to vector<16x128xf32>
    %56 = vector.extract_strided_slice %52 {offsets = [0, 0], sizes = [16, 16], strides = [1, 1]} : vector<16x128xbf16> to vector<16x16xbf16>
    %57 = vector.shape_cast %56 : vector<16x16xbf16> to vector<2x8x16xbf16>
    %58 = vector.extract_strided_slice %53 {offsets = [0, 0], sizes = [16, 16], strides = [1, 1]} : vector<16x128xbf16> to vector<16x16xbf16>
    %59 = vector.shape_cast %58 : vector<16x16xbf16> to vector<2x8x16xbf16>
    %60 = vector.extract_strided_slice %54 {offsets = [0, 0], sizes = [16, 16], strides = [1, 1]} : vector<16x128xbf16> to vector<16x16xbf16>
    %61 = vector.shape_cast %60 : vector<16x16xbf16> to vector<2x8x16xbf16>
    "tpu.trace_start"() <{level = 10 : i32, message = "bqd,bkd->bqk"}> : () -> ()
    %cst_30 = arith.constant dense<0.000000e+00> : vector<2x8x8xf32>
    %62 = tpu.matmul %57, %59, %cst_30 {dimension_numbers = #tpu.dot_dimension_numbers<[2], [2], [1], [1], [0, 0, 0, 1, 1, 1], [0], [0]>} : vector<2x8x16xbf16>, vector<2x8x16xbf16>, vector<2x8x8xf32> -> vector<2x8x8xf32>
    "tpu.trace_stop"() : () -> ()
    %63 = arith.addf %62, %8 : vector<2x8x8xf32>
    %cst_31 = arith.constant dense<0xFF800000> : vector<2x8xf32>
    %64 = vector.multi_reduction <maximumf>, %63, %cst_31 [2] : vector<2x8x8xf32> to vector<2x8xf32>
    %65 = vector.shape_cast %64 : vector<2x8xf32> to vector<2x8x1xf32>
    %66 = vector.broadcast %65 : vector<2x8x1xf32> to vector<2x8x8xf32>
    %67 = arith.subf %63, %66 : vector<2x8x8xf32>
    %68 = math.exp %67 : vector<2x8x8xf32>
    %cst_32 = arith.constant dense<0.000000e+00> : vector<2x8xf32>
    %69 = vector.multi_reduction <add>, %68, %cst_32 [2] : vector<2x8x8xf32> to vector<2x8xf32>
    %70 = vector.shape_cast %69 : vector<2x8xf32> to vector<2x8x1xf32>
    %71 = tpu.reciprocal %70 {approx = true} : vector<2x8x1xf32> -> vector<2x8x1xf32>
    %72 = vector.broadcast %71 : vector<2x8x1xf32> to vector<2x8x8xf32>
    %73 = arith.mulf %68, %72 : vector<2x8x8xf32>
    %74 = arith.truncf %73 : vector<2x8x8xf32> to vector<2x8x8xbf16>
    "tpu.trace_start"() <{level = 10 : i32, message = "bqk,bkd->bqd"}> : () -> ()
    %cst_33 = arith.constant dense<0.000000e+00> : vector<2x8x16xf32>
    %75 = tpu.matmul %74, %61, %cst_33 {dimension_numbers = #tpu.dot_dimension_numbers<[2], [1], [1], [2], [0, 0, 0, 1, 1, 2], [0], [0]>} : vector<2x8x8xbf16>, vector<2x8x16xbf16>, vector<2x8x16xf32> -> vector<2x8x16xf32>
    "tpu.trace_stop"() : () -> ()
    %76 = vector.shape_cast %75 : vector<2x8x16xf32> to vector<16x16xf32>
    %77 = arith.truncf %76 : vector<16x16xf32> to vector<16x16xbf16>
    %78 = vector.extract_strided_slice %33 {offsets = [0, 0], sizes = [16, 128], strides = [1, 1]} : vector<128x128xbf16> to vector<16x128xbf16>
    %cst_34 = arith.constant dense<0.000000e+00> : vector<16x128xf32>
    %79 = tpu.matmul %77, %78, %cst_34 {dimension_numbers = #tpu.dot_dimension_numbers<[1], [0], [0], [1], [0, 0, 1, 1], [], []>} : vector<16x16xbf16>, vector<16x128xbf16>, vector<16x128xf32> -> vector<16x128xf32>
    %80 = arith.addf %55, %79 : vector<16x128xf32>
    %81 = vector.extract_strided_slice %52 {offsets = [0, 16], sizes = [16, 16], strides = [1, 1]} : vector<16x128xbf16> to vector<16x16xbf16>
    %82 = vector.shape_cast %81 : vector<16x16xbf16> to vector<2x8x16xbf16>
    %83 = vector.extract_strided_slice %53 {offsets = [0, 16], sizes = [16, 16], strides = [1, 1]} : vector<16x128xbf16> to vector<16x16xbf16>
    %84 = vector.shape_cast %83 : vector<16x16xbf16> to vector<2x8x16xbf16>
    %85 = vector.extract_strided_slice %54 {offsets = [0, 16], sizes = [16, 16], strides = [1, 1]} : vector<16x128xbf16> to vector<16x16xbf16>
    %86 = vector.shape_cast %85 : vector<16x16xbf16> to vector<2x8x16xbf16>
    "tpu.trace_start"() <{level = 10 : i32, message = "bqd,bkd->bqk"}> : () -> ()
    %cst_35 = arith.constant dense<0.000000e+00> : vector<2x8x8xf32>
    %87 = tpu.matmul %82, %84, %cst_35 {dimension_numbers = #tpu.dot_dimension_numbers<[2], [2], [1], [1], [0, 0, 0, 1, 1, 1], [0], [0]>} : vector<2x8x16xbf16>, vector<2x8x16xbf16>, vector<2x8x8xf32> -> vector<2x8x8xf32>
    "tpu.trace_stop"() : () -> ()
    %88 = arith.addf %87, %8 : vector<2x8x8xf32>
    %cst_36 = arith.constant dense<0xFF800000> : vector<2x8xf32>
    %89 = vector.multi_reduction <maximumf>, %88, %cst_36 [2] : vector<2x8x8xf32> to vector<2x8xf32>
    %90 = vector.shape_cast %89 : vector<2x8xf32> to vector<2x8x1xf32>
    %91 = vector.broadcast %90 : vector<2x8x1xf32> to vector<2x8x8xf32>
    %92 = arith.subf %88, %91 : vector<2x8x8xf32>
    %93 = math.exp %92 : vector<2x8x8xf32>
    %cst_37 = arith.constant dense<0.000000e+00> : vector<2x8xf32>
    %94 = vector.multi_reduction <add>, %93, %cst_37 [2] : vector<2x8x8xf32> to vector<2x8xf32>
    %95 = vector.shape_cast %94 : vector<2x8xf32> to vector<2x8x1xf32>
    %96 = tpu.reciprocal %95 {approx = true} : vector<2x8x1xf32> -> vector<2x8x1xf32>
    %97 = vector.broadcast %96 : vector<2x8x1xf32> to vector<2x8x8xf32>
    %98 = arith.mulf %93, %97 : vector<2x8x8xf32>
    %99 = arith.truncf %98 : vector<2x8x8xf32> to vector<2x8x8xbf16>
    "tpu.trace_start"() <{level = 10 : i32, message = "bqk,bkd->bqd"}> : () -> ()
    %cst_38 = arith.constant dense<0.000000e+00> : vector<2x8x16xf32>
    %100 = tpu.matmul %99, %86, %cst_38 {dimension_numbers = #tpu.dot_dimension_numbers<[2], [1], [1], [2], [0, 0, 0, 1, 1, 2], [0], [0]>} : vector<2x8x8xbf16>, vector<2x8x16xbf16>, vector<2x8x16xf32> -> vector<2x8x16xf32>
    "tpu.trace_stop"() : () -> ()
    %101 = vector.shape_cast %100 : vector<2x8x16xf32> to vector<16x16xf32>
    %102 = arith.truncf %101 : vector<16x16xf32> to vector<16x16xbf16>
    %103 = vector.extract_strided_slice %33 {offsets = [16, 0], sizes = [16, 128], strides = [1, 1]} : vector<128x128xbf16> to vector<16x128xbf16>
    %cst_39 = arith.constant dense<0.000000e+00> : vector<16x128xf32>
    %104 = tpu.matmul %102, %103, %cst_39 {dimension_numbers = #tpu.dot_dimension_numbers<[1], [0], [0], [1], [0, 0, 1, 1], [], []>} : vector<16x16xbf16>, vector<16x128xbf16>, vector<16x128xf32> -> vector<16x128xf32>
    %105 = arith.addf %80, %104 : vector<16x128xf32>
    %106 = vector.extract_strided_slice %52 {offsets = [0, 32], sizes = [16, 16], strides = [1, 1]} : vector<16x128xbf16> to vector<16x16xbf16>
    %107 = vector.shape_cast %106 : vector<16x16xbf16> to vector<2x8x16xbf16>
    %108 = vector.extract_strided_slice %53 {offsets = [0, 32], sizes = [16, 16], strides = [1, 1]} : vector<16x128xbf16> to vector<16x16xbf16>
    %109 = vector.shape_cast %108 : vector<16x16xbf16> to vector<2x8x16xbf16>
    %110 = vector.extract_strided_slice %54 {offsets = [0, 32], sizes = [16, 16], strides = [1, 1]} : vector<16x128xbf16> to vector<16x16xbf16>
    %111 = vector.shape_cast %110 : vector<16x16xbf16> to vector<2x8x16xbf16>
    "tpu.trace_start"() <{level = 10 : i32, message = "bqd,bkd->bqk"}> : () -> ()
    %cst_40 = arith.constant dense<0.000000e+00> : vector<2x8x8xf32>
    %112 = tpu.matmul %107, %109, %cst_40 {dimension_numbers = #tpu.dot_dimension_numbers<[2], [2], [1], [1], [0, 0, 0, 1, 1, 1], [0], [0]>} : vector<2x8x16xbf16>, vector<2x8x16xbf16>, vector<2x8x8xf32> -> vector<2x8x8xf32>
    "tpu.trace_stop"() : () -> ()
    %113 = arith.addf %112, %8 : vector<2x8x8xf32>
    %cst_41 = arith.constant dense<0xFF800000> : vector<2x8xf32>
    %114 = vector.multi_reduction <maximumf>, %113, %cst_41 [2] : vector<2x8x8xf32> to vector<2x8xf32>
    %115 = vector.shape_cast %114 : vector<2x8xf32> to vector<2x8x1xf32>
    %116 = vector.broadcast %115 : vector<2x8x1xf32> to vector<2x8x8xf32>
    %117 = arith.subf %113, %116 : vector<2x8x8xf32>
    %118 = math.exp %117 : vector<2x8x8xf32>
    %cst_42 = arith.constant dense<0.000000e+00> : vector<2x8xf32>
    %119 = vector.multi_reduction <add>, %118, %cst_42 [2] : vector<2x8x8xf32> to vector<2x8xf32>
    %120 = vector.shape_cast %119 : vector<2x8xf32> to vector<2x8x1xf32>
    %121 = tpu.reciprocal %120 {approx = true} : vector<2x8x1xf32> -> vector<2x8x1xf32>
    %122 = vector.broadcast %121 : vector<2x8x1xf32> to vector<2x8x8xf32>
    %123 = arith.mulf %118, %122 : vector<2x8x8xf32>
    %124 = arith.truncf %123 : vector<2x8x8xf32> to vector<2x8x8xbf16>
    "tpu.trace_start"() <{level = 10 : i32, message = "bqk,bkd->bqd"}> : () -> ()
    %cst_43 = arith.constant dense<0.000000e+00> : vector<2x8x16xf32>
    %125 = tpu.matmul %124, %111, %cst_43 {dimension_numbers = #tpu.dot_dimension_numbers<[2], [1], [1], [2], [0, 0, 0, 1, 1, 2], [0], [0]>} : vector<2x8x8xbf16>, vector<2x8x16xbf16>, vector<2x8x16xf32> -> vector<2x8x16xf32>
    "tpu.trace_stop"() : () -> ()
    %126 = vector.shape_cast %125 : vector<2x8x16xf32> to vector<16x16xf32>
    %127 = arith.truncf %126 : vector<16x16xf32> to vector<16x16xbf16>
    %128 = vector.extract_strided_slice %33 {offsets = [32, 0], sizes = [16, 128], strides = [1, 1]} : vector<128x128xbf16> to vector<16x128xbf16>
    %cst_44 = arith.constant dense<0.000000e+00> : vector<16x128xf32>
    %129 = tpu.matmul %127, %128, %cst_44 {dimension_numbers = #tpu.dot_dimension_numbers<[1], [0], [0], [1], [0, 0, 1, 1], [], []>} : vector<16x16xbf16>, vector<16x128xbf16>, vector<16x128xf32> -> vector<16x128xf32>
    %130 = arith.addf %105, %129 : vector<16x128xf32>
    %131 = vector.extract_strided_slice %52 {offsets = [0, 48], sizes = [16, 16], strides = [1, 1]} : vector<16x128xbf16> to vector<16x16xbf16>
    %132 = vector.shape_cast %131 : vector<16x16xbf16> to vector<2x8x16xbf16>
    %133 = vector.extract_strided_slice %53 {offsets = [0, 48], sizes = [16, 16], strides = [1, 1]} : vector<16x128xbf16> to vector<16x16xbf16>
    %134 = vector.shape_cast %133 : vector<16x16xbf16> to vector<2x8x16xbf16>
    %135 = vector.extract_strided_slice %54 {offsets = [0, 48], sizes = [16, 16], strides = [1, 1]} : vector<16x128xbf16> to vector<16x16xbf16>
    %136 = vector.shape_cast %135 : vector<16x16xbf16> to vector<2x8x16xbf16>
    "tpu.trace_start"() <{level = 10 : i32, message = "bqd,bkd->bqk"}> : () -> ()
    %cst_45 = arith.constant dense<0.000000e+00> : vector<2x8x8xf32>
    %137 = tpu.matmul %132, %134, %cst_45 {dimension_numbers = #tpu.dot_dimension_numbers<[2], [2], [1], [1], [0, 0, 0, 1, 1, 1], [0], [0]>} : vector<2x8x16xbf16>, vector<2x8x16xbf16>, vector<2x8x8xf32> -> vector<2x8x8xf32>
    "tpu.trace_stop"() : () -> ()
    %138 = arith.addf %137, %8 : vector<2x8x8xf32>
    %cst_46 = arith.constant dense<0xFF800000> : vector<2x8xf32>
    %139 = vector.multi_reduction <maximumf>, %138, %cst_46 [2] : vector<2x8x8xf32> to vector<2x8xf32>
    %140 = vector.shape_cast %139 : vector<2x8xf32> to vector<2x8x1xf32>
    %141 = vector.broadcast %140 : vector<2x8x1xf32> to vector<2x8x8xf32>
    %142 = arith.subf %138, %141 : vector<2x8x8xf32>
    %143 = math.exp %142 : vector<2x8x8xf32>
    %cst_47 = arith.constant dense<0.000000e+00> : vector<2x8xf32>
    %144 = vector.multi_reduction <add>, %143, %cst_47 [2] : vector<2x8x8xf32> to vector<2x8xf32>
    %145 = vector.shape_cast %144 : vector<2x8xf32> to vector<2x8x1xf32>
    %146 = tpu.reciprocal %145 {approx = true} : vector<2x8x1xf32> -> vector<2x8x1xf32>
    %147 = vector.broadcast %146 : vector<2x8x1xf32> to vector<2x8x8xf32>
    %148 = arith.mulf %143, %147 : vector<2x8x8xf32>
    %149 = arith.truncf %148 : vector<2x8x8xf32> to vector<2x8x8xbf16>
    "tpu.trace_start"() <{level = 10 : i32, message = "bqk,bkd->bqd"}> : () -> ()
    %cst_48 = arith.constant dense<0.000000e+00> : vector<2x8x16xf32>
    %150 = tpu.matmul %149, %136, %cst_48 {dimension_numbers = #tpu.dot_dimension_numbers<[2], [1], [1], [2], [0, 0, 0, 1, 1, 2], [0], [0]>} : vector<2x8x8xbf16>, vector<2x8x16xbf16>, vector<2x8x16xf32> -> vector<2x8x16xf32>
    "tpu.trace_stop"() : () -> ()
    %151 = vector.shape_cast %150 : vector<2x8x16xf32> to vector<16x16xf32>
    %152 = arith.truncf %151 : vector<16x16xf32> to vector<16x16xbf16>
    %153 = vector.extract_strided_slice %33 {offsets = [48, 0], sizes = [16, 128], strides = [1, 1]} : vector<128x128xbf16> to vector<16x128xbf16>
    %cst_49 = arith.constant dense<0.000000e+00> : vector<16x128xf32>
    %154 = tpu.matmul %152, %153, %cst_49 {dimension_numbers = #tpu.dot_dimension_numbers<[1], [0], [0], [1], [0, 0, 1, 1], [], []>} : vector<16x16xbf16>, vector<16x128xbf16>, vector<16x128xf32> -> vector<16x128xf32>
    %155 = arith.addf %130, %154 : vector<16x128xf32>
    %156 = vector.extract_strided_slice %52 {offsets = [0, 64], sizes = [16, 16], strides = [1, 1]} : vector<16x128xbf16> to vector<16x16xbf16>
    %157 = vector.shape_cast %156 : vector<16x16xbf16> to vector<2x8x16xbf16>
    %158 = vector.extract_strided_slice %53 {offsets = [0, 64], sizes = [16, 16], strides = [1, 1]} : vector<16x128xbf16> to vector<16x16xbf16>
    %159 = vector.shape_cast %158 : vector<16x16xbf16> to vector<2x8x16xbf16>
    %160 = vector.extract_strided_slice %54 {offsets = [0, 64], sizes = [16, 16], strides = [1, 1]} : vector<16x128xbf16> to vector<16x16xbf16>
    %161 = vector.shape_cast %160 : vector<16x16xbf16> to vector<2x8x16xbf16>
    "tpu.trace_start"() <{level = 10 : i32, message = "bqd,bkd->bqk"}> : () -> ()
    %cst_50 = arith.constant dense<0.000000e+00> : vector<2x8x8xf32>
    %162 = tpu.matmul %157, %159, %cst_50 {dimension_numbers = #tpu.dot_dimension_numbers<[2], [2], [1], [1], [0, 0, 0, 1, 1, 1], [0], [0]>} : vector<2x8x16xbf16>, vector<2x8x16xbf16>, vector<2x8x8xf32> -> vector<2x8x8xf32>
    "tpu.trace_stop"() : () -> ()
    %163 = arith.addf %162, %8 : vector<2x8x8xf32>
    %cst_51 = arith.constant dense<0xFF800000> : vector<2x8xf32>
    %164 = vector.multi_reduction <maximumf>, %163, %cst_51 [2] : vector<2x8x8xf32> to vector<2x8xf32>
    %165 = vector.shape_cast %164 : vector<2x8xf32> to vector<2x8x1xf32>
    %166 = vector.broadcast %165 : vector<2x8x1xf32> to vector<2x8x8xf32>
    %167 = arith.subf %163, %166 : vector<2x8x8xf32>
    %168 = math.exp %167 : vector<2x8x8xf32>
    %cst_52 = arith.constant dense<0.000000e+00> : vector<2x8xf32>
    %169 = vector.multi_reduction <add>, %168, %cst_52 [2] : vector<2x8x8xf32> to vector<2x8xf32>
    %170 = vector.shape_cast %169 : vector<2x8xf32> to vector<2x8x1xf32>
    %171 = tpu.reciprocal %170 {approx = true} : vector<2x8x1xf32> -> vector<2x8x1xf32>
    %172 = vector.broadcast %171 : vector<2x8x1xf32> to vector<2x8x8xf32>
    %173 = arith.mulf %168, %172 : vector<2x8x8xf32>
    %174 = arith.truncf %173 : vector<2x8x8xf32> to vector<2x8x8xbf16>
    "tpu.trace_start"() <{level = 10 : i32, message = "bqk,bkd->bqd"}> : () -> ()
    %cst_53 = arith.constant dense<0.000000e+00> : vector<2x8x16xf32>
    %175 = tpu.matmul %174, %161, %cst_53 {dimension_numbers = #tpu.dot_dimension_numbers<[2], [1], [1], [2], [0, 0, 0, 1, 1, 2], [0], [0]>} : vector<2x8x8xbf16>, vector<2x8x16xbf16>, vector<2x8x16xf32> -> vector<2x8x16xf32>
    "tpu.trace_stop"() : () -> ()
    %176 = vector.shape_cast %175 : vector<2x8x16xf32> to vector<16x16xf32>
    %177 = arith.truncf %176 : vector<16x16xf32> to vector<16x16xbf16>
    %178 = vector.extract_strided_slice %33 {offsets = [64, 0], sizes = [16, 128], strides = [1, 1]} : vector<128x128xbf16> to vector<16x128xbf16>
    %cst_54 = arith.constant dense<0.000000e+00> : vector<16x128xf32>
    %179 = tpu.matmul %177, %178, %cst_54 {dimension_numbers = #tpu.dot_dimension_numbers<[1], [0], [0], [1], [0, 0, 1, 1], [], []>} : vector<16x16xbf16>, vector<16x128xbf16>, vector<16x128xf32> -> vector<16x128xf32>
    %180 = arith.addf %155, %179 : vector<16x128xf32>
    %181 = vector.extract_strided_slice %52 {offsets = [0, 80], sizes = [16, 16], strides = [1, 1]} : vector<16x128xbf16> to vector<16x16xbf16>
    %182 = vector.shape_cast %181 : vector<16x16xbf16> to vector<2x8x16xbf16>
    %183 = vector.extract_strided_slice %53 {offsets = [0, 80], sizes = [16, 16], strides = [1, 1]} : vector<16x128xbf16> to vector<16x16xbf16>
    %184 = vector.shape_cast %183 : vector<16x16xbf16> to vector<2x8x16xbf16>
    %185 = vector.extract_strided_slice %54 {offsets = [0, 80], sizes = [16, 16], strides = [1, 1]} : vector<16x128xbf16> to vector<16x16xbf16>
    %186 = vector.shape_cast %185 : vector<16x16xbf16> to vector<2x8x16xbf16>
    "tpu.trace_start"() <{level = 10 : i32, message = "bqd,bkd->bqk"}> : () -> ()
    %cst_55 = arith.constant dense<0.000000e+00> : vector<2x8x8xf32>
    %187 = tpu.matmul %182, %184, %cst_55 {dimension_numbers = #tpu.dot_dimension_numbers<[2], [2], [1], [1], [0, 0, 0, 1, 1, 1], [0], [0]>} : vector<2x8x16xbf16>, vector<2x8x16xbf16>, vector<2x8x8xf32> -> vector<2x8x8xf32>
    "tpu.trace_stop"() : () -> ()
    %188 = arith.addf %187, %8 : vector<2x8x8xf32>
    %cst_56 = arith.constant dense<0xFF800000> : vector<2x8xf32>
    %189 = vector.multi_reduction <maximumf>, %188, %cst_56 [2] : vector<2x8x8xf32> to vector<2x8xf32>
    %190 = vector.shape_cast %189 : vector<2x8xf32> to vector<2x8x1xf32>
    %191 = vector.broadcast %190 : vector<2x8x1xf32> to vector<2x8x8xf32>
    %192 = arith.subf %188, %191 : vector<2x8x8xf32>
    %193 = math.exp %192 : vector<2x8x8xf32>
    %cst_57 = arith.constant dense<0.000000e+00> : vector<2x8xf32>
    %194 = vector.multi_reduction <add>, %193, %cst_57 [2] : vector<2x8x8xf32> to vector<2x8xf32>
    %195 = vector.shape_cast %194 : vector<2x8xf32> to vector<2x8x1xf32>
    %196 = tpu.reciprocal %195 {approx = true} : vector<2x8x1xf32> -> vector<2x8x1xf32>
    %197 = vector.broadcast %196 : vector<2x8x1xf32> to vector<2x8x8xf32>
    %198 = arith.mulf %193, %197 : vector<2x8x8xf32>
    %199 = arith.truncf %198 : vector<2x8x8xf32> to vector<2x8x8xbf16>
    "tpu.trace_start"() <{level = 10 : i32, message = "bqk,bkd->bqd"}> : () -> ()
    %cst_58 = arith.constant dense<0.000000e+00> : vector<2x8x16xf32>
    %200 = tpu.matmul %199, %186, %cst_58 {dimension_numbers = #tpu.dot_dimension_numbers<[2], [1], [1], [2], [0, 0, 0, 1, 1, 2], [0], [0]>} : vector<2x8x8xbf16>, vector<2x8x16xbf16>, vector<2x8x16xf32> -> vector<2x8x16xf32>
    "tpu.trace_stop"() : () -> ()
    %201 = vector.shape_cast %200 : vector<2x8x16xf32> to vector<16x16xf32>
    %202 = arith.truncf %201 : vector<16x16xf32> to vector<16x16xbf16>
    %203 = vector.extract_strided_slice %33 {offsets = [80, 0], sizes = [16, 128], strides = [1, 1]} : vector<128x128xbf16> to vector<16x128xbf16>
    %cst_59 = arith.constant dense<0.000000e+00> : vector<16x128xf32>
    %204 = tpu.matmul %202, %203, %cst_59 {dimension_numbers = #tpu.dot_dimension_numbers<[1], [0], [0], [1], [0, 0, 1, 1], [], []>} : vector<16x16xbf16>, vector<16x128xbf16>, vector<16x128xf32> -> vector<16x128xf32>
    %205 = arith.addf %180, %204 : vector<16x128xf32>
    %206 = vector.extract_strided_slice %52 {offsets = [0, 96], sizes = [16, 16], strides = [1, 1]} : vector<16x128xbf16> to vector<16x16xbf16>
    %207 = vector.shape_cast %206 : vector<16x16xbf16> to vector<2x8x16xbf16>
    %208 = vector.extract_strided_slice %53 {offsets = [0, 96], sizes = [16, 16], strides = [1, 1]} : vector<16x128xbf16> to vector<16x16xbf16>
    %209 = vector.shape_cast %208 : vector<16x16xbf16> to vector<2x8x16xbf16>
    %210 = vector.extract_strided_slice %54 {offsets = [0, 96], sizes = [16, 16], strides = [1, 1]} : vector<16x128xbf16> to vector<16x16xbf16>
    %211 = vector.shape_cast %210 : vector<16x16xbf16> to vector<2x8x16xbf16>
    "tpu.trace_start"() <{level = 10 : i32, message = "bqd,bkd->bqk"}> : () -> ()
    %cst_60 = arith.constant dense<0.000000e+00> : vector<2x8x8xf32>
    %212 = tpu.matmul %207, %209, %cst_60 {dimension_numbers = #tpu.dot_dimension_numbers<[2], [2], [1], [1], [0, 0, 0, 1, 1, 1], [0], [0]>} : vector<2x8x16xbf16>, vector<2x8x16xbf16>, vector<2x8x8xf32> -> vector<2x8x8xf32>
    "tpu.trace_stop"() : () -> ()
    %213 = arith.addf %212, %8 : vector<2x8x8xf32>
    %cst_61 = arith.constant dense<0xFF800000> : vector<2x8xf32>
    %214 = vector.multi_reduction <maximumf>, %213, %cst_61 [2] : vector<2x8x8xf32> to vector<2x8xf32>
    %215 = vector.shape_cast %214 : vector<2x8xf32> to vector<2x8x1xf32>
    %216 = vector.broadcast %215 : vector<2x8x1xf32> to vector<2x8x8xf32>
    %217 = arith.subf %213, %216 : vector<2x8x8xf32>
    %218 = math.exp %217 : vector<2x8x8xf32>
    %cst_62 = arith.constant dense<0.000000e+00> : vector<2x8xf32>
    %219 = vector.multi_reduction <add>, %218, %cst_62 [2] : vector<2x8x8xf32> to vector<2x8xf32>
    %220 = vector.shape_cast %219 : vector<2x8xf32> to vector<2x8x1xf32>
    %221 = tpu.reciprocal %220 {approx = true} : vector<2x8x1xf32> -> vector<2x8x1xf32>
    %222 = vector.broadcast %221 : vector<2x8x1xf32> to vector<2x8x8xf32>
    %223 = arith.mulf %218, %222 : vector<2x8x8xf32>
    %224 = arith.truncf %223 : vector<2x8x8xf32> to vector<2x8x8xbf16>
    "tpu.trace_start"() <{level = 10 : i32, message = "bqk,bkd->bqd"}> : () -> ()
    %cst_63 = arith.constant dense<0.000000e+00> : vector<2x8x16xf32>
    %225 = tpu.matmul %224, %211, %cst_63 {dimension_numbers = #tpu.dot_dimension_numbers<[2], [1], [1], [2], [0, 0, 0, 1, 1, 2], [0], [0]>} : vector<2x8x8xbf16>, vector<2x8x16xbf16>, vector<2x8x16xf32> -> vector<2x8x16xf32>
    "tpu.trace_stop"() : () -> ()
    %226 = vector.shape_cast %225 : vector<2x8x16xf32> to vector<16x16xf32>
    %227 = arith.truncf %226 : vector<16x16xf32> to vector<16x16xbf16>
    %228 = vector.extract_strided_slice %33 {offsets = [96, 0], sizes = [16, 128], strides = [1, 1]} : vector<128x128xbf16> to vector<16x128xbf16>
    %cst_64 = arith.constant dense<0.000000e+00> : vector<16x128xf32>
    %229 = tpu.matmul %227, %228, %cst_64 {dimension_numbers = #tpu.dot_dimension_numbers<[1], [0], [0], [1], [0, 0, 1, 1], [], []>} : vector<16x16xbf16>, vector<16x128xbf16>, vector<16x128xf32> -> vector<16x128xf32>
    %230 = arith.addf %205, %229 : vector<16x128xf32>
    %231 = vector.extract_strided_slice %52 {offsets = [0, 112], sizes = [16, 16], strides = [1, 1]} : vector<16x128xbf16> to vector<16x16xbf16>
    %232 = vector.shape_cast %231 : vector<16x16xbf16> to vector<2x8x16xbf16>
    %233 = vector.extract_strided_slice %53 {offsets = [0, 112], sizes = [16, 16], strides = [1, 1]} : vector<16x128xbf16> to vector<16x16xbf16>
    %234 = vector.shape_cast %233 : vector<16x16xbf16> to vector<2x8x16xbf16>
    %235 = vector.extract_strided_slice %54 {offsets = [0, 112], sizes = [16, 16], strides = [1, 1]} : vector<16x128xbf16> to vector<16x16xbf16>
    %236 = vector.shape_cast %235 : vector<16x16xbf16> to vector<2x8x16xbf16>
    "tpu.trace_start"() <{level = 10 : i32, message = "bqd,bkd->bqk"}> : () -> ()
    %cst_65 = arith.constant dense<0.000000e+00> : vector<2x8x8xf32>
    %237 = tpu.matmul %232, %234, %cst_65 {dimension_numbers = #tpu.dot_dimension_numbers<[2], [2], [1], [1], [0, 0, 0, 1, 1, 1], [0], [0]>} : vector<2x8x16xbf16>, vector<2x8x16xbf16>, vector<2x8x8xf32> -> vector<2x8x8xf32>
    "tpu.trace_stop"() : () -> ()
    %238 = arith.addf %237, %8 : vector<2x8x8xf32>
    %cst_66 = arith.constant dense<0xFF800000> : vector<2x8xf32>
    %239 = vector.multi_reduction <maximumf>, %238, %cst_66 [2] : vector<2x8x8xf32> to vector<2x8xf32>
    %240 = vector.shape_cast %239 : vector<2x8xf32> to vector<2x8x1xf32>
    %241 = vector.broadcast %240 : vector<2x8x1xf32> to vector<2x8x8xf32>
    %242 = arith.subf %238, %241 : vector<2x8x8xf32>
    %243 = math.exp %242 : vector<2x8x8xf32>
    %cst_67 = arith.constant dense<0.000000e+00> : vector<2x8xf32>
    %244 = vector.multi_reduction <add>, %243, %cst_67 [2] : vector<2x8x8xf32> to vector<2x8xf32>
    %245 = vector.shape_cast %244 : vector<2x8xf32> to vector<2x8x1xf32>
    %246 = tpu.reciprocal %245 {approx = true} : vector<2x8x1xf32> -> vector<2x8x1xf32>
    %247 = vector.broadcast %246 : vector<2x8x1xf32> to vector<2x8x8xf32>
    %248 = arith.mulf %243, %247 : vector<2x8x8xf32>
    %249 = arith.truncf %248 : vector<2x8x8xf32> to vector<2x8x8xbf16>
    "tpu.trace_start"() <{level = 10 : i32, message = "bqk,bkd->bqd"}> : () -> ()
    %cst_68 = arith.constant dense<0.000000e+00> : vector<2x8x16xf32>
    %250 = tpu.matmul %249, %236, %cst_68 {dimension_numbers = #tpu.dot_dimension_numbers<[2], [1], [1], [2], [0, 0, 0, 1, 1, 2], [0], [0]>} : vector<2x8x8xbf16>, vector<2x8x16xbf16>, vector<2x8x16xf32> -> vector<2x8x16xf32>
    "tpu.trace_stop"() : () -> ()
    %251 = vector.shape_cast %250 : vector<2x8x16xf32> to vector<16x16xf32>
    %252 = arith.truncf %251 : vector<16x16xf32> to vector<16x16xbf16>
    %253 = vector.extract_strided_slice %33 {offsets = [112, 0], sizes = [16, 128], strides = [1, 1]} : vector<128x128xbf16> to vector<16x128xbf16>
    %cst_69 = arith.constant dense<0.000000e+00> : vector<16x128xf32>
    %254 = tpu.matmul %252, %253, %cst_69 {dimension_numbers = #tpu.dot_dimension_numbers<[1], [0], [0], [1], [0, 0, 1, 1], [], []>} : vector<16x16xbf16>, vector<16x128xbf16>, vector<16x128xf32> -> vector<16x128xf32>
    %255 = arith.addf %230, %254 : vector<16x128xf32>
    %256 = vector.shape_cast %35 : vector<128xf32> to vector<1x128xf32>
    %257 = vector.broadcast %256 : vector<1x128xf32> to vector<16x128xf32>
    %258 = arith.addf %255, %257 : vector<16x128xf32>
    %259 = arith.addf %1, %258 : vector<16x128xf32>
    %cst_70 = arith.constant dense<0.000000e+00> : vector<16xf32>
    %260 = vector.multi_reduction <add>, %259, %cst_70 [1] : vector<16x128xf32> to vector<16xf32>
    %261 = vector.shape_cast %260 : vector<16xf32> to vector<16x1xf32>
    %cst_71 = arith.constant 1.280000e+02 : f32
    %262 = vector.broadcast %cst_71 : f32 to vector<16x1xf32>
    %263 = arith.divf %261, %262 : vector<16x1xf32>
    %264 = vector.broadcast %263 : vector<16x1xf32> to vector<16x128xf32>
    %265 = arith.subf %259, %264 : vector<16x128xf32>
    %266 = arith.mulf %265, %265 : vector<16x128xf32>
    %cst_72 = arith.constant dense<0.000000e+00> : vector<16xf32>
    %267 = vector.multi_reduction <add>, %266, %cst_72 [1] : vector<16x128xf32> to vector<16xf32>
    %268 = vector.shape_cast %267 : vector<16xf32> to vector<16x1xf32>
    %cst_73 = arith.constant 1.280000e+02 : f32
    %269 = vector.broadcast %cst_73 : f32 to vector<16x1xf32>
    %270 = arith.divf %268, %269 : vector<16x1xf32>
    %271 = vector.broadcast %263 : vector<16x1xf32> to vector<16x128xf32>
    %272 = arith.subf %259, %271 : vector<16x128xf32>
    %cst_74 = arith.constant 9.99999974E-6 : f32
    %273 = vector.broadcast %cst_74 : f32 to vector<16x1xf32>
    %274 = arith.addf %270, %273 : vector<16x1xf32>
    %275 = math.rsqrt %274 : vector<16x1xf32>
    %276 = vector.broadcast %275 : vector<16x1xf32> to vector<16x128xf32>
    %277 = arith.mulf %272, %276 : vector<16x128xf32>
    %278 = vector.shape_cast %17 : vector<128xf32> to vector<1x128xf32>
    %279 = vector.broadcast %278 : vector<1x128xf32> to vector<16x128xf32>
    %280 = arith.mulf %277, %279 : vector<16x128xf32>
    %281 = vector.shape_cast %19 : vector<128xf32> to vector<1x128xf32>
    %282 = vector.broadcast %281 : vector<1x128xf32> to vector<16x128xf32>
    %283 = arith.addf %280, %282 : vector<16x128xf32>
    %284 = vector.extract_strided_slice %14 {offsets = [1, 0, 0, 0], sizes = [1, 1, 128, 128], strides = [1, 1, 1, 1]} : vector<2x4x128x128xbf16> to vector<1x1x128x128xbf16>
    %285 = vector.shape_cast %284 : vector<1x1x128x128xbf16> to vector<128x128xbf16>
    %286 = vector.extract_strided_slice %15 {offsets = [1, 0, 0], sizes = [1, 1, 128], strides = [1, 1, 1]} : vector<2x4x128xf32> to vector<1x1x128xf32>
    %287 = vector.shape_cast %286 : vector<1x1x128xf32> to vector<128xf32>
    %288 = vector.extract_strided_slice %14 {offsets = [1, 1, 0, 0], sizes = [1, 1, 128, 128], strides = [1, 1, 1, 1]} : vector<2x4x128x128xbf16> to vector<1x1x128x128xbf16>
    %289 = vector.shape_cast %288 : vector<1x1x128x128xbf16> to vector<128x128xbf16>
    %290 = vector.extract_strided_slice %15 {offsets = [1, 1, 0], sizes = [1, 1, 128], strides = [1, 1, 1]} : vector<2x4x128xf32> to vector<1x1x128xf32>
    %291 = vector.shape_cast %290 : vector<1x1x128xf32> to vector<128xf32>
    %292 = vector.extract_strided_slice %14 {offsets = [1, 2, 0, 0], sizes = [1, 1, 128, 128], strides = [1, 1, 1, 1]} : vector<2x4x128x128xbf16> to vector<1x1x128x128xbf16>
    %293 = vector.shape_cast %292 : vector<1x1x128x128xbf16> to vector<128x128xbf16>
    %294 = vector.extract_strided_slice %15 {offsets = [1, 2, 0], sizes = [1, 1, 128], strides = [1, 1, 1]} : vector<2x4x128xf32> to vector<1x1x128xf32>
    %295 = vector.shape_cast %294 : vector<1x1x128xf32> to vector<128xf32>
    %296 = vector.extract_strided_slice %14 {offsets = [1, 3, 0, 0], sizes = [1, 1, 128, 128], strides = [1, 1, 1, 1]} : vector<2x4x128x128xbf16> to vector<1x1x128x128xbf16>
    %297 = vector.shape_cast %296 : vector<1x1x128x128xbf16> to vector<128x128xbf16>
    %298 = vector.extract_strided_slice %15 {offsets = [1, 3, 0], sizes = [1, 1, 128], strides = [1, 1, 1]} : vector<2x4x128xf32> to vector<1x1x128xf32>
    %299 = vector.shape_cast %298 : vector<1x1x128xf32> to vector<128xf32>
    %300 = arith.truncf %283 : vector<16x128xf32> to vector<16x128xbf16>
    %301 = arith.truncf %3 : vector<16x128xf32> to vector<16x128xbf16>
    %cst_75 = arith.constant dense<0.000000e+00> : vector<16x128xf32>
    %302 = tpu.matmul %300, %285, %cst_75 {dimension_numbers = #tpu.dot_dimension_numbers<[1], [0], [0], [1], [0, 0, 1, 1], [], []>} : vector<16x128xbf16>, vector<128x128xbf16>, vector<16x128xf32> -> vector<16x128xf32>
    %303 = vector.shape_cast %287 : vector<128xf32> to vector<1x128xf32>
    %304 = vector.broadcast %303 : vector<1x128xf32> to vector<16x128xf32>
    %305 = arith.addf %302, %304 : vector<16x128xf32>
    %cst_76 = arith.constant 2.500000e-01 : f32
    %306 = vector.broadcast %cst_76 : f32 to vector<16x128xf32>
    %307 = arith.mulf %305, %306 : vector<16x128xf32>
    %cst_77 = arith.constant dense<0.000000e+00> : vector<16x128xf32>
    %308 = tpu.matmul %301, %289, %cst_77 {dimension_numbers = #tpu.dot_dimension_numbers<[1], [0], [0], [1], [0, 0, 1, 1], [], []>} : vector<16x128xbf16>, vector<128x128xbf16>, vector<16x128xf32> -> vector<16x128xf32>
    %309 = vector.shape_cast %291 : vector<128xf32> to vector<1x128xf32>
    %310 = vector.broadcast %309 : vector<1x128xf32> to vector<16x128xf32>
    %311 = arith.addf %308, %310 : vector<16x128xf32>
    %cst_78 = arith.constant dense<0.000000e+00> : vector<16x128xf32>
    %312 = tpu.matmul %301, %293, %cst_78 {dimension_numbers = #tpu.dot_dimension_numbers<[1], [0], [0], [1], [0, 0, 1, 1], [], []>} : vector<16x128xbf16>, vector<128x128xbf16>, vector<16x128xf32> -> vector<16x128xf32>
    %313 = vector.shape_cast %295 : vector<128xf32> to vector<1x128xf32>
    %314 = vector.broadcast %313 : vector<1x128xf32> to vector<16x128xf32>
    %315 = arith.addf %312, %314 : vector<16x128xf32>
    %316 = arith.truncf %307 : vector<16x128xf32> to vector<16x128xbf16>
    %317 = arith.truncf %311 : vector<16x128xf32> to vector<16x128xbf16>
    %318 = arith.truncf %315 : vector<16x128xf32> to vector<16x128xbf16>
    %cst_79 = arith.constant 0.000000e+00 : f32
    %319 = vector.broadcast %cst_79 : f32 to vector<16x128xf32>
    %320 = vector.extract_strided_slice %316 {offsets = [0, 0], sizes = [16, 16], strides = [1, 1]} : vector<16x128xbf16> to vector<16x16xbf16>
    %321 = vector.shape_cast %320 : vector<16x16xbf16> to vector<2x8x16xbf16>
    %322 = vector.extract_strided_slice %317 {offsets = [0, 0], sizes = [16, 16], strides = [1, 1]} : vector<16x128xbf16> to vector<16x16xbf16>
    %323 = vector.shape_cast %322 : vector<16x16xbf16> to vector<2x8x16xbf16>
    %324 = vector.extract_strided_slice %318 {offsets = [0, 0], sizes = [16, 16], strides = [1, 1]} : vector<16x128xbf16> to vector<16x16xbf16>
    %325 = vector.shape_cast %324 : vector<16x16xbf16> to vector<2x8x16xbf16>
    "tpu.trace_start"() <{level = 10 : i32, message = "bqd,bkd->bqk"}> : () -> ()
    %cst_80 = arith.constant dense<0.000000e+00> : vector<2x8x8xf32>
    %326 = tpu.matmul %321, %323, %cst_80 {dimension_numbers = #tpu.dot_dimension_numbers<[2], [2], [1], [1], [0, 0, 0, 1, 1, 1], [0], [0]>} : vector<2x8x16xbf16>, vector<2x8x16xbf16>, vector<2x8x8xf32> -> vector<2x8x8xf32>
    "tpu.trace_stop"() : () -> ()
    %327 = vector.broadcast %13 : vector<2x1x8xf32> to vector<2x8x8xf32>
    %328 = arith.addf %326, %327 : vector<2x8x8xf32>
    %cst_81 = arith.constant dense<0xFF800000> : vector<2x8xf32>
    %329 = vector.multi_reduction <maximumf>, %328, %cst_81 [2] : vector<2x8x8xf32> to vector<2x8xf32>
    %330 = vector.shape_cast %329 : vector<2x8xf32> to vector<2x8x1xf32>
    %331 = vector.broadcast %330 : vector<2x8x1xf32> to vector<2x8x8xf32>
    %332 = arith.subf %328, %331 : vector<2x8x8xf32>
    %333 = math.exp %332 : vector<2x8x8xf32>
    %cst_82 = arith.constant dense<0.000000e+00> : vector<2x8xf32>
    %334 = vector.multi_reduction <add>, %333, %cst_82 [2] : vector<2x8x8xf32> to vector<2x8xf32>
    %335 = vector.shape_cast %334 : vector<2x8xf32> to vector<2x8x1xf32>
    %336 = tpu.reciprocal %335 {approx = true} : vector<2x8x1xf32> -> vector<2x8x1xf32>
    %337 = vector.broadcast %336 : vector<2x8x1xf32> to vector<2x8x8xf32>
    %338 = arith.mulf %333, %337 : vector<2x8x8xf32>
    %339 = arith.truncf %338 : vector<2x8x8xf32> to vector<2x8x8xbf16>
    "tpu.trace_start"() <{level = 10 : i32, message = "bqk,bkd->bqd"}> : () -> ()
    %cst_83 = arith.constant dense<0.000000e+00> : vector<2x8x16xf32>
    %340 = tpu.matmul %339, %325, %cst_83 {dimension_numbers = #tpu.dot_dimension_numbers<[2], [1], [1], [2], [0, 0, 0, 1, 1, 2], [0], [0]>} : vector<2x8x8xbf16>, vector<2x8x16xbf16>, vector<2x8x16xf32> -> vector<2x8x16xf32>
    "tpu.trace_stop"() : () -> ()
    %341 = vector.shape_cast %340 : vector<2x8x16xf32> to vector<16x16xf32>
    %342 = arith.truncf %341 : vector<16x16xf32> to vector<16x16xbf16>
    %343 = vector.extract_strided_slice %297 {offsets = [0, 0], sizes = [16, 128], strides = [1, 1]} : vector<128x128xbf16> to vector<16x128xbf16>
    %cst_84 = arith.constant dense<0.000000e+00> : vector<16x128xf32>
    %344 = tpu.matmul %342, %343, %cst_84 {dimension_numbers = #tpu.dot_dimension_numbers<[1], [0], [0], [1], [0, 0, 1, 1], [], []>} : vector<16x16xbf16>, vector<16x128xbf16>, vector<16x128xf32> -> vector<16x128xf32>
    %345 = arith.addf %319, %344 : vector<16x128xf32>
    %346 = vector.extract_strided_slice %316 {offsets = [0, 16], sizes = [16, 16], strides = [1, 1]} : vector<16x128xbf16> to vector<16x16xbf16>
    %347 = vector.shape_cast %346 : vector<16x16xbf16> to vector<2x8x16xbf16>
    %348 = vector.extract_strided_slice %317 {offsets = [0, 16], sizes = [16, 16], strides = [1, 1]} : vector<16x128xbf16> to vector<16x16xbf16>
    %349 = vector.shape_cast %348 : vector<16x16xbf16> to vector<2x8x16xbf16>
    %350 = vector.extract_strided_slice %318 {offsets = [0, 16], sizes = [16, 16], strides = [1, 1]} : vector<16x128xbf16> to vector<16x16xbf16>
    %351 = vector.shape_cast %350 : vector<16x16xbf16> to vector<2x8x16xbf16>
    "tpu.trace_start"() <{level = 10 : i32, message = "bqd,bkd->bqk"}> : () -> ()
    %cst_85 = arith.constant dense<0.000000e+00> : vector<2x8x8xf32>
    %352 = tpu.matmul %347, %349, %cst_85 {dimension_numbers = #tpu.dot_dimension_numbers<[2], [2], [1], [1], [0, 0, 0, 1, 1, 1], [0], [0]>} : vector<2x8x16xbf16>, vector<2x8x16xbf16>, vector<2x8x8xf32> -> vector<2x8x8xf32>
    "tpu.trace_stop"() : () -> ()
    %353 = vector.broadcast %13 : vector<2x1x8xf32> to vector<2x8x8xf32>
    %354 = arith.addf %352, %353 : vector<2x8x8xf32>
    %cst_86 = arith.constant dense<0xFF800000> : vector<2x8xf32>
    %355 = vector.multi_reduction <maximumf>, %354, %cst_86 [2] : vector<2x8x8xf32> to vector<2x8xf32>
    %356 = vector.shape_cast %355 : vector<2x8xf32> to vector<2x8x1xf32>
    %357 = vector.broadcast %356 : vector<2x8x1xf32> to vector<2x8x8xf32>
    %358 = arith.subf %354, %357 : vector<2x8x8xf32>
    %359 = math.exp %358 : vector<2x8x8xf32>
    %cst_87 = arith.constant dense<0.000000e+00> : vector<2x8xf32>
    %360 = vector.multi_reduction <add>, %359, %cst_87 [2] : vector<2x8x8xf32> to vector<2x8xf32>
    %361 = vector.shape_cast %360 : vector<2x8xf32> to vector<2x8x1xf32>
    %362 = tpu.reciprocal %361 {approx = true} : vector<2x8x1xf32> -> vector<2x8x1xf32>
    %363 = vector.broadcast %362 : vector<2x8x1xf32> to vector<2x8x8xf32>
    %364 = arith.mulf %359, %363 : vector<2x8x8xf32>
    %365 = arith.truncf %364 : vector<2x8x8xf32> to vector<2x8x8xbf16>
    "tpu.trace_start"() <{level = 10 : i32, message = "bqk,bkd->bqd"}> : () -> ()
    %cst_88 = arith.constant dense<0.000000e+00> : vector<2x8x16xf32>
    %366 = tpu.matmul %365, %351, %cst_88 {dimension_numbers = #tpu.dot_dimension_numbers<[2], [1], [1], [2], [0, 0, 0, 1, 1, 2], [0], [0]>} : vector<2x8x8xbf16>, vector<2x8x16xbf16>, vector<2x8x16xf32> -> vector<2x8x16xf32>
    "tpu.trace_stop"() : () -> ()
    %367 = vector.shape_cast %366 : vector<2x8x16xf32> to vector<16x16xf32>
    %368 = arith.truncf %367 : vector<16x16xf32> to vector<16x16xbf16>
    %369 = vector.extract_strided_slice %297 {offsets = [16, 0], sizes = [16, 128], strides = [1, 1]} : vector<128x128xbf16> to vector<16x128xbf16>
    %cst_89 = arith.constant dense<0.000000e+00> : vector<16x128xf32>
    %370 = tpu.matmul %368, %369, %cst_89 {dimension_numbers = #tpu.dot_dimension_numbers<[1], [0], [0], [1], [0, 0, 1, 1], [], []>} : vector<16x16xbf16>, vector<16x128xbf16>, vector<16x128xf32> -> vector<16x128xf32>
    %371 = arith.addf %345, %370 : vector<16x128xf32>
    %372 = vector.extract_strided_slice %316 {offsets = [0, 32], sizes = [16, 16], strides = [1, 1]} : vector<16x128xbf16> to vector<16x16xbf16>
    %373 = vector.shape_cast %372 : vector<16x16xbf16> to vector<2x8x16xbf16>
    %374 = vector.extract_strided_slice %317 {offsets = [0, 32], sizes = [16, 16], strides = [1, 1]} : vector<16x128xbf16> to vector<16x16xbf16>
    %375 = vector.shape_cast %374 : vector<16x16xbf16> to vector<2x8x16xbf16>
    %376 = vector.extract_strided_slice %318 {offsets = [0, 32], sizes = [16, 16], strides = [1, 1]} : vector<16x128xbf16> to vector<16x16xbf16>
    %377 = vector.shape_cast %376 : vector<16x16xbf16> to vector<2x8x16xbf16>
    "tpu.trace_start"() <{level = 10 : i32, message = "bqd,bkd->bqk"}> : () -> ()
    %cst_90 = arith.constant dense<0.000000e+00> : vector<2x8x8xf32>
    %378 = tpu.matmul %373, %375, %cst_90 {dimension_numbers = #tpu.dot_dimension_numbers<[2], [2], [1], [1], [0, 0, 0, 1, 1, 1], [0], [0]>} : vector<2x8x16xbf16>, vector<2x8x16xbf16>, vector<2x8x8xf32> -> vector<2x8x8xf32>
    "tpu.trace_stop"() : () -> ()
    %379 = vector.broadcast %13 : vector<2x1x8xf32> to vector<2x8x8xf32>
    %380 = arith.addf %378, %379 : vector<2x8x8xf32>
    %cst_91 = arith.constant dense<0xFF800000> : vector<2x8xf32>
    %381 = vector.multi_reduction <maximumf>, %380, %cst_91 [2] : vector<2x8x8xf32> to vector<2x8xf32>
    %382 = vector.shape_cast %381 : vector<2x8xf32> to vector<2x8x1xf32>
    %383 = vector.broadcast %382 : vector<2x8x1xf32> to vector<2x8x8xf32>
    %384 = arith.subf %380, %383 : vector<2x8x8xf32>
    %385 = math.exp %384 : vector<2x8x8xf32>
    %cst_92 = arith.constant dense<0.000000e+00> : vector<2x8xf32>
    %386 = vector.multi_reduction <add>, %385, %cst_92 [2] : vector<2x8x8xf32> to vector<2x8xf32>
    %387 = vector.shape_cast %386 : vector<2x8xf32> to vector<2x8x1xf32>
    %388 = tpu.reciprocal %387 {approx = true} : vector<2x8x1xf32> -> vector<2x8x1xf32>
    %389 = vector.broadcast %388 : vector<2x8x1xf32> to vector<2x8x8xf32>
    %390 = arith.mulf %385, %389 : vector<2x8x8xf32>
    %391 = arith.truncf %390 : vector<2x8x8xf32> to vector<2x8x8xbf16>
    "tpu.trace_start"() <{level = 10 : i32, message = "bqk,bkd->bqd"}> : () -> ()
    %cst_93 = arith.constant dense<0.000000e+00> : vector<2x8x16xf32>
    %392 = tpu.matmul %391, %377, %cst_93 {dimension_numbers = #tpu.dot_dimension_numbers<[2], [1], [1], [2], [0, 0, 0, 1, 1, 2], [0], [0]>} : vector<2x8x8xbf16>, vector<2x8x16xbf16>, vector<2x8x16xf32> -> vector<2x8x16xf32>
    "tpu.trace_stop"() : () -> ()
    %393 = vector.shape_cast %392 : vector<2x8x16xf32> to vector<16x16xf32>
    %394 = arith.truncf %393 : vector<16x16xf32> to vector<16x16xbf16>
    %395 = vector.extract_strided_slice %297 {offsets = [32, 0], sizes = [16, 128], strides = [1, 1]} : vector<128x128xbf16> to vector<16x128xbf16>
    %cst_94 = arith.constant dense<0.000000e+00> : vector<16x128xf32>
    %396 = tpu.matmul %394, %395, %cst_94 {dimension_numbers = #tpu.dot_dimension_numbers<[1], [0], [0], [1], [0, 0, 1, 1], [], []>} : vector<16x16xbf16>, vector<16x128xbf16>, vector<16x128xf32> -> vector<16x128xf32>
    %397 = arith.addf %371, %396 : vector<16x128xf32>
    %398 = vector.extract_strided_slice %316 {offsets = [0, 48], sizes = [16, 16], strides = [1, 1]} : vector<16x128xbf16> to vector<16x16xbf16>
    %399 = vector.shape_cast %398 : vector<16x16xbf16> to vector<2x8x16xbf16>
    %400 = vector.extract_strided_slice %317 {offsets = [0, 48], sizes = [16, 16], strides = [1, 1]} : vector<16x128xbf16> to vector<16x16xbf16>
    %401 = vector.shape_cast %400 : vector<16x16xbf16> to vector<2x8x16xbf16>
    %402 = vector.extract_strided_slice %318 {offsets = [0, 48], sizes = [16, 16], strides = [1, 1]} : vector<16x128xbf16> to vector<16x16xbf16>
    %403 = vector.shape_cast %402 : vector<16x16xbf16> to vector<2x8x16xbf16>
    "tpu.trace_start"() <{level = 10 : i32, message = "bqd,bkd->bqk"}> : () -> ()
    %cst_95 = arith.constant dense<0.000000e+00> : vector<2x8x8xf32>
    %404 = tpu.matmul %399, %401, %cst_95 {dimension_numbers = #tpu.dot_dimension_numbers<[2], [2], [1], [1], [0, 0, 0, 1, 1, 1], [0], [0]>} : vector<2x8x16xbf16>, vector<2x8x16xbf16>, vector<2x8x8xf32> -> vector<2x8x8xf32>
    "tpu.trace_stop"() : () -> ()
    %405 = vector.broadcast %13 : vector<2x1x8xf32> to vector<2x8x8xf32>
    %406 = arith.addf %404, %405 : vector<2x8x8xf32>
    %cst_96 = arith.constant dense<0xFF800000> : vector<2x8xf32>
    %407 = vector.multi_reduction <maximumf>, %406, %cst_96 [2] : vector<2x8x8xf32> to vector<2x8xf32>
    %408 = vector.shape_cast %407 : vector<2x8xf32> to vector<2x8x1xf32>
    %409 = vector.broadcast %408 : vector<2x8x1xf32> to vector<2x8x8xf32>
    %410 = arith.subf %406, %409 : vector<2x8x8xf32>
    %411 = math.exp %410 : vector<2x8x8xf32>
    %cst_97 = arith.constant dense<0.000000e+00> : vector<2x8xf32>
    %412 = vector.multi_reduction <add>, %411, %cst_97 [2] : vector<2x8x8xf32> to vector<2x8xf32>
    %413 = vector.shape_cast %412 : vector<2x8xf32> to vector<2x8x1xf32>
    %414 = tpu.reciprocal %413 {approx = true} : vector<2x8x1xf32> -> vector<2x8x1xf32>
    %415 = vector.broadcast %414 : vector<2x8x1xf32> to vector<2x8x8xf32>
    %416 = arith.mulf %411, %415 : vector<2x8x8xf32>
    %417 = arith.truncf %416 : vector<2x8x8xf32> to vector<2x8x8xbf16>
    "tpu.trace_start"() <{level = 10 : i32, message = "bqk,bkd->bqd"}> : () -> ()
    %cst_98 = arith.constant dense<0.000000e+00> : vector<2x8x16xf32>
    %418 = tpu.matmul %417, %403, %cst_98 {dimension_numbers = #tpu.dot_dimension_numbers<[2], [1], [1], [2], [0, 0, 0, 1, 1, 2], [0], [0]>} : vector<2x8x8xbf16>, vector<2x8x16xbf16>, vector<2x8x16xf32> -> vector<2x8x16xf32>
    "tpu.trace_stop"() : () -> ()
    %419 = vector.shape_cast %418 : vector<2x8x16xf32> to vector<16x16xf32>
    %420 = arith.truncf %419 : vector<16x16xf32> to vector<16x16xbf16>
    %421 = vector.extract_strided_slice %297 {offsets = [48, 0], sizes = [16, 128], strides = [1, 1]} : vector<128x128xbf16> to vector<16x128xbf16>
    %cst_99 = arith.constant dense<0.000000e+00> : vector<16x128xf32>
    %422 = tpu.matmul %420, %421, %cst_99 {dimension_numbers = #tpu.dot_dimension_numbers<[1], [0], [0], [1], [0, 0, 1, 1], [], []>} : vector<16x16xbf16>, vector<16x128xbf16>, vector<16x128xf32> -> vector<16x128xf32>
    %423 = arith.addf %397, %422 : vector<16x128xf32>
    %424 = vector.extract_strided_slice %316 {offsets = [0, 64], sizes = [16, 16], strides = [1, 1]} : vector<16x128xbf16> to vector<16x16xbf16>
    %425 = vector.shape_cast %424 : vector<16x16xbf16> to vector<2x8x16xbf16>
    %426 = vector.extract_strided_slice %317 {offsets = [0, 64], sizes = [16, 16], strides = [1, 1]} : vector<16x128xbf16> to vector<16x16xbf16>
    %427 = vector.shape_cast %426 : vector<16x16xbf16> to vector<2x8x16xbf16>
    %428 = vector.extract_strided_slice %318 {offsets = [0, 64], sizes = [16, 16], strides = [1, 1]} : vector<16x128xbf16> to vector<16x16xbf16>
    %429 = vector.shape_cast %428 : vector<16x16xbf16> to vector<2x8x16xbf16>
    "tpu.trace_start"() <{level = 10 : i32, message = "bqd,bkd->bqk"}> : () -> ()
    %cst_100 = arith.constant dense<0.000000e+00> : vector<2x8x8xf32>
    %430 = tpu.matmul %425, %427, %cst_100 {dimension_numbers = #tpu.dot_dimension_numbers<[2], [2], [1], [1], [0, 0, 0, 1, 1, 1], [0], [0]>} : vector<2x8x16xbf16>, vector<2x8x16xbf16>, vector<2x8x8xf32> -> vector<2x8x8xf32>
    "tpu.trace_stop"() : () -> ()
    %431 = vector.broadcast %13 : vector<2x1x8xf32> to vector<2x8x8xf32>
    %432 = arith.addf %430, %431 : vector<2x8x8xf32>
    %cst_101 = arith.constant dense<0xFF800000> : vector<2x8xf32>
    %433 = vector.multi_reduction <maximumf>, %432, %cst_101 [2] : vector<2x8x8xf32> to vector<2x8xf32>
    %434 = vector.shape_cast %433 : vector<2x8xf32> to vector<2x8x1xf32>
    %435 = vector.broadcast %434 : vector<2x8x1xf32> to vector<2x8x8xf32>
    %436 = arith.subf %432, %435 : vector<2x8x8xf32>
    %437 = math.exp %436 : vector<2x8x8xf32>
    %cst_102 = arith.constant dense<0.000000e+00> : vector<2x8xf32>
    %438 = vector.multi_reduction <add>, %437, %cst_102 [2] : vector<2x8x8xf32> to vector<2x8xf32>
    %439 = vector.shape_cast %438 : vector<2x8xf32> to vector<2x8x1xf32>
    %440 = tpu.reciprocal %439 {approx = true} : vector<2x8x1xf32> -> vector<2x8x1xf32>
    %441 = vector.broadcast %440 : vector<2x8x1xf32> to vector<2x8x8xf32>
    %442 = arith.mulf %437, %441 : vector<2x8x8xf32>
    %443 = arith.truncf %442 : vector<2x8x8xf32> to vector<2x8x8xbf16>
    "tpu.trace_start"() <{level = 10 : i32, message = "bqk,bkd->bqd"}> : () -> ()
    %cst_103 = arith.constant dense<0.000000e+00> : vector<2x8x16xf32>
    %444 = tpu.matmul %443, %429, %cst_103 {dimension_numbers = #tpu.dot_dimension_numbers<[2], [1], [1], [2], [0, 0, 0, 1, 1, 2], [0], [0]>} : vector<2x8x8xbf16>, vector<2x8x16xbf16>, vector<2x8x16xf32> -> vector<2x8x16xf32>
    "tpu.trace_stop"() : () -> ()
    %445 = vector.shape_cast %444 : vector<2x8x16xf32> to vector<16x16xf32>
    %446 = arith.truncf %445 : vector<16x16xf32> to vector<16x16xbf16>
    %447 = vector.extract_strided_slice %297 {offsets = [64, 0], sizes = [16, 128], strides = [1, 1]} : vector<128x128xbf16> to vector<16x128xbf16>
    %cst_104 = arith.constant dense<0.000000e+00> : vector<16x128xf32>
    %448 = tpu.matmul %446, %447, %cst_104 {dimension_numbers = #tpu.dot_dimension_numbers<[1], [0], [0], [1], [0, 0, 1, 1], [], []>} : vector<16x16xbf16>, vector<16x128xbf16>, vector<16x128xf32> -> vector<16x128xf32>
    %449 = arith.addf %423, %448 : vector<16x128xf32>
    %450 = vector.extract_strided_slice %316 {offsets = [0, 80], sizes = [16, 16], strides = [1, 1]} : vector<16x128xbf16> to vector<16x16xbf16>
    %451 = vector.shape_cast %450 : vector<16x16xbf16> to vector<2x8x16xbf16>
    %452 = vector.extract_strided_slice %317 {offsets = [0, 80], sizes = [16, 16], strides = [1, 1]} : vector<16x128xbf16> to vector<16x16xbf16>
    %453 = vector.shape_cast %452 : vector<16x16xbf16> to vector<2x8x16xbf16>
    %454 = vector.extract_strided_slice %318 {offsets = [0, 80], sizes = [16, 16], strides = [1, 1]} : vector<16x128xbf16> to vector<16x16xbf16>
    %455 = vector.shape_cast %454 : vector<16x16xbf16> to vector<2x8x16xbf16>
    "tpu.trace_start"() <{level = 10 : i32, message = "bqd,bkd->bqk"}> : () -> ()
    %cst_105 = arith.constant dense<0.000000e+00> : vector<2x8x8xf32>
    %456 = tpu.matmul %451, %453, %cst_105 {dimension_numbers = #tpu.dot_dimension_numbers<[2], [2], [1], [1], [0, 0, 0, 1, 1, 1], [0], [0]>} : vector<2x8x16xbf16>, vector<2x8x16xbf16>, vector<2x8x8xf32> -> vector<2x8x8xf32>
    "tpu.trace_stop"() : () -> ()
    %457 = vector.broadcast %13 : vector<2x1x8xf32> to vector<2x8x8xf32>
    %458 = arith.addf %456, %457 : vector<2x8x8xf32>
    %cst_106 = arith.constant dense<0xFF800000> : vector<2x8xf32>
    %459 = vector.multi_reduction <maximumf>, %458, %cst_106 [2] : vector<2x8x8xf32> to vector<2x8xf32>
    %460 = vector.shape_cast %459 : vector<2x8xf32> to vector<2x8x1xf32>
    %461 = vector.broadcast %460 : vector<2x8x1xf32> to vector<2x8x8xf32>
    %462 = arith.subf %458, %461 : vector<2x8x8xf32>
    %463 = math.exp %462 : vector<2x8x8xf32>
    %cst_107 = arith.constant dense<0.000000e+00> : vector<2x8xf32>
    %464 = vector.multi_reduction <add>, %463, %cst_107 [2] : vector<2x8x8xf32> to vector<2x8xf32>
    %465 = vector.shape_cast %464 : vector<2x8xf32> to vector<2x8x1xf32>
    %466 = tpu.reciprocal %465 {approx = true} : vector<2x8x1xf32> -> vector<2x8x1xf32>
    %467 = vector.broadcast %466 : vector<2x8x1xf32> to vector<2x8x8xf32>
    %468 = arith.mulf %463, %467 : vector<2x8x8xf32>
    %469 = arith.truncf %468 : vector<2x8x8xf32> to vector<2x8x8xbf16>
    "tpu.trace_start"() <{level = 10 : i32, message = "bqk,bkd->bqd"}> : () -> ()
    %cst_108 = arith.constant dense<0.000000e+00> : vector<2x8x16xf32>
    %470 = tpu.matmul %469, %455, %cst_108 {dimension_numbers = #tpu.dot_dimension_numbers<[2], [1], [1], [2], [0, 0, 0, 1, 1, 2], [0], [0]>} : vector<2x8x8xbf16>, vector<2x8x16xbf16>, vector<2x8x16xf32> -> vector<2x8x16xf32>
    "tpu.trace_stop"() : () -> ()
    %471 = vector.shape_cast %470 : vector<2x8x16xf32> to vector<16x16xf32>
    %472 = arith.truncf %471 : vector<16x16xf32> to vector<16x16xbf16>
    %473 = vector.extract_strided_slice %297 {offsets = [80, 0], sizes = [16, 128], strides = [1, 1]} : vector<128x128xbf16> to vector<16x128xbf16>
    %cst_109 = arith.constant dense<0.000000e+00> : vector<16x128xf32>
    %474 = tpu.matmul %472, %473, %cst_109 {dimension_numbers = #tpu.dot_dimension_numbers<[1], [0], [0], [1], [0, 0, 1, 1], [], []>} : vector<16x16xbf16>, vector<16x128xbf16>, vector<16x128xf32> -> vector<16x128xf32>
    %475 = arith.addf %449, %474 : vector<16x128xf32>
    %476 = vector.extract_strided_slice %316 {offsets = [0, 96], sizes = [16, 16], strides = [1, 1]} : vector<16x128xbf16> to vector<16x16xbf16>
    %477 = vector.shape_cast %476 : vector<16x16xbf16> to vector<2x8x16xbf16>
    %478 = vector.extract_strided_slice %317 {offsets = [0, 96], sizes = [16, 16], strides = [1, 1]} : vector<16x128xbf16> to vector<16x16xbf16>
    %479 = vector.shape_cast %478 : vector<16x16xbf16> to vector<2x8x16xbf16>
    %480 = vector.extract_strided_slice %318 {offsets = [0, 96], sizes = [16, 16], strides = [1, 1]} : vector<16x128xbf16> to vector<16x16xbf16>
    %481 = vector.shape_cast %480 : vector<16x16xbf16> to vector<2x8x16xbf16>
    "tpu.trace_start"() <{level = 10 : i32, message = "bqd,bkd->bqk"}> : () -> ()
    %cst_110 = arith.constant dense<0.000000e+00> : vector<2x8x8xf32>
    %482 = tpu.matmul %477, %479, %cst_110 {dimension_numbers = #tpu.dot_dimension_numbers<[2], [2], [1], [1], [0, 0, 0, 1, 1, 1], [0], [0]>} : vector<2x8x16xbf16>, vector<2x8x16xbf16>, vector<2x8x8xf32> -> vector<2x8x8xf32>
    "tpu.trace_stop"() : () -> ()
    %483 = vector.broadcast %13 : vector<2x1x8xf32> to vector<2x8x8xf32>
    %484 = arith.addf %482, %483 : vector<2x8x8xf32>
    %cst_111 = arith.constant dense<0xFF800000> : vector<2x8xf32>
    %485 = vector.multi_reduction <maximumf>, %484, %cst_111 [2] : vector<2x8x8xf32> to vector<2x8xf32>
    %486 = vector.shape_cast %485 : vector<2x8xf32> to vector<2x8x1xf32>
    %487 = vector.broadcast %486 : vector<2x8x1xf32> to vector<2x8x8xf32>
    %488 = arith.subf %484, %487 : vector<2x8x8xf32>
    %489 = math.exp %488 : vector<2x8x8xf32>
    %cst_112 = arith.constant dense<0.000000e+00> : vector<2x8xf32>
    %490 = vector.multi_reduction <add>, %489, %cst_112 [2] : vector<2x8x8xf32> to vector<2x8xf32>
    %491 = vector.shape_cast %490 : vector<2x8xf32> to vector<2x8x1xf32>
    %492 = tpu.reciprocal %491 {approx = true} : vector<2x8x1xf32> -> vector<2x8x1xf32>
    %493 = vector.broadcast %492 : vector<2x8x1xf32> to vector<2x8x8xf32>
    %494 = arith.mulf %489, %493 : vector<2x8x8xf32>
    %495 = arith.truncf %494 : vector<2x8x8xf32> to vector<2x8x8xbf16>
    "tpu.trace_start"() <{level = 10 : i32, message = "bqk,bkd->bqd"}> : () -> ()
    %cst_113 = arith.constant dense<0.000000e+00> : vector<2x8x16xf32>
    %496 = tpu.matmul %495, %481, %cst_113 {dimension_numbers = #tpu.dot_dimension_numbers<[2], [1], [1], [2], [0, 0, 0, 1, 1, 2], [0], [0]>} : vector<2x8x8xbf16>, vector<2x8x16xbf16>, vector<2x8x16xf32> -> vector<2x8x16xf32>
    "tpu.trace_stop"() : () -> ()
    %497 = vector.shape_cast %496 : vector<2x8x16xf32> to vector<16x16xf32>
    %498 = arith.truncf %497 : vector<16x16xf32> to vector<16x16xbf16>
    %499 = vector.extract_strided_slice %297 {offsets = [96, 0], sizes = [16, 128], strides = [1, 1]} : vector<128x128xbf16> to vector<16x128xbf16>
    %cst_114 = arith.constant dense<0.000000e+00> : vector<16x128xf32>
    %500 = tpu.matmul %498, %499, %cst_114 {dimension_numbers = #tpu.dot_dimension_numbers<[1], [0], [0], [1], [0, 0, 1, 1], [], []>} : vector<16x16xbf16>, vector<16x128xbf16>, vector<16x128xf32> -> vector<16x128xf32>
    %501 = arith.addf %475, %500 : vector<16x128xf32>
    %502 = vector.extract_strided_slice %316 {offsets = [0, 112], sizes = [16, 16], strides = [1, 1]} : vector<16x128xbf16> to vector<16x16xbf16>
    %503 = vector.shape_cast %502 : vector<16x16xbf16> to vector<2x8x16xbf16>
    %504 = vector.extract_strided_slice %317 {offsets = [0, 112], sizes = [16, 16], strides = [1, 1]} : vector<16x128xbf16> to vector<16x16xbf16>
    %505 = vector.shape_cast %504 : vector<16x16xbf16> to vector<2x8x16xbf16>
    %506 = vector.extract_strided_slice %318 {offsets = [0, 112], sizes = [16, 16], strides = [1, 1]} : vector<16x128xbf16> to vector<16x16xbf16>
    %507 = vector.shape_cast %506 : vector<16x16xbf16> to vector<2x8x16xbf16>
    "tpu.trace_start"() <{level = 10 : i32, message = "bqd,bkd->bqk"}> : () -> ()
    %cst_115 = arith.constant dense<0.000000e+00> : vector<2x8x8xf32>
    %508 = tpu.matmul %503, %505, %cst_115 {dimension_numbers = #tpu.dot_dimension_numbers<[2], [2], [1], [1], [0, 0, 0, 1, 1, 1], [0], [0]>} : vector<2x8x16xbf16>, vector<2x8x16xbf16>, vector<2x8x8xf32> -> vector<2x8x8xf32>
    "tpu.trace_stop"() : () -> ()
    %509 = vector.broadcast %13 : vector<2x1x8xf32> to vector<2x8x8xf32>
    %510 = arith.addf %508, %509 : vector<2x8x8xf32>
    %cst_116 = arith.constant dense<0xFF800000> : vector<2x8xf32>
    %511 = vector.multi_reduction <maximumf>, %510, %cst_116 [2] : vector<2x8x8xf32> to vector<2x8xf32>
    %512 = vector.shape_cast %511 : vector<2x8xf32> to vector<2x8x1xf32>
    %513 = vector.broadcast %512 : vector<2x8x1xf32> to vector<2x8x8xf32>
    %514 = arith.subf %510, %513 : vector<2x8x8xf32>
    %515 = math.exp %514 : vector<2x8x8xf32>
    %cst_117 = arith.constant dense<0.000000e+00> : vector<2x8xf32>
    %516 = vector.multi_reduction <add>, %515, %cst_117 [2] : vector<2x8x8xf32> to vector<2x8xf32>
    %517 = vector.shape_cast %516 : vector<2x8xf32> to vector<2x8x1xf32>
    %518 = tpu.reciprocal %517 {approx = true} : vector<2x8x1xf32> -> vector<2x8x1xf32>
    %519 = vector.broadcast %518 : vector<2x8x1xf32> to vector<2x8x8xf32>
    %520 = arith.mulf %515, %519 : vector<2x8x8xf32>
    %521 = arith.truncf %520 : vector<2x8x8xf32> to vector<2x8x8xbf16>
    "tpu.trace_start"() <{level = 10 : i32, message = "bqk,bkd->bqd"}> : () -> ()
    %cst_118 = arith.constant dense<0.000000e+00> : vector<2x8x16xf32>
    %522 = tpu.matmul %521, %507, %cst_118 {dimension_numbers = #tpu.dot_dimension_numbers<[2], [1], [1], [2], [0, 0, 0, 1, 1, 2], [0], [0]>} : vector<2x8x8xbf16>, vector<2x8x16xbf16>, vector<2x8x16xf32> -> vector<2x8x16xf32>
    "tpu.trace_stop"() : () -> ()
    %523 = vector.shape_cast %522 : vector<2x8x16xf32> to vector<16x16xf32>
    %524 = arith.truncf %523 : vector<16x16xf32> to vector<16x16xbf16>
    %525 = vector.extract_strided_slice %297 {offsets = [112, 0], sizes = [16, 128], strides = [1, 1]} : vector<128x128xbf16> to vector<16x128xbf16>
    %cst_119 = arith.constant dense<0.000000e+00> : vector<16x128xf32>
    %526 = tpu.matmul %524, %525, %cst_119 {dimension_numbers = #tpu.dot_dimension_numbers<[1], [0], [0], [1], [0, 0, 1, 1], [], []>} : vector<16x16xbf16>, vector<16x128xbf16>, vector<16x128xf32> -> vector<16x128xf32>
    %527 = arith.addf %501, %526 : vector<16x128xf32>
    %528 = vector.shape_cast %299 : vector<128xf32> to vector<1x128xf32>
    %529 = vector.broadcast %528 : vector<1x128xf32> to vector<16x128xf32>
    %530 = arith.addf %527, %529 : vector<16x128xf32>
    %531 = arith.addf %283, %530 : vector<16x128xf32>
    %cst_120 = arith.constant dense<0.000000e+00> : vector<16xf32>
    %532 = vector.multi_reduction <add>, %531, %cst_120 [1] : vector<16x128xf32> to vector<16xf32>
    %533 = vector.shape_cast %532 : vector<16xf32> to vector<16x1xf32>
    %cst_121 = arith.constant 1.280000e+02 : f32
    %534 = vector.broadcast %cst_121 : f32 to vector<16x1xf32>
    %535 = arith.divf %533, %534 : vector<16x1xf32>
    %536 = vector.broadcast %535 : vector<16x1xf32> to vector<16x128xf32>
    %537 = arith.subf %531, %536 : vector<16x128xf32>
    %538 = arith.mulf %537, %537 : vector<16x128xf32>
    %cst_122 = arith.constant dense<0.000000e+00> : vector<16xf32>
    %539 = vector.multi_reduction <add>, %538, %cst_122 [1] : vector<16x128xf32> to vector<16xf32>
    %540 = vector.shape_cast %539 : vector<16xf32> to vector<16x1xf32>
    %cst_123 = arith.constant 1.280000e+02 : f32
    %541 = vector.broadcast %cst_123 : f32 to vector<16x1xf32>
    %542 = arith.divf %540, %541 : vector<16x1xf32>
    %543 = vector.broadcast %535 : vector<16x1xf32> to vector<16x128xf32>
    %544 = arith.subf %531, %543 : vector<16x128xf32>
    %cst_124 = arith.constant 9.99999974E-6 : f32
    %545 = vector.broadcast %cst_124 : f32 to vector<16x1xf32>
    %546 = arith.addf %542, %545 : vector<16x1xf32>
    %547 = math.rsqrt %546 : vector<16x1xf32>
    %548 = vector.broadcast %547 : vector<16x1xf32> to vector<16x128xf32>
    %549 = arith.mulf %544, %548 : vector<16x128xf32>
    %550 = vector.shape_cast %17 : vector<128xf32> to vector<1x128xf32>
    %551 = vector.broadcast %550 : vector<1x128xf32> to vector<16x128xf32>
    %552 = arith.mulf %549, %551 : vector<16x128xf32>
    %553 = vector.shape_cast %19 : vector<128xf32> to vector<1x128xf32>
    %554 = vector.broadcast %553 : vector<1x128xf32> to vector<16x128xf32>
    %555 = arith.addf %552, %554 : vector<16x128xf32>
    %556 = arith.truncf %555 : vector<16x128xf32> to vector<16x128xbf16>
    %c0_125 = arith.constant 0 : index
    %c0_126 = arith.constant 0 : index
    %557 = vector.load %arg9[%c0_125, %c0_126] : memref<128x2048xbf16, #tpu.memory_space<vmem>>, vector<128x2048xbf16>
    %cst_127 = arith.constant dense<0.000000e+00> : vector<16x2048xf32>
    %558 = tpu.matmul %556, %557, %cst_127 {dimension_numbers = #tpu.dot_dimension_numbers<[1], [0], [0], [1], [0, 0, 1, 1], [], []>} : vector<16x128xbf16>, vector<128x2048xbf16>, vector<16x2048xf32> -> vector<16x2048xf32>
    %c0_128 = arith.constant 0 : index
    %c0_129 = arith.constant 0 : index
    %559 = vector.load %arg10[%c0_128, %c0_129] : memref<1x2048xf32, #tpu.memory_space<vmem>>, vector<1x2048xf32>
    %560 = vector.shape_cast %559 : vector<1x2048xf32> to vector<2048xf32>
    %561 = vector.shape_cast %560 : vector<2048xf32> to vector<1x2048xf32>
    %562 = vector.broadcast %561 : vector<1x2048xf32> to vector<16x2048xf32>
    %563 = arith.addf %558, %562 : vector<16x2048xf32>
    %cst_130 = arith.constant 0.000000e+00 : f32
    %564 = vector.broadcast %cst_130 : f32 to vector<16x2048xf32>
    %565 = arith.maximumf %563, %564 : vector<16x2048xf32>
    %566 = arith.truncf %565 : vector<16x2048xf32> to vector<16x2048xbf16>
    %c0_131 = arith.constant 0 : index
    %c0_132 = arith.constant 0 : index
    %567 = vector.load %arg11[%c0_131, %c0_132] : memref<2048x128xbf16, #tpu.memory_space<vmem>>, vector<2048x128xbf16>
    %cst_133 = arith.constant dense<0.000000e+00> : vector<16x128xf32>
    %568 = tpu.matmul %566, %567, %cst_133 {dimension_numbers = #tpu.dot_dimension_numbers<[1], [0], [0], [1], [0, 0, 1, 1], [], []>} : vector<16x2048xbf16>, vector<2048x128xbf16>, vector<16x128xf32> -> vector<16x128xf32>
    %c0_134 = arith.constant 0 : index
    %c0_135 = arith.constant 0 : index
    %569 = vector.load %arg12[%c0_134, %c0_135] : memref<1x128xf32, #tpu.memory_space<vmem>>, vector<1x128xf32>
    %570 = vector.shape_cast %569 : vector<1x128xf32> to vector<128xf32>
    %571 = vector.shape_cast %570 : vector<128xf32> to vector<1x128xf32>
    %572 = vector.broadcast %571 : vector<1x128xf32> to vector<16x128xf32>
    %573 = arith.addf %568, %572 : vector<16x128xf32>
    %574 = arith.addf %555, %573 : vector<16x128xf32>
    %cst_136 = arith.constant dense<0.000000e+00> : vector<16xf32>
    %575 = vector.multi_reduction <add>, %574, %cst_136 [1] : vector<16x128xf32> to vector<16xf32>
    %576 = vector.shape_cast %575 : vector<16xf32> to vector<16x1xf32>
    %cst_137 = arith.constant 1.280000e+02 : f32
    %577 = vector.broadcast %cst_137 : f32 to vector<16x1xf32>
    %578 = arith.divf %576, %577 : vector<16x1xf32>
    %579 = vector.broadcast %578 : vector<16x1xf32> to vector<16x128xf32>
    %580 = arith.subf %574, %579 : vector<16x128xf32>
    %581 = arith.mulf %580, %580 : vector<16x128xf32>
    %cst_138 = arith.constant dense<0.000000e+00> : vector<16xf32>
    %582 = vector.multi_reduction <add>, %581, %cst_138 [1] : vector<16x128xf32> to vector<16xf32>
    %583 = vector.shape_cast %582 : vector<16xf32> to vector<16x1xf32>
    %cst_139 = arith.constant 1.280000e+02 : f32
    %584 = vector.broadcast %cst_139 : f32 to vector<16x1xf32>
    %585 = arith.divf %583, %584 : vector<16x1xf32>
    %586 = vector.broadcast %578 : vector<16x1xf32> to vector<16x128xf32>
    %587 = arith.subf %574, %586 : vector<16x128xf32>
    %cst_140 = arith.constant 9.99999974E-6 : f32
    %588 = vector.broadcast %cst_140 : f32 to vector<16x1xf32>
    %589 = arith.addf %585, %588 : vector<16x1xf32>
    %590 = math.rsqrt %589 : vector<16x1xf32>
    %591 = vector.broadcast %590 : vector<16x1xf32> to vector<16x128xf32>
    %592 = arith.mulf %587, %591 : vector<16x128xf32>
    %593 = vector.shape_cast %17 : vector<128xf32> to vector<1x128xf32>
    %594 = vector.broadcast %593 : vector<1x128xf32> to vector<16x128xf32>
    %595 = arith.mulf %592, %594 : vector<16x128xf32>
    %596 = vector.shape_cast %19 : vector<128xf32> to vector<1x128xf32>
    %597 = vector.broadcast %596 : vector<1x128xf32> to vector<16x128xf32>
    %598 = arith.addf %595, %597 : vector<16x128xf32>
    %599 = vector.shape_cast %598 : vector<16x128xf32> to vector<2x8x128xf32>
    %c0_141 = arith.constant 0 : index
    %c0_142 = arith.constant 0 : index
    %c0_143 = arith.constant 0 : index
    %600 = vector.load %arg13[%c0_141, %c0_142, %c0_143] : memref<2x8x128xf32, #tpu.memory_space<vmem>>, vector<2x8x128xf32>
    tpu.vector_store %arg13[%c0_141, %c0_142, %c0_143], %599 {strides = array<i32>} : memref<2x8x128xf32, #tpu.memory_space<vmem>>, vector<2x8x128xf32>,
    return
  }
  func.func @transform_0(%arg0: i32) -> (i32, i32, i32) {
    %c0_i32 = arith.constant 0 : i32
    %c0_i32_0 = arith.constant 0 : i32
    %c0_i32_1 = arith.constant 0 : i32
    return %arg0, %c0_i32, %c0_i32_0 : i32, i32, i32
  }
  func.func @transform_1(%arg0: i32) -> (i32, i32, i32) {
    %c0_i32 = arith.constant 0 : i32
    %c0_i32_0 = arith.constant 0 : i32
    %c0_i32_1 = arith.constant 0 : i32
    return %arg0, %c0_i32, %c0_i32_0 : i32, i32, i32
  }
  func.func @transform_2(%arg0: i32) -> (i32, i32, i32) {
    %c0_i32 = arith.constant 0 : i32
    %c0_i32_0 = arith.constant 0 : i32
    %c0_i32_1 = arith.constant 0 : i32
    return %arg0, %c0_i32, %c0_i32_0 : i32, i32, i32
  }
  func.func @transform_3(%arg0: i32) -> (i32, i32, i32) {
    %c0_i32 = arith.constant 0 : i32
    %c0_i32_0 = arith.constant 0 : i32
    %c0_i32_1 = arith.constant 0 : i32
    return %arg0, %c0_i32, %c0_i32_0 : i32, i32, i32
  }
  func.func @transform_4(%arg0: i32) -> (i32, i32, i32, i32) {
    %c0_i32 = arith.constant 0 : i32
    %c0_i32_0 = arith.constant 0 : i32
    %c0_i32_1 = arith.constant 0 : i32
    %c0_i32_2 = arith.constant 0 : i32
    %c0_i32_3 = arith.constant 0 : i32
    return %c0_i32, %c0_i32_0, %c0_i32_1, %c0_i32_2 : i32, i32, i32, i32
  }
  func.func @transform_5(%arg0: i32) -> (i32, i32, i32) {
    %c0_i32 = arith.constant 0 : i32
    %c0_i32_0 = arith.constant 0 : i32
    %c0_i32_1 = arith.constant 0 : i32
    %c0_i32_2 = arith.constant 0 : i32
    return %c0_i32, %c0_i32_0, %c0_i32_1 : i32, i32, i32
  }
  func.func @transform_6(%arg0: i32) -> (i32, i32) {
    %c0_i32 = arith.constant 0 : i32
    %c0_i32_0 = arith.constant 0 : i32
    %c0_i32_1 = arith.constant 0 : i32
    return %c0_i32, %c0_i32_0 : i32, i32
  }
  func.func @transform_7(%arg0: i32) -> (i32, i32) {
    %c0_i32 = arith.constant 0 : i32
    %c0_i32_0 = arith.constant 0 : i32
    %c0_i32_1 = arith.constant 0 : i32
    return %c0_i32, %c0_i32_0 : i32, i32
  }
  func.func @transform_8(%arg0: i32) -> (i32, i32) {
    %c0_i32 = arith.constant 0 : i32
    %c0_i32_0 = arith.constant 0 : i32
    %c0_i32_1 = arith.constant 0 : i32
    return %c0_i32, %c0_i32_0 : i32, i32
  }
  func.func @transform_9(%arg0: i32) -> (i32, i32) {
    %c0_i32 = arith.constant 0 : i32
    %c0_i32_0 = arith.constant 0 : i32
    %c0_i32_1 = arith.constant 0 : i32
    return %c0_i32, %c0_i32_0 : i32, i32
  }
  func.func @transform_10(%arg0: i32) -> (i32, i32) {
    %c0_i32 = arith.constant 0 : i32
    %c0_i32_0 = arith.constant 0 : i32
    %c0_i32_1 = arith.constant 0 : i32
    return %c0_i32, %c0_i32_0 : i32, i32
  }
  func.func @transform_11(%arg0: i32) -> (i32, i32) {
    %c0_i32 = arith.constant 0 : i32
    %c0_i32_0 = arith.constant 0 : i32
    %c0_i32_1 = arith.constant 0 : i32
    return %c0_i32, %c0_i32_0 : i32, i32
  }
  func.func @transform_12(%arg0: i32) -> (i32, i32, i32) {
    %c0_i32 = arith.constant 0 : i32
    %c0_i32_0 = arith.constant 0 : i32
    %c0_i32_1 = arith.constant 0 : i32
    return %arg0, %c0_i32, %c0_i32_0 : i32, i32, i32
  }
}

</mosaic_0001>

<llo_original>
// kernel: tpu_custom_call.1
$region0: #{tpu_custom_call.1}
  #allocation0 [shape = 'u32[]', space=smem, size = 0x4, offset = 0x4, fixed_abs, tag = 'smem constant byte address 0x4 - core index']
  #allocation1 [shape = 'u32[144,128]{1,0:T(1,128)}', space=vmem, size = 0x12000, scoped, tag = 'internal scratch']
  %s0 = inlined_call_operand.hbm [shape: f32[2,8,128], index: 0, kind: input, shape index: {}]
  %s1 = inlined_call_operand.hbm [shape: f32[2,8,128], index: 1, kind: input, shape index: {}]
  %s2 = inlined_call_operand.hbm [shape: f32[2,8,8], index: 2, kind: input, shape index: {}]
  %s3 = inlined_call_operand.vmem [shape: f32[2,1,8], index: 3, kind: input, shape index: {}]
  %s4 = inlined_call_operand.hbm [shape: bf16[2,4,128,128], index: 4, kind: input, shape index: {}]
  %s5 = inlined_call_operand.vmem [shape: f32[2,4,128], index: 5, kind: input, shape index: {}]
  %s6 = inlined_call_operand.vmem [shape: f32[1,128], index: 6, kind: input, shape index: {}]
  %s7 = inlined_call_operand.vmem [shape: f32[1,128], index: 7, kind: input, shape index: {}]
  %s8 = inlined_call_operand.hbm [shape: bf16[128,2048], index: 8, kind: input, shape index: {}]
  %s9 = inlined_call_operand.vmem [shape: f32[1,2048], index: 9, kind: input, shape index: {}]
  %s10 = inlined_call_operand.hbm [shape: bf16[2048,128], index: 10, kind: input, shape index: {}]
  %s11 = inlined_call_operand.vmem [shape: f32[1,128], index: 11, kind: input, shape index: {}]
  %s12 = inlined_call_operand.hbm [shape: f32[2,8,128], index: 12, kind: output, shape index: {}]
  %s13 = sld [smem:[#allocation0]]
  $region82: #{tpu_custom_call.1} parent=0
    _
  %s15 = ssub.s32 1, %s13
  %s16 = scalar_select 0, %s15, %s13
  $region1: #{tpu_custom_call.1} parent=0
    #allocation2 [shape = 'u8[8192]{0}', space=vmem, size = 0x2000, scoped, tag = 'input window, operand 0, single buffered']
    #allocation3 [shape = 's32[1]{0}', space=sflag, size = 0x4, scoped, tag = 'scoped memory for tpu_custom_call.1']
    #allocation4 [shape = 's32[1]{0}', space=sflag, size = 0x4, scoped, tag = 'scoped memory for tpu_custom_call.1']
    #allocation5 [shape = 'u8[8192]{0}', space=vmem, size = 0x2000, scoped, tag = 'input window, operand 1, single buffered']
    #allocation6 [shape = 's32[1]{0}', space=sflag, size = 0x4, scoped, tag = 'scoped memory for tpu_custom_call.1']
    #allocation7 [shape = 'u8[8192]{0}', space=vmem, size = 0x2000, scoped, tag = 'input window, operand 2, single buffered']
    #allocation8 [shape = 'u8[262144]{0}', space=vmem, size = 0x40000, scoped, tag = 'input window, operand 4, single buffered']
    #allocation9 [shape = 's32[1]{0}', space=sflag, size = 0x4, scoped, tag = 'scoped memory for tpu_custom_call.1']
    #allocation10 [shape = 'u8[524288]{0}', space=vmem, size = 0x80000, scoped, tag = 'input window, operand 8, single buffered']
    #allocation11 [shape = 'u8[524288]{0}', space=vmem, size = 0x80000, scoped, tag = 'input window, operand 10, single buffered']
    #allocation12 [shape = 's32[1]{0}', space=sflag, size = 0x4, scoped, tag = 'scoped memory for tpu_custom_call.1']
    #allocation13 [shape = 'u8[8192]{0}', space=vmem, size = 0x2000, scoped, tag = 'output window, operand 0, single buffered']
    %17 = vsyncpa [#allocation3], 0
    %18 = vsyncpa [#allocation6], 0
    %19 = vsyncpa [#allocation9], 0
    %20 = vsyncpa [#allocation12], 0
    %21 = vsyncpa [#allocation4], 0
    // Predicated region
    $region2: #{tpu_custom_call.1} parent=1 // pred_check
      _
    $region3: #{tpu_custom_call.1} parent=1 // pred_check_branch
      %23 = sbr.rel (0) target = $region5
    $region4: #{tpu_custom_call.1} parent=1 // pred_region
      %s25 = ssub.s32 256, 256
      %26 = vsyncadd [#allocation3], %s25
      %s27 = sshll.u32 [#allocation2], 4
      %s28 = int_to_ptr.vmem [resolvable:$true] %s27
      %33 = dma.hbm_to_vmem [thread:$0]  %s0, 256, %s28, [#allocation3], 128, 128, 8
    $region5: #{tpu_custom_call.1} parent=1 // pred_fallthru
      _
    // Predicated region
    $region6: #{tpu_custom_call.1} parent=1 // pred_check
      _
    $region7: #{tpu_custom_call.1} parent=1 // pred_check_branch
      %35 = sbr.rel (0) target = $region9
    $region8: #{tpu_custom_call.1} parent=1 // pred_region
      %s37 = ssub.s32 256, 256
      %38 = vsyncadd [#allocation6], %s37
      %s39 = sshll.u32 [#allocation5], 4
      %s40 = int_to_ptr.vmem [resolvable:$true] %s39
      %45 = dma.hbm_to_vmem [thread:$0]  %s1, 256, %s40, [#allocation6], 128, 128, 8
    $region9: #{tpu_custom_call.1} parent=1 // pred_fallthru
      _
    // Predicated region
    $region10: #{tpu_custom_call.1} parent=1 // pred_check
      _
    $region11: #{tpu_custom_call.1} parent=1 // pred_check_branch
      %47 = sbr.rel (0) target = $region13
    $region12: #{tpu_custom_call.1} parent=1 // pred_region
      %s49 = ssub.s32 256, 256
      %50 = vsyncadd [#allocation6], %s49
      %s51 = sshll.u32 [#allocation7], 4
      %s52 = int_to_ptr.vmem [resolvable:$true] %s51
      %57 = dma.hbm_to_vmem [thread:$0]  %s2, 256, %s52, [#allocation6], 128, 128, 8
    $region13: #{tpu_custom_call.1} parent=1 // pred_fallthru
      _
    // Predicated region
    $region14: #{tpu_custom_call.1} parent=1 // pred_check
      _
    $region15: #{tpu_custom_call.1} parent=1 // pred_check_branch
      %59 = sbr.rel (0) target = $region17
    $region16: #{tpu_custom_call.1} parent=1 // pred_region
      _
    $region17: #{tpu_custom_call.1} parent=1 // pred_fallthru
      _
    // Predicated region
    $region18: #{tpu_custom_call.1} parent=1 // pred_check
      _
    $region19: #{tpu_custom_call.1} parent=1 // pred_check_branch
      %61 = sbr.rel (0) target = $region21
    $region20: #{tpu_custom_call.1} parent=1 // pred_region
      %s63 = ssub.s32 8192, 8192
      %64 = vsyncadd [#allocation9], %s63
      %s65 = sshll.u32 [#allocation8], 4
      %s66 = int_to_ptr.vmem [resolvable:$true] %s65
      %71 = dma.hbm_to_vmem [thread:$0]  %s4, 8192, %s66, [#allocation9], 64, 64, 4
    $region21: #{tpu_custom_call.1} parent=1 // pred_fallthru
      _
    // Predicated region
    $region22: #{tpu_custom_call.1} parent=1 // pred_check
      _
    $region23: #{tpu_custom_call.1} parent=1 // pred_check_branch
      %73 = sbr.rel (0) target = $region25
    $region24: #{tpu_custom_call.1} parent=1 // pred_region
      _
    $region25: #{tpu_custom_call.1} parent=1 // pred_fallthru
      _
    // Predicated region
    $region26: #{tpu_custom_call.1} parent=1 // pred_check
      _
    $region27: #{tpu_custom_call.1} parent=1 // pred_check_branch
      %75 = sbr.rel (0) target = $region29
    $region28: #{tpu_custom_call.1} parent=1 // pred_region
      _
    $region29: #{tpu_custom_call.1} parent=1 // pred_fallthru
      _
    // Predicated region
    $region30: #{tpu_custom_call.1} parent=1 // pred_check
      _
    $region31: #{tpu_custom_call.1} parent=1 // pred_check_branch
      %77 = sbr.rel (0) target = $region33
    $region32: #{tpu_custom_call.1} parent=1 // pred_region
      _
    $region33: #{tpu_custom_call.1} parent=1 // pred_fallthru
      _
    // Predicated region
    $region34: #{tpu_custom_call.1} parent=1 // pred_check
      _
    $region35: #{tpu_custom_call.1} parent=1 // pred_check_branch
      %79 = sbr.rel (0) target = $region37
    $region36: #{tpu_custom_call.1} parent=1 // pred_region
      %s81 = ssub.s32 16384, 16384
      %82 = vsyncadd [#allocation9], %s81
      %s83 = sshll.u32 [#allocation10], 4
      %s84 = int_to_ptr.vmem [resolvable:$true] %s83
      %89 = dma.hbm_to_vmem [thread:$0]  %s8, 16384, %s84, [#allocation9], 1024, 1024, 64
    $region37: #{tpu_custom_call.1} parent=1 // pred_fallthru
      _
    // Predicated region
    $region38: #{tpu_custom_call.1} parent=1 // pred_check
      _
    $region39: #{tpu_custom_call.1} parent=1 // pred_check_branch
      %91 = sbr.rel (0) target = $region41
    $region40: #{tpu_custom_call.1} parent=1 // pred_region
      _
    $region41: #{tpu_custom_call.1} parent=1 // pred_fallthru
      _
    // Predicated region
    $region42: #{tpu_custom_call.1} parent=1 // pred_check
      _
    $region43: #{tpu_custom_call.1} parent=1 // pred_check_branch
      %93 = sbr.rel (0) target = $region45
    $region44: #{tpu_custom_call.1} parent=1 // pred_region
      %s95 = ssub.s32 16384, 16384
      %96 = vsyncadd [#allocation12], %s95
      %s97 = sshll.u32 [#allocation11], 4
      %s98 = int_to_ptr.vmem [resolvable:$true] %s97
      %103 = dma.hbm_to_vmem [thread:$0]  %s10, 16384, %s98, [#allocation12], 64, 64, 4
    $region45: #{tpu_custom_call.1} parent=1 // pred_fallthru
      _
    // Predicated region
    $region46: #{tpu_custom_call.1} parent=1 // pred_check
      _
    $region47: #{tpu_custom_call.1} parent=1 // pred_check_branch
      %105 = sbr.rel (0) target = $region49
    $region48: #{tpu_custom_call.1} parent=1 // pred_region
      _
    $region49: #{tpu_custom_call.1} parent=1 // pred_fallthru
      _
    // Predicated region
    $region50: #{tpu_custom_call.1} parent=1 // pred_check
      _
    $region51: #{tpu_custom_call.1} parent=1 // pred_check_branch
      %107 = sbr.rel (0) target = $region53
    $region52: #{tpu_custom_call.1} parent=1 // pred_region
      %108 = dma.done [#allocation3], 256
    $region53: #{tpu_custom_call.1} parent=1 // pred_fallthru
      _
    // Predicated region
    $region54: #{tpu_custom_call.1} parent=1 // pred_check
      _
    $region55: #{tpu_custom_call.1} parent=1 // pred_check_branch
      %110 = sbr.rel (0) target = $region57
    $region56: #{tpu_custom_call.1} parent=1 // pred_region
      %111 = dma.done [#allocation6], 256
    $region57: #{tpu_custom_call.1} parent=1 // pred_fallthru
      _
    // Predicated region
    $region58: #{tpu_custom_call.1} parent=1 // pred_check
      _
    $region59: #{tpu_custom_call.1} parent=1 // pred_check_branch
      %113 = sbr.rel (0) target = $region61
    $region60: #{tpu_custom_call.1} parent=1 // pred_region
      %114 = dma.done [#allocation6], 256
    $region61: #{tpu_custom_call.1} parent=1 // pred_fallthru
      _
    // Predicated region
    $region62: #{tpu_custom_call.1} parent=1 // pred_check
      _
    $region63: #{tpu_custom_call.1} parent=1 // pred_check_branch
      %116 = sbr.rel (0) target = $region65
    $region64: #{tpu_custom_call.1} parent=1 // pred_region
      %117 = dma.done [#allocation9], 8192
    $region65: #{tpu_custom_call.1} parent=1 // pred_fallthru
      _
    // Predicated region
    $region66: #{tpu_custom_call.1} parent=1 // pred_check
      _
    $region67: #{tpu_custom_call.1} parent=1 // pred_check_branch
      %119 = sbr.rel (0) target = $region69
    $region68: #{tpu_custom_call.1} parent=1 // pred_region
      %120 = dma.done [#allocation9], 16384
    $region69: #{tpu_custom_call.1} parent=1 // pred_fallthru
      _
    // Predicated region
    $region70: #{tpu_custom_call.1} parent=1 // pred_check
      _
    $region71: #{tpu_custom_call.1} parent=1 // pred_check_branch
      %122 = sbr.rel (0) target = $region73
    $region72: #{tpu_custom_call.1} parent=1 // pred_region
      %123 = dma.done [#allocation12], 16384
    $region73: #{tpu_custom_call.1} parent=1 // pred_fallthru
      _
    %v125 = vld [vmem:[#allocation2] sm:$0xff]
    %v126 = vld [vmem:[#allocation2 + $0x8] sm:$0xff]
    %v127 = vld [vmem:[#allocation5] sm:$0xff]
    %v128 = vld [vmem:[#allocation5 + $0x8] sm:$0xff]
    %v129 = vld [vmem:[#allocation7] sm:$0xff]
    %v130 = vld [vmem:[#allocation7 + $0x8] sm:$0xff]
    %v131 = vsub.f32 %v129, 1.0
    %v132 = vsub.f32 %v130, 1.0
    %v133 = vmul.f32 %v131, 1e+10
    %v134 = vmul.f32 %v132, 1e+10
    %v135 = vld [vmem:[%s3] sm:$0x1]
    %v136 = vld [vmem:[%s3 + $0x1] sm:$0x1]
    %v137 = vsub.f32 %v135, 1.0
    %v138 = vsub.f32 %v136, 1.0
    %v139 = vmul.f32 %v137, 1e+10
    %v140 = vmul.f32 %v138, 1e+10
    %v141 = vld [vmem:[#allocation8] sm:$0xf]
    %v142 = vld [vmem:[#allocation8 + $0x4] sm:$0xf]
    %v143 = vld [vmem:[#allocation8 + $0x8] sm:$0xf]
    %v144 = vld [vmem:[#allocation8 + $0xc] sm:$0xf]
    %v145 = vld [vmem:[#allocation8 + $0x10] sm:$0xf]
    %v146 = vld [vmem:[#allocation8 + $0x14] sm:$0xf]
    %v147 = vld [vmem:[#allocation8 + $0x18] sm:$0xf]
    %v148 = vld [vmem:[#allocation8 + $0x1c] sm:$0xf]
    %v149 = vld [vmem:[#allocation8 + $0x20] sm:$0xf]
    %v150 = vld [vmem:[#allocation8 + $0x24] sm:$0xf]
    %v151 = vld [vmem:[#allocation8 + $0x28] sm:$0xf]
    %v152 = vld [vmem:[#allocation8 + $0x2c] sm:$0xf]
    %v153 = vld [vmem:[#allocation8 + $0x30] sm:$0xf]
    %v154 = vld [vmem:[#allocation8 + $0x34] sm:$0xf]
    %v155 = vld [vmem:[#allocation8 + $0x38] sm:$0xf]
    %v156 = vld [vmem:[#allocation8 + $0x3c] sm:$0xf]
    %v157 = vld [vmem:[#allocation8 + $0x40] sm:$0xf]
    %v158 = vld [vmem:[#allocation8 + $0x44] sm:$0xf]
    %v159 = vld [vmem:[#allocation8 + $0x48] sm:$0xf]
    %v160 = vld [vmem:[#allocation8 + $0x4c] sm:$0xf]
    %v161 = vld [vmem:[#allocation8 + $0x50] sm:$0xf]
    %v162 = vld [vmem:[#allocation8 + $0x54] sm:$0xf]
    %v163 = vld [vmem:[#allocation8 + $0x58] sm:$0xf]
    %v164 = vld [vmem:[#allocation8 + $0x5c] sm:$0xf]
    %v165 = vld [vmem:[#allocation8 + $0x60] sm:$0xf]
    %v166 = vld [vmem:[#allocation8 + $0x64] sm:$0xf]
    %v167 = vld [vmem:[#allocation8 + $0x68] sm:$0xf]
    %v168 = vld [vmem:[#allocation8 + $0x6c] sm:$0xf]
    %v169 = vld [vmem:[#allocation8 + $0x70] sm:$0xf]
    %v170 = vld [vmem:[#allocation8 + $0x74] sm:$0xf]
    %v171 = vld [vmem:[#allocation8 + $0x78] sm:$0xf]
    %v172 = vld [vmem:[#allocation8 + $0x7c] sm:$0xf]
    %v173 = vld [vmem:[#allocation8 + $0x80] sm:$0xf]
    %v174 = vld [vmem:[#allocation8 + $0x84] sm:$0xf]
    %v175 = vld [vmem:[#allocation8 + $0x88] sm:$0xf]
    %v176 = vld [vmem:[#allocation8 + $0x8c] sm:$0xf]
    %v177 = vld [vmem:[#allocation8 + $0x90] sm:$0xf]
    %v178 = vld [vmem:[#allocation8 + $0x94] sm:$0xf]
    %v179 = vld [vmem:[#allocation8 + $0x98] sm:$0xf]
    %v180 = vld [vmem:[#allocation8 + $0x9c] sm:$0xf]
    %v181 = vld [vmem:[#allocation8 + $0xa0] sm:$0xf]
    %v182 = vld [vmem:[#allocation8 + $0xa4] sm:$0xf]
    %v183 = vld [vmem:[#allocation8 + $0xa8] sm:$0xf]
    %v184 = vld [vmem:[#allocation8 + $0xac] sm:$0xf]
    %v185 = vld [vmem:[#allocation8 + $0xb0] sm:$0xf]
    %v186 = vld [vmem:[#allocation8 + $0xb4] sm:$0xf]
    %v187 = vld [vmem:[#allocation8 + $0xb8] sm:$0xf]
    %v188 = vld [vmem:[#allocation8 + $0xbc] sm:$0xf]
    %v189 = vld [vmem:[#allocation8 + $0xc0] sm:$0xf]
    %v190 = vld [vmem:[#allocation8 + $0xc4] sm:$0xf]
    %v191 = vld [vmem:[#allocation8 + $0xc8] sm:$0xf]
    %v192 = vld [vmem:[#allocation8 + $0xcc] sm:$0xf]
    %v193 = vld [vmem:[#allocation8 + $0xd0] sm:$0xf]
    %v194 = vld [vmem:[#allocation8 + $0xd4] sm:$0xf]
    %v195 = vld [vmem:[#allocation8 + $0xd8] sm:$0xf]
    %v196 = vld [vmem:[#allocation8 + $0xdc] sm:$0xf]
    %v197 = vld [vmem:[#allocation8 + $0xe0] sm:$0xf]
    %v198 = vld [vmem:[#allocation8 + $0xe4] sm:$0xf]
    %v199 = vld [vmem:[#allocation8 + $0xe8] sm:$0xf]
    %v200 = vld [vmem:[#allocation8 + $0xec] sm:$0xf]
    %v201 = vld [vmem:[#allocation8 + $0xf0] sm:$0xf]
    %v202 = vld [vmem:[#allocation8 + $0xf4] sm:$0xf]
    %v203 = vld [vmem:[#allocation8 + $0xf8] sm:$0xf]
    %v204 = vld [vmem:[#allocation8 + $0xfc] sm:$0xf]
    %v205 = vld [vmem:[#allocation8 + $0x100] sm:$0xf]
    %v206 = vld [vmem:[#allocation8 + $0x104] sm:$0xf]
    %v207 = vld [vmem:[#allocation8 + $0x108] sm:$0xf]
    %v208 = vld [vmem:[#allocation8 + $0x10c] sm:$0xf]
    %v209 = vld [vmem:[#allocation8 + $0x110] sm:$0xf]
    %v210 = vld [vmem:[#allocation8 + $0x114] sm:$0xf]
    %v211 = vld [vmem:[#allocation8 + $0x118] sm:$0xf]
    %v212 = vld [vmem:[#allocation8 + $0x11c] sm:$0xf]
    %v213 = vld [vmem:[#allocation8 + $0x120] sm:$0xf]
    %v214 = vld [vmem:[#allocation8 + $0x124] sm:$0xf]
    %v215 = vld [vmem:[#allocation8 + $0x128] sm:$0xf]
    %v216 = vld [vmem:[#allocation8 + $0x12c] sm:$0xf]
    %v217 = vld [vmem:[#allocation8 + $0x130] sm:$0xf]
    %v218 = vld [vmem:[#allocation8 + $0x134] sm:$0xf]
    %v219 = vld [vmem:[#allocation8 + $0x138] sm:$0xf]
    %v220 = vld [vmem:[#allocation8 + $0x13c] sm:$0xf]
    %v221 = vld [vmem:[#allocation8 + $0x140] sm:$0xf]
    %v222 = vld [vmem:[#allocation8 + $0x144] sm:$0xf]
    %v223 = vld [vmem:[#allocation8 + $0x148] sm:$0xf]
    %v224 = vld [vmem:[#allocation8 + $0x14c] sm:$0xf]
    %v225 = vld [vmem:[#allocation8 + $0x150] sm:$0xf]
    %v226 = vld [vmem:[#allocation8 + $0x154] sm:$0xf]
    %v227 = vld [vmem:[#allocation8 + $0x158] sm:$0xf]
    %v228 = vld [vmem:[#allocation8 + $0x15c] sm:$0xf]
    %v229 = vld [vmem:[#allocation8 + $0x160] sm:$0xf]
    %v230 = vld [vmem:[#allocation8 + $0x164] sm:$0xf]
    %v231 = vld [vmem:[#allocation8 + $0x168] sm:$0xf]
    %v232 = vld [vmem:[#allocation8 + $0x16c] sm:$0xf]
    %v233 = vld [vmem:[#allocation8 + $0x170] sm:$0xf]
    %v234 = vld [vmem:[#allocation8 + $0x174] sm:$0xf]
    %v235 = vld [vmem:[#allocation8 + $0x178] sm:$0xf]
    %v236 = vld [vmem:[#allocation8 + $0x17c] sm:$0xf]
    %v237 = vld [vmem:[#allocation8 + $0x180] sm:$0xf]
    %v238 = vld [vmem:[#allocation8 + $0x184] sm:$0xf]
    %v239 = vld [vmem:[#allocation8 + $0x188] sm:$0xf]
    %v240 = vld [vmem:[#allocation8 + $0x18c] sm:$0xf]
    %v241 = vld [vmem:[#allocation8 + $0x190] sm:$0xf]
    %v242 = vld [vmem:[#allocation8 + $0x194] sm:$0xf]
    %v243 = vld [vmem:[#allocation8 + $0x198] sm:$0xf]
    %v244 = vld [vmem:[#allocation8 + $0x19c] sm:$0xf]
    %v245 = vld [vmem:[#allocation8 + $0x1a0] sm:$0xf]
    %v246 = vld [vmem:[#allocation8 + $0x1a4] sm:$0xf]
    %v247 = vld [vmem:[#allocation8 + $0x1a8] sm:$0xf]
    %v248 = vld [vmem:[#allocation8 + $0x1ac] sm:$0xf]
    %v249 = vld [vmem:[#allocation8 + $0x1b0] sm:$0xf]
    %v250 = vld [vmem:[#allocation8 + $0x1b4] sm:$0xf]
    %v251 = vld [vmem:[#allocation8 + $0x1b8] sm:$0xf]
    %v252 = vld [vmem:[#allocation8 + $0x1bc] sm:$0xf]
    %v253 = vld [vmem:[#allocation8 + $0x1c0] sm:$0xf]
    %v254 = vld [vmem:[#allocation8 + $0x1c4] sm:$0xf]
    %v255 = vld [vmem:[#allocation8 + $0x1c8] sm:$0xf]
    %v256 = vld [vmem:[#allocation8 + $0x1cc] sm:$0xf]
    %v257 = vld [vmem:[#allocation8 + $0x1d0] sm:$0xf]
    %v258 = vld [vmem:[#allocation8 + $0x1d4] sm:$0xf]
    %v259 = vld [vmem:[#allocation8 + $0x1d8] sm:$0xf]
    %v260 = vld [vmem:[#allocation8 + $0x1dc] sm:$0xf]
    %v261 = vld [vmem:[#allocation8 + $0x1e0] sm:$0xf]
    %v262 = vld [vmem:[#allocation8 + $0x1e4] sm:$0xf]
    %v263 = vld [vmem:[#allocation8 + $0x1e8] sm:$0xf]
    %v264 = vld [vmem:[#allocation8 + $0x1ec] sm:$0xf]
    %v265 = vld [vmem:[#allocation8 + $0x1f0] sm:$0xf]
    %v266 = vld [vmem:[#allocation8 + $0x1f4] sm:$0xf]
    %v267 = vld [vmem:[#allocation8 + $0x1f8] sm:$0xf]
    %v268 = vld [vmem:[#allocation8 + $0x1fc] sm:$0xf]
    %v269 = vld [vmem:[%s5] sm:$0xf]
    %v270 = vld [vmem:[%s5 + $0x4] sm:$0xf]
    %v271 = vld [vmem:[%s6] sm:$0x1]
    %v272 = vld [vmem:[%s7] sm:$0x1]
    %v273 = vpack.c.bf16 %v126, %v125
    %v274 = vlaneseq
    %v275 = vshrl.u32 %v274, 7
    %v276 = vsub.s32 0, %v275
    %v277 = vrot.slane %v269, %v276
    %v294 = vunpack.c.l.b16 %v141
    %v295 = vunpack.c.l.b16 %v142
    %v296 = vunpack.c.l.b16 %v143
    %v297 = vunpack.c.l.b16 %v144
    %v298 = vunpack.c.l.b16 %v145
    %v299 = vunpack.c.l.b16 %v146
    %v300 = vunpack.c.l.b16 %v147
    %v301 = vunpack.c.l.b16 %v148
    %v302 = vunpack.c.l.b16 %v149
    %v303 = vunpack.c.l.b16 %v150
    %v304 = vunpack.c.l.b16 %v151
    %v305 = vunpack.c.l.b16 %v152
    %v306 = vunpack.c.l.b16 %v153
    %v307 = vunpack.c.l.b16 %v154
    %v308 = vunpack.c.l.b16 %v155
    %v309 = vunpack.c.l.b16 %v156
    %v310 = vpack.c.b16 %v295, %v294
    %v311 = vpack.c.b16 %v297, %v296
    %v312 = vpack.c.b16 %v299, %v298
    %v313 = vpack.c.b16 %v301, %v300
    %v314 = vpack.c.b16 %v303, %v302
    %v315 = vpack.c.b16 %v305, %v304
    %v316 = vpack.c.b16 %v307, %v306
    %v317 = vpack.c.b16 %v309, %v308
    %326 = vmatprep.subr.bf16.mxu0 0
    %327 = vmatpush1.bf16.msra.mxu0 %v310
    %328 = vmatprep.subr.bf16.mxu0 0
    %329 = vmatpush1.bf16.msra.mxu0 %v311
    %330 = vmatprep.subr.bf16.mxu0 0
    %331 = vmatpush1.bf16.msra.mxu0 %v312
    %332 = vmatprep.subr.bf16.mxu0 0
    %333 = vmatpush1.bf16.msra.mxu0 %v313
    %334 = vmatprep.subr.bf16.mxu0 0
    %335 = vmatpush1.bf16.msra.mxu0 %v314
    %336 = vmatprep.subr.bf16.mxu0 0
    %337 = vmatpush1.bf16.msra.mxu0 %v315
    %338 = vmatprep.subr.bf16.mxu0 0
    %339 = vmatpush1.bf16.msra.mxu0 %v316
    %340 = vmatprep.subr.bf16.mxu0 0
    %341 = vmatpush1.bf16.msra.mxu0 %v317
    %342 = vmatprep.subr.bf16.mxu0 0
    %343 = vmatpush1.bf16.msra.mxu0 0
    %344 = vmatprep.subr.bf16.mxu0 0
    %345 = vmatpush1.bf16.msra.mxu0 0
    %346 = vmatprep.subr.bf16.mxu0 0
    %347 = vmatpush1.bf16.msra.mxu0 0
    %348 = vmatprep.subr.bf16.mxu0 0
    %349 = vmatpush1.bf16.msra.mxu0 0
    %350 = vmatprep.subr.bf16.mxu0 0
    %351 = vmatpush1.bf16.msra.mxu0 0
    %352 = vmatprep.subr.bf16.mxu0 0
    %353 = vmatpush1.bf16.msra.mxu0 0
    %354 = vmatprep.subr.bf16.mxu0 0
    %355 = vmatpush1.bf16.msra.mxu0 0
    %356 = vmatprep.subr.bf16.mxu0 0
    %357 = vmatpush1.bf16.msra.mxu0 0
    %358 = vmatprep.mubr.bf16.mxu0 0
    %359 = vmatmul.mubr.bf16.gmra.mrb[0].mxu0 %v273
    %v360 = vpop.f32.mrb[0].mxu0
    %v361 = vadd.f32 %v277, %v360
    %v362 = vpop.f32.mrb[0].mxu0
    %v363 = vpop.f32.mrb[0].mxu0
    %v364 = vadd.f32 %v277, %v363
    %v365 = vpop.f32.mrb[0].mxu0
    %366 = vdwg.mxu0
    %v367 = vmul.f32 %v361, 0.25
    %v368 = vmul.f32 %v364, 0.25
    %v369 = vlaneseq
    %v370 = vshrl.u32 %v369, 7
    %v371 = vsub.s32 1, %v370
    %v372 = vrot.slane %v269, %v371
    %v389 = vunpack.c.l.b16 %v157
    %v390 = vunpack.c.l.b16 %v158
    %v391 = vunpack.c.l.b16 %v159
    %v392 = vunpack.c.l.b16 %v160
    %v393 = vunpack.c.l.b16 %v161
    %v394 = vunpack.c.l.b16 %v162
    %v395 = vunpack.c.l.b16 %v163
    %v396 = vunpack.c.l.b16 %v164
    %v397 = vunpack.c.l.b16 %v165
    %v398 = vunpack.c.l.b16 %v166
    %v399 = vunpack.c.l.b16 %v167
    %v400 = vunpack.c.l.b16 %v168
    %v401 = vunpack.c.l.b16 %v169
    %v402 = vunpack.c.l.b16 %v170
    %v403 = vunpack.c.l.b16 %v171
    %v404 = vunpack.c.l.b16 %v172
    %v405 = vpack.c.b16 %v390, %v389
    %v406 = vpack.c.b16 %v392, %v391
    %v407 = vpack.c.b16 %v394, %v393
    %v408 = vpack.c.b16 %v396, %v395
    %v409 = vpack.c.b16 %v398, %v397
    %v410 = vpack.c.b16 %v400, %v399
    %v411 = vpack.c.b16 %v402, %v401
    %v412 = vpack.c.b16 %v404, %v403
    %421 = vmatprep.subr.bf16.mxu0 0
    %422 = vmatpush1.bf16.msra.mxu0 %v405
    %423 = vmatprep.subr.bf16.mxu0 0
    %424 = vmatpush1.bf16.msra.mxu0 %v406
    %425 = vmatprep.subr.bf16.mxu0 0
    %426 = vmatpush1.bf16.msra.mxu0 %v407
    %427 = vmatprep.subr.bf16.mxu0 0
    %428 = vmatpush1.bf16.msra.mxu0 %v408
    %429 = vmatprep.subr.bf16.mxu0 0
    %430 = vmatpush1.bf16.msra.mxu0 %v409
    %431 = vmatprep.subr.bf16.mxu0 0
    %432 = vmatpush1.bf16.msra.mxu0 %v410
    %433 = vmatprep.subr.bf16.mxu0 0
    %434 = vmatpush1.bf16.msra.mxu0 %v411
    %435 = vmatprep.subr.bf16.mxu0 0
    %436 = vmatpush1.bf16.msra.mxu0 %v412
    %437 = vmatprep.subr.bf16.mxu0 0
    %438 = vmatpush1.bf16.msra.mxu0 0
    %439 = vmatprep.subr.bf16.mxu0 0
    %440 = vmatpush1.bf16.msra.mxu0 0
    %441 = vmatprep.subr.bf16.mxu0 0
    %442 = vmatpush1.bf16.msra.mxu0 0
    %443 = vmatprep.subr.bf16.mxu0 0
    %444 = vmatpush1.bf16.msra.mxu0 0
    %445 = vmatprep.subr.bf16.mxu0 0
    %446 = vmatpush1.bf16.msra.mxu0 0
    %447 = vmatprep.subr.bf16.mxu0 0
    %448 = vmatpush1.bf16.msra.mxu0 0
    %449 = vmatprep.subr.bf16.mxu0 0
    %450 = vmatpush1.bf16.msra.mxu0 0
    %451 = vmatprep.subr.bf16.mxu0 0
    %452 = vmatpush1.bf16.msra.mxu0 0
    %453 = vmatprep.mubr.bf16.mxu0 0
    %454 = vmatmul.mubr.bf16.gmra.mrb[0].mxu0 %v273
    %v455 = vpop.f32.mrb[0].mxu0
    %v456 = vadd.f32 %v372, %v455
    %v457 = vpop.f32.mrb[0].mxu0
    %v458 = vpop.f32.mrb[0].mxu0
    %v459 = vadd.f32 %v372, %v458
    %v460 = vpop.f32.mrb[0].mxu0
    %461 = vdwg.mxu0
    %v462 = vlaneseq
    %v463 = vshrl.u32 %v462, 7
    %v464 = vsub.s32 2, %v463
    %v465 = vrot.slane %v269, %v464
    %v482 = vunpack.c.l.b16 %v173
    %v483 = vunpack.c.l.b16 %v174
    %v484 = vunpack.c.l.b16 %v175
    %v485 = vunpack.c.l.b16 %v176
    %v486 = vunpack.c.l.b16 %v177
    %v487 = vunpack.c.l.b16 %v178
    %v488 = vunpack.c.l.b16 %v179
    %v489 = vunpack.c.l.b16 %v180
    %v490 = vunpack.c.l.b16 %v181
    %v491 = vunpack.c.l.b16 %v182
    %v492 = vunpack.c.l.b16 %v183
    %v493 = vunpack.c.l.b16 %v184
    %v494 = vunpack.c.l.b16 %v185
    %v495 = vunpack.c.l.b16 %v186
    %v496 = vunpack.c.l.b16 %v187
    %v497 = vunpack.c.l.b16 %v188
    %v498 = vpack.c.b16 %v483, %v482
    %v499 = vpack.c.b16 %v485, %v484
    %v500 = vpack.c.b16 %v487, %v486
    %v501 = vpack.c.b16 %v489, %v488
    %v502 = vpack.c.b16 %v491, %v490
    %v503 = vpack.c.b16 %v493, %v492
    %v504 = vpack.c.b16 %v495, %v494
    %v505 = vpack.c.b16 %v497, %v496
    %514 = vmatprep.subr.bf16.mxu0 0
    %515 = vmatpush1.bf16.msra.mxu0 %v498
    %516 = vmatprep.subr.bf16.mxu0 0
    %517 = vmatpush1.bf16.msra.mxu0 %v499
    %518 = vmatprep.subr.bf16.mxu0 0
    %519 = vmatpush1.bf16.msra.mxu0 %v500
    %520 = vmatprep.subr.bf16.mxu0 0
    %521 = vmatpush1.bf16.msra.mxu0 %v501
    %522 = vmatprep.subr.bf16.mxu0 0
    %523 = vmatpush1.bf16.msra.mxu0 %v502
    %524 = vmatprep.subr.bf16.mxu0 0
    %525 = vmatpush1.bf16.msra.mxu0 %v503
    %526 = vmatprep.subr.bf16.mxu0 0
    %527 = vmatpush1.bf16.msra.mxu0 %v504
    %528 = vmatprep.subr.bf16.mxu0 0
    %529 = vmatpush1.bf16.msra.mxu0 %v505
    %530 = vmatprep.subr.bf16.mxu0 0
    %531 = vmatpush1.bf16.msra.mxu0 0
    %532 = vmatprep.subr.bf16.mxu0 0
    %533 = vmatpush1.bf16.msra.mxu0 0
    %534 = vmatprep.subr.bf16.mxu0 0
    %535 = vmatpush1.bf16.msra.mxu0 0
    %536 = vmatprep.subr.bf16.mxu0 0
    %537 = vmatpush1.bf16.msra.mxu0 0
    %538 = vmatprep.subr.bf16.mxu0 0
    %539 = vmatpush1.bf16.msra.mxu0 0
    %540 = vmatprep.subr.bf16.mxu0 0
    %541 = vmatpush1.bf16.msra.mxu0 0
    %542 = vmatprep.subr.bf16.mxu0 0
    %543 = vmatpush1.bf16.msra.mxu0 0
    %544 = vmatprep.subr.bf16.mxu0 0
    %545 = vmatpush1.bf16.msra.mxu0 0
    %546 = vmatprep.mubr.bf16.mxu0 0
    %547 = vmatmul.mubr.bf16.gmra.mrb[0].mxu0 %v273
    %v548 = vpop.f32.mrb[0].mxu0
    %v549 = vadd.f32 %v465, %v548
    %v550 = vpop.f32.mrb[0].mxu0
    %v551 = vpop.f32.mrb[0].mxu0
    %v552 = vadd.f32 %v465, %v551
    %v553 = vpop.f32.mrb[0].mxu0
    %554 = vdwg.mxu0
    %v555 = vpack.c.bf16 %v368, %v367
    %v556 = vpack.c.bf16 %v459, %v456
    %v557 = vpack.c.bf16 %v552, %v549
    %v559 = vunpack.c.l.b16 %v555
    %v560 = vunpack.c.h.b16 %v555
    %v561 = vpack.c.b16 %v559, %v559
    %v562 = vpack.c.b16 %v560, %v560
    %v564 = vunpack.c.l.b16 %v556
    %v565 = vunpack.c.h.b16 %v556
    %v566 = vpack.c.b16 %v564, %v564
    %v567 = vpack.c.b16 %v565, %v565
    %v569 = vunpack.c.l.b16 %v557
    %v570 = vunpack.c.h.b16 %v557
    %v571 = vpack.c.b16 %v569, %v569
    %v572 = vpack.c.b16 %v570, %v570
    %vm573 = vcmask 130048
    %v575 = vsel %vm573, %v561, 0
    %v578 = vsel %vm573, %v566, 0
    %580 = vmatprep.subr.bf16.mxu0 0
    %581 = vmatpush1.bf16.xpose.msra.mxu0 %v578
    %582 = vmatprep.subr.bf16.mxu0 0
    %583 = vmatpush1.bf16.xpose.msra.mxu0 0
    %584 = vmatprep.subr.bf16.mxu0 0
    %585 = vmatpush1.bf16.xpose.msra.mxu0 0
    %586 = vmatprep.subr.bf16.mxu0 0
    %587 = vmatpush1.bf16.xpose.msra.mxu0 0
    %588 = vmatprep.subr.bf16.mxu0 0
    %589 = vmatpush1.bf16.xpose.msra.mxu0 0
    %590 = vmatprep.subr.bf16.mxu0 0
    %591 = vmatpush1.bf16.xpose.msra.mxu0 0
    %592 = vmatprep.subr.bf16.mxu0 0
    %593 = vmatpush1.bf16.xpose.msra.mxu0 0
    %594 = vmatprep.subr.bf16.mxu0 0
    %595 = vmatpush1.bf16.xpose.msra.mxu0 0
    %596 = vmatprep.subr.bf16.mxu0 0
    %597 = vmatpush1.bf16.xpose.msra.mxu0 0
    %598 = vmatprep.subr.bf16.mxu0 0
    %599 = vmatpush1.bf16.xpose.msra.mxu0 0
    %600 = vmatprep.subr.bf16.mxu0 0
    %601 = vmatpush1.bf16.xpose.msra.mxu0 0
    %602 = vmatprep.subr.bf16.mxu0 0
    %603 = vmatpush1.bf16.xpose.msra.mxu0 0
    %604 = vmatprep.subr.bf16.mxu0 0
    %605 = vmatpush1.bf16.xpose.msra.mxu0 0
    %606 = vmatprep.subr.bf16.mxu0 0
    %607 = vmatpush1.bf16.xpose.msra.mxu0 0
    %608 = vmatprep.subr.bf16.mxu0 0
    %609 = vmatpush1.bf16.xpose.msra.mxu0 0
    %610 = vmatprep.subr.bf16.mxu0 0
    %611 = vmatpush1.bf16.xpose.msra.mxu0 0
    %612 = vmatprep.mubr.bf16.mxu0 0
    %613 = vmatmul.mubr.bf16.gmra.mrb[0].mxu0 %v575
    %v614 = vpop.f32.mrb[0].mxu0
    %v615 = vadd.f32 %v133, %v614
    %v616 = vpop.f32.mrb[0].mxu0
    %v617 = vpop.f32.mrb[0].mxu0
    %v618 = vpop.f32.mrb[0].mxu0
    %619 = vdwg.mxu0
    %v621 = vsel %vm573, %v562, 0
    %v624 = vsel %vm573, %v567, 0
    %626 = vmatprep.subr.bf16.mxu0 0
    %627 = vmatpush1.bf16.xpose.msra.mxu0 %v624
    %628 = vmatprep.subr.bf16.mxu0 0
    %629 = vmatpush1.bf16.xpose.msra.mxu0 0
    %630 = vmatprep.subr.bf16.mxu0 0
    %631 = vmatpush1.bf16.xpose.msra.mxu0 0
    %632 = vmatprep.subr.bf16.mxu0 0
    %633 = vmatpush1.bf16.xpose.msra.mxu0 0
    %634 = vmatprep.subr.bf16.mxu0 0
    %635 = vmatpush1.bf16.xpose.msra.mxu0 0
    %636 = vmatprep.subr.bf16.mxu0 0
    %637 = vmatpush1.bf16.xpose.msra.mxu0 0
    %638 = vmatprep.subr.bf16.mxu0 0
    %639 = vmatpush1.bf16.xpose.msra.mxu0 0
    %640 = vmatprep.subr.bf16.mxu0 0
    %641 = vmatpush1.bf16.xpose.msra.mxu0 0
    %642 = vmatprep.subr.bf16.mxu0 0
    %643 = vmatpush1.bf16.xpose.msra.mxu0 0
    %644 = vmatprep.subr.bf16.mxu0 0
    %645 = vmatpush1.bf16.xpose.msra.mxu0 0
    %646 = vmatprep.subr.bf16.mxu0 0
    %647 = vmatpush1.bf16.xpose.msra.mxu0 0
    %648 = vmatprep.subr.bf16.mxu0 0
    %649 = vmatpush1.bf16.xpose.msra.mxu0 0
    %650 = vmatprep.subr.bf16.mxu0 0
    %651 = vmatpush1.bf16.xpose.msra.mxu0 0
    %652 = vmatprep.subr.bf16.mxu0 0
    %653 = vmatpush1.bf16.xpose.msra.mxu0 0
    %654 = vmatprep.subr.bf16.mxu0 0
    %655 = vmatpush1.bf16.xpose.msra.mxu0 0
    %656 = vmatprep.subr.bf16.mxu0 0
    %657 = vmatpush1.bf16.xpose.msra.mxu0 0
    %658 = vmatprep.mubr.bf16.mxu0 0
    %659 = vmatmul.mubr.bf16.gmra.mrb[0].mxu0 %v621
    %v660 = vpop.f32.mrb[0].mxu0
    %v661 = vadd.f32 %v134, %v660
    %v662 = vpop.f32.mrb[0].mxu0
    %v663 = vpop.f32.mrb[0].mxu0
    %v664 = vpop.f32.mrb[0].mxu0
    %665 = vdwg.mxu0
    %vm666 = vcmask 64512
    %v667 = vsel %vm666, %v615, -inf
    %668 = vmax.xlane.f32.xlu0 %v667
    %v669 = vpop.xlane.xlu0 %668
    %v670 = vsel %vm666, %v661, -inf
    %671 = vmax.xlane.f32.xlu0 %v670
    %v672 = vpop.xlane.xlu0 %671
    %v673 = vsub.f32 %v615, %v669
    %v674 = vsub.f32 %v661, %v672
    %v675 = vmul.f32 %v673, 1.442695
    %v676 = vpow.pop %v675
    %v677 = vmul.f32 %v674, 1.442695
    %v678 = vpow.pop %v677
    %v679 = vsel %vm666, %v676, 0.0
    %680 = vadd.xlane.f32.xlu0 %v679
    %v681 = vpop.xlane.xlu0 %680
    %v682 = vsel %vm666, %v678, 0.0
    %683 = vadd.xlane.f32.xlu0 %v682
    %v684 = vpop.xlane.xlu0 %683
    %v685 = vrcp.pop %v681
    %v686 = vrcp.pop %v684
    %v687 = vmul.f32 %v676, %v685
    %v688 = vmul.f32 %v678, %v686
    %v689 = vpack.c.bf16 %v687, %v687
    %v690 = vpack.c.bf16 %v688, %v688
    %v692 = vsel %vm666, %v689, 0
    %vm694 = vcmask 1043456
    %v696 = vsel %vm694, %v571, 0
    %698 = vmatprep.subr.bf16.mxu0 0
    %699 = vmatpush1.bf16.msra.mxu0 %v696
    %700 = vmatprep.subr.bf16.mxu0 0
    %701 = vmatpush1.bf16.msra.mxu0 0
    %702 = vmatprep.subr.bf16.mxu0 0
    %703 = vmatpush1.bf16.msra.mxu0 0
    %704 = vmatprep.subr.bf16.mxu0 0
    %705 = vmatpush1.bf16.msra.mxu0 0
    %706 = vmatprep.subr.bf16.mxu0 0
    %707 = vmatpush1.bf16.msra.mxu0 0
    %708 = vmatprep.subr.bf16.mxu0 0
    %709 = vmatpush1.bf16.msra.mxu0 0
    %710 = vmatprep.subr.bf16.mxu0 0
    %711 = vmatpush1.bf16.msra.mxu0 0
    %712 = vmatprep.subr.bf16.mxu0 0
    %713 = vmatpush1.bf16.msra.mxu0 0
    %714 = vmatprep.subr.bf16.mxu0 0
    %715 = vmatpush1.bf16.msra.mxu0 0
    %716 = vmatprep.subr.bf16.mxu0 0
    %717 = vmatpush1.bf16.msra.mxu0 0
    %718 = vmatprep.subr.bf16.mxu0 0
    %719 = vmatpush1.bf16.msra.mxu0 0
    %720 = vmatprep.subr.bf16.mxu0 0
    %721 = vmatpush1.bf16.msra.mxu0 0
    %722 = vmatprep.subr.bf16.mxu0 0
    %723 = vmatpush1.bf16.msra.mxu0 0
    %724 = vmatprep.subr.bf16.mxu0 0
    %725 = vmatpush1.bf16.msra.mxu0 0
    %726 = vmatprep.subr.bf16.mxu0 0
    %727 = vmatpush1.bf16.msra.mxu0 0
    %728 = vmatprep.subr.bf16.mxu0 0
    %729 = vmatpush1.bf16.msra.mxu0 0
    %730 = vmatprep.mubr.bf16.mxu0 0
    %731 = vmatmul.mubr.bf16.gmra.mrb[0].mxu0 %v692
    %v732 = vpop.f32.mrb[0].mxu0
    %v733 = vadd.f32 0.0, %v732
    %v734 = vpop.f32.mrb[0].mxu0
    %v735 = vpop.f32.mrb[0].mxu0
    %v736 = vpop.f32.mrb[0].mxu0
    %737 = vdwg.mxu0
    %v739 = vsel %vm666, %v690, 0
    %v742 = vsel %vm694, %v572, 0
    %744 = vmatprep.subr.bf16.mxu0 0
    %745 = vmatpush1.bf16.msra.mxu0 %v742
    %746 = vmatprep.subr.bf16.mxu0 0
    %747 = vmatpush1.bf16.msra.mxu0 0
    %748 = vmatprep.subr.bf16.mxu0 0
    %749 = vmatpush1.bf16.msra.mxu0 0
    %750 = vmatprep.subr.bf16.mxu0 0
    %751 = vmatpush1.bf16.msra.mxu0 0
    %752 = vmatprep.subr.bf16.mxu0 0
    %753 = vmatpush1.bf16.msra.mxu0 0
    %754 = vmatprep.subr.bf16.mxu0 0
    %755 = vmatpush1.bf16.msra.mxu0 0
    %756 = vmatprep.subr.bf16.mxu0 0
    %757 = vmatpush1.bf16.msra.mxu0 0
    %758 = vmatprep.subr.bf16.mxu0 0
    %759 = vmatpush1.bf16.msra.mxu0 0
    %760 = vmatprep.subr.bf16.mxu0 0
    %761 = vmatpush1.bf16.msra.mxu0 0
    %762 = vmatprep.subr.bf16.mxu0 0
    %763 = vmatpush1.bf16.msra.mxu0 0
    %764 = vmatprep.subr.bf16.mxu0 0
    %765 = vmatpush1.bf16.msra.mxu0 0
    %766 = vmatprep.subr.bf16.mxu0 0
    %767 = vmatpush1.bf16.msra.mxu0 0
    %768 = vmatprep.subr.bf16.mxu0 0
    %769 = vmatpush1.bf16.msra.mxu0 0
    %770 = vmatprep.subr.bf16.mxu0 0
    %771 = vmatpush1.bf16.msra.mxu0 0
    %772 = vmatprep.subr.bf16.mxu0 0
    %773 = vmatpush1.bf16.msra.mxu0 0
    %774 = vmatprep.subr.bf16.mxu0 0
    %775 = vmatpush1.bf16.msra.mxu0 0
    %776 = vmatprep.mubr.bf16.mxu0 0
    %777 = vmatmul.mubr.bf16.gmra.mrb[0].mxu0 %v739
    %v778 = vpop.f32.mrb[0].mxu0
    %v779 = vadd.f32 0.0, %v778
    %v780 = vpop.f32.mrb[0].mxu0
    %v781 = vpop.f32.mrb[0].mxu0
    %v782 = vpop.f32.mrb[0].mxu0
    %783 = vdwg.mxu0
    %v784 = vpack.c.bf16 %v779, %v733
    %785 = vrot.lane.b32.xlu0 %v561, 112
    %v786 = vpop.permute.xlu0 %785
    %787 = vrot.lane.b32.xlu0 %v566, 112
    %v788 = vpop.permute.xlu0 %787
    %v790 = vsel %vm573, %v786, 0
    %v793 = vsel %vm573, %v788, 0
    %795 = vmatprep.subr.bf16.mxu0 0
    %796 = vmatpush1.bf16.xpose.msra.mxu0 %v793
    %797 = vmatprep.subr.bf16.mxu0 0
    %798 = vmatpush1.bf16.xpose.msra.mxu0 0
    %799 = vmatprep.subr.bf16.mxu0 0
    %800 = vmatpush1.bf16.xpose.msra.mxu0 0
    %801 = vmatprep.subr.bf16.mxu0 0
    %802 = vmatpush1.bf16.xpose.msra.mxu0 0
    %803 = vmatprep.subr.bf16.mxu0 0
    %804 = vmatpush1.bf16.xpose.msra.mxu0 0
    %805 = vmatprep.subr.bf16.mxu0 0
    %806 = vmatpush1.bf16.xpose.msra.mxu0 0
    %807 = vmatprep.subr.bf16.mxu0 0
    %808 = vmatpush1.bf16.xpose.msra.mxu0 0
    %809 = vmatprep.subr.bf16.mxu0 0
    %810 = vmatpush1.bf16.xpose.msra.mxu0 0
    %811 = vmatprep.subr.bf16.mxu0 0
    %812 = vmatpush1.bf16.xpose.msra.mxu0 0
    %813 = vmatprep.subr.bf16.mxu0 0
    %814 = vmatpush1.bf16.xpose.msra.mxu0 0
    %815 = vmatprep.subr.bf16.mxu0 0
    %816 = vmatpush1.bf16.xpose.msra.mxu0 0
    %817 = vmatprep.subr.bf16.mxu0 0
    %818 = vmatpush1.bf16.xpose.msra.mxu0 0
    %819 = vmatprep.subr.bf16.mxu0 0
    %820 = vmatpush1.bf16.xpose.msra.mxu0 0
    %821 = vmatprep.subr.bf16.mxu0 0
    %822 = vmatpush1.bf16.xpose.msra.mxu0 0
    %823 = vmatprep.subr.bf16.mxu0 0
    %824 = vmatpush1.bf16.xpose.msra.mxu0 0
    %825 = vmatprep.subr.bf16.mxu0 0
    %826 = vmatpush1.bf16.xpose.msra.mxu0 0
    %827 = vmatprep.mubr.bf16.mxu0 0
    %828 = vmatmul.mubr.bf16.gmra.mrb[0].mxu0 %v790
    %v829 = vpop.f32.mrb[0].mxu0
    %v830 = vadd.f32 %v133, %v829
    %v831 = vpop.f32.mrb[0].mxu0
    %v832 = vpop.f32.mrb[0].mxu0
    %v833 = vpop.f32.mrb[0].mxu0
    %834 = vdwg.mxu0
    %835 = vrot.lane.b32.xlu0 %v562, 112
    %v836 = vpop.permute.xlu0 %835
    %837 = vrot.lane.b32.xlu0 %v567, 112
    %v838 = vpop.permute.xlu0 %837
    %v840 = vsel %vm573, %v836, 0
    %v843 = vsel %vm573, %v838, 0
    %845 = vmatprep.subr.bf16.mxu0 0
    %846 = vmatpush1.bf16.xpose.msra.mxu0 %v843
    %847 = vmatprep.subr.bf16.mxu0 0
    %848 = vmatpush1.bf16.xpose.msra.mxu0 0
    %849 = vmatprep.subr.bf16.mxu0 0
    %850 = vmatpush1.bf16.xpose.msra.mxu0 0
    %851 = vmatprep.subr.bf16.mxu0 0
    %852 = vmatpush1.bf16.xpose.msra.mxu0 0
    %853 = vmatprep.subr.bf16.mxu0 0
    %854 = vmatpush1.bf16.xpose.msra.mxu0 0
    %855 = vmatprep.subr.bf16.mxu0 0
    %856 = vmatpush1.bf16.xpose.msra.mxu0 0
    %857 = vmatprep.subr.bf16.mxu0 0
    %858 = vmatpush1.bf16.xpose.msra.mxu0 0
    %859 = vmatprep.subr.bf16.mxu0 0
    %860 = vmatpush1.bf16.xpose.msra.mxu0 0
    %861 = vmatprep.subr.bf16.mxu0 0
    %862 = vmatpush1.bf16.xpose.msra.mxu0 0
    %863 = vmatprep.subr.bf16.mxu0 0
    %864 = vmatpush1.bf16.xpose.msra.mxu0 0
    %865 = vmatprep.subr.bf16.mxu0 0
    %866 = vmatpush1.bf16.xpose.msra.mxu0 0
    %867 = vmatprep.subr.bf16.mxu0 0
    %868 = vmatpush1.bf16.xpose.msra.mxu0 0
    %869 = vmatprep.subr.bf16.mxu0 0
    %870 = vmatpush1.bf16.xpose.msra.mxu0 0
    %871 = vmatprep.subr.bf16.mxu0 0
    %872 = vmatpush1.bf16.xpose.msra.mxu0 0
    %873 = vmatprep.subr.bf16.mxu0 0
    %874 = vmatpush1.bf16.xpose.msra.mxu0 0
    %875 = vmatprep.subr.bf16.mxu0 0
    %876 = vmatpush1.bf16.xpose.msra.mxu0 0
    %877 = vmatprep.mubr.bf16.mxu0 0
    %878 = vmatmul.mubr.bf16.gmra.mrb[0].mxu0 %v840
    %v879 = vpop.f32.mrb[0].mxu0
    %v880 = vadd.f32 %v134, %v879
    %v881 = vpop.f32.mrb[0].mxu0
    %v882 = vpop.f32.mrb[0].mxu0
    %v883 = vpop.f32.mrb[0].mxu0
    %884 = vdwg.mxu0
    %v885 = vsel %vm666, %v830, -inf
    %886 = vmax.xlane.f32.xlu0 %v885
    %v887 = vpop.xlane.xlu0 %886
    %v888 = vsel %vm666, %v880, -inf
    %889 = vmax.xlane.f32.xlu0 %v888
    %v890 = vpop.xlane.xlu0 %889
    %v891 = vsub.f32 %v830, %v887
    %v892 = vsub.f32 %v880, %v890
    %v893 = vmul.f32 %v891, 1.442695
    %v894 = vpow.pop %v893
    %v895 = vmul.f32 %v892, 1.442695
    %v896 = vpow.pop %v895
    %v897 = vsel %vm666, %v894, 0.0
    %898 = vadd.xlane.f32.xlu0 %v897
    %v899 = vpop.xlane.xlu0 %898
    %v900 = vsel %vm666, %v896, 0.0
    %901 = vadd.xlane.f32.xlu0 %v900
    %v902 = vpop.xlane.xlu0 %901
    %v903 = vrcp.pop %v899
    %v904 = vrcp.pop %v902
    %v905 = vmul.f32 %v894, %v903
    %v906 = vmul.f32 %v896, %v904
    %v907 = vpack.c.bf16 %v905, %v905
    %v908 = vpack.c.bf16 %v906, %v906
    %909 = vrot.lane.b32.xlu0 %v571, 112
    %v910 = vpop.permute.xlu0 %909
    %v912 = vsel %vm666, %v907, 0
    %v915 = vsel %vm694, %v910, 0
    %917 = vmatprep.subr.bf16.mxu0 0
    %918 = vmatpush1.bf16.msra.mxu0 %v915
    %919 = vmatprep.subr.bf16.mxu0 0
    %920 = vmatpush1.bf16.msra.mxu0 0
    %921 = vmatprep.subr.bf16.mxu0 0
    %922 = vmatpush1.bf16.msra.mxu0 0
    %923 = vmatprep.subr.bf16.mxu0 0
    %924 = vmatpush1.bf16.msra.mxu0 0
    %925 = vmatprep.subr.bf16.mxu0 0
    %926 = vmatpush1.bf16.msra.mxu0 0
    %927 = vmatprep.subr.bf16.mxu0 0
    %928 = vmatpush1.bf16.msra.mxu0 0
    %929 = vmatprep.subr.bf16.mxu0 0
    %930 = vmatpush1.bf16.msra.mxu0 0
    %931 = vmatprep.subr.bf16.mxu0 0
    %932 = vmatpush1.bf16.msra.mxu0 0
    %933 = vmatprep.subr.bf16.mxu0 0
    %934 = vmatpush1.bf16.msra.mxu0 0
    %935 = vmatprep.subr.bf16.mxu0 0
    %936 = vmatpush1.bf16.msra.mxu0 0
    %937 = vmatprep.subr.bf16.mxu0 0
    %938 = vmatpush1.bf16.msra.mxu0 0
    %939 = vmatprep.subr.bf16.mxu0 0
    %940 = vmatpush1.bf16.msra.mxu0 0
    %941 = vmatprep.subr.bf16.mxu0 0
    %942 = vmatpush1.bf16.msra.mxu0 0
    %943 = vmatprep.subr.bf16.mxu0 0
    %944 = vmatpush1.bf16.msra.mxu0 0
    %945 = vmatprep.subr.bf16.mxu0 0
    %946 = vmatpush1.bf16.msra.mxu0 0
    %947 = vmatprep.subr.bf16.mxu0 0
    %948 = vmatpush1.bf16.msra.mxu0 0
    %949 = vmatprep.mubr.bf16.mxu0 0
    %950 = vmatmul.mubr.bf16.gmra.mrb[0].mxu0 %v912
    %v951 = vpop.f32.mrb[0].mxu0
    %v952 = vadd.f32 0.0, %v951
    %v953 = vpop.f32.mrb[0].mxu0
    %v954 = vpop.f32.mrb[0].mxu0
    %v955 = vpop.f32.mrb[0].mxu0
    %956 = vdwg.mxu0
    %957 = vrot.lane.b32.xlu0 %v572, 112
    %v958 = vpop.permute.xlu0 %957
    %v960 = vsel %vm666, %v908, 0
    %v963 = vsel %vm694, %v958, 0
    %965 = vmatprep.subr.bf16.mxu0 0
    %966 = vmatpush1.bf16.msra.mxu0 %v963
    %967 = vmatprep.subr.bf16.mxu0 0
    %968 = vmatpush1.bf16.msra.mxu0 0
    %969 = vmatprep.subr.bf16.mxu0 0
    %970 = vmatpush1.bf16.msra.mxu0 0
    %971 = vmatprep.subr.bf16.mxu0 0
    %972 = vmatpush1.bf16.msra.mxu0 0
    %973 = vmatprep.subr.bf16.mxu0 0
    %974 = vmatpush1.bf16.msra.mxu0 0
    %975 = vmatprep.subr.bf16.mxu0 0
    %976 = vmatpush1.bf16.msra.mxu0 0
    %977 = vmatprep.subr.bf16.mxu0 0
    %978 = vmatpush1.bf16.msra.mxu0 0
    %979 = vmatprep.subr.bf16.mxu0 0
    %980 = vmatpush1.bf16.msra.mxu0 0
    %981 = vmatprep.subr.bf16.mxu0 0
    %982 = vmatpush1.bf16.msra.mxu0 0
    %983 = vmatprep.subr.bf16.mxu0 0
    %984 = vmatpush1.bf16.msra.mxu0 0
    %985 = vmatprep.subr.bf16.mxu0 0
    %986 = vmatpush1.bf16.msra.mxu0 0
    %987 = vmatprep.subr.bf16.mxu0 0
    %988 = vmatpush1.bf16.msra.mxu0 0
    %989 = vmatprep.subr.bf16.mxu0 0
    %990 = vmatpush1.bf16.msra.mxu0 0
    %991 = vmatprep.subr.bf16.mxu0 0
    %992 = vmatpush1.bf16.msra.mxu0 0
    %993 = vmatprep.subr.bf16.mxu0 0
    %994 = vmatpush1.bf16.msra.mxu0 0
    %995 = vmatprep.subr.bf16.mxu0 0
    %996 = vmatpush1.bf16.msra.mxu0 0
    %997 = vmatprep.mubr.bf16.mxu0 0
    %998 = vmatmul.mubr.bf16.gmra.mrb[0].mxu0 %v960
    %v999 = vpop.f32.mrb[0].mxu0
    %v1000 = vadd.f32 0.0, %v999
    %v1001 = vpop.f32.mrb[0].mxu0
    %v1002 = vpop.f32.mrb[0].mxu0
    %v1003 = vpop.f32.mrb[0].mxu0
    %1004 = vdwg.mxu0
    %v1005 = vpack.c.bf16 %v1000, %v952
    %v1008 = vunpack.c.l.b16 %v191
    %v1009 = vunpack.c.l.b16 %v192
    %v1010 = vpack.c.b16 %v1009, %v1008
    %v1013 = vsel %vm573, %v1005, 0
    %1015 = vmatprep.subr.bf16.mxu0 0
    %1016 = vmatpush1.bf16.msra.mxu0 %v1010
    %1017 = vmatprep.subr.bf16.mxu0 0
    %1018 = vmatpush1.bf16.msra.mxu0 0
    %1019 = vmatprep.subr.bf16.mxu0 0
    %1020 = vmatpush1.bf16.msra.mxu0 0
    %1021 = vmatprep.subr.bf16.mxu0 0
    %1022 = vmatpush1.bf16.msra.mxu0 0
    %1023 = vmatprep.subr.bf16.mxu0 0
    %1024 = vmatpush1.bf16.msra.mxu0 0
    %1025 = vmatprep.subr.bf16.mxu0 0
    %1026 = vmatpush1.bf16.msra.mxu0 0
    %1027 = vmatprep.subr.bf16.mxu0 0
    %1028 = vmatpush1.bf16.msra.mxu0 0
    %1029 = vmatprep.subr.bf16.mxu0 0
    %1030 = vmatpush1.bf16.msra.mxu0 0
    %1031 = vmatprep.subr.bf16.mxu0 0
    %1032 = vmatpush1.bf16.msra.mxu0 0
    %1033 = vmatprep.subr.bf16.mxu0 0
    %1034 = vmatpush1.bf16.msra.mxu0 0
    %1035 = vmatprep.subr.bf16.mxu0 0
    %1036 = vmatpush1.bf16.msra.mxu0 0
    %1037 = vmatprep.subr.bf16.mxu0 0
    %1038 = vmatpush1.bf16.msra.mxu0 0
    %1039 = vmatprep.subr.bf16.mxu0 0
    %1040 = vmatpush1.bf16.msra.mxu0 0
    %1041 = vmatprep.subr.bf16.mxu0 0
    %1042 = vmatpush1.bf16.msra.mxu0 0
    %1043 = vmatprep.subr.bf16.mxu0 0
    %1044 = vmatpush1.bf16.msra.mxu0 0
    %1045 = vmatprep.subr.bf16.mxu0 0
    %1046 = vmatpush1.bf16.msra.mxu0 0
    %1047 = vmatprep.mubr.bf16.mxu0 0
    %1048 = vmatmul.mubr.bf16.gmra.mrb[0].mxu0 %v1013
    %v1049 = vpop.f32.mrb[0].mxu0
    %v1050 = vadd.f32 0.0, %v1049
    %v1051 = vpop.f32.mrb[0].mxu0
    %v1052 = vpop.f32.mrb[0].mxu0
    %v1053 = vadd.f32 0.0, %v1052
    %v1054 = vpop.f32.mrb[0].mxu0
    %1055 = vdwg.mxu0
    %v1058 = vunpack.c.l.b16 %v189
    %v1059 = vunpack.c.l.b16 %v190
    %v1060 = vpack.c.b16 %v1059, %v1058
    %v1063 = vsel %vm573, %v784, 0
    %1065 = vmatprep.subr.bf16.mxu0 0
    %1066 = vmatpush1.bf16.msra.mxu0 %v1060
    %1067 = vmatprep.subr.bf16.mxu0 0
    %1068 = vmatpush1.bf16.msra.mxu0 0
    %1069 = vmatprep.subr.bf16.mxu0 0
    %1070 = vmatpush1.bf16.msra.mxu0 0
    %1071 = vmatprep.subr.bf16.mxu0 0
    %1072 = vmatpush1.bf16.msra.mxu0 0
    %1073 = vmatprep.subr.bf16.mxu0 0
    %1074 = vmatpush1.bf16.msra.mxu0 0
    %1075 = vmatprep.subr.bf16.mxu0 0
    %1076 = vmatpush1.bf16.msra.mxu0 0
    %1077 = vmatprep.subr.bf16.mxu0 0
    %1078 = vmatpush1.bf16.msra.mxu0 0
    %1079 = vmatprep.subr.bf16.mxu0 0
    %1080 = vmatpush1.bf16.msra.mxu0 0
    %1081 = vmatprep.subr.bf16.mxu0 0
    %1082 = vmatpush1.bf16.msra.mxu0 0
    %1083 = vmatprep.subr.bf16.mxu0 0
    %1084 = vmatpush1.bf16.msra.mxu0 0
    %1085 = vmatprep.subr.bf16.mxu0 0
    %1086 = vmatpush1.bf16.msra.mxu0 0
    %1087 = vmatprep.subr.bf16.mxu0 0
    %1088 = vmatpush1.bf16.msra.mxu0 0
    %1089 = vmatprep.subr.bf16.mxu0 0
    %1090 = vmatpush1.bf16.msra.mxu0 0
    %1091 = vmatprep.subr.bf16.mxu0 0
    %1092 = vmatpush1.bf16.msra.mxu0 0
    %1093 = vmatprep.subr.bf16.mxu0 0
    %1094 = vmatpush1.bf16.msra.mxu0 0
    %1095 = vmatprep.subr.bf16.mxu0 0
    %1096 = vmatpush1.bf16.msra.mxu0 0
    %1097 = vmatprep.mubr.bf16.mxu0 0
    %1098 = vmatmul.mubr.bf16.gmra.mrb[0].mxu0 %v1063
    %v1099 = vpop.f32.mrb[0].mxu0
    %v1100 = vadd.f32 %v1050, %v1099
    %v1101 = vpop.f32.mrb[0].mxu0
    %v1102 = vpop.f32.mrb[0].mxu0
    %v1103 = vadd.f32 %v1053, %v1102
    %v1104 = vpop.f32.mrb[0].mxu0
    %1105 = vdwg.mxu0
    %1106 = vrot.lane.b32.xlu0 %v561, 96
    %v1107 = vpop.permute.xlu0 %1106
    %1108 = vrot.lane.b32.xlu0 %v566, 96
    %v1109 = vpop.permute.xlu0 %1108
    %v1111 = vsel %vm573, %v1107, 0
    %v1114 = vsel %vm573, %v1109, 0
    %1116 = vmatprep.subr.bf16.mxu0 0
    %1117 = vmatpush1.bf16.xpose.msra.mxu0 %v1114
    %1118 = vmatprep.subr.bf16.mxu0 0
    %1119 = vmatpush1.bf16.xpose.msra.mxu0 0
    %1120 = vmatprep.subr.bf16.mxu0 0
    %1121 = vmatpush1.bf16.xpose.msra.mxu0 0
    %1122 = vmatprep.subr.bf16.mxu0 0
    %1123 = vmatpush1.bf16.xpose.msra.mxu0 0
    %1124 = vmatprep.subr.bf16.mxu0 0
    %1125 = vmatpush1.bf16.xpose.msra.mxu0 0
    %1126 = vmatprep.subr.bf16.mxu0 0
    %1127 = vmatpush1.bf16.xpose.msra.mxu0 0
    %1128 = vmatprep.subr.bf16.mxu0 0
    %1129 = vmatpush1.bf16.xpose.msra.mxu0 0
    %1130 = vmatprep.subr.bf16.mxu0 0
    %1131 = vmatpush1.bf16.xpose.msra.mxu0 0
    %1132 = vmatprep.subr.bf16.mxu0 0
    %1133 = vmatpush1.bf16.xpose.msra.mxu0 0
    %1134 = vmatprep.subr.bf16.mxu0 0
    %1135 = vmatpush1.bf16.xpose.msra.mxu0 0
    %1136 = vmatprep.subr.bf16.mxu0 0
    %1137 = vmatpush1.bf16.xpose.msra.mxu0 0
    %1138 = vmatprep.subr.bf16.mxu0 0
    %1139 = vmatpush1.bf16.xpose.msra.mxu0 0
    %1140 = vmatprep.subr.bf16.mxu0 0
    %1141 = vmatpush1.bf16.xpose.msra.mxu0 0
    %1142 = vmatprep.subr.bf16.mxu0 0
    %1143 = vmatpush1.bf16.xpose.msra.mxu0 0
    %1144 = vmatprep.subr.bf16.mxu0 0
    %1145 = vmatpush1.bf16.xpose.msra.mxu0 0
    %1146 = vmatprep.subr.bf16.mxu0 0
    %1147 = vmatpush1.bf16.xpose.msra.mxu0 0
    %1148 = vmatprep.mubr.bf16.mxu0 0
    %1149 = vmatmul.mubr.bf16.gmra.mrb[0].mxu0 %v1111
    %v1150 = vpop.f32.mrb[0].mxu0
    %v1151 = vadd.f32 %v133, %v1150
    %v1152 = vpop.f32.mrb[0].mxu0
    %v1153 = vpop.f32.mrb[0].mxu0
    %v1154 = vpop.f32.mrb[0].mxu0
    %1155 = vdwg.mxu0
    %1156 = vrot.lane.b32.xlu0 %v562, 96
    %v1157 = vpop.permute.xlu0 %1156
    %1158 = vrot.lane.b32.xlu0 %v567, 96
    %v1159 = vpop.permute.xlu0 %1158
    %v1161 = vsel %vm573, %v1157, 0
    %v1164 = vsel %vm573, %v1159, 0
    %1166 = vmatprep.subr.bf16.mxu0 0
    %1167 = vmatpush1.bf16.xpose.msra.mxu0 %v1164
    %1168 = vmatprep.subr.bf16.mxu0 0
    %1169 = vmatpush1.bf16.xpose.msra.mxu0 0
    %1170 = vmatprep.subr.bf16.mxu0 0
    %1171 = vmatpush1.bf16.xpose.msra.mxu0 0
    %1172 = vmatprep.subr.bf16.mxu0 0
    %1173 = vmatpush1.bf16.xpose.msra.mxu0 0
    %1174 = vmatprep.subr.bf16.mxu0 0
    %1175 = vmatpush1.bf16.xpose.msra.mxu0 0
    %1176 = vmatprep.subr.bf16.mxu0 0
    %1177 = vmatpush1.bf16.xpose.msra.mxu0 0
    %1178 = vmatprep.subr.bf16.mxu0 0
    %1179 = vmatpush1.bf16.xpose.msra.mxu0 0
    %1180 = vmatprep.subr.bf16.mxu0 0
    %1181 = vmatpush1.bf16.xpose.msra.mxu0 0
    %1182 = vmatprep.subr.bf16.mxu0 0
    %1183 = vmatpush1.bf16.xpose.msra.mxu0 0
    %1184 = vmatprep.subr.bf16.mxu0 0
    %1185 = vmatpush1.bf16.xpose.msra.mxu0 0
    %1186 = vmatprep.subr.bf16.mxu0 0
    %1187 = vmatpush1.bf16.xpose.msra.mxu0 0
    %1188 = vmatprep.subr.bf16.mxu0 0
    %1189 = vmatpush1.bf16.xpose.msra.mxu0 0
    %1190 = vmatprep.subr.bf16.mxu0 0
    %1191 = vmatpush1.bf16.xpose.msra.mxu0 0
    %1192 = vmatprep.subr.bf16.mxu0 0
    %1193 = vmatpush1.bf16.xpose.msra.mxu0 0
    %1194 = vmatprep.subr.bf16.mxu0 0
    %1195 = vmatpush1.bf16.xpose.msra.mxu0 0
    %1196 = vmatprep.subr.bf16.mxu0 0
    %1197 = vmatpush1.bf16.xpose.msra.mxu0 0
    %1198 = vmatprep.mubr.bf16.mxu0 0
    %1199 = vmatmul.mubr.bf16.gmra.mrb[0].mxu0 %v1161
    %v1200 = vpop.f32.mrb[0].mxu0
    %v1201 = vadd.f32 %v134, %v1200
    %v1202 = vpop.f32.mrb[0].mxu0
    %v1203 = vpop.f32.mrb[0].mxu0
    %v1204 = vpop.f32.mrb[0].mxu0
    %1205 = vdwg.mxu0
    %v1206 = vsel %vm666, %v1151, -inf
    %1207 = vmax.xlane.f32.xlu0 %v1206
    %v1208 = vpop.xlane.xlu0 %1207
    %v1209 = vsel %vm666, %v1201, -inf
    %1210 = vmax.xlane.f32.xlu0 %v1209
    %v1211 = vpop.xlane.xlu0 %1210
    %v1212 = vsub.f32 %v1151, %v1208
    %v1213 = vsub.f32 %v1201, %v1211
    %v1214 = vmul.f32 %v1212, 1.442695
    %v1215 = vpow.pop %v1214
    %v1216 = vmul.f32 %v1213, 1.442695
    %v1217 = vpow.pop %v1216
    %v1218 = vsel %vm666, %v1215, 0.0
    %1219 = vadd.xlane.f32.xlu0 %v1218
    %v1220 = vpop.xlane.xlu0 %1219
    %v1221 = vsel %vm666, %v1217, 0.0
    %1222 = vadd.xlane.f32.xlu0 %v1221
    %v1223 = vpop.xlane.xlu0 %1222
    %v1224 = vrcp.pop %v1220
    %v1225 = vrcp.pop %v1223
    %v1226 = vmul.f32 %v1215, %v1224
    %v1227 = vmul.f32 %v1217, %v1225
    %v1228 = vpack.c.bf16 %v1226, %v1226
    %v1229 = vpack.c.bf16 %v1227, %v1227
    %1230 = vrot.lane.b32.xlu0 %v571, 96
    %v1231 = vpop.permute.xlu0 %1230
    %v1233 = vsel %vm666, %v1228, 0
    %v1236 = vsel %vm694, %v1231, 0
    %1238 = vmatprep.subr.bf16.mxu0 0
    %1239 = vmatpush1.bf16.msra.mxu0 %v1236
    %1240 = vmatprep.subr.bf16.mxu0 0
    %1241 = vmatpush1.bf16.msra.mxu0 0
    %1242 = vmatprep.subr.bf16.mxu0 0
    %1243 = vmatpush1.bf16.msra.mxu0 0
    %1244 = vmatprep.subr.bf16.mxu0 0
    %1245 = vmatpush1.bf16.msra.mxu0 0
    %1246 = vmatprep.subr.bf16.mxu0 0
    %1247 = vmatpush1.bf16.msra.mxu0 0
    %1248 = vmatprep.subr.bf16.mxu0 0
    %1249 = vmatpush1.bf16.msra.mxu0 0
    %1250 = vmatprep.subr.bf16.mxu0 0
    %1251 = vmatpush1.bf16.msra.mxu0 0
    %1252 = vmatprep.subr.bf16.mxu0 0
    %1253 = vmatpush1.bf16.msra.mxu0 0
    %1254 = vmatprep.subr.bf16.mxu0 0
    %1255 = vmatpush1.bf16.msra.mxu0 0
    %1256 = vmatprep.subr.bf16.mxu0 0
    %1257 = vmatpush1.bf16.msra.mxu0 0
    %1258 = vmatprep.subr.bf16.mxu0 0
    %1259 = vmatpush1.bf16.msra.mxu0 0
    %1260 = vmatprep.subr.bf16.mxu0 0
    %1261 = vmatpush1.bf16.msra.mxu0 0
    %1262 = vmatprep.subr.bf16.mxu0 0
    %1263 = vmatpush1.bf16.msra.mxu0 0
    %1264 = vmatprep.subr.bf16.mxu0 0
    %1265 = vmatpush1.bf16.msra.mxu0 0
    %1266 = vmatprep.subr.bf16.mxu0 0
    %1267 = vmatpush1.bf16.msra.mxu0 0
    %1268 = vmatprep.subr.bf16.mxu0 0
    %1269 = vmatpush1.bf16.msra.mxu0 0
    %1270 = vmatprep.mubr.bf16.mxu0 0
    %1271 = vmatmul.mubr.bf16.gmra.mrb[0].mxu0 %v1233
    %v1272 = vpop.f32.mrb[0].mxu0
    %v1273 = vadd.f32 0.0, %v1272
    %v1274 = vpop.f32.mrb[0].mxu0
    %v1275 = vpop.f32.mrb[0].mxu0
    %v1276 = vpop.f32.mrb[0].mxu0
    %1277 = vdwg.mxu0
    %1278 = vrot.lane.b32.xlu0 %v572, 96
    %v1279 = vpop.permute.xlu0 %1278
    %v1281 = vsel %vm666, %v1229, 0
    %v1284 = vsel %vm694, %v1279, 0
    %1286 = vmatprep.subr.bf16.mxu0 0
    %1287 = vmatpush1.bf16.msra.mxu0 %v1284
    %1288 = vmatprep.subr.bf16.mxu0 0
    %1289 = vmatpush1.bf16.msra.mxu0 0
    %1290 = vmatprep.subr.bf16.mxu0 0
    %1291 = vmatpush1.bf16.msra.mxu0 0
    %1292 = vmatprep.subr.bf16.mxu0 0
    %1293 = vmatpush1.bf16.msra.mxu0 0
    %1294 = vmatprep.subr.bf16.mxu0 0
    %1295 = vmatpush1.bf16.msra.mxu0 0
    %1296 = vmatprep.subr.bf16.mxu0 0
    %1297 = vmatpush1.bf16.msra.mxu0 0
    %1298 = vmatprep.subr.bf16.mxu0 0
    %1299 = vmatpush1.bf16.msra.mxu0 0
    %1300 = vmatprep.subr.bf16.mxu0 0
    %1301 = vmatpush1.bf16.msra.mxu0 0
    %1302 = vmatprep.subr.bf16.mxu0 0
    %1303 = vmatpush1.bf16.msra.mxu0 0
    %1304 = vmatprep.subr.bf16.mxu0 0
    %1305 = vmatpush1.bf16.msra.mxu0 0
    %1306 = vmatprep.subr.bf16.mxu0 0
    %1307 = vmatpush1.bf16.msra.mxu0 0
    %1308 = vmatprep.subr.bf16.mxu0 0
    %1309 = vmatpush1.bf16.msra.mxu0 0
    %1310 = vmatprep.subr.bf16.mxu0 0
    %1311 = vmatpush1.bf16.msra.mxu0 0
    %1312 = vmatprep.subr.bf16.mxu0 0
    %1313 = vmatpush1.bf16.msra.mxu0 0
    %1314 = vmatprep.subr.bf16.mxu0 0
    %1315 = vmatpush1.bf16.msra.mxu0 0
    %1316 = vmatprep.subr.bf16.mxu0 0
    %1317 = vmatpush1.bf16.msra.mxu0 0
    %1318 = vmatprep.mubr.bf16.mxu0 0
    %1319 = vmatmul.mubr.bf16.gmra.mrb[0].mxu0 %v1281
    %v1320 = vpop.f32.mrb[0].mxu0
    %v1321 = vadd.f32 0.0, %v1320
    %v1322 = vpop.f32.mrb[0].mxu0
    %v1323 = vpop.f32.mrb[0].mxu0
    %v1324 = vpop.f32.mrb[0].mxu0
    %1325 = vdwg.mxu0
    %v1326 = vpack.c.bf16 %v1321, %v1273
    %v1329 = vunpack.c.l.b16 %v193
    %v1330 = vunpack.c.l.b16 %v194
    %v1331 = vpack.c.b16 %v1330, %v1329
    %v1334 = vsel %vm573, %v1326, 0
    %1336 = vmatprep.subr.bf16.mxu0 0
    %1337 = vmatpush1.bf16.msra.mxu0 %v1331
    %1338 = vmatprep.subr.bf16.mxu0 0
    %1339 = vmatpush1.bf16.msra.mxu0 0
    %1340 = vmatprep.subr.bf16.mxu0 0
    %1341 = vmatpush1.bf16.msra.mxu0 0
    %1342 = vmatprep.subr.bf16.mxu0 0
    %1343 = vmatpush1.bf16.msra.mxu0 0
    %1344 = vmatprep.subr.bf16.mxu0 0
    %1345 = vmatpush1.bf16.msra.mxu0 0
    %1346 = vmatprep.subr.bf16.mxu0 0
    %1347 = vmatpush1.bf16.msra.mxu0 0
    %1348 = vmatprep.subr.bf16.mxu0 0
    %1349 = vmatpush1.bf16.msra.mxu0 0
    %1350 = vmatprep.subr.bf16.mxu0 0
    %1351 = vmatpush1.bf16.msra.mxu0 0
    %1352 = vmatprep.subr.bf16.mxu0 0
    %1353 = vmatpush1.bf16.msra.mxu0 0
    %1354 = vmatprep.subr.bf16.mxu0 0
    %1355 = vmatpush1.bf16.msra.mxu0 0
    %1356 = vmatprep.subr.bf16.mxu0 0
    %1357 = vmatpush1.bf16.msra.mxu0 0
    %1358 = vmatprep.subr.bf16.mxu0 0
    %1359 = vmatpush1.bf16.msra.mxu0 0
    %1360 = vmatprep.subr.bf16.mxu0 0
    %1361 = vmatpush1.bf16.msra.mxu0 0
    %1362 = vmatprep.subr.bf16.mxu0 0
    %1363 = vmatpush1.bf16.msra.mxu0 0
    %1364 = vmatprep.subr.bf16.mxu0 0
    %1365 = vmatpush1.bf16.msra.mxu0 0
    %1366 = vmatprep.subr.bf16.mxu0 0
    %1367 = vmatpush1.bf16.msra.mxu0 0
    %1368 = vmatprep.mubr.bf16.mxu0 0
    %1369 = vmatmul.mubr.bf16.gmra.mrb[0].mxu0 %v1334
    %v1370 = vpop.f32.mrb[0].mxu0
    %v1371 = vadd.f32 0.0, %v1370
    %v1372 = vpop.f32.mrb[0].mxu0
    %v1373 = vpop.f32.mrb[0].mxu0
    %v1374 = vadd.f32 0.0, %v1373
    %v1375 = vpop.f32.mrb[0].mxu0
    %1376 = vdwg.mxu0
    %v1377 = vadd.f32 %v1100, %v1371
    %v1378 = vadd.f32 %v1103, %v1374
    %1379 = vrot.lane.b32.xlu0 %v561, 80
    %v1380 = vpop.permute.xlu0 %1379
    %1381 = vrot.lane.b32.xlu0 %v566, 80
    %v1382 = vpop.permute.xlu0 %1381
    %v1384 = vsel %vm573, %v1380, 0
    %v1387 = vsel %vm573, %v1382, 0
    %1389 = vmatprep.subr.bf16.mxu0 0
    %1390 = vmatpush1.bf16.xpose.msra.mxu0 %v1387
    %1391 = vmatprep.subr.bf16.mxu0 0
    %1392 = vmatpush1.bf16.xpose.msra.mxu0 0
    %1393 = vmatprep.subr.bf16.mxu0 0
    %1394 = vmatpush1.bf16.xpose.msra.mxu0 0
    %1395 = vmatprep.subr.bf16.mxu0 0
    %1396 = vmatpush1.bf16.xpose.msra.mxu0 0
    %1397 = vmatprep.subr.bf16.mxu0 0
    %1398 = vmatpush1.bf16.xpose.msra.mxu0 0
    %1399 = vmatprep.subr.bf16.mxu0 0
    %1400 = vmatpush1.bf16.xpose.msra.mxu0 0
    %1401 = vmatprep.subr.bf16.mxu0 0
    %1402 = vmatpush1.bf16.xpose.msra.mxu0 0
    %1403 = vmatprep.subr.bf16.mxu0 0
    %1404 = vmatpush1.bf16.xpose.msra.mxu0 0
    %1405 = vmatprep.subr.bf16.mxu0 0
    %1406 = vmatpush1.bf16.xpose.msra.mxu0 0
    %1407 = vmatprep.subr.bf16.mxu0 0
    %1408 = vmatpush1.bf16.xpose.msra.mxu0 0
    %1409 = vmatprep.subr.bf16.mxu0 0
    %1410 = vmatpush1.bf16.xpose.msra.mxu0 0
    %1411 = vmatprep.subr.bf16.mxu0 0
    %1412 = vmatpush1.bf16.xpose.msra.mxu0 0
    %1413 = vmatprep.subr.bf16.mxu0 0
    %1414 = vmatpush1.bf16.xpose.msra.mxu0 0
    %1415 = vmatprep.subr.bf16.mxu0 0
    %1416 = vmatpush1.bf16.xpose.msra.mxu0 0
    %1417 = vmatprep.subr.bf16.mxu0 0
    %1418 = vmatpush1.bf16.xpose.msra.mxu0 0
    %1419 = vmatprep.subr.bf16.mxu0 0
    %1420 = vmatpush1.bf16.xpose.msra.mxu0 0
    %1421 = vmatprep.mubr.bf16.mxu0 0
    %1422 = vmatmul.mubr.bf16.gmra.mrb[0].mxu0 %v1384
    %v1423 = vpop.f32.mrb[0].mxu0
    %v1424 = vadd.f32 %v133, %v1423
    %v1425 = vpop.f32.mrb[0].mxu0
    %v1426 = vpop.f32.mrb[0].mxu0
    %v1427 = vpop.f32.mrb[0].mxu0
    %1428 = vdwg.mxu0
    %1429 = vrot.lane.b32.xlu0 %v562, 80
    %v1430 = vpop.permute.xlu0 %1429
    %1431 = vrot.lane.b32.xlu0 %v567, 80
    %v1432 = vpop.permute.xlu0 %1431
    %v1434 = vsel %vm573, %v1430, 0
    %v1437 = vsel %vm573, %v1432, 0
    %1439 = vmatprep.subr.bf16.mxu0 0
    %1440 = vmatpush1.bf16.xpose.msra.mxu0 %v1437
    %1441 = vmatprep.subr.bf16.mxu0 0
    %1442 = vmatpush1.bf16.xpose.msra.mxu0 0
    %1443 = vmatprep.subr.bf16.mxu0 0
    %1444 = vmatpush1.bf16.xpose.msra.mxu0 0
    %1445 = vmatprep.subr.bf16.mxu0 0
    %1446 = vmatpush1.bf16.xpose.msra.mxu0 0
    %1447 = vmatprep.subr.bf16.mxu0 0
    %1448 = vmatpush1.bf16.xpose.msra.mxu0 0
    %1449 = vmatprep.subr.bf16.mxu0 0
    %1450 = vmatpush1.bf16.xpose.msra.mxu0 0
    %1451 = vmatprep.subr.bf16.mxu0 0
    %1452 = vmatpush1.bf16.xpose.msra.mxu0 0
    %1453 = vmatprep.subr.bf16.mxu0 0
    %1454 = vmatpush1.bf16.xpose.msra.mxu0 0
    %1455 = vmatprep.subr.bf16.mxu0 0
    %1456 = vmatpush1.bf16.xpose.msra.mxu0 0
    %1457 = vmatprep.subr.bf16.mxu0 0
    %1458 = vmatpush1.bf16.xpose.msra.mxu0 0
    %1459 = vmatprep.subr.bf16.mxu0 0
    %1460 = vmatpush1.bf16.xpose.msra.mxu0 0
    %1461 = vmatprep.subr.bf16.mxu0 0
    %1462 = vmatpush1.bf16.xpose.msra.mxu0 0
    %1463 = vmatprep.subr.bf16.mxu0 0
    %1464 = vmatpush1.bf16.xpose.msra.mxu0 0
    %1465 = vmatprep.subr.bf16.mxu0 0
    %1466 = vmatpush1.bf16.xpose.msra.mxu0 0
    %1467 = vmatprep.subr.bf16.mxu0 0
    %1468 = vmatpush1.bf16.xpose.msra.mxu0 0
    %1469 = vmatprep.subr.bf16.mxu0 0
    %1470 = vmatpush1.bf16.xpose.msra.mxu0 0
    %1471 = vmatprep.mubr.bf16.mxu0 0
    %1472 = vmatmul.mubr.bf16.gmra.mrb[0].mxu0 %v1434
    %v1473 = vpop.f32.mrb[0].mxu0
    %v1474 = vadd.f32 %v134, %v1473
    %v1475 = vpop.f32.mrb[0].mxu0
    %v1476 = vpop.f32.mrb[0].mxu0
    %v1477 = vpop.f32.mrb[0].mxu0
    %1478 = vdwg.mxu0
    %v1479 = vsel %vm666, %v1424, -inf
    %1480 = vmax.xlane.f32.xlu0 %v1479
    %v1481 = vpop.xlane.xlu0 %1480
    %v1482 = vsel %vm666, %v1474, -inf
    %1483 = vmax.xlane.f32.xlu0 %v1482
    %v1484 = vpop.xlane.xlu0 %1483
    %v1485 = vsub.f32 %v1424, %v1481
    %v1486 = vsub.f32 %v1474, %v1484
    %v1487 = vmul.f32 %v1485, 1.442695
    %v1488 = vpow.pop %v1487
    %v1489 = vmul.f32 %v1486, 1.442695
    %v1490 = vpow.pop %v1489
    %v1491 = vsel %vm666, %v1488, 0.0
    %1492 = vadd.xlane.f32.xlu0 %v1491
    %v1493 = vpop.xlane.xlu0 %1492
    %v1494 = vsel %vm666, %v1490, 0.0
    %1495 = vadd.xlane.f32.xlu0 %v1494
    %v1496 = vpop.xlane.xlu0 %1495
    %v1497 = vrcp.pop %v1493
    %v1498 = vrcp.pop %v1496
    %v1499 = vmul.f32 %v1488, %v1497
    %v1500 = vmul.f32 %v1490, %v1498
    %v1501 = vpack.c.bf16 %v1499, %v1499
    %v1502 = vpack.c.bf16 %v1500, %v1500
    %1503 = vrot.lane.b32.xlu0 %v571, 80
    %v1504 = vpop.permute.xlu0 %1503
    %v1506 = vsel %vm666, %v1501, 0
    %v1509 = vsel %vm694, %v1504, 0
    %1511 = vmatprep.subr.bf16.mxu0 0
    %1512 = vmatpush1.bf16.msra.mxu0 %v1509
    %1513 = vmatprep.subr.bf16.mxu0 0
    %1514 = vmatpush1.bf16.msra.mxu0 0
    %1515 = vmatprep.subr.bf16.mxu0 0
    %1516 = vmatpush1.bf16.msra.mxu0 0
    %1517 = vmatprep.subr.bf16.mxu0 0
    %1518 = vmatpush1.bf16.msra.mxu0 0
    %1519 = vmatprep.subr.bf16.mxu0 0
    %1520 = vmatpush1.bf16.msra.mxu0 0
    %1521 = vmatprep.subr.bf16.mxu0 0
    %1522 = vmatpush1.bf16.msra.mxu0 0
    %1523 = vmatprep.subr.bf16.mxu0 0
    %1524 = vmatpush1.bf16.msra.mxu0 0
    %1525 = vmatprep.subr.bf16.mxu0 0
    %1526 = vmatpush1.bf16.msra.mxu0 0
    %1527 = vmatprep.subr.bf16.mxu0 0
    %1528 = vmatpush1.bf16.msra.mxu0 0
    %1529 = vmatprep.subr.bf16.mxu0 0
    %1530 = vmatpush1.bf16.msra.mxu0 0
    %1531 = vmatprep.subr.bf16.mxu0 0
    %1532 = vmatpush1.bf16.msra.mxu0 0
    %1533 = vmatprep.subr.bf16.mxu0 0
    %1534 = vmatpush1.bf16.msra.mxu0 0
    %1535 = vmatprep.subr.bf16.mxu0 0
    %1536 = vmatpush1.bf16.msra.mxu0 0
    %1537 = vmatprep.subr.bf16.mxu0 0
    %1538 = vmatpush1.bf16.msra.mxu0 0
    %1539 = vmatprep.subr.bf16.mxu0 0
    %1540 = vmatpush1.bf16.msra.mxu0 0
    %1541 = vmatprep.subr.bf16.mxu0 0
    %1542 = vmatpush1.bf16.msra.mxu0 0
    %1543 = vmatprep.mubr.bf16.mxu0 0
    %1544 = vmatmul.mubr.bf16.gmra.mrb[0].mxu0 %v1506
    %v1545 = vpop.f32.mrb[0].mxu0
    %v1546 = vadd.f32 0.0, %v1545
    %v1547 = vpop.f32.mrb[0].mxu0
    %v1548 = vpop.f32.mrb[0].mxu0
    %v1549 = vpop.f32.mrb[0].mxu0
    %1550 = vdwg.mxu0
    %1551 = vrot.lane.b32.xlu0 %v572, 80
    %v1552 = vpop.permute.xlu0 %1551
    %v1554 = vsel %vm666, %v1502, 0
    %v1557 = vsel %vm694, %v1552, 0
    %1559 = vmatprep.subr.bf16.mxu0 0
    %1560 = vmatpush1.bf16.msra.mxu0 %v1557
    %1561 = vmatprep.subr.bf16.mxu0 0
    %1562 = vmatpush1.bf16.msra.mxu0 0
    %1563 = vmatprep.subr.bf16.mxu0 0
    %1564 = vmatpush1.bf16.msra.mxu0 0
    %1565 = vmatprep.subr.bf16.mxu0 0
    %1566 = vmatpush1.bf16.msra.mxu0 0
    %1567 = vmatprep.subr.bf16.mxu0 0
    %1568 = vmatpush1.bf16.msra.mxu0 0
    %1569 = vmatprep.subr.bf16.mxu0 0
    %1570 = vmatpush1.bf16.msra.mxu0 0
    %1571 = vmatprep.subr.bf16.mxu0 0
    %1572 = vmatpush1.bf16.msra.mxu0 0
    %1573 = vmatprep.subr.bf16.mxu0 0
    %1574 = vmatpush1.bf16.msra.mxu0 0
    %1575 = vmatprep.subr.bf16.mxu0 0
    %1576 = vmatpush1.bf16.msra.mxu0 0
    %1577 = vmatprep.subr.bf16.mxu0 0
    %1578 = vmatpush1.bf16.msra.mxu0 0
    %1579 = vmatprep.subr.bf16.mxu0 0
    %1580 = vmatpush1.bf16.msra.mxu0 0
    %1581 = vmatprep.subr.bf16.mxu0 0
    %1582 = vmatpush1.bf16.msra.mxu0 0
    %1583 = vmatprep.subr.bf16.mxu0 0
    %1584 = vmatpush1.bf16.msra.mxu0 0
    %1585 = vmatprep.subr.bf16.mxu0 0
    %1586 = vmatpush1.bf16.msra.mxu0 0
    %1587 = vmatprep.subr.bf16.mxu0 0
    %1588 = vmatpush1.bf16.msra.mxu0 0
    %1589 = vmatprep.subr.bf16.mxu0 0
    %1590 = vmatpush1.bf16.msra.mxu0 0
    %1591 = vmatprep.mubr.bf16.mxu0 0
    %1592 = vmatmul.mubr.bf16.gmra.mrb[0].mxu0 %v1554
    %v1593 = vpop.f32.mrb[0].mxu0
    %v1594 = vadd.f32 0.0, %v1593
    %v1595 = vpop.f32.mrb[0].mxu0
    %v1596 = vpop.f32.mrb[0].mxu0
    %v1597 = vpop.f32.mrb[0].mxu0
    %1598 = vdwg.mxu0
    %v1599 = vpack.c.bf16 %v1594, %v1546
    %v1602 = vunpack.c.l.b16 %v195
    %v1603 = vunpack.c.l.b16 %v196
    %v1604 = vpack.c.b16 %v1603, %v1602
    %v1607 = vsel %vm573, %v1599, 0
    %1609 = vmatprep.subr.bf16.mxu0 0
    %1610 = vmatpush1.bf16.msra.mxu0 %v1604
    %1611 = vmatprep.subr.bf16.mxu0 0
    %1612 = vmatpush1.bf16.msra.mxu0 0
    %1613 = vmatprep.subr.bf16.mxu0 0
    %1614 = vmatpush1.bf16.msra.mxu0 0
    %1615 = vmatprep.subr.bf16.mxu0 0
    %1616 = vmatpush1.bf16.msra.mxu0 0
    %1617 = vmatprep.subr.bf16.mxu0 0
    %1618 = vmatpush1.bf16.msra.mxu0 0
    %1619 = vmatprep.subr.bf16.mxu0 0
    %1620 = vmatpush1.bf16.msra.mxu0 0
    %1621 = vmatprep.subr.bf16.mxu0 0
    %1622 = vmatpush1.bf16.msra.mxu0 0
    %1623 = vmatprep.subr.bf16.mxu0 0
    %1624 = vmatpush1.bf16.msra.mxu0 0
    %1625 = vmatprep.subr.bf16.mxu0 0
    %1626 = vmatpush1.bf16.msra.mxu0 0
    %1627 = vmatprep.subr.bf16.mxu0 0
    %1628 = vmatpush1.bf16.msra.mxu0 0
    %1629 = vmatprep.subr.bf16.mxu0 0
    %1630 = vmatpush1.bf16.msra.mxu0 0
    %1631 = vmatprep.subr.bf16.mxu0 0
    %1632 = vmatpush1.bf16.msra.mxu0 0
    %1633 = vmatprep.subr.bf16.mxu0 0
    %1634 = vmatpush1.bf16.msra.mxu0 0
    %1635 = vmatprep.subr.bf16.mxu0 0
    %1636 = vmatpush1.bf16.msra.mxu0 0
    %1637 = vmatprep.subr.bf16.mxu0 0
    %1638 = vmatpush1.bf16.msra.mxu0 0
    %1639 = vmatprep.subr.bf16.mxu0 0
    %1640 = vmatpush1.bf16.msra.mxu0 0
    %1641 = vmatprep.mubr.bf16.mxu0 0
    %1642 = vmatmul.mubr.bf16.gmra.mrb[0].mxu0 %v1607
    %v1643 = vpop.f32.mrb[0].mxu0
    %v1644 = vadd.f32 0.0, %v1643
    %v1645 = vpop.f32.mrb[0].mxu0
    %v1646 = vpop.f32.mrb[0].mxu0
    %v1647 = vadd.f32 0.0, %v1646
    %v1648 = vpop.f32.mrb[0].mxu0
    %1649 = vdwg.mxu0
    %v1650 = vadd.f32 %v1377, %v1644
    %v1651 = vadd.f32 %v1378, %v1647
    %1652 = vrot.lane.b32.xlu0 %v561, 64
    %v1653 = vpop.permute.xlu0 %1652
    %1654 = vrot.lane.b32.xlu0 %v566, 64
    %v1655 = vpop.permute.xlu0 %1654
    %v1657 = vsel %vm573, %v1653, 0
    %v1660 = vsel %vm573, %v1655, 0
    %1662 = vmatprep.subr.bf16.mxu0 0
    %1663 = vmatpush1.bf16.xpose.msra.mxu0 %v1660
    %1664 = vmatprep.subr.bf16.mxu0 0
    %1665 = vmatpush1.bf16.xpose.msra.mxu0 0
    %1666 = vmatprep.subr.bf16.mxu0 0
    %1667 = vmatpush1.bf16.xpose.msra.mxu0 0
    %1668 = vmatprep.subr.bf16.mxu0 0
    %1669 = vmatpush1.bf16.xpose.msra.mxu0 0
    %1670 = vmatprep.subr.bf16.mxu0 0
    %1671 = vmatpush1.bf16.xpose.msra.mxu0 0
    %1672 = vmatprep.subr.bf16.mxu0 0
    %1673 = vmatpush1.bf16.xpose.msra.mxu0 0
    %1674 = vmatprep.subr.bf16.mxu0 0
    %1675 = vmatpush1.bf16.xpose.msra.mxu0 0
    %1676 = vmatprep.subr.bf16.mxu0 0
    %1677 = vmatpush1.bf16.xpose.msra.mxu0 0
    %1678 = vmatprep.subr.bf16.mxu0 0
    %1679 = vmatpush1.bf16.xpose.msra.mxu0 0
    %1680 = vmatprep.subr.bf16.mxu0 0
    %1681 = vmatpush1.bf16.xpose.msra.mxu0 0
    %1682 = vmatprep.subr.bf16.mxu0 0
    %1683 = vmatpush1.bf16.xpose.msra.mxu0 0
    %1684 = vmatprep.subr.bf16.mxu0 0
    %1685 = vmatpush1.bf16.xpose.msra.mxu0 0
    %1686 = vmatprep.subr.bf16.mxu0 0
    %1687 = vmatpush1.bf16.xpose.msra.mxu0 0
    %1688 = vmatprep.subr.bf16.mxu0 0
    %1689 = vmatpush1.bf16.xpose.msra.mxu0 0
    %1690 = vmatprep.subr.bf16.mxu0 0
    %1691 = vmatpush1.bf16.xpose.msra.mxu0 0
    %1692 = vmatprep.subr.bf16.mxu0 0
    %1693 = vmatpush1.bf16.xpose.msra.mxu0 0
    %1694 = vmatprep.mubr.bf16.mxu0 0
    %1695 = vmatmul.mubr.bf16.gmra.mrb[0].mxu0 %v1657
    %v1696 = vpop.f32.mrb[0].mxu0
    %v1697 = vadd.f32 %v133, %v1696
    %v1698 = vpop.f32.mrb[0].mxu0
    %v1699 = vpop.f32.mrb[0].mxu0
    %v1700 = vpop.f32.mrb[0].mxu0
    %1701 = vdwg.mxu0
    %1702 = vrot.lane.b32.xlu0 %v562, 64
    %v1703 = vpop.permute.xlu0 %1702
    %1704 = vrot.lane.b32.xlu0 %v567, 64
    %v1705 = vpop.permute.xlu0 %1704
    %v1707 = vsel %vm573, %v1703, 0
    %v1710 = vsel %vm573, %v1705, 0
    %1712 = vmatprep.subr.bf16.mxu0 0
    %1713 = vmatpush1.bf16.xpose.msra.mxu0 %v1710
    %1714 = vmatprep.subr.bf16.mxu0 0
    %1715 = vmatpush1.bf16.xpose.msra.mxu0 0
    %1716 = vmatprep.subr.bf16.mxu0 0
    %1717 = vmatpush1.bf16.xpose.msra.mxu0 0
    %1718 = vmatprep.subr.bf16.mxu0 0
    %1719 = vmatpush1.bf16.xpose.msra.mxu0 0
    %1720 = vmatprep.subr.bf16.mxu0 0
    %1721 = vmatpush1.bf16.xpose.msra.mxu0 0
    %1722 = vmatprep.subr.bf16.mxu0 0
    %1723 = vmatpush1.bf16.xpose.msra.mxu0 0
    %1724 = vmatprep.subr.bf16.mxu0 0
    %1725 = vmatpush1.bf16.xpose.msra.mxu0 0
    %1726 = vmatprep.subr.bf16.mxu0 0
    %1727 = vmatpush1.bf16.xpose.msra.mxu0 0
    %1728 = vmatprep.subr.bf16.mxu0 0
    %1729 = vmatpush1.bf16.xpose.msra.mxu0 0
    %1730 = vmatprep.subr.bf16.mxu0 0
    %1731 = vmatpush1.bf16.xpose.msra.mxu0 0
    %1732 = vmatprep.subr.bf16.mxu0 0
    %1733 = vmatpush1.bf16.xpose.msra.mxu0 0
    %1734 = vmatprep.subr.bf16.mxu0 0
    %1735 = vmatpush1.bf16.xpose.msra.mxu0 0
    %1736 = vmatprep.subr.bf16.mxu0 0
    %1737 = vmatpush1.bf16.xpose.msra.mxu0 0
    %1738 = vmatprep.subr.bf16.mxu0 0
    %1739 = vmatpush1.bf16.xpose.msra.mxu0 0
    %1740 = vmatprep.subr.bf16.mxu0 0
    %1741 = vmatpush1.bf16.xpose.msra.mxu0 0
    %1742 = vmatprep.subr.bf16.mxu0 0
    %1743 = vmatpush1.bf16.xpose.msra.mxu0 0
    %1744 = vmatprep.mubr.bf16.mxu0 0
    %1745 = vmatmul.mubr.bf16.gmra.mrb[0].mxu0 %v1707
    %v1746 = vpop.f32.mrb[0].mxu0
    %v1747 = vadd.f32 %v134, %v1746
    %v1748 = vpop.f32.mrb[0].mxu0
    %v1749 = vpop.f32.mrb[0].mxu0
    %v1750 = vpop.f32.mrb[0].mxu0
    %1751 = vdwg.mxu0
    %v1752 = vsel %vm666, %v1697, -inf
    %1753 = vmax.xlane.f32.xlu0 %v1752
    %v1754 = vpop.xlane.xlu0 %1753
    %v1755 = vsel %vm666, %v1747, -inf
    %1756 = vmax.xlane.f32.xlu0 %v1755
    %v1757 = vpop.xlane.xlu0 %1756
    %v1758 = vsub.f32 %v1697, %v1754
    %v1759 = vsub.f32 %v1747, %v1757
    %v1760 = vmul.f32 %v1758, 1.442695
    %v1761 = vpow.pop %v1760
    %v1762 = vmul.f32 %v1759, 1.442695
    %v1763 = vpow.pop %v1762
    %v1764 = vsel %vm666, %v1761, 0.0
    %1765 = vadd.xlane.f32.xlu0 %v1764
    %v1766 = vpop.xlane.xlu0 %1765
    %v1767 = vsel %vm666, %v1763, 0.0
    %1768 = vadd.xlane.f32.xlu0 %v1767
    %v1769 = vpop.xlane.xlu0 %1768
    %v1770 = vrcp.pop %v1766
    %v1771 = vrcp.pop %v1769
    %v1772 = vmul.f32 %v1761, %v1770
    %v1773 = vmul.f32 %v1763, %v1771
    %v1774 = vpack.c.bf16 %v1772, %v1772
    %v1775 = vpack.c.bf16 %v1773, %v1773
    %1776 = vrot.lane.b32.xlu0 %v571, 64
    %v1777 = vpop.permute.xlu0 %1776
    %v1779 = vsel %vm666, %v1774, 0
    %v1782 = vsel %vm694, %v1777, 0
    %1784 = vmatprep.subr.bf16.mxu0 0
    %1785 = vmatpush1.bf16.msra.mxu0 %v1782
    %1786 = vmatprep.subr.bf16.mxu0 0
    %1787 = vmatpush1.bf16.msra.mxu0 0
    %1788 = vmatprep.subr.bf16.mxu0 0
    %1789 = vmatpush1.bf16.msra.mxu0 0
    %1790 = vmatprep.subr.bf16.mxu0 0
    %1791 = vmatpush1.bf16.msra.mxu0 0
    %1792 = vmatprep.subr.bf16.mxu0 0
    %1793 = vmatpush1.bf16.msra.mxu0 0
    %1794 = vmatprep.subr.bf16.mxu0 0
    %1795 = vmatpush1.bf16.msra.mxu0 0
    %1796 = vmatprep.subr.bf16.mxu0 0
    %1797 = vmatpush1.bf16.msra.mxu0 0
    %1798 = vmatprep.subr.bf16.mxu0 0
    %1799 = vmatpush1.bf16.msra.mxu0 0
    %1800 = vmatprep.subr.bf16.mxu0 0
    %1801 = vmatpush1.bf16.msra.mxu0 0
    %1802 = vmatprep.subr.bf16.mxu0 0
    %1803 = vmatpush1.bf16.msra.mxu0 0
    %1804 = vmatprep.subr.bf16.mxu0 0
    %1805 = vmatpush1.bf16.msra.mxu0 0
    %1806 = vmatprep.subr.bf16.mxu0 0
    %1807 = vmatpush1.bf16.msra.mxu0 0
    %1808 = vmatprep.subr.bf16.mxu0 0
    %1809 = vmatpush1.bf16.msra.mxu0 0
    %1810 = vmatprep.subr.bf16.mxu0 0
    %1811 = vmatpush1.bf16.msra.mxu0 0
    %1812 = vmatprep.subr.bf16.mxu0 0
    %1813 = vmatpush1.bf16.msra.mxu0 0
    %1814 = vmatprep.subr.bf16.mxu0 0
    %1815 = vmatpush1.bf16.msra.mxu0 0
    %1816 = vmatprep.mubr.bf16.mxu0 0
    %1817 = vmatmul.mubr.bf16.gmra.mrb[0].mxu0 %v1779
    %v1818 = vpop.f32.mrb[0].mxu0
    %v1819 = vadd.f32 0.0, %v1818
    %v1820 = vpop.f32.mrb[0].mxu0
    %v1821 = vpop.f32.mrb[0].mxu0
    %v1822 = vpop.f32.mrb[0].mxu0
    %1823 = vdwg.mxu0
    %1824 = vrot.lane.b32.xlu0 %v572, 64
    %v1825 = vpop.permute.xlu0 %1824
    %v1827 = vsel %vm666, %v1775, 0
    %v1830 = vsel %vm694, %v1825, 0
    %1832 = vmatprep.subr.bf16.mxu0 0
    %1833 = vmatpush1.bf16.msra.mxu0 %v1830
    %1834 = vmatprep.subr.bf16.mxu0 0
    %1835 = vmatpush1.bf16.msra.mxu0 0
    %1836 = vmatprep.subr.bf16.mxu0 0
    %1837 = vmatpush1.bf16.msra.mxu0 0
    %1838 = vmatprep.subr.bf16.mxu0 0
    %1839 = vmatpush1.bf16.msra.mxu0 0
    %1840 = vmatprep.subr.bf16.mxu0 0
    %1841 = vmatpush1.bf16.msra.mxu0 0
    %1842 = vmatprep.subr.bf16.mxu0 0
    %1843 = vmatpush1.bf16.msra.mxu0 0
    %1844 = vmatprep.subr.bf16.mxu0 0
    %1845 = vmatpush1.bf16.msra.mxu0 0
    %1846 = vmatprep.subr.bf16.mxu0 0
    %1847 = vmatpush1.bf16.msra.mxu0 0
    %1848 = vmatprep.subr.bf16.mxu0 0
    %1849 = vmatpush1.bf16.msra.mxu0 0
    %1850 = vmatprep.subr.bf16.mxu0 0
    %1851 = vmatpush1.bf16.msra.mxu0 0
    %1852 = vmatprep.subr.bf16.mxu0 0
    %1853 = vmatpush1.bf16.msra.mxu0 0
    %1854 = vmatprep.subr.bf16.mxu0 0
    %1855 = vmatpush1.bf16.msra.mxu0 0
    %1856 = vmatprep.subr.bf16.mxu0 0
    %1857 = vmatpush1.bf16.msra.mxu0 0
    %1858 = vmatprep.subr.bf16.mxu0 0
    %1859 = vmatpush1.bf16.msra.mxu0 0
    %1860 = vmatprep.subr.bf16.mxu0 0
    %1861 = vmatpush1.bf16.msra.mxu0 0
    %1862 = vmatprep.subr.bf16.mxu0 0
    %1863 = vmatpush1.bf16.msra.mxu0 0
    %1864 = vmatprep.mubr.bf16.mxu0 0
    %1865 = vmatmul.mubr.bf16.gmra.mrb[0].mxu0 %v1827
    %v1866 = vpop.f32.mrb[0].mxu0
    %v1867 = vadd.f32 0.0, %v1866
    %v1868 = vpop.f32.mrb[0].mxu0
    %v1869 = vpop.f32.mrb[0].mxu0
    %v1870 = vpop.f32.mrb[0].mxu0
    %1871 = vdwg.mxu0
    %v1872 = vpack.c.bf16 %v1867, %v1819
    %v1875 = vunpack.c.l.b16 %v197
    %v1876 = vunpack.c.l.b16 %v198
    %v1877 = vpack.c.b16 %v1876, %v1875
    %v1880 = vsel %vm573, %v1872, 0
    %1882 = vmatprep.subr.bf16.mxu0 0
    %1883 = vmatpush1.bf16.msra.mxu0 %v1877
    %1884 = vmatprep.subr.bf16.mxu0 0
    %1885 = vmatpush1.bf16.msra.mxu0 0
    %1886 = vmatprep.subr.bf16.mxu0 0
    %1887 = vmatpush1.bf16.msra.mxu0 0
    %1888 = vmatprep.subr.bf16.mxu0 0
    %1889 = vmatpush1.bf16.msra.mxu0 0
    %1890 = vmatprep.subr.bf16.mxu0 0
    %1891 = vmatpush1.bf16.msra.mxu0 0
    %1892 = vmatprep.subr.bf16.mxu0 0
    %1893 = vmatpush1.bf16.msra.mxu0 0
    %1894 = vmatprep.subr.bf16.mxu0 0
    %1895 = vmatpush1.bf16.msra.mxu0 0
    %1896 = vmatprep.subr.bf16.mxu0 0
    %1897 = vmatpush1.bf16.msra.mxu0 0
    %1898 = vmatprep.subr.bf16.mxu0 0
    %1899 = vmatpush1.bf16.msra.mxu0 0
    %1900 = vmatprep.subr.bf16.mxu0 0
    %1901 = vmatpush1.bf16.msra.mxu0 0
    %1902 = vmatprep.subr.bf16.mxu0 0
    %1903 = vmatpush1.bf16.msra.mxu0 0
    %1904 = vmatprep.subr.bf16.mxu0 0
    %1905 = vmatpush1.bf16.msra.mxu0 0
    %1906 = vmatprep.subr.bf16.mxu0 0
    %1907 = vmatpush1.bf16.msra.mxu0 0
    %1908 = vmatprep.subr.bf16.mxu0 0
    %1909 = vmatpush1.bf16.msra.mxu0 0
    %1910 = vmatprep.subr.bf16.mxu0 0
    %1911 = vmatpush1.bf16.msra.mxu0 0
    %1912 = vmatprep.subr.bf16.mxu0 0
    %1913 = vmatpush1.bf16.msra.mxu0 0
    %1914 = vmatprep.mubr.bf16.mxu0 0
    %1915 = vmatmul.mubr.bf16.gmra.mrb[0].mxu0 %v1880
    %v1916 = vpop.f32.mrb[0].mxu0
    %v1917 = vadd.f32 0.0, %v1916
    %v1918 = vpop.f32.mrb[0].mxu0
    %v1919 = vpop.f32.mrb[0].mxu0
    %v1920 = vadd.f32 0.0, %v1919
    %v1921 = vpop.f32.mrb[0].mxu0
    %1922 = vdwg.mxu0
    %v1923 = vadd.f32 %v1650, %v1917
    %v1924 = vadd.f32 %v1651, %v1920
    %1925 = vrot.lane.b32.xlu0 %v561, 48
    %v1926 = vpop.permute.xlu0 %1925
    %1927 = vrot.lane.b32.xlu0 %v566, 48
    %v1928 = vpop.permute.xlu0 %1927
    %v1930 = vsel %vm573, %v1926, 0
    %v1933 = vsel %vm573, %v1928, 0
    %1935 = vmatprep.subr.bf16.mxu0 0
    %1936 = vmatpush1.bf16.xpose.msra.mxu0 %v1933
    %1937 = vmatprep.subr.bf16.mxu0 0
    %1938 = vmatpush1.bf16.xpose.msra.mxu0 0
    %1939 = vmatprep.subr.bf16.mxu0 0
    %1940 = vmatpush1.bf16.xpose.msra.mxu0 0
    %1941 = vmatprep.subr.bf16.mxu0 0
    %1942 = vmatpush1.bf16.xpose.msra.mxu0 0
    %1943 = vmatprep.subr.bf16.mxu0 0
    %1944 = vmatpush1.bf16.xpose.msra.mxu0 0
    %1945 = vmatprep.subr.bf16.mxu0 0
    %1946 = vmatpush1.bf16.xpose.msra.mxu0 0
    %1947 = vmatprep.subr.bf16.mxu0 0
    %1948 = vmatpush1.bf16.xpose.msra.mxu0 0
    %1949 = vmatprep.subr.bf16.mxu0 0
    %1950 = vmatpush1.bf16.xpose.msra.mxu0 0
    %1951 = vmatprep.subr.bf16.mxu0 0
    %1952 = vmatpush1.bf16.xpose.msra.mxu0 0
    %1953 = vmatprep.subr.bf16.mxu0 0
    %1954 = vmatpush1.bf16.xpose.msra.mxu0 0
    %1955 = vmatprep.subr.bf16.mxu0 0
    %1956 = vmatpush1.bf16.xpose.msra.mxu0 0
    %1957 = vmatprep.subr.bf16.mxu0 0
    %1958 = vmatpush1.bf16.xpose.msra.mxu0 0
    %1959 = vmatprep.subr.bf16.mxu0 0
    %1960 = vmatpush1.bf16.xpose.msra.mxu0 0
    %1961 = vmatprep.subr.bf16.mxu0 0
    %1962 = vmatpush1.bf16.xpose.msra.mxu0 0
    %1963 = vmatprep.subr.bf16.mxu0 0
    %1964 = vmatpush1.bf16.xpose.msra.mxu0 0
    %1965 = vmatprep.subr.bf16.mxu0 0
    %1966 = vmatpush1.bf16.xpose.msra.mxu0 0
    %1967 = vmatprep.mubr.bf16.mxu0 0
    %1968 = vmatmul.mubr.bf16.gmra.mrb[0].mxu0 %v1930
    %v1969 = vpop.f32.mrb[0].mxu0
    %v1970 = vadd.f32 %v133, %v1969
    %v1971 = vpop.f32.mrb[0].mxu0
    %v1972 = vpop.f32.mrb[0].mxu0
    %v1973 = vpop.f32.mrb[0].mxu0
    %1974 = vdwg.mxu0
    %1975 = vrot.lane.b32.xlu0 %v562, 48
    %v1976 = vpop.permute.xlu0 %1975
    %1977 = vrot.lane.b32.xlu0 %v567, 48
    %v1978 = vpop.permute.xlu0 %1977
    %v1980 = vsel %vm573, %v1976, 0
    %v1983 = vsel %vm573, %v1978, 0
    %1985 = vmatprep.subr.bf16.mxu0 0
    %1986 = vmatpush1.bf16.xpose.msra.mxu0 %v1983
    %1987 = vmatprep.subr.bf16.mxu0 0
    %1988 = vmatpush1.bf16.xpose.msra.mxu0 0
    %1989 = vmatprep.subr.bf16.mxu0 0
    %1990 = vmatpush1.bf16.xpose.msra.mxu0 0
    %1991 = vmatprep.subr.bf16.mxu0 0
    %1992 = vmatpush1.bf16.xpose.msra.mxu0 0
    %1993 = vmatprep.subr.bf16.mxu0 0
    %1994 = vmatpush1.bf16.xpose.msra.mxu0 0
    %1995 = vmatprep.subr.bf16.mxu0 0
    %1996 = vmatpush1.bf16.xpose.msra.mxu0 0
    %1997 = vmatprep.subr.bf16.mxu0 0
    %1998 = vmatpush1.bf16.xpose.msra.mxu0 0
    %1999 = vmatprep.subr.bf16.mxu0 0
    %2000 = vmatpush1.bf16.xpose.msra.mxu0 0
    %2001 = vmatprep.subr.bf16.mxu0 0
    %2002 = vmatpush1.bf16.xpose.msra.mxu0 0
    %2003 = vmatprep.subr.bf16.mxu0 0
    %2004 = vmatpush1.bf16.xpose.msra.mxu0 0
    %2005 = vmatprep.subr.bf16.mxu0 0
    %2006 = vmatpush1.bf16.xpose.msra.mxu0 0
    %2007 = vmatprep.subr.bf16.mxu0 0
    %2008 = vmatpush1.bf16.xpose.msra.mxu0 0
    %2009 = vmatprep.subr.bf16.mxu0 0
    %2010 = vmatpush1.bf16.xpose.msra.mxu0 0
    %2011 = vmatprep.subr.bf16.mxu0 0
    %2012 = vmatpush1.bf16.xpose.msra.mxu0 0
    %2013 = vmatprep.subr.bf16.mxu0 0
    %2014 = vmatpush1.bf16.xpose.msra.mxu0 0
    %2015 = vmatprep.subr.bf16.mxu0 0
    %2016 = vmatpush1.bf16.xpose.msra.mxu0 0
    %2017 = vmatprep.mubr.bf16.mxu0 0
    %2018 = vmatmul.mubr.bf16.gmra.mrb[0].mxu0 %v1980
    %v2019 = vpop.f32.mrb[0].mxu0
    %v2020 = vadd.f32 %v134, %v2019
    %v2021 = vpop.f32.mrb[0].mxu0
    %v2022 = vpop.f32.mrb[0].mxu0
    %v2023 = vpop.f32.mrb[0].mxu0
    %2024 = vdwg.mxu0
    %v2025 = vsel %vm666, %v1970, -inf
    %2026 = vmax.xlane.f32.xlu0 %v2025
    %v2027 = vpop.xlane.xlu0 %2026
    %v2028 = vsel %vm666, %v2020, -inf
    %2029 = vmax.xlane.f32.xlu0 %v2028
    %v2030 = vpop.xlane.xlu0 %2029
    %v2031 = vsub.f32 %v1970, %v2027
    %v2032 = vsub.f32 %v2020, %v2030
    %v2033 = vmul.f32 %v2031, 1.442695
    %v2034 = vpow.pop %v2033
    %v2035 = vmul.f32 %v2032, 1.442695
    %v2036 = vpow.pop %v2035
    %v2037 = vsel %vm666, %v2034, 0.0
    %2038 = vadd.xlane.f32.xlu0 %v2037
    %v2039 = vpop.xlane.xlu0 %2038
    %v2040 = vsel %vm666, %v2036, 0.0
    %2041 = vadd.xlane.f32.xlu0 %v2040
    %v2042 = vpop.xlane.xlu0 %2041
    %v2043 = vrcp.pop %v2039
    %v2044 = vrcp.pop %v2042
    %v2045 = vmul.f32 %v2034, %v2043
    %v2046 = vmul.f32 %v2036, %v2044
    %v2047 = vpack.c.bf16 %v2045, %v2045
    %v2048 = vpack.c.bf16 %v2046, %v2046
    %2049 = vrot.lane.b32.xlu0 %v571, 48
    %v2050 = vpop.permute.xlu0 %2049
    %v2052 = vsel %vm666, %v2047, 0
    %v2055 = vsel %vm694, %v2050, 0
    %2057 = vmatprep.subr.bf16.mxu0 0
    %2058 = vmatpush1.bf16.msra.mxu0 %v2055
    %2059 = vmatprep.subr.bf16.mxu0 0
    %2060 = vmatpush1.bf16.msra.mxu0 0
    %2061 = vmatprep.subr.bf16.mxu0 0
    %2062 = vmatpush1.bf16.msra.mxu0 0
    %2063 = vmatprep.subr.bf16.mxu0 0
    %2064 = vmatpush1.bf16.msra.mxu0 0
    %2065 = vmatprep.subr.bf16.mxu0 0
    %2066 = vmatpush1.bf16.msra.mxu0 0
    %2067 = vmatprep.subr.bf16.mxu0 0
    %2068 = vmatpush1.bf16.msra.mxu0 0
    %2069 = vmatprep.subr.bf16.mxu0 0
    %2070 = vmatpush1.bf16.msra.mxu0 0
    %2071 = vmatprep.subr.bf16.mxu0 0
    %2072 = vmatpush1.bf16.msra.mxu0 0
    %2073 = vmatprep.subr.bf16.mxu0 0
    %2074 = vmatpush1.bf16.msra.mxu0 0
    %2075 = vmatprep.subr.bf16.mxu0 0
    %2076 = vmatpush1.bf16.msra.mxu0 0
    %2077 = vmatprep.subr.bf16.mxu0 0
    %2078 = vmatpush1.bf16.msra.mxu0 0
    %2079 = vmatprep.subr.bf16.mxu0 0
    %2080 = vmatpush1.bf16.msra.mxu0 0
    %2081 = vmatprep.subr.bf16.mxu0 0
    %2082 = vmatpush1.bf16.msra.mxu0 0
    %2083 = vmatprep.subr.bf16.mxu0 0
    %2084 = vmatpush1.bf16.msra.mxu0 0
    %2085 = vmatprep.subr.bf16.mxu0 0
    %2086 = vmatpush1.bf16.msra.mxu0 0
    %2087 = vmatprep.subr.bf16.mxu0 0
    %2088 = vmatpush1.bf16.msra.mxu0 0
    %2089 = vmatprep.mubr.bf16.mxu0 0
    %2090 = vmatmul.mubr.bf16.gmra.mrb[0].mxu0 %v2052
    %v2091 = vpop.f32.mrb[0].mxu0
    %v2092 = vadd.f32 0.0, %v2091
    %v2093 = vpop.f32.mrb[0].mxu0
    %v2094 = vpop.f32.mrb[0].mxu0
    %v2095 = vpop.f32.mrb[0].mxu0
    %2096 = vdwg.mxu0
    %2097 = vrot.lane.b32.xlu0 %v572, 48
    %v2098 = vpop.permute.xlu0 %2097
    %v2100 = vsel %vm666, %v2048, 0
    %v2103 = vsel %vm694, %v2098, 0
    %2105 = vmatprep.subr.bf16.mxu0 0
    %2106 = vmatpush1.bf16.msra.mxu0 %v2103
    %2107 = vmatprep.subr.bf16.mxu0 0
    %2108 = vmatpush1.bf16.msra.mxu0 0
    %2109 = vmatprep.subr.bf16.mxu0 0
    %2110 = vmatpush1.bf16.msra.mxu0 0
    %2111 = vmatprep.subr.bf16.mxu0 0
    %2112 = vmatpush1.bf16.msra.mxu0 0
    %2113 = vmatprep.subr.bf16.mxu0 0
    %2114 = vmatpush1.bf16.msra.mxu0 0
    %2115 = vmatprep.subr.bf16.mxu0 0
    %2116 = vmatpush1.bf16.msra.mxu0 0
    %2117 = vmatprep.subr.bf16.mxu0 0
    %2118 = vmatpush1.bf16.msra.mxu0 0
    %2119 = vmatprep.subr.bf16.mxu0 0
    %2120 = vmatpush1.bf16.msra.mxu0 0
    %2121 = vmatprep.subr.bf16.mxu0 0
    %2122 = vmatpush1.bf16.msra.mxu0 0
    %2123 = vmatprep.subr.bf16.mxu0 0
    %2124 = vmatpush1.bf16.msra.mxu0 0
    %2125 = vmatprep.subr.bf16.mxu0 0
    %2126 = vmatpush1.bf16.msra.mxu0 0
    %2127 = vmatprep.subr.bf16.mxu0 0
    %2128 = vmatpush1.bf16.msra.mxu0 0
    %2129 = vmatprep.subr.bf16.mxu0 0
    %2130 = vmatpush1.bf16.msra.mxu0 0
    %2131 = vmatprep.subr.bf16.mxu0 0
    %2132 = vmatpush1.bf16.msra.mxu0 0
    %2133 = vmatprep.subr.bf16.mxu0 0
    %2134 = vmatpush1.bf16.msra.mxu0 0
    %2135 = vmatprep.subr.bf16.mxu0 0
    %2136 = vmatpush1.bf16.msra.mxu0 0
    %2137 = vmatprep.mubr.bf16.mxu0 0
    %2138 = vmatmul.mubr.bf16.gmra.mrb[0].mxu0 %v2100
    %v2139 = vpop.f32.mrb[0].mxu0
    %v2140 = vadd.f32 0.0, %v2139
    %v2141 = vpop.f32.mrb[0].mxu0
    %v2142 = vpop.f32.mrb[0].mxu0
    %v2143 = vpop.f32.mrb[0].mxu0
    %2144 = vdwg.mxu0
    %v2145 = vpack.c.bf16 %v2140, %v2092
    %v2148 = vunpack.c.l.b16 %v199
    %v2149 = vunpack.c.l.b16 %v200
    %v2150 = vpack.c.b16 %v2149, %v2148
    %v2153 = vsel %vm573, %v2145, 0
    %2155 = vmatprep.subr.bf16.mxu0 0
    %2156 = vmatpush1.bf16.msra.mxu0 %v2150
    %2157 = vmatprep.subr.bf16.mxu0 0
    %2158 = vmatpush1.bf16.msra.mxu0 0
    %2159 = vmatprep.subr.bf16.mxu0 0
    %2160 = vmatpush1.bf16.msra.mxu0 0
    %2161 = vmatprep.subr.bf16.mxu0 0
    %2162 = vmatpush1.bf16.msra.mxu0 0
    %2163 = vmatprep.subr.bf16.mxu0 0
    %2164 = vmatpush1.bf16.msra.mxu0 0
    %2165 = vmatprep.subr.bf16.mxu0 0
    %2166 = vmatpush1.bf16.msra.mxu0 0
    %2167 = vmatprep.subr.bf16.mxu0 0
    %2168 = vmatpush1.bf16.msra.mxu0 0
    %2169 = vmatprep.subr.bf16.mxu0 0
    %2170 = vmatpush1.bf16.msra.mxu0 0
    %2171 = vmatprep.subr.bf16.mxu0 0
    %2172 = vmatpush1.bf16.msra.mxu0 0
    %2173 = vmatprep.subr.bf16.mxu0 0
    %2174 = vmatpush1.bf16.msra.mxu0 0
    %2175 = vmatprep.subr.bf16.mxu0 0
    %2176 = vmatpush1.bf16.msra.mxu0 0
    %2177 = vmatprep.subr.bf16.mxu0 0
    %2178 = vmatpush1.bf16.msra.mxu0 0
    %2179 = vmatprep.subr.bf16.mxu0 0
    %2180 = vmatpush1.bf16.msra.mxu0 0
    %2181 = vmatprep.subr.bf16.mxu0 0
    %2182 = vmatpush1.bf16.msra.mxu0 0
    %2183 = vmatprep.subr.bf16.mxu0 0
    %2184 = vmatpush1.bf16.msra.mxu0 0
    %2185 = vmatprep.subr.bf16.mxu0 0
    %2186 = vmatpush1.bf16.msra.mxu0 0
    %2187 = vmatprep.mubr.bf16.mxu0 0
    %2188 = vmatmul.mubr.bf16.gmra.mrb[0].mxu0 %v2153
    %v2189 = vpop.f32.mrb[0].mxu0
    %v2190 = vadd.f32 0.0, %v2189
    %v2191 = vpop.f32.mrb[0].mxu0
    %v2192 = vpop.f32.mrb[0].mxu0
    %v2193 = vadd.f32 0.0, %v2192
    %v2194 = vpop.f32.mrb[0].mxu0
    %2195 = vdwg.mxu0
    %v2196 = vadd.f32 %v1923, %v2190
    %v2197 = vadd.f32 %v1924, %v2193
    %2198 = vrot.lane.b32.xlu0 %v561, 32
    %v2199 = vpop.permute.xlu0 %2198
    %2200 = vrot.lane.b32.xlu0 %v566, 32
    %v2201 = vpop.permute.xlu0 %2200
    %v2203 = vsel %vm573, %v2199, 0
    %v2206 = vsel %vm573, %v2201, 0
    %2208 = vmatprep.subr.bf16.mxu0 0
    %2209 = vmatpush1.bf16.xpose.msra.mxu0 %v2206
    %2210 = vmatprep.subr.bf16.mxu0 0
    %2211 = vmatpush1.bf16.xpose.msra.mxu0 0
    %2212 = vmatprep.subr.bf16.mxu0 0
    %2213 = vmatpush1.bf16.xpose.msra.mxu0 0
    %2214 = vmatprep.subr.bf16.mxu0 0
    %2215 = vmatpush1.bf16.xpose.msra.mxu0 0
    %2216 = vmatprep.subr.bf16.mxu0 0
    %2217 = vmatpush1.bf16.xpose.msra.mxu0 0
    %2218 = vmatprep.subr.bf16.mxu0 0
    %2219 = vmatpush1.bf16.xpose.msra.mxu0 0
    %2220 = vmatprep.subr.bf16.mxu0 0
    %2221 = vmatpush1.bf16.xpose.msra.mxu0 0
    %2222 = vmatprep.subr.bf16.mxu0 0
    %2223 = vmatpush1.bf16.xpose.msra.mxu0 0
    %2224 = vmatprep.subr.bf16.mxu0 0
    %2225 = vmatpush1.bf16.xpose.msra.mxu0 0
    %2226 = vmatprep.subr.bf16.mxu0 0
    %2227 = vmatpush1.bf16.xpose.msra.mxu0 0
    %2228 = vmatprep.subr.bf16.mxu0 0
    %2229 = vmatpush1.bf16.xpose.msra.mxu0 0
    %2230 = vmatprep.subr.bf16.mxu0 0
    %2231 = vmatpush1.bf16.xpose.msra.mxu0 0
    %2232 = vmatprep.subr.bf16.mxu0 0
    %2233 = vmatpush1.bf16.xpose.msra.mxu0 0
    %2234 = vmatprep.subr.bf16.mxu0 0
    %2235 = vmatpush1.bf16.xpose.msra.mxu0 0
    %2236 = vmatprep.subr.bf16.mxu0 0
    %2237 = vmatpush1.bf16.xpose.msra.mxu0 0
    %2238 = vmatprep.subr.bf16.mxu0 0
    %2239 = vmatpush1.bf16.xpose.msra.mxu0 0
    %2240 = vmatprep.mubr.bf16.mxu0 0
    %2241 = vmatmul.mubr.bf16.gmra.mrb[0].mxu0 %v2203
    %v2242 = vpop.f32.mrb[0].mxu0
    %v2243 = vadd.f32 %v133, %v2242
    %v2244 = vpop.f32.mrb[0].mxu0
    %v2245 = vpop.f32.mrb[0].mxu0
    %v2246 = vpop.f32.mrb[0].mxu0
    %2247 = vdwg.mxu0
    %2248 = vrot.lane.b32.xlu0 %v562, 32
    %v2249 = vpop.permute.xlu0 %2248
    %2250 = vrot.lane.b32.xlu0 %v567, 32
    %v2251 = vpop.permute.xlu0 %2250
    %v2253 = vsel %vm573, %v2249, 0
    %v2256 = vsel %vm573, %v2251, 0
    %2258 = vmatprep.subr.bf16.mxu0 0
    %2259 = vmatpush1.bf16.xpose.msra.mxu0 %v2256
    %2260 = vmatprep.subr.bf16.mxu0 0
    %2261 = vmatpush1.bf16.xpose.msra.mxu0 0
    %2262 = vmatprep.subr.bf16.mxu0 0
    %2263 = vmatpush1.bf16.xpose.msra.mxu0 0
    %2264 = vmatprep.subr.bf16.mxu0 0
    %2265 = vmatpush1.bf16.xpose.msra.mxu0 0
    %2266 = vmatprep.subr.bf16.mxu0 0
    %2267 = vmatpush1.bf16.xpose.msra.mxu0 0
    %2268 = vmatprep.subr.bf16.mxu0 0
    %2269 = vmatpush1.bf16.xpose.msra.mxu0 0
    %2270 = vmatprep.subr.bf16.mxu0 0
    %2271 = vmatpush1.bf16.xpose.msra.mxu0 0
    %2272 = vmatprep.subr.bf16.mxu0 0
    %2273 = vmatpush1.bf16.xpose.msra.mxu0 0
    %2274 = vmatprep.subr.bf16.mxu0 0
    %2275 = vmatpush1.bf16.xpose.msra.mxu0 0
    %2276 = vmatprep.subr.bf16.mxu0 0
    %2277 = vmatpush1.bf16.xpose.msra.mxu0 0
    %2278 = vmatprep.subr.bf16.mxu0 0
    %2279 = vmatpush1.bf16.xpose.msra.mxu0 0
    %2280 = vmatprep.subr.bf16.mxu0 0
    %2281 = vmatpush1.bf16.xpose.msra.mxu0 0
    %2282 = vmatprep.subr.bf16.mxu0 0
    %2283 = vmatpush1.bf16.xpose.msra.mxu0 0
    %2284 = vmatprep.subr.bf16.mxu0 0
    %2285 = vmatpush1.bf16.xpose.msra.mxu0 0
    %2286 = vmatprep.subr.bf16.mxu0 0
    %2287 = vmatpush1.bf16.xpose.msra.mxu0 0
    %2288 = vmatprep.subr.bf16.mxu0 0
    %2289 = vmatpush1.bf16.xpose.msra.mxu0 0
    %2290 = vmatprep.mubr.bf16.mxu0 0
    %2291 = vmatmul.mubr.bf16.gmra.mrb[0].mxu0 %v2253
    %v2292 = vpop.f32.mrb[0].mxu0
    %v2293 = vadd.f32 %v134, %v2292
    %v2294 = vpop.f32.mrb[0].mxu0
    %v2295 = vpop.f32.mrb[0].mxu0
    %v2296 = vpop.f32.mrb[0].mxu0
    %2297 = vdwg.mxu0
    %v2298 = vsel %vm666, %v2243, -inf
    %2299 = vmax.xlane.f32.xlu0 %v2298
    %v2300 = vpop.xlane.xlu0 %2299
    %v2301 = vsel %vm666, %v2293, -inf
    %2302 = vmax.xlane.f32.xlu0 %v2301
    %v2303 = vpop.xlane.xlu0 %2302
    %v2304 = vsub.f32 %v2243, %v2300
    %v2305 = vsub.f32 %v2293, %v2303
    %v2306 = vmul.f32 %v2304, 1.442695
    %v2307 = vpow.pop %v2306
    %v2308 = vmul.f32 %v2305, 1.442695
    %v2309 = vpow.pop %v2308
    %v2310 = vsel %vm666, %v2307, 0.0
    %2311 = vadd.xlane.f32.xlu0 %v2310
    %v2312 = vpop.xlane.xlu0 %2311
    %v2313 = vsel %vm666, %v2309, 0.0
    %2314 = vadd.xlane.f32.xlu0 %v2313
    %v2315 = vpop.xlane.xlu0 %2314
    %v2316 = vrcp.pop %v2312
    %v2317 = vrcp.pop %v2315
    %v2318 = vmul.f32 %v2307, %v2316
    %v2319 = vmul.f32 %v2309, %v2317
    %v2320 = vpack.c.bf16 %v2318, %v2318
    %v2321 = vpack.c.bf16 %v2319, %v2319
    %2322 = vrot.lane.b32.xlu0 %v571, 32
    %v2323 = vpop.permute.xlu0 %2322
    %v2325 = vsel %vm666, %v2320, 0
    %v2328 = vsel %vm694, %v2323, 0
    %2330 = vmatprep.subr.bf16.mxu0 0
    %2331 = vmatpush1.bf16.msra.mxu0 %v2328
    %2332 = vmatprep.subr.bf16.mxu0 0
    %2333 = vmatpush1.bf16.msra.mxu0 0
    %2334 = vmatprep.subr.bf16.mxu0 0
    %2335 = vmatpush1.bf16.msra.mxu0 0
    %2336 = vmatprep.subr.bf16.mxu0 0
    %2337 = vmatpush1.bf16.msra.mxu0 0
    %2338 = vmatprep.subr.bf16.mxu0 0
    %2339 = vmatpush1.bf16.msra.mxu0 0
    %2340 = vmatprep.subr.bf16.mxu0 0
    %2341 = vmatpush1.bf16.msra.mxu0 0
    %2342 = vmatprep.subr.bf16.mxu0 0
    %2343 = vmatpush1.bf16.msra.mxu0 0
    %2344 = vmatprep.subr.bf16.mxu0 0
    %2345 = vmatpush1.bf16.msra.mxu0 0
    %2346 = vmatprep.subr.bf16.mxu0 0
    %2347 = vmatpush1.bf16.msra.mxu0 0
    %2348 = vmatprep.subr.bf16.mxu0 0
    %2349 = vmatpush1.bf16.msra.mxu0 0
    %2350 = vmatprep.subr.bf16.mxu0 0
    %2351 = vmatpush1.bf16.msra.mxu0 0
    %2352 = vmatprep.subr.bf16.mxu0 0
    %2353 = vmatpush1.bf16.msra.mxu0 0
    %2354 = vmatprep.subr.bf16.mxu0 0
    %2355 = vmatpush1.bf16.msra.mxu0 0
    %2356 = vmatprep.subr.bf16.mxu0 0
    %2357 = vmatpush1.bf16.msra.mxu0 0
    %2358 = vmatprep.subr.bf16.mxu0 0
    %2359 = vmatpush1.bf16.msra.mxu0 0
    %2360 = vmatprep.subr.bf16.mxu0 0
    %2361 = vmatpush1.bf16.msra.mxu0 0
    %2362 = vmatprep.mubr.bf16.mxu0 0
    %2363 = vmatmul.mubr.bf16.gmra.mrb[0].mxu0 %v2325
    %v2364 = vpop.f32.mrb[0].mxu0
    %v2365 = vadd.f32 0.0, %v2364
    %v2366 = vpop.f32.mrb[0].mxu0
    %v2367 = vpop.f32.mrb[0].mxu0
    %v2368 = vpop.f32.mrb[0].mxu0
    %2369 = vdwg.mxu0
    %2370 = vrot.lane.b32.xlu0 %v572, 32
    %v2371 = vpop.permute.xlu0 %2370
    %v2373 = vsel %vm666, %v2321, 0
    %v2376 = vsel %vm694, %v2371, 0
    %2378 = vmatprep.subr.bf16.mxu0 0
    %2379 = vmatpush1.bf16.msra.mxu0 %v2376
    %2380 = vmatprep.subr.bf16.mxu0 0
    %2381 = vmatpush1.bf16.msra.mxu0 0
    %2382 = vmatprep.subr.bf16.mxu0 0
    %2383 = vmatpush1.bf16.msra.mxu0 0
    %2384 = vmatprep.subr.bf16.mxu0 0
    %2385 = vmatpush1.bf16.msra.mxu0 0
    %2386 = vmatprep.subr.bf16.mxu0 0
    %2387 = vmatpush1.bf16.msra.mxu0 0
    %2388 = vmatprep.subr.bf16.mxu0 0
    %2389 = vmatpush1.bf16.msra.mxu0 0
    %2390 = vmatprep.subr.bf16.mxu0 0
    %2391 = vmatpush1.bf16.msra.mxu0 0
    %2392 = vmatprep.subr.bf16.mxu0 0
    %2393 = vmatpush1.bf16.msra.mxu0 0
    %2394 = vmatprep.subr.bf16.mxu0 0
    %2395 = vmatpush1.bf16.msra.mxu0 0
    %2396 = vmatprep.subr.bf16.mxu0 0
    %2397 = vmatpush1.bf16.msra.mxu0 0
    %2398 = vmatprep.subr.bf16.mxu0 0
    %2399 = vmatpush1.bf16.msra.mxu0 0
    %2400 = vmatprep.subr.bf16.mxu0 0
    %2401 = vmatpush1.bf16.msra.mxu0 0
    %2402 = vmatprep.subr.bf16.mxu0 0
    %2403 = vmatpush1.bf16.msra.mxu0 0
    %2404 = vmatprep.subr.bf16.mxu0 0
    %2405 = vmatpush1.bf16.msra.mxu0 0
    %2406 = vmatprep.subr.bf16.mxu0 0
    %2407 = vmatpush1.bf16.msra.mxu0 0
    %2408 = vmatprep.subr.bf16.mxu0 0
    %2409 = vmatpush1.bf16.msra.mxu0 0
    %2410 = vmatprep.mubr.bf16.mxu0 0
    %2411 = vmatmul.mubr.bf16.gmra.mrb[0].mxu0 %v2373
    %v2412 = vpop.f32.mrb[0].mxu0
    %v2413 = vadd.f32 0.0, %v2412
    %v2414 = vpop.f32.mrb[0].mxu0
    %v2415 = vpop.f32.mrb[0].mxu0
    %v2416 = vpop.f32.mrb[0].mxu0
    %2417 = vdwg.mxu0
    %v2418 = vpack.c.bf16 %v2413, %v2365
    %v2421 = vunpack.c.l.b16 %v201
    %v2422 = vunpack.c.l.b16 %v202
    %v2423 = vpack.c.b16 %v2422, %v2421
    %v2426 = vsel %vm573, %v2418, 0
    %2428 = vmatprep.subr.bf16.mxu0 0
    %2429 = vmatpush1.bf16.msra.mxu0 %v2423
    %2430 = vmatprep.subr.bf16.mxu0 0
    %2431 = vmatpush1.bf16.msra.mxu0 0
    %2432 = vmatprep.subr.bf16.mxu0 0
    %2433 = vmatpush1.bf16.msra.mxu0 0
    %2434 = vmatprep.subr.bf16.mxu0 0
    %2435 = vmatpush1.bf16.msra.mxu0 0
    %2436 = vmatprep.subr.bf16.mxu0 0
    %2437 = vmatpush1.bf16.msra.mxu0 0
    %2438 = vmatprep.subr.bf16.mxu0 0
    %2439 = vmatpush1.bf16.msra.mxu0 0
    %2440 = vmatprep.subr.bf16.mxu0 0
    %2441 = vmatpush1.bf16.msra.mxu0 0
    %2442 = vmatprep.subr.bf16.mxu0 0
    %2443 = vmatpush1.bf16.msra.mxu0 0
    %2444 = vmatprep.subr.bf16.mxu0 0
    %2445 = vmatpush1.bf16.msra.mxu0 0
    %2446 = vmatprep.subr.bf16.mxu0 0
    %2447 = vmatpush1.bf16.msra.mxu0 0
    %2448 = vmatprep.subr.bf16.mxu0 0
    %2449 = vmatpush1.bf16.msra.mxu0 0
    %2450 = vmatprep.subr.bf16.mxu0 0
    %2451 = vmatpush1.bf16.msra.mxu0 0
    %2452 = vmatprep.subr.bf16.mxu0 0
    %2453 = vmatpush1.bf16.msra.mxu0 0
    %2454 = vmatprep.subr.bf16.mxu0 0
    %2455 = vmatpush1.bf16.msra.mxu0 0
    %2456 = vmatprep.subr.bf16.mxu0 0
    %2457 = vmatpush1.bf16.msra.mxu0 0
    %2458 = vmatprep.subr.bf16.mxu0 0
    %2459 = vmatpush1.bf16.msra.mxu0 0
    %2460 = vmatprep.mubr.bf16.mxu0 0
    %2461 = vmatmul.mubr.bf16.gmra.mrb[0].mxu0 %v2426
    %v2462 = vpop.f32.mrb[0].mxu0
    %v2463 = vadd.f32 0.0, %v2462
    %v2464 = vpop.f32.mrb[0].mxu0
    %v2465 = vpop.f32.mrb[0].mxu0
    %v2466 = vadd.f32 0.0, %v2465
    %v2467 = vpop.f32.mrb[0].mxu0
    %2468 = vdwg.mxu0
    %v2469 = vadd.f32 %v2196, %v2463
    %v2470 = vadd.f32 %v2197, %v2466
    %2471 = vrot.lane.b32.xlu0 %v561, 16
    %v2472 = vpop.permute.xlu0 %2471
    %2473 = vrot.lane.b32.xlu0 %v566, 16
    %v2474 = vpop.permute.xlu0 %2473
    %v2476 = vsel %vm573, %v2472, 0
    %v2479 = vsel %vm573, %v2474, 0
    %2481 = vmatprep.subr.bf16.mxu0 0
    %2482 = vmatpush1.bf16.xpose.msra.mxu0 %v2479
    %2483 = vmatprep.subr.bf16.mxu0 0
    %2484 = vmatpush1.bf16.xpose.msra.mxu0 0
    %2485 = vmatprep.subr.bf16.mxu0 0
    %2486 = vmatpush1.bf16.xpose.msra.mxu0 0
    %2487 = vmatprep.subr.bf16.mxu0 0
    %2488 = vmatpush1.bf16.xpose.msra.mxu0 0
    %2489 = vmatprep.subr.bf16.mxu0 0
    %2490 = vmatpush1.bf16.xpose.msra.mxu0 0
    %2491 = vmatprep.subr.bf16.mxu0 0
    %2492 = vmatpush1.bf16.xpose.msra.mxu0 0
    %2493 = vmatprep.subr.bf16.mxu0 0
    %2494 = vmatpush1.bf16.xpose.msra.mxu0 0
    %2495 = vmatprep.subr.bf16.mxu0 0
    %2496 = vmatpush1.bf16.xpose.msra.mxu0 0
    %2497 = vmatprep.subr.bf16.mxu0 0
    %2498 = vmatpush1.bf16.xpose.msra.mxu0 0
    %2499 = vmatprep.subr.bf16.mxu0 0
    %2500 = vmatpush1.bf16.xpose.msra.mxu0 0
    %2501 = vmatprep.subr.bf16.mxu0 0
    %2502 = vmatpush1.bf16.xpose.msra.mxu0 0
    %2503 = vmatprep.subr.bf16.mxu0 0
    %2504 = vmatpush1.bf16.xpose.msra.mxu0 0
    %2505 = vmatprep.subr.bf16.mxu0 0
    %2506 = vmatpush1.bf16.xpose.msra.mxu0 0
    %2507 = vmatprep.subr.bf16.mxu0 0
    %2508 = vmatpush1.bf16.xpose.msra.mxu0 0
    %2509 = vmatprep.subr.bf16.mxu0 0
    %2510 = vmatpush1.bf16.xpose.msra.mxu0 0
    %2511 = vmatprep.subr.bf16.mxu0 0
    %2512 = vmatpush1.bf16.xpose.msra.mxu0 0
    %2513 = vmatprep.mubr.bf16.mxu0 0
    %2514 = vmatmul.mubr.bf16.gmra.mrb[0].mxu0 %v2476
    %v2515 = vpop.f32.mrb[0].mxu0
    %v2516 = vadd.f32 %v133, %v2515
    %v2517 = vpop.f32.mrb[0].mxu0
    %v2518 = vpop.f32.mrb[0].mxu0
    %v2519 = vpop.f32.mrb[0].mxu0
    %2520 = vdwg.mxu0
    %2521 = vrot.lane.b32.xlu0 %v562, 16
    %v2522 = vpop.permute.xlu0 %2521
    %2523 = vrot.lane.b32.xlu0 %v567, 16
    %v2524 = vpop.permute.xlu0 %2523
    %v2526 = vsel %vm573, %v2522, 0
    %v2529 = vsel %vm573, %v2524, 0
    %2531 = vmatprep.subr.bf16.mxu0 0
    %2532 = vmatpush1.bf16.xpose.msra.mxu0 %v2529
    %2533 = vmatprep.subr.bf16.mxu0 0
    %2534 = vmatpush1.bf16.xpose.msra.mxu0 0
    %2535 = vmatprep.subr.bf16.mxu0 0
    %2536 = vmatpush1.bf16.xpose.msra.mxu0 0
    %2537 = vmatprep.subr.bf16.mxu0 0
    %2538 = vmatpush1.bf16.xpose.msra.mxu0 0
    %2539 = vmatprep.subr.bf16.mxu0 0
    %2540 = vmatpush1.bf16.xpose.msra.mxu0 0
    %2541 = vmatprep.subr.bf16.mxu0 0
    %2542 = vmatpush1.bf16.xpose.msra.mxu0 0
    %2543 = vmatprep.subr.bf16.mxu0 0
    %2544 = vmatpush1.bf16.xpose.msra.mxu0 0
    %2545 = vmatprep.subr.bf16.mxu0 0
    %2546 = vmatpush1.bf16.xpose.msra.mxu0 0
    %2547 = vmatprep.subr.bf16.mxu0 0
    %2548 = vmatpush1.bf16.xpose.msra.mxu0 0
    %2549 = vmatprep.subr.bf16.mxu0 0
    %2550 = vmatpush1.bf16.xpose.msra.mxu0 0
    %2551 = vmatprep.subr.bf16.mxu0 0
    %2552 = vmatpush1.bf16.xpose.msra.mxu0 0
    %2553 = vmatprep.subr.bf16.mxu0 0
    %2554 = vmatpush1.bf16.xpose.msra.mxu0 0
    %2555 = vmatprep.subr.bf16.mxu0 0
    %2556 = vmatpush1.bf16.xpose.msra.mxu0 0
    %2557 = vmatprep.subr.bf16.mxu0 0
    %2558 = vmatpush1.bf16.xpose.msra.mxu0 0
    %2559 = vmatprep.subr.bf16.mxu0 0
    %2560 = vmatpush1.bf16.xpose.msra.mxu0 0
    %2561 = vmatprep.subr.bf16.mxu0 0
    %2562 = vmatpush1.bf16.xpose.msra.mxu0 0
    %2563 = vmatprep.mubr.bf16.mxu0 0
    %2564 = vmatmul.mubr.bf16.gmra.mrb[0].mxu0 %v2526
    %v2565 = vpop.f32.mrb[0].mxu0
    %v2566 = vadd.f32 %v134, %v2565
    %v2567 = vpop.f32.mrb[0].mxu0
    %v2568 = vpop.f32.mrb[0].mxu0
    %v2569 = vpop.f32.mrb[0].mxu0
    %2570 = vdwg.mxu0
    %v2571 = vsel %vm666, %v2516, -inf
    %2572 = vmax.xlane.f32.xlu0 %v2571
    %v2573 = vpop.xlane.xlu0 %2572
    %v2574 = vsel %vm666, %v2566, -inf
    %2575 = vmax.xlane.f32.xlu0 %v2574
    %v2576 = vpop.xlane.xlu0 %2575
    %v2577 = vsub.f32 %v2516, %v2573
    %v2578 = vsub.f32 %v2566, %v2576
    %v2579 = vmul.f32 %v2577, 1.442695
    %v2580 = vpow.pop %v2579
    %v2581 = vmul.f32 %v2578, 1.442695
    %v2582 = vpow.pop %v2581
    %v2583 = vsel %vm666, %v2580, 0.0
    %2584 = vadd.xlane.f32.xlu0 %v2583
    %v2585 = vpop.xlane.xlu0 %2584
    %v2586 = vsel %vm666, %v2582, 0.0
    %2587 = vadd.xlane.f32.xlu0 %v2586
    %v2588 = vpop.xlane.xlu0 %2587
    %v2589 = vrcp.pop %v2585
    %v2590 = vrcp.pop %v2588
    %v2591 = vmul.f32 %v2580, %v2589
    %v2592 = vmul.f32 %v2582, %v2590
    %v2593 = vpack.c.bf16 %v2591, %v2591
    %v2594 = vpack.c.bf16 %v2592, %v2592
    %2595 = vrot.lane.b32.xlu0 %v571, 16
    %v2596 = vpop.permute.xlu0 %2595
    %v2598 = vsel %vm666, %v2593, 0
    %v2601 = vsel %vm694, %v2596, 0
    %2603 = vmatprep.subr.bf16.mxu0 0
    %2604 = vmatpush1.bf16.msra.mxu0 %v2601
    %2605 = vmatprep.subr.bf16.mxu0 0
    %2606 = vmatpush1.bf16.msra.mxu0 0
    %2607 = vmatprep.subr.bf16.mxu0 0
    %2608 = vmatpush1.bf16.msra.mxu0 0
    %2609 = vmatprep.subr.bf16.mxu0 0
    %2610 = vmatpush1.bf16.msra.mxu0 0
    %2611 = vmatprep.subr.bf16.mxu0 0
    %2612 = vmatpush1.bf16.msra.mxu0 0
    %2613 = vmatprep.subr.bf16.mxu0 0
    %2614 = vmatpush1.bf16.msra.mxu0 0
    %2615 = vmatprep.subr.bf16.mxu0 0
    %2616 = vmatpush1.bf16.msra.mxu0 0
    %2617 = vmatprep.subr.bf16.mxu0 0
    %2618 = vmatpush1.bf16.msra.mxu0 0
    %2619 = vmatprep.subr.bf16.mxu0 0
    %2620 = vmatpush1.bf16.msra.mxu0 0
    %2621 = vmatprep.subr.bf16.mxu0 0
    %2622 = vmatpush1.bf16.msra.mxu0 0
    %2623 = vmatprep.subr.bf16.mxu0 0
    %2624 = vmatpush1.bf16.msra.mxu0 0
    %2625 = vmatprep.subr.bf16.mxu0 0
    %2626 = vmatpush1.bf16.msra.mxu0 0
    %2627 = vmatprep.subr.bf16.mxu0 0
    %2628 = vmatpush1.bf16.msra.mxu0 0
    %2629 = vmatprep.subr.bf16.mxu0 0
    %2630 = vmatpush1.bf16.msra.mxu0 0
    %2631 = vmatprep.subr.bf16.mxu0 0
    %2632 = vmatpush1.bf16.msra.mxu0 0
    %2633 = vmatprep.subr.bf16.mxu0 0
    %2634 = vmatpush1.bf16.msra.mxu0 0
    %2635 = vmatprep.mubr.bf16.mxu0 0
    %2636 = vmatmul.mubr.bf16.gmra.mrb[0].mxu0 %v2598
    %v2637 = vpop.f32.mrb[0].mxu0
    %v2638 = vadd.f32 0.0, %v2637
    %v2639 = vpop.f32.mrb[0].mxu0
    %v2640 = vpop.f32.mrb[0].mxu0
    %v2641 = vpop.f32.mrb[0].mxu0
    %2642 = vdwg.mxu0
    %2643 = vrot.lane.b32.xlu0 %v572, 16
    %v2644 = vpop.permute.xlu0 %2643
    %v2646 = vsel %vm666, %v2594, 0
    %v2649 = vsel %vm694, %v2644, 0
    %2651 = vmatprep.subr.bf16.mxu0 0
    %2652 = vmatpush1.bf16.msra.mxu0 %v2649
    %2653 = vmatprep.subr.bf16.mxu0 0
    %2654 = vmatpush1.bf16.msra.mxu0 0
    %2655 = vmatprep.subr.bf16.mxu0 0
    %2656 = vmatpush1.bf16.msra.mxu0 0
    %2657 = vmatprep.subr.bf16.mxu0 0
    %2658 = vmatpush1.bf16.msra.mxu0 0
    %2659 = vmatprep.subr.bf16.mxu0 0
    %2660 = vmatpush1.bf16.msra.mxu0 0
    %2661 = vmatprep.subr.bf16.mxu0 0
    %2662 = vmatpush1.bf16.msra.mxu0 0
    %2663 = vmatprep.subr.bf16.mxu0 0
    %2664 = vmatpush1.bf16.msra.mxu0 0
    %2665 = vmatprep.subr.bf16.mxu0 0
    %2666 = vmatpush1.bf16.msra.mxu0 0
    %2667 = vmatprep.subr.bf16.mxu0 0
    %2668 = vmatpush1.bf16.msra.mxu0 0
    %2669 = vmatprep.subr.bf16.mxu0 0
    %2670 = vmatpush1.bf16.msra.mxu0 0
    %2671 = vmatprep.subr.bf16.mxu0 0
    %2672 = vmatpush1.bf16.msra.mxu0 0
    %2673 = vmatprep.subr.bf16.mxu0 0
    %2674 = vmatpush1.bf16.msra.mxu0 0
    %2675 = vmatprep.subr.bf16.mxu0 0
    %2676 = vmatpush1.bf16.msra.mxu0 0
    %2677 = vmatprep.subr.bf16.mxu0 0
    %2678 = vmatpush1.bf16.msra.mxu0 0
    %2679 = vmatprep.subr.bf16.mxu0 0
    %2680 = vmatpush1.bf16.msra.mxu0 0
    %2681 = vmatprep.subr.bf16.mxu0 0
    %2682 = vmatpush1.bf16.msra.mxu0 0
    %2683 = vmatprep.mubr.bf16.mxu0 0
    %2684 = vmatmul.mubr.bf16.gmra.mrb[0].mxu0 %v2646
    %v2685 = vpop.f32.mrb[0].mxu0
    %v2686 = vadd.f32 0.0, %v2685
    %v2687 = vpop.f32.mrb[0].mxu0
    %v2688 = vpop.f32.mrb[0].mxu0
    %v2689 = vpop.f32.mrb[0].mxu0
    %2690 = vdwg.mxu0
    %v2691 = vpack.c.bf16 %v2686, %v2638
    %v2694 = vunpack.c.l.b16 %v203
    %v2695 = vunpack.c.l.b16 %v204
    %v2696 = vpack.c.b16 %v2695, %v2694
    %v2699 = vsel %vm573, %v2691, 0
    %2701 = vmatprep.subr.bf16.mxu0 0
    %2702 = vmatpush1.bf16.msra.mxu0 %v2696
    %2703 = vmatprep.subr.bf16.mxu0 0
    %2704 = vmatpush1.bf16.msra.mxu0 0
    %2705 = vmatprep.subr.bf16.mxu0 0
    %2706 = vmatpush1.bf16.msra.mxu0 0
    %2707 = vmatprep.subr.bf16.mxu0 0
    %2708 = vmatpush1.bf16.msra.mxu0 0
    %2709 = vmatprep.subr.bf16.mxu0 0
    %2710 = vmatpush1.bf16.msra.mxu0 0
    %2711 = vmatprep.subr.bf16.mxu0 0
    %2712 = vmatpush1.bf16.msra.mxu0 0
    %2713 = vmatprep.subr.bf16.mxu0 0
    %2714 = vmatpush1.bf16.msra.mxu0 0
    %2715 = vmatprep.subr.bf16.mxu0 0
    %2716 = vmatpush1.bf16.msra.mxu0 0
    %2717 = vmatprep.subr.bf16.mxu0 0
    %2718 = vmatpush1.bf16.msra.mxu0 0
    %2719 = vmatprep.subr.bf16.mxu0 0
    %2720 = vmatpush1.bf16.msra.mxu0 0
    %2721 = vmatprep.subr.bf16.mxu0 0
    %2722 = vmatpush1.bf16.msra.mxu0 0
    %2723 = vmatprep.subr.bf16.mxu0 0
    %2724 = vmatpush1.bf16.msra.mxu0 0
    %2725 = vmatprep.subr.bf16.mxu0 0
    %2726 = vmatpush1.bf16.msra.mxu0 0
    %2727 = vmatprep.subr.bf16.mxu0 0
    %2728 = vmatpush1.bf16.msra.mxu0 0
    %2729 = vmatprep.subr.bf16.mxu0 0
    %2730 = vmatpush1.bf16.msra.mxu0 0
    %2731 = vmatprep.subr.bf16.mxu0 0
    %2732 = vmatpush1.bf16.msra.mxu0 0
    %2733 = vmatprep.mubr.bf16.mxu0 0
    %2734 = vmatmul.mubr.bf16.gmra.mrb[0].mxu0 %v2699
    %v2735 = vpop.f32.mrb[0].mxu0
    %v2736 = vadd.f32 0.0, %v2735
    %v2737 = vpop.f32.mrb[0].mxu0
    %v2738 = vpop.f32.mrb[0].mxu0
    %v2739 = vadd.f32 0.0, %v2738
    %v2740 = vpop.f32.mrb[0].mxu0
    %2741 = vdwg.mxu0
    %v2742 = vadd.f32 %v2469, %v2736
    %v2743 = vadd.f32 %v2470, %v2739
    %v2744 = vlaneseq
    %v2745 = vshrl.u32 %v2744, 7
    %v2746 = vsub.s32 3, %v2745
    %v2747 = vrot.slane %v269, %v2746
    %v2748 = vadd.f32 %v2742, %v2747
    %v2749 = vadd.f32 %v2743, %v2747
    %v2750 = vadd.f32 %v125, %v2748
    %v2751 = vadd.f32 %v126, %v2749
    %2752 = vadd.xlane.f32.xlu0 %v2750
    %v2753 = vpop.xlane.xlu0 %2752
    %2754 = vadd.xlane.f32.xlu0 %v2751
    %v2755 = vpop.xlane.xlu0 %2754
    %v2756 = vrcp.pop 128.0
    %v2757 = vmul.f32 %v2753, %v2756
    %v2758 = vmul.f32 %v2755, %v2756
    %v2759 = vsub.f32 %v2750, %v2757
    %v2760 = vsub.f32 %v2751, %v2758
    %v2761 = vmul.f32 %v2759, %v2759
    %v2762 = vmul.f32 %v2760, %v2760
    %2763 = vadd.xlane.f32.xlu0 %v2761
    %v2764 = vpop.xlane.xlu0 %2763
    %2765 = vadd.xlane.f32.xlu0 %v2762
    %v2766 = vpop.xlane.xlu0 %2765
    %v2767 = vmul.f32 %v2764, %v2756
    %v2768 = vmul.f32 %v2766, %v2756
    %v2769 = vadd.f32 %v2767, 1e-05
    %v2770 = vadd.f32 %v2768, 1e-05
    %v2771 = vrsqrt.pop %v2769
    %v2772 = vrsqrt.pop %v2770
    %v2773 = vmul.f32 %v2759, %v2771
    %v2774 = vmul.f32 %v2760, %v2772
    %v2776 = vlaneseq
    %v2777 = vshrl.u32 %v2776, 7
    %v2778 = vsub.s32 0, %v2777
    %v2779 = vrot.slane %v271, %v2778
    %v2781 = vmul.f32 %v2773, %v2779
    %v2782 = vmul.f32 %v2774, %v2779
    %v2784 = vlaneseq
    %v2785 = vshrl.u32 %v2784, 7
    %v2786 = vsub.s32 0, %v2785
    %v2787 = vrot.slane %v272, %v2786
    %v2789 = vadd.f32 %v2781, %v2787
    %v2790 = vadd.f32 %v2782, %v2787
    %v2791 = vpack.c.bf16 %v2790, %v2789
    %v2792 = vpack.c.bf16 %v128, %v127
    %v2793 = vlaneseq
    %v2794 = vshrl.u32 %v2793, 7
    %v2795 = vsub.s32 0, %v2794
    %v2796 = vrot.slane %v270, %v2795
    %v2813 = vunpack.c.l.b16 %v205
    %v2814 = vunpack.c.l.b16 %v206
    %v2815 = vunpack.c.l.b16 %v207
    %v2816 = vunpack.c.l.b16 %v208
    %v2817 = vunpack.c.l.b16 %v209
    %v2818 = vunpack.c.l.b16 %v210
    %v2819 = vunpack.c.l.b16 %v211
    %v2820 = vunpack.c.l.b16 %v212
    %v2821 = vunpack.c.l.b16 %v213
    %v2822 = vunpack.c.l.b16 %v214
    %v2823 = vunpack.c.l.b16 %v215
    %v2824 = vunpack.c.l.b16 %v216
    %v2825 = vunpack.c.l.b16 %v217
    %v2826 = vunpack.c.l.b16 %v218
    %v2827 = vunpack.c.l.b16 %v219
    %v2828 = vunpack.c.l.b16 %v220
    %v2829 = vpack.c.b16 %v2814, %v2813
    %v2830 = vpack.c.b16 %v2816, %v2815
    %v2831 = vpack.c.b16 %v2818, %v2817
    %v2832 = vpack.c.b16 %v2820, %v2819
    %v2833 = vpack.c.b16 %v2822, %v2821
    %v2834 = vpack.c.b16 %v2824, %v2823
    %v2835 = vpack.c.b16 %v2826, %v2825
    %v2836 = vpack.c.b16 %v2828, %v2827
    %2845 = vmatprep.subr.bf16.mxu0 0
    %2846 = vmatpush1.bf16.msra.mxu0 %v2829
    %2847 = vmatprep.subr.bf16.mxu0 0
    %2848 = vmatpush1.bf16.msra.mxu0 %v2830
    %2849 = vmatprep.subr.bf16.mxu0 0
    %2850 = vmatpush1.bf16.msra.mxu0 %v2831
    %2851 = vmatprep.subr.bf16.mxu0 0
    %2852 = vmatpush1.bf16.msra.mxu0 %v2832
    %2853 = vmatprep.subr.bf16.mxu0 0
    %2854 = vmatpush1.bf16.msra.mxu0 %v2833
    %2855 = vmatprep.subr.bf16.mxu0 0
    %2856 = vmatpush1.bf16.msra.mxu0 %v2834
    %2857 = vmatprep.subr.bf16.mxu0 0
    %2858 = vmatpush1.bf16.msra.mxu0 %v2835
    %2859 = vmatprep.subr.bf16.mxu0 0
    %2860 = vmatpush1.bf16.msra.mxu0 %v2836
    %2861 = vmatprep.subr.bf16.mxu0 0
    %2862 = vmatpush1.bf16.msra.mxu0 0
    %2863 = vmatprep.subr.bf16.mxu0 0
    %2864 = vmatpush1.bf16.msra.mxu0 0
    %2865 = vmatprep.subr.bf16.mxu0 0
    %2866 = vmatpush1.bf16.msra.mxu0 0
    %2867 = vmatprep.subr.bf16.mxu0 0
    %2868 = vmatpush1.bf16.msra.mxu0 0
    %2869 = vmatprep.subr.bf16.mxu0 0
    %2870 = vmatpush1.bf16.msra.mxu0 0
    %2871 = vmatprep.subr.bf16.mxu0 0
    %2872 = vmatpush1.bf16.msra.mxu0 0
    %2873 = vmatprep.subr.bf16.mxu0 0
    %2874 = vmatpush1.bf16.msra.mxu0 0
    %2875 = vmatprep.subr.bf16.mxu0 0
    %2876 = vmatpush1.bf16.msra.mxu0 0
    %2877 = vmatprep.mubr.bf16.mxu0 0
    %2878 = vmatmul.mubr.bf16.gmra.mrb[0].mxu0 %v2791
    %v2879 = vpop.f32.mrb[0].mxu0
    %v2880 = vadd.f32 %v2796, %v2879
    %v2881 = vpop.f32.mrb[0].mxu0
    %v2882 = vpop.f32.mrb[0].mxu0
    %v2883 = vadd.f32 %v2796, %v2882
    %v2884 = vpop.f32.mrb[0].mxu0
    %2885 = vdwg.mxu0
    %v2886 = vmul.f32 %v2880, 0.25
    %v2887 = vmul.f32 %v2883, 0.25
    %v2888 = vlaneseq
    %v2889 = vshrl.u32 %v2888, 7
    %v2890 = vsub.s32 1, %v2889
    %v2891 = vrot.slane %v270, %v2890
    %v2908 = vunpack.c.l.b16 %v221
    %v2909 = vunpack.c.l.b16 %v222
    %v2910 = vunpack.c.l.b16 %v223
    %v2911 = vunpack.c.l.b16 %v224
    %v2912 = vunpack.c.l.b16 %v225
    %v2913 = vunpack.c.l.b16 %v226
    %v2914 = vunpack.c.l.b16 %v227
    %v2915 = vunpack.c.l.b16 %v228
    %v2916 = vunpack.c.l.b16 %v229
    %v2917 = vunpack.c.l.b16 %v230
    %v2918 = vunpack.c.l.b16 %v231
    %v2919 = vunpack.c.l.b16 %v232
    %v2920 = vunpack.c.l.b16 %v233
    %v2921 = vunpack.c.l.b16 %v234
    %v2922 = vunpack.c.l.b16 %v235
    %v2923 = vunpack.c.l.b16 %v236
    %v2924 = vpack.c.b16 %v2909, %v2908
    %v2925 = vpack.c.b16 %v2911, %v2910
    %v2926 = vpack.c.b16 %v2913, %v2912
    %v2927 = vpack.c.b16 %v2915, %v2914
    %v2928 = vpack.c.b16 %v2917, %v2916
    %v2929 = vpack.c.b16 %v2919, %v2918
    %v2930 = vpack.c.b16 %v2921, %v2920
    %v2931 = vpack.c.b16 %v2923, %v2922
    %2940 = vmatprep.subr.bf16.mxu0 0
    %2941 = vmatpush1.bf16.msra.mxu0 %v2924
    %2942 = vmatprep.subr.bf16.mxu0 0
    %2943 = vmatpush1.bf16.msra.mxu0 %v2925
    %2944 = vmatprep.subr.bf16.mxu0 0
    %2945 = vmatpush1.bf16.msra.mxu0 %v2926
    %2946 = vmatprep.subr.bf16.mxu0 0
    %2947 = vmatpush1.bf16.msra.mxu0 %v2927
    %2948 = vmatprep.subr.bf16.mxu0 0
    %2949 = vmatpush1.bf16.msra.mxu0 %v2928
    %2950 = vmatprep.subr.bf16.mxu0 0
    %2951 = vmatpush1.bf16.msra.mxu0 %v2929
    %2952 = vmatprep.subr.bf16.mxu0 0
    %2953 = vmatpush1.bf16.msra.mxu0 %v2930
    %2954 = vmatprep.subr.bf16.mxu0 0
    %2955 = vmatpush1.bf16.msra.mxu0 %v2931
    %2956 = vmatprep.subr.bf16.mxu0 0
    %2957 = vmatpush1.bf16.msra.mxu0 0
    %2958 = vmatprep.subr.bf16.mxu0 0
    %2959 = vmatpush1.bf16.msra.mxu0 0
    %2960 = vmatprep.subr.bf16.mxu0 0
    %2961 = vmatpush1.bf16.msra.mxu0 0
    %2962 = vmatprep.subr.bf16.mxu0 0
    %2963 = vmatpush1.bf16.msra.mxu0 0
    %2964 = vmatprep.subr.bf16.mxu0 0
    %2965 = vmatpush1.bf16.msra.mxu0 0
    %2966 = vmatprep.subr.bf16.mxu0 0
    %2967 = vmatpush1.bf16.msra.mxu0 0
    %2968 = vmatprep.subr.bf16.mxu0 0
    %2969 = vmatpush1.bf16.msra.mxu0 0
    %2970 = vmatprep.subr.bf16.mxu0 0
    %2971 = vmatpush1.bf16.msra.mxu0 0
    %2972 = vmatprep.mubr.bf16.mxu0 0
    %2973 = vmatmul.mubr.bf16.gmra.mrb[0].mxu0 %v2792
    %v2974 = vpop.f32.mrb[0].mxu0
    %v2975 = vadd.f32 %v2891, %v2974
    %v2976 = vpop.f32.mrb[0].mxu0
    %v2977 = vpop.f32.mrb[0].mxu0
    %v2978 = vadd.f32 %v2891, %v2977
    %v2979 = vpop.f32.mrb[0].mxu0
    %2980 = vdwg.mxu0
    %v2981 = vlaneseq
    %v2982 = vshrl.u32 %v2981, 7
    %v2983 = vsub.s32 2, %v2982
    %v2984 = vrot.slane %v270, %v2983
    %v3001 = vunpack.c.l.b16 %v237
    %v3002 = vunpack.c.l.b16 %v238
    %v3003 = vunpack.c.l.b16 %v239
    %v3004 = vunpack.c.l.b16 %v240
    %v3005 = vunpack.c.l.b16 %v241
    %v3006 = vunpack.c.l.b16 %v242
    %v3007 = vunpack.c.l.b16 %v243
    %v3008 = vunpack.c.l.b16 %v244
    %v3009 = vunpack.c.l.b16 %v245
    %v3010 = vunpack.c.l.b16 %v246
    %v3011 = vunpack.c.l.b16 %v247
    %v3012 = vunpack.c.l.b16 %v248
    %v3013 = vunpack.c.l.b16 %v249
    %v3014 = vunpack.c.l.b16 %v250
    %v3015 = vunpack.c.l.b16 %v251
    %v3016 = vunpack.c.l.b16 %v252
    %v3017 = vpack.c.b16 %v3002, %v3001
    %v3018 = vpack.c.b16 %v3004, %v3003
    %v3019 = vpack.c.b16 %v3006, %v3005
    %v3020 = vpack.c.b16 %v3008, %v3007
    %v3021 = vpack.c.b16 %v3010, %v3009
    %v3022 = vpack.c.b16 %v3012, %v3011
    %v3023 = vpack.c.b16 %v3014, %v3013
    %v3024 = vpack.c.b16 %v3016, %v3015
    %3033 = vmatprep.subr.bf16.mxu0 0
    %3034 = vmatpush1.bf16.msra.mxu0 %v3017
    %3035 = vmatprep.subr.bf16.mxu0 0
    %3036 = vmatpush1.bf16.msra.mxu0 %v3018
    %3037 = vmatprep.subr.bf16.mxu0 0
    %3038 = vmatpush1.bf16.msra.mxu0 %v3019
    %3039 = vmatprep.subr.bf16.mxu0 0
    %3040 = vmatpush1.bf16.msra.mxu0 %v3020
    %3041 = vmatprep.subr.bf16.mxu0 0
    %3042 = vmatpush1.bf16.msra.mxu0 %v3021
    %3043 = vmatprep.subr.bf16.mxu0 0
    %3044 = vmatpush1.bf16.msra.mxu0 %v3022
    %3045 = vmatprep.subr.bf16.mxu0 0
    %3046 = vmatpush1.bf16.msra.mxu0 %v3023
    %3047 = vmatprep.subr.bf16.mxu0 0
    %3048 = vmatpush1.bf16.msra.mxu0 %v3024
    %3049 = vmatprep.subr.bf16.mxu0 0
    %3050 = vmatpush1.bf16.msra.mxu0 0
    %3051 = vmatprep.subr.bf16.mxu0 0
    %3052 = vmatpush1.bf16.msra.mxu0 0
    %3053 = vmatprep.subr.bf16.mxu0 0
    %3054 = vmatpush1.bf16.msra.mxu0 0
    %3055 = vmatprep.subr.bf16.mxu0 0
    %3056 = vmatpush1.bf16.msra.mxu0 0
    %3057 = vmatprep.subr.bf16.mxu0 0
    %3058 = vmatpush1.bf16.msra.mxu0 0
    %3059 = vmatprep.subr.bf16.mxu0 0
    %3060 = vmatpush1.bf16.msra.mxu0 0
    %3061 = vmatprep.subr.bf16.mxu0 0
    %3062 = vmatpush1.bf16.msra.mxu0 0
    %3063 = vmatprep.subr.bf16.mxu0 0
    %3064 = vmatpush1.bf16.msra.mxu0 0
    %3065 = vmatprep.mubr.bf16.mxu0 0
    %3066 = vmatmul.mubr.bf16.gmra.mrb[0].mxu0 %v2792
    %v3067 = vpop.f32.mrb[0].mxu0
    %v3068 = vadd.f32 %v2984, %v3067
    %v3069 = vpop.f32.mrb[0].mxu0
    %v3070 = vpop.f32.mrb[0].mxu0
    %v3071 = vadd.f32 %v2984, %v3070
    %v3072 = vpop.f32.mrb[0].mxu0
    %3073 = vdwg.mxu0
    %v3074 = vpack.c.bf16 %v2887, %v2886
    %v3075 = vpack.c.bf16 %v2978, %v2975
    %v3076 = vpack.c.bf16 %v3071, %v3068
    %v3078 = vunpack.c.l.b16 %v3074
    %v3079 = vunpack.c.h.b16 %v3074
    %v3080 = vpack.c.b16 %v3078, %v3078
    %v3081 = vpack.c.b16 %v3079, %v3079
    %v3083 = vunpack.c.l.b16 %v3075
    %v3084 = vunpack.c.h.b16 %v3075
    %v3085 = vpack.c.b16 %v3083, %v3083
    %v3086 = vpack.c.b16 %v3084, %v3084
    %v3088 = vunpack.c.l.b16 %v3076
    %v3089 = vunpack.c.h.b16 %v3076
    %v3090 = vpack.c.b16 %v3088, %v3088
    %v3091 = vpack.c.b16 %v3089, %v3089
    %v3094 = vlaneseq
    %v3095 = vshrl.u32 %v3094, 7
    %v3096 = vsub.s32 0, %v3095
    %v3097 = vrot.slane %v139, %v3096
    %v3098 = vlaneseq
    %v3099 = vshrl.u32 %v3098, 7
    %v3100 = vsub.s32 0, %v3099
    %v3101 = vrot.slane %v140, %v3100
    %v3105 = vsel %vm573, %v3080, 0
    %v3108 = vsel %vm573, %v3085, 0
    %3110 = vmatprep.subr.bf16.mxu0 0
    %3111 = vmatpush1.bf16.xpose.msra.mxu0 %v3108
    %3112 = vmatprep.subr.bf16.mxu0 0
    %3113 = vmatpush1.bf16.xpose.msra.mxu0 0
    %3114 = vmatprep.subr.bf16.mxu0 0
    %3115 = vmatpush1.bf16.xpose.msra.mxu0 0
    %3116 = vmatprep.subr.bf16.mxu0 0
    %3117 = vmatpush1.bf16.xpose.msra.mxu0 0
    %3118 = vmatprep.subr.bf16.mxu0 0
    %3119 = vmatpush1.bf16.xpose.msra.mxu0 0
    %3120 = vmatprep.subr.bf16.mxu0 0
    %3121 = vmatpush1.bf16.xpose.msra.mxu0 0
    %3122 = vmatprep.subr.bf16.mxu0 0
    %3123 = vmatpush1.bf16.xpose.msra.mxu0 0
    %3124 = vmatprep.subr.bf16.mxu0 0
    %3125 = vmatpush1.bf16.xpose.msra.mxu0 0
    %3126 = vmatprep.subr.bf16.mxu0 0
    %3127 = vmatpush1.bf16.xpose.msra.mxu0 0
    %3128 = vmatprep.subr.bf16.mxu0 0
    %3129 = vmatpush1.bf16.xpose.msra.mxu0 0
    %3130 = vmatprep.subr.bf16.mxu0 0
    %3131 = vmatpush1.bf16.xpose.msra.mxu0 0
    %3132 = vmatprep.subr.bf16.mxu0 0
    %3133 = vmatpush1.bf16.xpose.msra.mxu0 0
    %3134 = vmatprep.subr.bf16.mxu0 0
    %3135 = vmatpush1.bf16.xpose.msra.mxu0 0
    %3136 = vmatprep.subr.bf16.mxu0 0
    %3137 = vmatpush1.bf16.xpose.msra.mxu0 0
    %3138 = vmatprep.subr.bf16.mxu0 0
    %3139 = vmatpush1.bf16.xpose.msra.mxu0 0
    %3140 = vmatprep.subr.bf16.mxu0 0
    %3141 = vmatpush1.bf16.xpose.msra.mxu0 0
    %3142 = vmatprep.mubr.bf16.mxu0 0
    %3143 = vmatmul.mubr.bf16.gmra.mrb[0].mxu0 %v3105
    %v3144 = vpop.f32.mrb[0].mxu0
    %v3145 = vadd.f32 %v3097, %v3144
    %v3146 = vpop.f32.mrb[0].mxu0
    %v3147 = vpop.f32.mrb[0].mxu0
    %v3148 = vpop.f32.mrb[0].mxu0
    %3149 = vdwg.mxu0
    %v3151 = vsel %vm573, %v3081, 0
    %v3154 = vsel %vm573, %v3086, 0
    %3156 = vmatprep.subr.bf16.mxu0 0
    %3157 = vmatpush1.bf16.xpose.msra.mxu0 %v3154
    %3158 = vmatprep.subr.bf16.mxu0 0
    %3159 = vmatpush1.bf16.xpose.msra.mxu0 0
    %3160 = vmatprep.subr.bf16.mxu0 0
    %3161 = vmatpush1.bf16.xpose.msra.mxu0 0
    %3162 = vmatprep.subr.bf16.mxu0 0
    %3163 = vmatpush1.bf16.xpose.msra.mxu0 0
    %3164 = vmatprep.subr.bf16.mxu0 0
    %3165 = vmatpush1.bf16.xpose.msra.mxu0 0
    %3166 = vmatprep.subr.bf16.mxu0 0
    %3167 = vmatpush1.bf16.xpose.msra.mxu0 0
    %3168 = vmatprep.subr.bf16.mxu0 0
    %3169 = vmatpush1.bf16.xpose.msra.mxu0 0
    %3170 = vmatprep.subr.bf16.mxu0 0
    %3171 = vmatpush1.bf16.xpose.msra.mxu0 0
    %3172 = vmatprep.subr.bf16.mxu0 0
    %3173 = vmatpush1.bf16.xpose.msra.mxu0 0
    %3174 = vmatprep.subr.bf16.mxu0 0
    %3175 = vmatpush1.bf16.xpose.msra.mxu0 0
    %3176 = vmatprep.subr.bf16.mxu0 0
    %3177 = vmatpush1.bf16.xpose.msra.mxu0 0
    %3178 = vmatprep.subr.bf16.mxu0 0
    %3179 = vmatpush1.bf16.xpose.msra.mxu0 0
    %3180 = vmatprep.subr.bf16.mxu0 0
    %3181 = vmatpush1.bf16.xpose.msra.mxu0 0
    %3182 = vmatprep.subr.bf16.mxu0 0
    %3183 = vmatpush1.bf16.xpose.msra.mxu0 0
    %3184 = vmatprep.subr.bf16.mxu0 0
    %3185 = vmatpush1.bf16.xpose.msra.mxu0 0
    %3186 = vmatprep.subr.bf16.mxu0 0
    %3187 = vmatpush1.bf16.xpose.msra.mxu0 0
    %3188 = vmatprep.mubr.bf16.mxu0 0
    %3189 = vmatmul.mubr.bf16.gmra.mrb[0].mxu0 %v3151
    %v3190 = vpop.f32.mrb[0].mxu0
    %v3191 = vadd.f32 %v3101, %v3190
    %v3192 = vpop.f32.mrb[0].mxu0
    %v3193 = vpop.f32.mrb[0].mxu0
    %v3194 = vpop.f32.mrb[0].mxu0
    %3195 = vdwg.mxu0
    %v3196 = vsel %vm666, %v3145, -inf
    %3197 = vmax.xlane.f32.xlu0 %v3196
    %v3198 = vpop.xlane.xlu0 %3197
    %v3199 = vsel %vm666, %v3191, -inf
    %3200 = vmax.xlane.f32.xlu0 %v3199
    %v3201 = vpop.xlane.xlu0 %3200
    %v3202 = vsub.f32 %v3145, %v3198
    %v3203 = vsub.f32 %v3191, %v3201
    %v3204 = vmul.f32 %v3202, 1.442695
    %v3205 = vpow.pop %v3204
    %v3206 = vmul.f32 %v3203, 1.442695
    %v3207 = vpow.pop %v3206
    %v3208 = vsel %vm666, %v3205, 0.0
    %3209 = vadd.xlane.f32.xlu0 %v3208
    %v3210 = vpop.xlane.xlu0 %3209
    %v3211 = vsel %vm666, %v3207, 0.0
    %3212 = vadd.xlane.f32.xlu0 %v3211
    %v3213 = vpop.xlane.xlu0 %3212
    %v3214 = vrcp.pop %v3210
    %v3215 = vrcp.pop %v3213
    %v3216 = vmul.f32 %v3205, %v3214
    %v3217 = vmul.f32 %v3207, %v3215
    %v3218 = vpack.c.bf16 %v3216, %v3216
    %v3219 = vpack.c.bf16 %v3217, %v3217
    %v3221 = vsel %vm666, %v3218, 0
    %v3224 = vsel %vm694, %v3090, 0
    %3226 = vmatprep.subr.bf16.mxu0 0
    %3227 = vmatpush1.bf16.msra.mxu0 %v3224
    %3228 = vmatprep.subr.bf16.mxu0 0
    %3229 = vmatpush1.bf16.msra.mxu0 0
    %3230 = vmatprep.subr.bf16.mxu0 0
    %3231 = vmatpush1.bf16.msra.mxu0 0
    %3232 = vmatprep.subr.bf16.mxu0 0
    %3233 = vmatpush1.bf16.msra.mxu0 0
    %3234 = vmatprep.subr.bf16.mxu0 0
    %3235 = vmatpush1.bf16.msra.mxu0 0
    %3236 = vmatprep.subr.bf16.mxu0 0
    %3237 = vmatpush1.bf16.msra.mxu0 0
    %3238 = vmatprep.subr.bf16.mxu0 0
    %3239 = vmatpush1.bf16.msra.mxu0 0
    %3240 = vmatprep.subr.bf16.mxu0 0
    %3241 = vmatpush1.bf16.msra.mxu0 0
    %3242 = vmatprep.subr.bf16.mxu0 0
    %3243 = vmatpush1.bf16.msra.mxu0 0
    %3244 = vmatprep.subr.bf16.mxu0 0
    %3245 = vmatpush1.bf16.msra.mxu0 0
    %3246 = vmatprep.subr.bf16.mxu0 0
    %3247 = vmatpush1.bf16.msra.mxu0 0
    %3248 = vmatprep.subr.bf16.mxu0 0
    %3249 = vmatpush1.bf16.msra.mxu0 0
    %3250 = vmatprep.subr.bf16.mxu0 0
    %3251 = vmatpush1.bf16.msra.mxu0 0
    %3252 = vmatprep.subr.bf16.mxu0 0
    %3253 = vmatpush1.bf16.msra.mxu0 0
    %3254 = vmatprep.subr.bf16.mxu0 0
    %3255 = vmatpush1.bf16.msra.mxu0 0
    %3256 = vmatprep.subr.bf16.mxu0 0
    %3257 = vmatpush1.bf16.msra.mxu0 0
    %3258 = vmatprep.mubr.bf16.mxu0 0
    %3259 = vmatmul.mubr.bf16.gmra.mrb[0].mxu0 %v3221
    %v3260 = vpop.f32.mrb[0].mxu0
    %v3261 = vadd.f32 0.0, %v3260
    %v3262 = vpop.f32.mrb[0].mxu0
    %v3263 = vpop.f32.mrb[0].mxu0
    %v3264 = vpop.f32.mrb[0].mxu0
    %3265 = vdwg.mxu0
    %v3267 = vsel %vm666, %v3219, 0
    %v3270 = vsel %vm694, %v3091, 0
    %3272 = vmatprep.subr.bf16.mxu0 0
    %3273 = vmatpush1.bf16.msra.mxu0 %v3270
    %3274 = vmatprep.subr.bf16.mxu0 0
    %3275 = vmatpush1.bf16.msra.mxu0 0
    %3276 = vmatprep.subr.bf16.mxu0 0
    %3277 = vmatpush1.bf16.msra.mxu0 0
    %3278 = vmatprep.subr.bf16.mxu0 0
    %3279 = vmatpush1.bf16.msra.mxu0 0
    %3280 = vmatprep.subr.bf16.mxu0 0
    %3281 = vmatpush1.bf16.msra.mxu0 0
    %3282 = vmatprep.subr.bf16.mxu0 0
    %3283 = vmatpush1.bf16.msra.mxu0 0
    %3284 = vmatprep.subr.bf16.mxu0 0
    %3285 = vmatpush1.bf16.msra.mxu0 0
    %3286 = vmatprep.subr.bf16.mxu0 0
    %3287 = vmatpush1.bf16.msra.mxu0 0
    %3288 = vmatprep.subr.bf16.mxu0 0
    %3289 = vmatpush1.bf16.msra.mxu0 0
    %3290 = vmatprep.subr.bf16.mxu0 0
    %3291 = vmatpush1.bf16.msra.mxu0 0
    %3292 = vmatprep.subr.bf16.mxu0 0
    %3293 = vmatpush1.bf16.msra.mxu0 0
    %3294 = vmatprep.subr.bf16.mxu0 0
    %3295 = vmatpush1.bf16.msra.mxu0 0
    %3296 = vmatprep.subr.bf16.mxu0 0
    %3297 = vmatpush1.bf16.msra.mxu0 0
    %3298 = vmatprep.subr.bf16.mxu0 0
    %3299 = vmatpush1.bf16.msra.mxu0 0
    %3300 = vmatprep.subr.bf16.mxu0 0
    %3301 = vmatpush1.bf16.msra.mxu0 0
    %3302 = vmatprep.subr.bf16.mxu0 0
    %3303 = vmatpush1.bf16.msra.mxu0 0
    %3304 = vmatprep.mubr.bf16.mxu0 0
    %3305 = vmatmul.mubr.bf16.gmra.mrb[0].mxu0 %v3267
    %v3306 = vpop.f32.mrb[0].mxu0
    %v3307 = vadd.f32 0.0, %v3306
    %v3308 = vpop.f32.mrb[0].mxu0
    %v3309 = vpop.f32.mrb[0].mxu0
    %v3310 = vpop.f32.mrb[0].mxu0
    %3311 = vdwg.mxu0
    %v3312 = vpack.c.bf16 %v3307, %v3261
    %3313 = vrot.lane.b32.xlu0 %v3080, 112
    %v3314 = vpop.permute.xlu0 %3313
    %3315 = vrot.lane.b32.xlu0 %v3085, 112
    %v3316 = vpop.permute.xlu0 %3315
    %v3318 = vsel %vm573, %v3314, 0
    %v3321 = vsel %vm573, %v3316, 0
    %3323 = vmatprep.subr.bf16.mxu0 0
    %3324 = vmatpush1.bf16.xpose.msra.mxu0 %v3321
    %3325 = vmatprep.subr.bf16.mxu0 0
    %3326 = vmatpush1.bf16.xpose.msra.mxu0 0
    %3327 = vmatprep.subr.bf16.mxu0 0
    %3328 = vmatpush1.bf16.xpose.msra.mxu0 0
    %3329 = vmatprep.subr.bf16.mxu0 0
    %3330 = vmatpush1.bf16.xpose.msra.mxu0 0
    %3331 = vmatprep.subr.bf16.mxu0 0
    %3332 = vmatpush1.bf16.xpose.msra.mxu0 0
    %3333 = vmatprep.subr.bf16.mxu0 0
    %3334 = vmatpush1.bf16.xpose.msra.mxu0 0
    %3335 = vmatprep.subr.bf16.mxu0 0
    %3336 = vmatpush1.bf16.xpose.msra.mxu0 0
    %3337 = vmatprep.subr.bf16.mxu0 0
    %3338 = vmatpush1.bf16.xpose.msra.mxu0 0
    %3339 = vmatprep.subr.bf16.mxu0 0
    %3340 = vmatpush1.bf16.xpose.msra.mxu0 0
    %3341 = vmatprep.subr.bf16.mxu0 0
    %3342 = vmatpush1.bf16.xpose.msra.mxu0 0
    %3343 = vmatprep.subr.bf16.mxu0 0
    %3344 = vmatpush1.bf16.xpose.msra.mxu0 0
    %3345 = vmatprep.subr.bf16.mxu0 0
    %3346 = vmatpush1.bf16.xpose.msra.mxu0 0
    %3347 = vmatprep.subr.bf16.mxu0 0
    %3348 = vmatpush1.bf16.xpose.msra.mxu0 0
    %3349 = vmatprep.subr.bf16.mxu0 0
    %3350 = vmatpush1.bf16.xpose.msra.mxu0 0
    %3351 = vmatprep.subr.bf16.mxu0 0
    %3352 = vmatpush1.bf16.xpose.msra.mxu0 0
    %3353 = vmatprep.subr.bf16.mxu0 0
    %3354 = vmatpush1.bf16.xpose.msra.mxu0 0
    %3355 = vmatprep.mubr.bf16.mxu0 0
    %3356 = vmatmul.mubr.bf16.gmra.mrb[0].mxu0 %v3318
    %v3357 = vpop.f32.mrb[0].mxu0
    %v3358 = vadd.f32 %v3097, %v3357
    %v3359 = vpop.f32.mrb[0].mxu0
    %v3360 = vpop.f32.mrb[0].mxu0
    %v3361 = vpop.f32.mrb[0].mxu0
    %3362 = vdwg.mxu0
    %3363 = vrot.lane.b32.xlu0 %v3081, 112
    %v3364 = vpop.permute.xlu0 %3363
    %3365 = vrot.lane.b32.xlu0 %v3086, 112
    %v3366 = vpop.permute.xlu0 %3365
    %v3368 = vsel %vm573, %v3364, 0
    %v3371 = vsel %vm573, %v3366, 0
    %3373 = vmatprep.subr.bf16.mxu0 0
    %3374 = vmatpush1.bf16.xpose.msra.mxu0 %v3371
    %3375 = vmatprep.subr.bf16.mxu0 0
    %3376 = vmatpush1.bf16.xpose.msra.mxu0 0
    %3377 = vmatprep.subr.bf16.mxu0 0
    %3378 = vmatpush1.bf16.xpose.msra.mxu0 0
    %3379 = vmatprep.subr.bf16.mxu0 0
    %3380 = vmatpush1.bf16.xpose.msra.mxu0 0
    %3381 = vmatprep.subr.bf16.mxu0 0
    %3382 = vmatpush1.bf16.xpose.msra.mxu0 0
    %3383 = vmatprep.subr.bf16.mxu0 0
    %3384 = vmatpush1.bf16.xpose.msra.mxu0 0
    %3385 = vmatprep.subr.bf16.mxu0 0
    %3386 = vmatpush1.bf16.xpose.msra.mxu0 0
    %3387 = vmatprep.subr.bf16.mxu0 0
    %3388 = vmatpush1.bf16.xpose.msra.mxu0 0
    %3389 = vmatprep.subr.bf16.mxu0 0
    %3390 = vmatpush1.bf16.xpose.msra.mxu0 0
    %3391 = vmatprep.subr.bf16.mxu0 0
    %3392 = vmatpush1.bf16.xpose.msra.mxu0 0
    %3393 = vmatprep.subr.bf16.mxu0 0
    %3394 = vmatpush1.bf16.xpose.msra.mxu0 0
    %3395 = vmatprep.subr.bf16.mxu0 0
    %3396 = vmatpush1.bf16.xpose.msra.mxu0 0
    %3397 = vmatprep.subr.bf16.mxu0 0
    %3398 = vmatpush1.bf16.xpose.msra.mxu0 0
    %3399 = vmatprep.subr.bf16.mxu0 0
    %3400 = vmatpush1.bf16.xpose.msra.mxu0 0
    %3401 = vmatprep.subr.bf16.mxu0 0
    %3402 = vmatpush1.bf16.xpose.msra.mxu0 0
    %3403 = vmatprep.subr.bf16.mxu0 0
    %3404 = vmatpush1.bf16.xpose.msra.mxu0 0
    %3405 = vmatprep.mubr.bf16.mxu0 0
    %3406 = vmatmul.mubr.bf16.gmra.mrb[0].mxu0 %v3368
    %v3407 = vpop.f32.mrb[0].mxu0
    %v3408 = vadd.f32 %v3101, %v3407
    %v3409 = vpop.f32.mrb[0].mxu0
    %v3410 = vpop.f32.mrb[0].mxu0
    %v3411 = vpop.f32.mrb[0].mxu0
    %3412 = vdwg.mxu0
    %v3413 = vsel %vm666, %v3358, -inf
    %3414 = vmax.xlane.f32.xlu0 %v3413
    %v3415 = vpop.xlane.xlu0 %3414
    %v3416 = vsel %vm666, %v3408, -inf
    %3417 = vmax.xlane.f32.xlu0 %v3416
    %v3418 = vpop.xlane.xlu0 %3417
    %v3419 = vsub.f32 %v3358, %v3415
    %v3420 = vsub.f32 %v3408, %v3418
    %v3421 = vmul.f32 %v3419, 1.442695
    %v3422 = vpow.pop %v3421
    %v3423 = vmul.f32 %v3420, 1.442695
    %v3424 = vpow.pop %v3423
    %v3425 = vsel %vm666, %v3422, 0.0
    %3426 = vadd.xlane.f32.xlu0 %v3425
    %v3427 = vpop.xlane.xlu0 %3426
    %v3428 = vsel %vm666, %v3424, 0.0
    %3429 = vadd.xlane.f32.xlu0 %v3428
    %v3430 = vpop.xlane.xlu0 %3429
    %v3431 = vrcp.pop %v3427
    %v3432 = vrcp.pop %v3430
    %v3433 = vmul.f32 %v3422, %v3431
    %v3434 = vmul.f32 %v3424, %v3432
    %v3435 = vpack.c.bf16 %v3433, %v3433
    %v3436 = vpack.c.bf16 %v3434, %v3434
    %3437 = vrot.lane.b32.xlu0 %v3090, 112
    %v3438 = vpop.permute.xlu0 %3437
    %v3440 = vsel %vm666, %v3435, 0
    %v3443 = vsel %vm694, %v3438, 0
    %3445 = vmatprep.subr.bf16.mxu0 0
    %3446 = vmatpush1.bf16.msra.mxu0 %v3443
    %3447 = vmatprep.subr.bf16.mxu0 0
    %3448 = vmatpush1.bf16.msra.mxu0 0
    %3449 = vmatprep.subr.bf16.mxu0 0
    %3450 = vmatpush1.bf16.msra.mxu0 0
    %3451 = vmatprep.subr.bf16.mxu0 0
    %3452 = vmatpush1.bf16.msra.mxu0 0
    %3453 = vmatprep.subr.bf16.mxu0 0
    %3454 = vmatpush1.bf16.msra.mxu0 0
    %3455 = vmatprep.subr.bf16.mxu0 0
    %3456 = vmatpush1.bf16.msra.mxu0 0
    %3457 = vmatprep.subr.bf16.mxu0 0
    %3458 = vmatpush1.bf16.msra.mxu0 0
    %3459 = vmatprep.subr.bf16.mxu0 0
    %3460 = vmatpush1.bf16.msra.mxu0 0
    %3461 = vmatprep.subr.bf16.mxu0 0
    %3462 = vmatpush1.bf16.msra.mxu0 0
    %3463 = vmatprep.subr.bf16.mxu0 0
    %3464 = vmatpush1.bf16.msra.mxu0 0
    %3465 = vmatprep.subr.bf16.mxu0 0
    %3466 = vmatpush1.bf16.msra.mxu0 0
    %3467 = vmatprep.subr.bf16.mxu0 0
    %3468 = vmatpush1.bf16.msra.mxu0 0
    %3469 = vmatprep.subr.bf16.mxu0 0
    %3470 = vmatpush1.bf16.msra.mxu0 0
    %3471 = vmatprep.subr.bf16.mxu0 0
    %3472 = vmatpush1.bf16.msra.mxu0 0
    %3473 = vmatprep.subr.bf16.mxu0 0
    %3474 = vmatpush1.bf16.msra.mxu0 0
    %3475 = vmatprep.subr.bf16.mxu0 0
    %3476 = vmatpush1.bf16.msra.mxu0 0
    %3477 = vmatprep.mubr.bf16.mxu0 0
    %3478 = vmatmul.mubr.bf16.gmra.mrb[0].mxu0 %v3440
    %v3479 = vpop.f32.mrb[0].mxu0
    %v3480 = vadd.f32 0.0, %v3479
    %v3481 = vpop.f32.mrb[0].mxu0
    %v3482 = vpop.f32.mrb[0].mxu0
    %v3483 = vpop.f32.mrb[0].mxu0
    %3484 = vdwg.mxu0
    %3485 = vrot.lane.b32.xlu0 %v3091, 112
    %v3486 = vpop.permute.xlu0 %3485
    %v3488 = vsel %vm666, %v3436, 0
    %v3491 = vsel %vm694, %v3486, 0
    %3493 = vmatprep.subr.bf16.mxu0 0
    %3494 = vmatpush1.bf16.msra.mxu0 %v3491
    %3495 = vmatprep.subr.bf16.mxu0 0
    %3496 = vmatpush1.bf16.msra.mxu0 0
    %3497 = vmatprep.subr.bf16.mxu0 0
    %3498 = vmatpush1.bf16.msra.mxu0 0
    %3499 = vmatprep.subr.bf16.mxu0 0
    %3500 = vmatpush1.bf16.msra.mxu0 0
    %3501 = vmatprep.subr.bf16.mxu0 0
    %3502 = vmatpush1.bf16.msra.mxu0 0
    %3503 = vmatprep.subr.bf16.mxu0 0
    %3504 = vmatpush1.bf16.msra.mxu0 0
    %3505 = vmatprep.subr.bf16.mxu0 0
    %3506 = vmatpush1.bf16.msra.mxu0 0
    %3507 = vmatprep.subr.bf16.mxu0 0
    %3508 = vmatpush1.bf16.msra.mxu0 0
    %3509 = vmatprep.subr.bf16.mxu0 0
    %3510 = vmatpush1.bf16.msra.mxu0 0
    %3511 = vmatprep.subr.bf16.mxu0 0
    %3512 = vmatpush1.bf16.msra.mxu0 0
    %3513 = vmatprep.subr.bf16.mxu0 0
    %3514 = vmatpush1.bf16.msra.mxu0 0
    %3515 = vmatprep.subr.bf16.mxu0 0
    %3516 = vmatpush1.bf16.msra.mxu0 0
    %3517 = vmatprep.subr.bf16.mxu0 0
    %3518 = vmatpush1.bf16.msra.mxu0 0
    %3519 = vmatprep.subr.bf16.mxu0 0
    %3520 = vmatpush1.bf16.msra.mxu0 0
    %3521 = vmatprep.subr.bf16.mxu0 0
    %3522 = vmatpush1.bf16.msra.mxu0 0
    %3523 = vmatprep.subr.bf16.mxu0 0
    %3524 = vmatpush1.bf16.msra.mxu0 0
    %3525 = vmatprep.mubr.bf16.mxu0 0
    %3526 = vmatmul.mubr.bf16.gmra.mrb[0].mxu0 %v3488
    %v3527 = vpop.f32.mrb[0].mxu0
    %v3528 = vadd.f32 0.0, %v3527
    %v3529 = vpop.f32.mrb[0].mxu0
    %v3530 = vpop.f32.mrb[0].mxu0
    %v3531 = vpop.f32.mrb[0].mxu0
    %3532 = vdwg.mxu0
    %v3533 = vpack.c.bf16 %v3528, %v3480
    %v3536 = vunpack.c.l.b16 %v255
    %v3537 = vunpack.c.l.b16 %v256
    %v3538 = vpack.c.b16 %v3537, %v3536
    %v3541 = vsel %vm573, %v3533, 0
    %3543 = vmatprep.subr.bf16.mxu0 0
    %3544 = vmatpush1.bf16.msra.mxu0 %v3538
    %3545 = vmatprep.subr.bf16.mxu0 0
    %3546 = vmatpush1.bf16.msra.mxu0 0
    %3547 = vmatprep.subr.bf16.mxu0 0
    %3548 = vmatpush1.bf16.msra.mxu0 0
    %3549 = vmatprep.subr.bf16.mxu0 0
    %3550 = vmatpush1.bf16.msra.mxu0 0
    %3551 = vmatprep.subr.bf16.mxu0 0
    %3552 = vmatpush1.bf16.msra.mxu0 0
    %3553 = vmatprep.subr.bf16.mxu0 0
    %3554 = vmatpush1.bf16.msra.mxu0 0
    %3555 = vmatprep.subr.bf16.mxu0 0
    %3556 = vmatpush1.bf16.msra.mxu0 0
    %3557 = vmatprep.subr.bf16.mxu0 0
    %3558 = vmatpush1.bf16.msra.mxu0 0
    %3559 = vmatprep.subr.bf16.mxu0 0
    %3560 = vmatpush1.bf16.msra.mxu0 0
    %3561 = vmatprep.subr.bf16.mxu0 0
    %3562 = vmatpush1.bf16.msra.mxu0 0
    %3563 = vmatprep.subr.bf16.mxu0 0
    %3564 = vmatpush1.bf16.msra.mxu0 0
    %3565 = vmatprep.subr.bf16.mxu0 0
    %3566 = vmatpush1.bf16.msra.mxu0 0
    %3567 = vmatprep.subr.bf16.mxu0 0
    %3568 = vmatpush1.bf16.msra.mxu0 0
    %3569 = vmatprep.subr.bf16.mxu0 0
    %3570 = vmatpush1.bf16.msra.mxu0 0
    %3571 = vmatprep.subr.bf16.mxu0 0
    %3572 = vmatpush1.bf16.msra.mxu0 0
    %3573 = vmatprep.subr.bf16.mxu0 0
    %3574 = vmatpush1.bf16.msra.mxu0 0
    %3575 = vmatprep.mubr.bf16.mxu0 0
    %3576 = vmatmul.mubr.bf16.gmra.mrb[0].mxu0 %v3541
    %v3577 = vpop.f32.mrb[0].mxu0
    %v3578 = vadd.f32 0.0, %v3577
    %v3579 = vpop.f32.mrb[0].mxu0
    %v3580 = vpop.f32.mrb[0].mxu0
    %v3581 = vadd.f32 0.0, %v3580
    %v3582 = vpop.f32.mrb[0].mxu0
    %3583 = vdwg.mxu0
    %v3586 = vunpack.c.l.b16 %v253
    %v3587 = vunpack.c.l.b16 %v254
    %v3588 = vpack.c.b16 %v3587, %v3586
    %v3591 = vsel %vm573, %v3312, 0
    %3593 = vmatprep.subr.bf16.mxu0 0
    %3594 = vmatpush1.bf16.msra.mxu0 %v3588
    %3595 = vmatprep.subr.bf16.mxu0 0
    %3596 = vmatpush1.bf16.msra.mxu0 0
    %3597 = vmatprep.subr.bf16.mxu0 0
    %3598 = vmatpush1.bf16.msra.mxu0 0
    %3599 = vmatprep.subr.bf16.mxu0 0
    %3600 = vmatpush1.bf16.msra.mxu0 0
    %3601 = vmatprep.subr.bf16.mxu0 0
    %3602 = vmatpush1.bf16.msra.mxu0 0
    %3603 = vmatprep.subr.bf16.mxu0 0
    %3604 = vmatpush1.bf16.msra.mxu0 0
    %3605 = vmatprep.subr.bf16.mxu0 0
    %3606 = vmatpush1.bf16.msra.mxu0 0
    %3607 = vmatprep.subr.bf16.mxu0 0
    %3608 = vmatpush1.bf16.msra.mxu0 0
    %3609 = vmatprep.subr.bf16.mxu0 0
    %3610 = vmatpush1.bf16.msra.mxu0 0
    %3611 = vmatprep.subr.bf16.mxu0 0
    %3612 = vmatpush1.bf16.msra.mxu0 0
    %3613 = vmatprep.subr.bf16.mxu0 0
    %3614 = vmatpush1.bf16.msra.mxu0 0
    %3615 = vmatprep.subr.bf16.mxu0 0
    %3616 = vmatpush1.bf16.msra.mxu0 0
    %3617 = vmatprep.subr.bf16.mxu0 0
    %3618 = vmatpush1.bf16.msra.mxu0 0
    %3619 = vmatprep.subr.bf16.mxu0 0
    %3620 = vmatpush1.bf16.msra.mxu0 0
    %3621 = vmatprep.subr.bf16.mxu0 0
    %3622 = vmatpush1.bf16.msra.mxu0 0
    %3623 = vmatprep.subr.bf16.mxu0 0
    %3624 = vmatpush1.bf16.msra.mxu0 0
    %3625 = vmatprep.mubr.bf16.mxu0 0
    %3626 = vmatmul.mubr.bf16.gmra.mrb[0].mxu0 %v3591
    %v3627 = vpop.f32.mrb[0].mxu0
    %v3628 = vadd.f32 %v3578, %v3627
    %v3629 = vpop.f32.mrb[0].mxu0
    %v3630 = vpop.f32.mrb[0].mxu0
    %v3631 = vadd.f32 %v3581, %v3630
    %v3632 = vpop.f32.mrb[0].mxu0
    %3633 = vdwg.mxu0
    %3634 = vrot.lane.b32.xlu0 %v3080, 96
    %v3635 = vpop.permute.xlu0 %3634
    %3636 = vrot.lane.b32.xlu0 %v3085, 96
    %v3637 = vpop.permute.xlu0 %3636
    %v3639 = vsel %vm573, %v3635, 0
    %v3642 = vsel %vm573, %v3637, 0
    %3644 = vmatprep.subr.bf16.mxu0 0
    %3645 = vmatpush1.bf16.xpose.msra.mxu0 %v3642
    %3646 = vmatprep.subr.bf16.mxu0 0
    %3647 = vmatpush1.bf16.xpose.msra.mxu0 0
    %3648 = vmatprep.subr.bf16.mxu0 0
    %3649 = vmatpush1.bf16.xpose.msra.mxu0 0
    %3650 = vmatprep.subr.bf16.mxu0 0
    %3651 = vmatpush1.bf16.xpose.msra.mxu0 0
    %3652 = vmatprep.subr.bf16.mxu0 0
    %3653 = vmatpush1.bf16.xpose.msra.mxu0 0
    %3654 = vmatprep.subr.bf16.mxu0 0
    %3655 = vmatpush1.bf16.xpose.msra.mxu0 0
    %3656 = vmatprep.subr.bf16.mxu0 0
    %3657 = vmatpush1.bf16.xpose.msra.mxu0 0
    %3658 = vmatprep.subr.bf16.mxu0 0
    %3659 = vmatpush1.bf16.xpose.msra.mxu0 0
    %3660 = vmatprep.subr.bf16.mxu0 0
    %3661 = vmatpush1.bf16.xpose.msra.mxu0 0
    %3662 = vmatprep.subr.bf16.mxu0 0
    %3663 = vmatpush1.bf16.xpose.msra.mxu0 0
    %3664 = vmatprep.subr.bf16.mxu0 0
    %3665 = vmatpush1.bf16.xpose.msra.mxu0 0
    %3666 = vmatprep.subr.bf16.mxu0 0
    %3667 = vmatpush1.bf16.xpose.msra.mxu0 0
    %3668 = vmatprep.subr.bf16.mxu0 0
    %3669 = vmatpush1.bf16.xpose.msra.mxu0 0
    %3670 = vmatprep.subr.bf16.mxu0 0
    %3671 = vmatpush1.bf16.xpose.msra.mxu0 0
    %3672 = vmatprep.subr.bf16.mxu0 0
    %3673 = vmatpush1.bf16.xpose.msra.mxu0 0
    %3674 = vmatprep.subr.bf16.mxu0 0
    %3675 = vmatpush1.bf16.xpose.msra.mxu0 0
    %3676 = vmatprep.mubr.bf16.mxu0 0
    %3677 = vmatmul.mubr.bf16.gmra.mrb[0].mxu0 %v3639
    %v3678 = vpop.f32.mrb[0].mxu0
    %v3679 = vadd.f32 %v3097, %v3678
    %v3680 = vpop.f32.mrb[0].mxu0
    %v3681 = vpop.f32.mrb[0].mxu0
    %v3682 = vpop.f32.mrb[0].mxu0
    %3683 = vdwg.mxu0
    %3684 = vrot.lane.b32.xlu0 %v3081, 96
    %v3685 = vpop.permute.xlu0 %3684
    %3686 = vrot.lane.b32.xlu0 %v3086, 96
    %v3687 = vpop.permute.xlu0 %3686
    %v3689 = vsel %vm573, %v3685, 0
    %v3692 = vsel %vm573, %v3687, 0
    %3694 = vmatprep.subr.bf16.mxu0 0
    %3695 = vmatpush1.bf16.xpose.msra.mxu0 %v3692
    %3696 = vmatprep.subr.bf16.mxu0 0
    %3697 = vmatpush1.bf16.xpose.msra.mxu0 0
    %3698 = vmatprep.subr.bf16.mxu0 0
    %3699 = vmatpush1.bf16.xpose.msra.mxu0 0
    %3700 = vmatprep.subr.bf16.mxu0 0
    %3701 = vmatpush1.bf16.xpose.msra.mxu0 0
    %3702 = vmatprep.subr.bf16.mxu0 0
    %3703 = vmatpush1.bf16.xpose.msra.mxu0 0
    %3704 = vmatprep.subr.bf16.mxu0 0
    %3705 = vmatpush1.bf16.xpose.msra.mxu0 0
    %3706 = vmatprep.subr.bf16.mxu0 0
    %3707 = vmatpush1.bf16.xpose.msra.mxu0 0
    %3708 = vmatprep.subr.bf16.mxu0 0
    %3709 = vmatpush1.bf16.xpose.msra.mxu0 0
    %3710 = vmatprep.subr.bf16.mxu0 0
    %3711 = vmatpush1.bf16.xpose.msra.mxu0 0
    %3712 = vmatprep.subr.bf16.mxu0 0
    %3713 = vmatpush1.bf16.xpose.msra.mxu0 0
    %3714 = vmatprep.subr.bf16.mxu0 0
    %3715 = vmatpush1.bf16.xpose.msra.mxu0 0
    %3716 = vmatprep.subr.bf16.mxu0 0
    %3717 = vmatpush1.bf16.xpose.msra.mxu0 0
    %3718 = vmatprep.subr.bf16.mxu0 0
    %3719 = vmatpush1.bf16.xpose.msra.mxu0 0
    %3720 = vmatprep.subr.bf16.mxu0 0
    %3721 = vmatpush1.bf16.xpose.msra.mxu0 0
    %3722 = vmatprep.subr.bf16.mxu0 0
    %3723 = vmatpush1.bf16.xpose.msra.mxu0 0
    %3724 = vmatprep.subr.bf16.mxu0 0
    %3725 = vmatpush1.bf16.xpose.msra.mxu0 0
    %3726 = vmatprep.mubr.bf16.mxu0 0
    %3727 = vmatmul.mubr.bf16.gmra.mrb[0].mxu0 %v3689
    %v3728 = vpop.f32.mrb[0].mxu0
    %v3729 = vadd.f32 %v3101, %v3728
    %v3730 = vpop.f32.mrb[0].mxu0
    %v3731 = vpop.f32.mrb[0].mxu0
    %v3732 = vpop.f32.mrb[0].mxu0
    %3733 = vdwg.mxu0
    %v3734 = vsel %vm666, %v3679, -inf
    %3735 = vmax.xlane.f32.xlu0 %v3734
    %v3736 = vpop.xlane.xlu0 %3735
    %v3737 = vsel %vm666, %v3729, -inf
    %3738 = vmax.xlane.f32.xlu0 %v3737
    %v3739 = vpop.xlane.xlu0 %3738
    %v3740 = vsub.f32 %v3679, %v3736
    %v3741 = vsub.f32 %v3729, %v3739
    %v3742 = vmul.f32 %v3740, 1.442695
    %v3743 = vpow.pop %v3742
    %v3744 = vmul.f32 %v3741, 1.442695
    %v3745 = vpow.pop %v3744
    %v3746 = vsel %vm666, %v3743, 0.0
    %3747 = vadd.xlane.f32.xlu0 %v3746
    %v3748 = vpop.xlane.xlu0 %3747
    %v3749 = vsel %vm666, %v3745, 0.0
    %3750 = vadd.xlane.f32.xlu0 %v3749
    %v3751 = vpop.xlane.xlu0 %3750
    %v3752 = vrcp.pop %v3748
    %v3753 = vrcp.pop %v3751
    %v3754 = vmul.f32 %v3743, %v3752
    %v3755 = vmul.f32 %v3745, %v3753
    %v3756 = vpack.c.bf16 %v3754, %v3754
    %v3757 = vpack.c.bf16 %v3755, %v3755
    %3758 = vrot.lane.b32.xlu0 %v3090, 96
    %v3759 = vpop.permute.xlu0 %3758
    %v3761 = vsel %vm666, %v3756, 0
    %v3764 = vsel %vm694, %v3759, 0
    %3766 = vmatprep.subr.bf16.mxu0 0
    %3767 = vmatpush1.bf16.msra.mxu0 %v3764
    %3768 = vmatprep.subr.bf16.mxu0 0
    %3769 = vmatpush1.bf16.msra.mxu0 0
    %3770 = vmatprep.subr.bf16.mxu0 0
    %3771 = vmatpush1.bf16.msra.mxu0 0
    %3772 = vmatprep.subr.bf16.mxu0 0
    %3773 = vmatpush1.bf16.msra.mxu0 0
    %3774 = vmatprep.subr.bf16.mxu0 0
    %3775 = vmatpush1.bf16.msra.mxu0 0
    %3776 = vmatprep.subr.bf16.mxu0 0
    %3777 = vmatpush1.bf16.msra.mxu0 0
    %3778 = vmatprep.subr.bf16.mxu0 0
    %3779 = vmatpush1.bf16.msra.mxu0 0
    %3780 = vmatprep.subr.bf16.mxu0 0
    %3781 = vmatpush1.bf16.msra.mxu0 0
    %3782 = vmatprep.subr.bf16.mxu0 0
    %3783 = vmatpush1.bf16.msra.mxu0 0
    %3784 = vmatprep.subr.bf16.mxu0 0
    %3785 = vmatpush1.bf16.msra.mxu0 0
    %3786 = vmatprep.subr.bf16.mxu0 0
    %3787 = vmatpush1.bf16.msra.mxu0 0
    %3788 = vmatprep.subr.bf16.mxu0 0
    %3789 = vmatpush1.bf16.msra.mxu0 0
    %3790 = vmatprep.subr.bf16.mxu0 0
    %3791 = vmatpush1.bf16.msra.mxu0 0
    %3792 = vmatprep.subr.bf16.mxu0 0
    %3793 = vmatpush1.bf16.msra.mxu0 0
    %3794 = vmatprep.subr.bf16.mxu0 0
    %3795 = vmatpush1.bf16.msra.mxu0 0
    %3796 = vmatprep.subr.bf16.mxu0 0
    %3797 = vmatpush1.bf16.msra.mxu0 0
    %3798 = vmatprep.mubr.bf16.mxu0 0
    %3799 = vmatmul.mubr.bf16.gmra.mrb[0].mxu0 %v3761
    %v3800 = vpop.f32.mrb[0].mxu0
    %v3801 = vadd.f32 0.0, %v3800
    %v3802 = vpop.f32.mrb[0].mxu0
    %v3803 = vpop.f32.mrb[0].mxu0
    %v3804 = vpop.f32.mrb[0].mxu0
    %3805 = vdwg.mxu0
    %3806 = vrot.lane.b32.xlu0 %v3091, 96
    %v3807 = vpop.permute.xlu0 %3806
    %v3809 = vsel %vm666, %v3757, 0
    %v3812 = vsel %vm694, %v3807, 0
    %3814 = vmatprep.subr.bf16.mxu0 0
    %3815 = vmatpush1.bf16.msra.mxu0 %v3812
    %3816 = vmatprep.subr.bf16.mxu0 0
    %3817 = vmatpush1.bf16.msra.mxu0 0
    %3818 = vmatprep.subr.bf16.mxu0 0
    %3819 = vmatpush1.bf16.msra.mxu0 0
    %3820 = vmatprep.subr.bf16.mxu0 0
    %3821 = vmatpush1.bf16.msra.mxu0 0
    %3822 = vmatprep.subr.bf16.mxu0 0
    %3823 = vmatpush1.bf16.msra.mxu0 0
    %3824 = vmatprep.subr.bf16.mxu0 0
    %3825 = vmatpush1.bf16.msra.mxu0 0
    %3826 = vmatprep.subr.bf16.mxu0 0
    %3827 = vmatpush1.bf16.msra.mxu0 0
    %3828 = vmatprep.subr.bf16.mxu0 0
    %3829 = vmatpush1.bf16.msra.mxu0 0
    %3830 = vmatprep.subr.bf16.mxu0 0
    %3831 = vmatpush1.bf16.msra.mxu0 0
    %3832 = vmatprep.subr.bf16.mxu0 0
    %3833 = vmatpush1.bf16.msra.mxu0 0
    %3834 = vmatprep.subr.bf16.mxu0 0
    %3835 = vmatpush1.bf16.msra.mxu0 0
    %3836 = vmatprep.subr.bf16.mxu0 0
    %3837 = vmatpush1.bf16.msra.mxu0 0
    %3838 = vmatprep.subr.bf16.mxu0 0
    %3839 = vmatpush1.bf16.msra.mxu0 0
    %3840 = vmatprep.subr.bf16.mxu0 0
    %3841 = vmatpush1.bf16.msra.mxu0 0
    %3842 = vmatprep.subr.bf16.mxu0 0
    %3843 = vmatpush1.bf16.msra.mxu0 0
    %3844 = vmatprep.subr.bf16.mxu0 0
    %3845 = vmatpush1.bf16.msra.mxu0 0
    %3846 = vmatprep.mubr.bf16.mxu0 0
    %3847 = vmatmul.mubr.bf16.gmra.mrb[0].mxu0 %v3809
    %v3848 = vpop.f32.mrb[0].mxu0
    %v3849 = vadd.f32 0.0, %v3848
    %v3850 = vpop.f32.mrb[0].mxu0
    %v3851 = vpop.f32.mrb[0].mxu0
    %v3852 = vpop.f32.mrb[0].mxu0
    %3853 = vdwg.mxu0
    %v3854 = vpack.c.bf16 %v3849, %v3801
    %v3857 = vunpack.c.l.b16 %v257
    %v3858 = vunpack.c.l.b16 %v258
    %v3859 = vpack.c.b16 %v3858, %v3857
    %v3862 = vsel %vm573, %v3854, 0
    %3864 = vmatprep.subr.bf16.mxu0 0
    %3865 = vmatpush1.bf16.msra.mxu0 %v3859
    %3866 = vmatprep.subr.bf16.mxu0 0
    %3867 = vmatpush1.bf16.msra.mxu0 0
    %3868 = vmatprep.subr.bf16.mxu0 0
    %3869 = vmatpush1.bf16.msra.mxu0 0
    %3870 = vmatprep.subr.bf16.mxu0 0
    %3871 = vmatpush1.bf16.msra.mxu0 0
    %3872 = vmatprep.subr.bf16.mxu0 0
    %3873 = vmatpush1.bf16.msra.mxu0 0
    %3874 = vmatprep.subr.bf16.mxu0 0
    %3875 = vmatpush1.bf16.msra.mxu0 0
    %3876 = vmatprep.subr.bf16.mxu0 0
    %3877 = vmatpush1.bf16.msra.mxu0 0
    %3878 = vmatprep.subr.bf16.mxu0 0
    %3879 = vmatpush1.bf16.msra.mxu0 0
    %3880 = vmatprep.subr.bf16.mxu0 0
    %3881 = vmatpush1.bf16.msra.mxu0 0
    %3882 = vmatprep.subr.bf16.mxu0 0
    %3883 = vmatpush1.bf16.msra.mxu0 0
    %3884 = vmatprep.subr.bf16.mxu0 0
    %3885 = vmatpush1.bf16.msra.mxu0 0
    %3886 = vmatprep.subr.bf16.mxu0 0
    %3887 = vmatpush1.bf16.msra.mxu0 0
    %3888 = vmatprep.subr.bf16.mxu0 0
    %3889 = vmatpush1.bf16.msra.mxu0 0
    %3890 = vmatprep.subr.bf16.mxu0 0
    %3891 = vmatpush1.bf16.msra.mxu0 0
    %3892 = vmatprep.subr.bf16.mxu0 0
    %3893 = vmatpush1.bf16.msra.mxu0 0
    %3894 = vmatprep.subr.bf16.mxu0 0
    %3895 = vmatpush1.bf16.msra.mxu0 0
    %3896 = vmatprep.mubr.bf16.mxu0 0
    %3897 = vmatmul.mubr.bf16.gmra.mrb[0].mxu0 %v3862
    %v3898 = vpop.f32.mrb[0].mxu0
    %v3899 = vadd.f32 0.0, %v3898
    %v3900 = vpop.f32.mrb[0].mxu0
    %v3901 = vpop.f32.mrb[0].mxu0
    %v3902 = vadd.f32 0.0, %v3901
    %v3903 = vpop.f32.mrb[0].mxu0
    %3904 = vdwg.mxu0
    %v3905 = vadd.f32 %v3628, %v3899
    %v3906 = vadd.f32 %v3631, %v3902
    %3907 = vrot.lane.b32.xlu0 %v3080, 80
    %v3908 = vpop.permute.xlu0 %3907
    %3909 = vrot.lane.b32.xlu0 %v3085, 80
    %v3910 = vpop.permute.xlu0 %3909
    %v3912 = vsel %vm573, %v3908, 0
    %v3915 = vsel %vm573, %v3910, 0
    %3917 = vmatprep.subr.bf16.mxu0 0
    %3918 = vmatpush1.bf16.xpose.msra.mxu0 %v3915
    %3919 = vmatprep.subr.bf16.mxu0 0
    %3920 = vmatpush1.bf16.xpose.msra.mxu0 0
    %3921 = vmatprep.subr.bf16.mxu0 0
    %3922 = vmatpush1.bf16.xpose.msra.mxu0 0
    %3923 = vmatprep.subr.bf16.mxu0 0
    %3924 = vmatpush1.bf16.xpose.msra.mxu0 0
    %3925 = vmatprep.subr.bf16.mxu0 0
    %3926 = vmatpush1.bf16.xpose.msra.mxu0 0
    %3927 = vmatprep.subr.bf16.mxu0 0
    %3928 = vmatpush1.bf16.xpose.msra.mxu0 0
    %3929 = vmatprep.subr.bf16.mxu0 0
    %3930 = vmatpush1.bf16.xpose.msra.mxu0 0
    %3931 = vmatprep.subr.bf16.mxu0 0
    %3932 = vmatpush1.bf16.xpose.msra.mxu0 0
    %3933 = vmatprep.subr.bf16.mxu0 0
    %3934 = vmatpush1.bf16.xpose.msra.mxu0 0
    %3935 = vmatprep.subr.bf16.mxu0 0
    %3936 = vmatpush1.bf16.xpose.msra.mxu0 0
    %3937 = vmatprep.subr.bf16.mxu0 0
    %3938 = vmatpush1.bf16.xpose.msra.mxu0 0
    %3939 = vmatprep.subr.bf16.mxu0 0
    %3940 = vmatpush1.bf16.xpose.msra.mxu0 0
    %3941 = vmatprep.subr.bf16.mxu0 0
    %3942 = vmatpush1.bf16.xpose.msra.mxu0 0
    %3943 = vmatprep.subr.bf16.mxu0 0
    %3944 = vmatpush1.bf16.xpose.msra.mxu0 0
    %3945 = vmatprep.subr.bf16.mxu0 0
    %3946 = vmatpush1.bf16.xpose.msra.mxu0 0
    %3947 = vmatprep.subr.bf16.mxu0 0
    %3948 = vmatpush1.bf16.xpose.msra.mxu0 0
    %3949 = vmatprep.mubr.bf16.mxu0 0
    %3950 = vmatmul.mubr.bf16.gmra.mrb[0].mxu0 %v3912
    %v3951 = vpop.f32.mrb[0].mxu0
    %v3952 = vadd.f32 %v3097, %v3951
    %v3953 = vpop.f32.mrb[0].mxu0
    %v3954 = vpop.f32.mrb[0].mxu0
    %v3955 = vpop.f32.mrb[0].mxu0
    %3956 = vdwg.mxu0
    %3957 = vrot.lane.b32.xlu0 %v3081, 80
    %v3958 = vpop.permute.xlu0 %3957
    %3959 = vrot.lane.b32.xlu0 %v3086, 80
    %v3960 = vpop.permute.xlu0 %3959
    %v3962 = vsel %vm573, %v3958, 0
    %v3965 = vsel %vm573, %v3960, 0
    %3967 = vmatprep.subr.bf16.mxu0 0
    %3968 = vmatpush1.bf16.xpose.msra.mxu0 %v3965
    %3969 = vmatprep.subr.bf16.mxu0 0
    %3970 = vmatpush1.bf16.xpose.msra.mxu0 0
    %3971 = vmatprep.subr.bf16.mxu0 0
    %3972 = vmatpush1.bf16.xpose.msra.mxu0 0
    %3973 = vmatprep.subr.bf16.mxu0 0
    %3974 = vmatpush1.bf16.xpose.msra.mxu0 0
    %3975 = vmatprep.subr.bf16.mxu0 0
    %3976 = vmatpush1.bf16.xpose.msra.mxu0 0
    %3977 = vmatprep.subr.bf16.mxu0 0
    %3978 = vmatpush1.bf16.xpose.msra.mxu0 0
    %3979 = vmatprep.subr.bf16.mxu0 0
    %3980 = vmatpush1.bf16.xpose.msra.mxu0 0
    %3981 = vmatprep.subr.bf16.mxu0 0
    %3982 = vmatpush1.bf16.xpose.msra.mxu0 0
    %3983 = vmatprep.subr.bf16.mxu0 0
    %3984 = vmatpush1.bf16.xpose.msra.mxu0 0
    %3985 = vmatprep.subr.bf16.mxu0 0
    %3986 = vmatpush1.bf16.xpose.msra.mxu0 0
    %3987 = vmatprep.subr.bf16.mxu0 0
    %3988 = vmatpush1.bf16.xpose.msra.mxu0 0
    %3989 = vmatprep.subr.bf16.mxu0 0
    %3990 = vmatpush1.bf16.xpose.msra.mxu0 0
    %3991 = vmatprep.subr.bf16.mxu0 0
    %3992 = vmatpush1.bf16.xpose.msra.mxu0 0
    %3993 = vmatprep.subr.bf16.mxu0 0
    %3994 = vmatpush1.bf16.xpose.msra.mxu0 0
    %3995 = vmatprep.subr.bf16.mxu0 0
    %3996 = vmatpush1.bf16.xpose.msra.mxu0 0
    %3997 = vmatprep.subr.bf16.mxu0 0
    %3998 = vmatpush1.bf16.xpose.msra.mxu0 0
    %3999 = vmatprep.mubr.bf16.mxu0 0
    %4000 = vmatmul.mubr.bf16.gmra.mrb[0].mxu0 %v3962
    %v4001 = vpop.f32.mrb[0].mxu0
    %v4002 = vadd.f32 %v3101, %v4001
    %v4003 = vpop.f32.mrb[0].mxu0
    %v4004 = vpop.f32.mrb[0].mxu0
    %v4005 = vpop.f32.mrb[0].mxu0
    %4006 = vdwg.mxu0
    %v4007 = vsel %vm666, %v3952, -inf
    %4008 = vmax.xlane.f32.xlu0 %v4007
    %v4009 = vpop.xlane.xlu0 %4008
    %v4010 = vsel %vm666, %v4002, -inf
    %4011 = vmax.xlane.f32.xlu0 %v4010
    %v4012 = vpop.xlane.xlu0 %4011
    %v4013 = vsub.f32 %v3952, %v4009
    %v4014 = vsub.f32 %v4002, %v4012
    %v4015 = vmul.f32 %v4013, 1.442695
    %v4016 = vpow.pop %v4015
    %v4017 = vmul.f32 %v4014, 1.442695
    %v4018 = vpow.pop %v4017
    %v4019 = vsel %vm666, %v4016, 0.0
    %4020 = vadd.xlane.f32.xlu0 %v4019
    %v4021 = vpop.xlane.xlu0 %4020
    %v4022 = vsel %vm666, %v4018, 0.0
    %4023 = vadd.xlane.f32.xlu0 %v4022
    %v4024 = vpop.xlane.xlu0 %4023
    %v4025 = vrcp.pop %v4021
    %v4026 = vrcp.pop %v4024
    %v4027 = vmul.f32 %v4016, %v4025
    %v4028 = vmul.f32 %v4018, %v4026
    %v4029 = vpack.c.bf16 %v4027, %v4027
    %v4030 = vpack.c.bf16 %v4028, %v4028
    %4031 = vrot.lane.b32.xlu0 %v3090, 80
    %v4032 = vpop.permute.xlu0 %4031
    %v4034 = vsel %vm666, %v4029, 0
    %v4037 = vsel %vm694, %v4032, 0
    %4039 = vmatprep.subr.bf16.mxu0 0
    %4040 = vmatpush1.bf16.msra.mxu0 %v4037
    %4041 = vmatprep.subr.bf16.mxu0 0
    %4042 = vmatpush1.bf16.msra.mxu0 0
    %4043 = vmatprep.subr.bf16.mxu0 0
    %4044 = vmatpush1.bf16.msra.mxu0 0
    %4045 = vmatprep.subr.bf16.mxu0 0
    %4046 = vmatpush1.bf16.msra.mxu0 0
    %4047 = vmatprep.subr.bf16.mxu0 0
    %4048 = vmatpush1.bf16.msra.mxu0 0
    %4049 = vmatprep.subr.bf16.mxu0 0
    %4050 = vmatpush1.bf16.msra.mxu0 0
    %4051 = vmatprep.subr.bf16.mxu0 0
    %4052 = vmatpush1.bf16.msra.mxu0 0
    %4053 = vmatprep.subr.bf16.mxu0 0
    %4054 = vmatpush1.bf16.msra.mxu0 0
    %4055 = vmatprep.subr.bf16.mxu0 0
    %4056 = vmatpush1.bf16.msra.mxu0 0
    %4057 = vmatprep.subr.bf16.mxu0 0
    %4058 = vmatpush1.bf16.msra.mxu0 0
    %4059 = vmatprep.subr.bf16.mxu0 0
    %4060 = vmatpush1.bf16.msra.mxu0 0
    %4061 = vmatprep.subr.bf16.mxu0 0
    %4062 = vmatpush1.bf16.msra.mxu0 0
    %4063 = vmatprep.subr.bf16.mxu0 0
    %4064 = vmatpush1.bf16.msra.mxu0 0
    %4065 = vmatprep.subr.bf16.mxu0 0
    %4066 = vmatpush1.bf16.msra.mxu0 0
    %4067 = vmatprep.subr.bf16.mxu0 0
    %4068 = vmatpush1.bf16.msra.mxu0 0
    %4069 = vmatprep.subr.bf16.mxu0 0
    %4070 = vmatpush1.bf16.msra.mxu0 0
    %4071 = vmatprep.mubr.bf16.mxu0 0
    %4072 = vmatmul.mubr.bf16.gmra.mrb[0].mxu0 %v4034
    %v4073 = vpop.f32.mrb[0].mxu0
    %v4074 = vadd.f32 0.0, %v4073
    %v4075 = vpop.f32.mrb[0].mxu0
    %v4076 = vpop.f32.mrb[0].mxu0
    %v4077 = vpop.f32.mrb[0].mxu0
    %4078 = vdwg.mxu0
    %4079 = vrot.lane.b32.xlu0 %v3091, 80
    %v4080 = vpop.permute.xlu0 %4079
    %v4082 = vsel %vm666, %v4030, 0
    %v4085 = vsel %vm694, %v4080, 0
    %4087 = vmatprep.subr.bf16.mxu0 0
    %4088 = vmatpush1.bf16.msra.mxu0 %v4085
    %4089 = vmatprep.subr.bf16.mxu0 0
    %4090 = vmatpush1.bf16.msra.mxu0 0
    %4091 = vmatprep.subr.bf16.mxu0 0
    %4092 = vmatpush1.bf16.msra.mxu0 0
    %4093 = vmatprep.subr.bf16.mxu0 0
    %4094 = vmatpush1.bf16.msra.mxu0 0
    %4095 = vmatprep.subr.bf16.mxu0 0
    %4096 = vmatpush1.bf16.msra.mxu0 0
    %4097 = vmatprep.subr.bf16.mxu0 0
    %4098 = vmatpush1.bf16.msra.mxu0 0
    %4099 = vmatprep.subr.bf16.mxu0 0
    %4100 = vmatpush1.bf16.msra.mxu0 0
    %4101 = vmatprep.subr.bf16.mxu0 0
    %4102 = vmatpush1.bf16.msra.mxu0 0
    %4103 = vmatprep.subr.bf16.mxu0 0
    %4104 = vmatpush1.bf16.msra.mxu0 0
    %4105 = vmatprep.subr.bf16.mxu0 0
    %4106 = vmatpush1.bf16.msra.mxu0 0
    %4107 = vmatprep.subr.bf16.mxu0 0
    %4108 = vmatpush1.bf16.msra.mxu0 0
    %4109 = vmatprep.subr.bf16.mxu0 0
    %4110 = vmatpush1.bf16.msra.mxu0 0
    %4111 = vmatprep.subr.bf16.mxu0 0
    %4112 = vmatpush1.bf16.msra.mxu0 0
    %4113 = vmatprep.subr.bf16.mxu0 0
    %4114 = vmatpush1.bf16.msra.mxu0 0
    %4115 = vmatprep.subr.bf16.mxu0 0
    %4116 = vmatpush1.bf16.msra.mxu0 0
    %4117 = vmatprep.subr.bf16.mxu0 0
    %4118 = vmatpush1.bf16.msra.mxu0 0
    %4119 = vmatprep.mubr.bf16.mxu0 0
    %4120 = vmatmul.mubr.bf16.gmra.mrb[0].mxu0 %v4082
    %v4121 = vpop.f32.mrb[0].mxu0
    %v4122 = vadd.f32 0.0, %v4121
    %v4123 = vpop.f32.mrb[0].mxu0
    %v4124 = vpop.f32.mrb[0].mxu0
    %v4125 = vpop.f32.mrb[0].mxu0
    %4126 = vdwg.mxu0
    %v4127 = vpack.c.bf16 %v4122, %v4074
    %v4130 = vunpack.c.l.b16 %v259
    %v4131 = vunpack.c.l.b16 %v260
    %v4132 = vpack.c.b16 %v4131, %v4130
    %v4135 = vsel %vm573, %v4127, 0
    %4137 = vmatprep.subr.bf16.mxu0 0
    %4138 = vmatpush1.bf16.msra.mxu0 %v4132
    %4139 = vmatprep.subr.bf16.mxu0 0
    %4140 = vmatpush1.bf16.msra.mxu0 0
    %4141 = vmatprep.subr.bf16.mxu0 0
    %4142 = vmatpush1.bf16.msra.mxu0 0
    %4143 = vmatprep.subr.bf16.mxu0 0
    %4144 = vmatpush1.bf16.msra.mxu0 0
    %4145 = vmatprep.subr.bf16.mxu0 0
    %4146 = vmatpush1.bf16.msra.mxu0 0
    %4147 = vmatprep.subr.bf16.mxu0 0
    %4148 = vmatpush1.bf16.msra.mxu0 0
    %4149 = vmatprep.subr.bf16.mxu0 0
    %4150 = vmatpush1.bf16.msra.mxu0 0
    %4151 = vmatprep.subr.bf16.mxu0 0
    %4152 = vmatpush1.bf16.msra.mxu0 0
    %4153 = vmatprep.subr.bf16.mxu0 0
    %4154 = vmatpush1.bf16.msra.mxu0 0
    %4155 = vmatprep.subr.bf16.mxu0 0
    %4156 = vmatpush1.bf16.msra.mxu0 0
    %4157 = vmatprep.subr.bf16.mxu0 0
    %4158 = vmatpush1.bf16.msra.mxu0 0
    %4159 = vmatprep.subr.bf16.mxu0 0
    %4160 = vmatpush1.bf16.msra.mxu0 0
    %4161 = vmatprep.subr.bf16.mxu0 0
    %4162 = vmatpush1.bf16.msra.mxu0 0
    %4163 = vmatprep.subr.bf16.mxu0 0
    %4164 = vmatpush1.bf16.msra.mxu0 0
    %4165 = vmatprep.subr.bf16.mxu0 0
    %4166 = vmatpush1.bf16.msra.mxu0 0
    %4167 = vmatprep.subr.bf16.mxu0 0
    %4168 = vmatpush1.bf16.msra.mxu0 0
    %4169 = vmatprep.mubr.bf16.mxu0 0
    %4170 = vmatmul.mubr.bf16.gmra.mrb[0].mxu0 %v4135
    %v4171 = vpop.f32.mrb[0].mxu0
    %v4172 = vadd.f32 0.0, %v4171
    %v4173 = vpop.f32.mrb[0].mxu0
    %v4174 = vpop.f32.mrb[0].mxu0
    %v4175 = vadd.f32 0.0, %v4174
    %v4176 = vpop.f32.mrb[0].mxu0
    %4177 = vdwg.mxu0
    %v4178 = vadd.f32 %v3905, %v4172
    %v4179 = vadd.f32 %v3906, %v4175
    %4180 = vrot.lane.b32.xlu0 %v3080, 64
    %v4181 = vpop.permute.xlu0 %4180
    %4182 = vrot.lane.b32.xlu0 %v3085, 64
    %v4183 = vpop.permute.xlu0 %4182
    %v4185 = vsel %vm573, %v4181, 0
    %v4188 = vsel %vm573, %v4183, 0
    %4190 = vmatprep.subr.bf16.mxu0 0
    %4191 = vmatpush1.bf16.xpose.msra.mxu0 %v4188
    %4192 = vmatprep.subr.bf16.mxu0 0
    %4193 = vmatpush1.bf16.xpose.msra.mxu0 0
    %4194 = vmatprep.subr.bf16.mxu0 0
    %4195 = vmatpush1.bf16.xpose.msra.mxu0 0
    %4196 = vmatprep.subr.bf16.mxu0 0
    %4197 = vmatpush1.bf16.xpose.msra.mxu0 0
    %4198 = vmatprep.subr.bf16.mxu0 0
    %4199 = vmatpush1.bf16.xpose.msra.mxu0 0
    %4200 = vmatprep.subr.bf16.mxu0 0
    %4201 = vmatpush1.bf16.xpose.msra.mxu0 0
    %4202 = vmatprep.subr.bf16.mxu0 0
    %4203 = vmatpush1.bf16.xpose.msra.mxu0 0
    %4204 = vmatprep.subr.bf16.mxu0 0
    %4205 = vmatpush1.bf16.xpose.msra.mxu0 0
    %4206 = vmatprep.subr.bf16.mxu0 0
    %4207 = vmatpush1.bf16.xpose.msra.mxu0 0
    %4208 = vmatprep.subr.bf16.mxu0 0
    %4209 = vmatpush1.bf16.xpose.msra.mxu0 0
    %4210 = vmatprep.subr.bf16.mxu0 0
    %4211 = vmatpush1.bf16.xpose.msra.mxu0 0
    %4212 = vmatprep.subr.bf16.mxu0 0
    %4213 = vmatpush1.bf16.xpose.msra.mxu0 0
    %4214 = vmatprep.subr.bf16.mxu0 0
    %4215 = vmatpush1.bf16.xpose.msra.mxu0 0
    %4216 = vmatprep.subr.bf16.mxu0 0
    %4217 = vmatpush1.bf16.xpose.msra.mxu0 0
    %4218 = vmatprep.subr.bf16.mxu0 0
    %4219 = vmatpush1.bf16.xpose.msra.mxu0 0
    %4220 = vmatprep.subr.bf16.mxu0 0
    %4221 = vmatpush1.bf16.xpose.msra.mxu0 0
    %4222 = vmatprep.mubr.bf16.mxu0 0
    %4223 = vmatmul.mubr.bf16.gmra.mrb[0].mxu0 %v4185
    %v4224 = vpop.f32.mrb[0].mxu0
    %v4225 = vadd.f32 %v3097, %v4224
    %v4226 = vpop.f32.mrb[0].mxu0
    %v4227 = vpop.f32.mrb[0].mxu0
    %v4228 = vpop.f32.mrb[0].mxu0
    %4229 = vdwg.mxu0
    %4230 = vrot.lane.b32.xlu0 %v3081, 64
    %v4231 = vpop.permute.xlu0 %4230
    %4232 = vrot.lane.b32.xlu0 %v3086, 64
    %v4233 = vpop.permute.xlu0 %4232
    %v4235 = vsel %vm573, %v4231, 0
    %v4238 = vsel %vm573, %v4233, 0
    %4240 = vmatprep.subr.bf16.mxu0 0
    %4241 = vmatpush1.bf16.xpose.msra.mxu0 %v4238
    %4242 = vmatprep.subr.bf16.mxu0 0
    %4243 = vmatpush1.bf16.xpose.msra.mxu0 0
    %4244 = vmatprep.subr.bf16.mxu0 0
    %4245 = vmatpush1.bf16.xpose.msra.mxu0 0
    %4246 = vmatprep.subr.bf16.mxu0 0
    %4247 = vmatpush1.bf16.xpose.msra.mxu0 0
    %4248 = vmatprep.subr.bf16.mxu0 0
    %4249 = vmatpush1.bf16.xpose.msra.mxu0 0
    %4250 = vmatprep.subr.bf16.mxu0 0
    %4251 = vmatpush1.bf16.xpose.msra.mxu0 0
    %4252 = vmatprep.subr.bf16.mxu0 0
    %4253 = vmatpush1.bf16.xpose.msra.mxu0 0
    %4254 = vmatprep.subr.bf16.mxu0 0
    %4255 = vmatpush1.bf16.xpose.msra.mxu0 0
    %4256 = vmatprep.subr.bf16.mxu0 0
    %4257 = vmatpush1.bf16.xpose.msra.mxu0 0
    %4258 = vmatprep.subr.bf16.mxu0 0
    %4259 = vmatpush1.bf16.xpose.msra.mxu0 0
    %4260 = vmatprep.subr.bf16.mxu0 0
    %4261 = vmatpush1.bf16.xpose.msra.mxu0 0
    %4262 = vmatprep.subr.bf16.mxu0 0
    %4263 = vmatpush1.bf16.xpose.msra.mxu0 0
    %4264 = vmatprep.subr.bf16.mxu0 0
    %4265 = vmatpush1.bf16.xpose.msra.mxu0 0
    %4266 = vmatprep.subr.bf16.mxu0 0
    %4267 = vmatpush1.bf16.xpose.msra.mxu0 0
    %4268 = vmatprep.subr.bf16.mxu0 0
    %4269 = vmatpush1.bf16.xpose.msra.mxu0 0
    %4270 = vmatprep.subr.bf16.mxu0 0
    %4271 = vmatpush1.bf16.xpose.msra.mxu0 0
    %4272 = vmatprep.mubr.bf16.mxu0 0
    %4273 = vmatmul.mubr.bf16.gmra.mrb[0].mxu0 %v4235
    %v4274 = vpop.f32.mrb[0].mxu0
    %v4275 = vadd.f32 %v3101, %v4274
    %v4276 = vpop.f32.mrb[0].mxu0
    %v4277 = vpop.f32.mrb[0].mxu0
    %v4278 = vpop.f32.mrb[0].mxu0
    %4279 = vdwg.mxu0
    %v4280 = vsel %vm666, %v4225, -inf
    %4281 = vmax.xlane.f32.xlu0 %v4280
    %v4282 = vpop.xlane.xlu0 %4281
    %v4283 = vsel %vm666, %v4275, -inf
    %4284 = vmax.xlane.f32.xlu0 %v4283
    %v4285 = vpop.xlane.xlu0 %4284
    %v4286 = vsub.f32 %v4225, %v4282
    %v4287 = vsub.f32 %v4275, %v4285
    %v4288 = vmul.f32 %v4286, 1.442695
    %v4289 = vpow.pop %v4288
    %v4290 = vmul.f32 %v4287, 1.442695
    %v4291 = vpow.pop %v4290
    %v4292 = vsel %vm666, %v4289, 0.0
    %4293 = vadd.xlane.f32.xlu0 %v4292
    %v4294 = vpop.xlane.xlu0 %4293
    %v4295 = vsel %vm666, %v4291, 0.0
    %4296 = vadd.xlane.f32.xlu0 %v4295
    %v4297 = vpop.xlane.xlu0 %4296
    %v4298 = vrcp.pop %v4294
    %v4299 = vrcp.pop %v4297
    %v4300 = vmul.f32 %v4289, %v4298
    %v4301 = vmul.f32 %v4291, %v4299
    %v4302 = vpack.c.bf16 %v4300, %v4300
    %v4303 = vpack.c.bf16 %v4301, %v4301
    %4304 = vrot.lane.b32.xlu0 %v3090, 64
    %v4305 = vpop.permute.xlu0 %4304
    %v4307 = vsel %vm666, %v4302, 0
    %v4310 = vsel %vm694, %v4305, 0
    %4312 = vmatprep.subr.bf16.mxu0 0
    %4313 = vmatpush1.bf16.msra.mxu0 %v4310
    %4314 = vmatprep.subr.bf16.mxu0 0
    %4315 = vmatpush1.bf16.msra.mxu0 0
    %4316 = vmatprep.subr.bf16.mxu0 0
    %4317 = vmatpush1.bf16.msra.mxu0 0
    %4318 = vmatprep.subr.bf16.mxu0 0
    %4319 = vmatpush1.bf16.msra.mxu0 0
    %4320 = vmatprep.subr.bf16.mxu0 0
    %4321 = vmatpush1.bf16.msra.mxu0 0
    %4322 = vmatprep.subr.bf16.mxu0 0
    %4323 = vmatpush1.bf16.msra.mxu0 0
    %4324 = vmatprep.subr.bf16.mxu0 0
    %4325 = vmatpush1.bf16.msra.mxu0 0
    %4326 = vmatprep.subr.bf16.mxu0 0
    %4327 = vmatpush1.bf16.msra.mxu0 0
    %4328 = vmatprep.subr.bf16.mxu0 0
    %4329 = vmatpush1.bf16.msra.mxu0 0
    %4330 = vmatprep.subr.bf16.mxu0 0
    %4331 = vmatpush1.bf16.msra.mxu0 0
    %4332 = vmatprep.subr.bf16.mxu0 0
    %4333 = vmatpush1.bf16.msra.mxu0 0
    %4334 = vmatprep.subr.bf16.mxu0 0
    %4335 = vmatpush1.bf16.msra.mxu0 0
    %4336 = vmatprep.subr.bf16.mxu0 0
    %4337 = vmatpush1.bf16.msra.mxu0 0
    %4338 = vmatprep.subr.bf16.mxu0 0
    %4339 = vmatpush1.bf16.msra.mxu0 0
    %4340 = vmatprep.subr.bf16.mxu0 0
    %4341 = vmatpush1.bf16.msra.mxu0 0
    %4342 = vmatprep.subr.bf16.mxu0 0
    %4343 = vmatpush1.bf16.msra.mxu0 0
    %4344 = vmatprep.mubr.bf16.mxu0 0
    %4345 = vmatmul.mubr.bf16.gmra.mrb[0].mxu0 %v4307
    %v4346 = vpop.f32.mrb[0].mxu0
    %v4347 = vadd.f32 0.0, %v4346
    %v4348 = vpop.f32.mrb[0].mxu0
    %v4349 = vpop.f32.mrb[0].mxu0
    %v4350 = vpop.f32.mrb[0].mxu0
    %4351 = vdwg.mxu0
    %4352 = vrot.lane.b32.xlu0 %v3091, 64
    %v4353 = vpop.permute.xlu0 %4352
    %v4355 = vsel %vm666, %v4303, 0
    %v4358 = vsel %vm694, %v4353, 0
    %4360 = vmatprep.subr.bf16.mxu0 0
    %4361 = vmatpush1.bf16.msra.mxu0 %v4358
    %4362 = vmatprep.subr.bf16.mxu0 0
    %4363 = vmatpush1.bf16.msra.mxu0 0
    %4364 = vmatprep.subr.bf16.mxu0 0
    %4365 = vmatpush1.bf16.msra.mxu0 0
    %4366 = vmatprep.subr.bf16.mxu0 0
    %4367 = vmatpush1.bf16.msra.mxu0 0
    %4368 = vmatprep.subr.bf16.mxu0 0
    %4369 = vmatpush1.bf16.msra.mxu0 0
    %4370 = vmatprep.subr.bf16.mxu0 0
    %4371 = vmatpush1.bf16.msra.mxu0 0
    %4372 = vmatprep.subr.bf16.mxu0 0
    %4373 = vmatpush1.bf16.msra.mxu0 0
    %4374 = vmatprep.subr.bf16.mxu0 0
    %4375 = vmatpush1.bf16.msra.mxu0 0
    %4376 = vmatprep.subr.bf16.mxu0 0
    %4377 = vmatpush1.bf16.msra.mxu0 0
    %4378 = vmatprep.subr.bf16.mxu0 0
    %4379 = vmatpush1.bf16.msra.mxu0 0
    %4380 = vmatprep.subr.bf16.mxu0 0
    %4381 = vmatpush1.bf16.msra.mxu0 0
    %4382 = vmatprep.subr.bf16.mxu0 0
    %4383 = vmatpush1.bf16.msra.mxu0 0
    %4384 = vmatprep.subr.bf16.mxu0 0
    %4385 = vmatpush1.bf16.msra.mxu0 0
    %4386 = vmatprep.subr.bf16.mxu0 0
    %4387 = vmatpush1.bf16.msra.mxu0 0
    %4388 = vmatprep.subr.bf16.mxu0 0
    %4389 = vmatpush1.bf16.msra.mxu0 0
    %4390 = vmatprep.subr.bf16.mxu0 0
    %4391 = vmatpush1.bf16.msra.mxu0 0
    %4392 = vmatprep.mubr.bf16.mxu0 0
    %4393 = vmatmul.mubr.bf16.gmra.mrb[0].mxu0 %v4355
    %v4394 = vpop.f32.mrb[0].mxu0
    %v4395 = vadd.f32 0.0, %v4394
    %v4396 = vpop.f32.mrb[0].mxu0
    %v4397 = vpop.f32.mrb[0].mxu0
    %v4398 = vpop.f32.mrb[0].mxu0
    %4399 = vdwg.mxu0
    %v4400 = vpack.c.bf16 %v4395, %v4347
    %v4403 = vunpack.c.l.b16 %v261
    %v4404 = vunpack.c.l.b16 %v262
    %v4405 = vpack.c.b16 %v4404, %v4403
    %v4408 = vsel %vm573, %v4400, 0
    %4410 = vmatprep.subr.bf16.mxu0 0
    %4411 = vmatpush1.bf16.msra.mxu0 %v4405
    %4412 = vmatprep.subr.bf16.mxu0 0
    %4413 = vmatpush1.bf16.msra.mxu0 0
    %4414 = vmatprep.subr.bf16.mxu0 0
    %4415 = vmatpush1.bf16.msra.mxu0 0
    %4416 = vmatprep.subr.bf16.mxu0 0
    %4417 = vmatpush1.bf16.msra.mxu0 0
    %4418 = vmatprep.subr.bf16.mxu0 0
    %4419 = vmatpush1.bf16.msra.mxu0 0
    %4420 = vmatprep.subr.bf16.mxu0 0
    %4421 = vmatpush1.bf16.msra.mxu0 0
    %4422 = vmatprep.subr.bf16.mxu0 0
    %4423 = vmatpush1.bf16.msra.mxu0 0
    %4424 = vmatprep.subr.bf16.mxu0 0
    %4425 = vmatpush1.bf16.msra.mxu0 0
    %4426 = vmatprep.subr.bf16.mxu0 0
    %4427 = vmatpush1.bf16.msra.mxu0 0
    %4428 = vmatprep.subr.bf16.mxu0 0
    %4429 = vmatpush1.bf16.msra.mxu0 0
    %4430 = vmatprep.subr.bf16.mxu0 0
    %4431 = vmatpush1.bf16.msra.mxu0 0
    %4432 = vmatprep.subr.bf16.mxu0 0
    %4433 = vmatpush1.bf16.msra.mxu0 0
    %4434 = vmatprep.subr.bf16.mxu0 0
    %4435 = vmatpush1.bf16.msra.mxu0 0
    %4436 = vmatprep.subr.bf16.mxu0 0
    %4437 = vmatpush1.bf16.msra.mxu0 0
    %4438 = vmatprep.subr.bf16.mxu0 0
    %4439 = vmatpush1.bf16.msra.mxu0 0
    %4440 = vmatprep.subr.bf16.mxu0 0
    %4441 = vmatpush1.bf16.msra.mxu0 0
    %4442 = vmatprep.mubr.bf16.mxu0 0
    %4443 = vmatmul.mubr.bf16.gmra.mrb[0].mxu0 %v4408
    %v4444 = vpop.f32.mrb[0].mxu0
    %v4445 = vadd.f32 0.0, %v4444
    %v4446 = vpop.f32.mrb[0].mxu0
    %v4447 = vpop.f32.mrb[0].mxu0
    %v4448 = vadd.f32 0.0, %v4447
    %v4449 = vpop.f32.mrb[0].mxu0
    %4450 = vdwg.mxu0
    %v4451 = vadd.f32 %v4178, %v4445
    %v4452 = vadd.f32 %v4179, %v4448
    %4453 = vrot.lane.b32.xlu0 %v3080, 48
    %v4454 = vpop.permute.xlu0 %4453
    %4455 = vrot.lane.b32.xlu0 %v3085, 48
    %v4456 = vpop.permute.xlu0 %4455
    %v4458 = vsel %vm573, %v4454, 0
    %v4461 = vsel %vm573, %v4456, 0
    %4463 = vmatprep.subr.bf16.mxu0 0
    %4464 = vmatpush1.bf16.xpose.msra.mxu0 %v4461
    %4465 = vmatprep.subr.bf16.mxu0 0
    %4466 = vmatpush1.bf16.xpose.msra.mxu0 0
    %4467 = vmatprep.subr.bf16.mxu0 0
    %4468 = vmatpush1.bf16.xpose.msra.mxu0 0
    %4469 = vmatprep.subr.bf16.mxu0 0
    %4470 = vmatpush1.bf16.xpose.msra.mxu0 0
    %4471 = vmatprep.subr.bf16.mxu0 0
    %4472 = vmatpush1.bf16.xpose.msra.mxu0 0
    %4473 = vmatprep.subr.bf16.mxu0 0
    %4474 = vmatpush1.bf16.xpose.msra.mxu0 0
    %4475 = vmatprep.subr.bf16.mxu0 0
    %4476 = vmatpush1.bf16.xpose.msra.mxu0 0
    %4477 = vmatprep.subr.bf16.mxu0 0
    %4478 = vmatpush1.bf16.xpose.msra.mxu0 0
    %4479 = vmatprep.subr.bf16.mxu0 0
    %4480 = vmatpush1.bf16.xpose.msra.mxu0 0
    %4481 = vmatprep.subr.bf16.mxu0 0
    %4482 = vmatpush1.bf16.xpose.msra.mxu0 0
    %4483 = vmatprep.subr.bf16.mxu0 0
    %4484 = vmatpush1.bf16.xpose.msra.mxu0 0
    %4485 = vmatprep.subr.bf16.mxu0 0
    %4486 = vmatpush1.bf16.xpose.msra.mxu0 0
    %4487 = vmatprep.subr.bf16.mxu0 0
    %4488 = vmatpush1.bf16.xpose.msra.mxu0 0
    %4489 = vmatprep.subr.bf16.mxu0 0
    %4490 = vmatpush1.bf16.xpose.msra.mxu0 0
    %4491 = vmatprep.subr.bf16.mxu0 0
    %4492 = vmatpush1.bf16.xpose.msra.mxu0 0
    %4493 = vmatprep.subr.bf16.mxu0 0
    %4494 = vmatpush1.bf16.xpose.msra.mxu0 0
    %4495 = vmatprep.mubr.bf16.mxu0 0
    %4496 = vmatmul.mubr.bf16.gmra.mrb[0].mxu0 %v4458
    %v4497 = vpop.f32.mrb[0].mxu0
    %v4498 = vadd.f32 %v3097, %v4497
    %v4499 = vpop.f32.mrb[0].mxu0
    %v4500 = vpop.f32.mrb[0].mxu0
    %v4501 = vpop.f32.mrb[0].mxu0
    %4502 = vdwg.mxu0
    %4503 = vrot.lane.b32.xlu0 %v3081, 48
    %v4504 = vpop.permute.xlu0 %4503
    %4505 = vrot.lane.b32.xlu0 %v3086, 48
    %v4506 = vpop.permute.xlu0 %4505
    %v4508 = vsel %vm573, %v4504, 0
    %v4511 = vsel %vm573, %v4506, 0
    %4513 = vmatprep.subr.bf16.mxu0 0
    %4514 = vmatpush1.bf16.xpose.msra.mxu0 %v4511
    %4515 = vmatprep.subr.bf16.mxu0 0
    %4516 = vmatpush1.bf16.xpose.msra.mxu0 0
    %4517 = vmatprep.subr.bf16.mxu0 0
    %4518 = vmatpush1.bf16.xpose.msra.mxu0 0
    %4519 = vmatprep.subr.bf16.mxu0 0
    %4520 = vmatpush1.bf16.xpose.msra.mxu0 0
    %4521 = vmatprep.subr.bf16.mxu0 0
    %4522 = vmatpush1.bf16.xpose.msra.mxu0 0
    %4523 = vmatprep.subr.bf16.mxu0 0
    %4524 = vmatpush1.bf16.xpose.msra.mxu0 0
    %4525 = vmatprep.subr.bf16.mxu0 0
    %4526 = vmatpush1.bf16.xpose.msra.mxu0 0
    %4527 = vmatprep.subr.bf16.mxu0 0
    %4528 = vmatpush1.bf16.xpose.msra.mxu0 0
    %4529 = vmatprep.subr.bf16.mxu0 0
    %4530 = vmatpush1.bf16.xpose.msra.mxu0 0
    %4531 = vmatprep.subr.bf16.mxu0 0
    %4532 = vmatpush1.bf16.xpose.msra.mxu0 0
    %4533 = vmatprep.subr.bf16.mxu0 0
    %4534 = vmatpush1.bf16.xpose.msra.mxu0 0
    %4535 = vmatprep.subr.bf16.mxu0 0
    %4536 = vmatpush1.bf16.xpose.msra.mxu0 0
    %4537 = vmatprep.subr.bf16.mxu0 0
    %4538 = vmatpush1.bf16.xpose.msra.mxu0 0
    %4539 = vmatprep.subr.bf16.mxu0 0
    %4540 = vmatpush1.bf16.xpose.msra.mxu0 0
    %4541 = vmatprep.subr.bf16.mxu0 0
    %4542 = vmatpush1.bf16.xpose.msra.mxu0 0
    %4543 = vmatprep.subr.bf16.mxu0 0
    %4544 = vmatpush1.bf16.xpose.msra.mxu0 0
    %4545 = vmatprep.mubr.bf16.mxu0 0
    %4546 = vmatmul.mubr.bf16.gmra.mrb[0].mxu0 %v4508
    %v4547 = vpop.f32.mrb[0].mxu0
    %v4548 = vadd.f32 %v3101, %v4547
    %v4549 = vpop.f32.mrb[0].mxu0
    %v4550 = vpop.f32.mrb[0].mxu0
    %v4551 = vpop.f32.mrb[0].mxu0
    %4552 = vdwg.mxu0
    %v4553 = vsel %vm666, %v4498, -inf
    %4554 = vmax.xlane.f32.xlu0 %v4553
    %v4555 = vpop.xlane.xlu0 %4554
    %v4556 = vsel %vm666, %v4548, -inf
    %4557 = vmax.xlane.f32.xlu0 %v4556
    %v4558 = vpop.xlane.xlu0 %4557
    %v4559 = vsub.f32 %v4498, %v4555
    %v4560 = vsub.f32 %v4548, %v4558
    %v4561 = vmul.f32 %v4559, 1.442695
    %v4562 = vpow.pop %v4561
    %v4563 = vmul.f32 %v4560, 1.442695
    %v4564 = vpow.pop %v4563
    %v4565 = vsel %vm666, %v4562, 0.0
    %4566 = vadd.xlane.f32.xlu0 %v4565
    %v4567 = vpop.xlane.xlu0 %4566
    %v4568 = vsel %vm666, %v4564, 0.0
    %4569 = vadd.xlane.f32.xlu0 %v4568
    %v4570 = vpop.xlane.xlu0 %4569
    %v4571 = vrcp.pop %v4567
    %v4572 = vrcp.pop %v4570
    %v4573 = vmul.f32 %v4562, %v4571
    %v4574 = vmul.f32 %v4564, %v4572
    %v4575 = vpack.c.bf16 %v4573, %v4573
    %v4576 = vpack.c.bf16 %v4574, %v4574
    %4577 = vrot.lane.b32.xlu0 %v3090, 48
    %v4578 = vpop.permute.xlu0 %4577
    %v4580 = vsel %vm666, %v4575, 0
    %v4583 = vsel %vm694, %v4578, 0
    %4585 = vmatprep.subr.bf16.mxu0 0
    %4586 = vmatpush1.bf16.msra.mxu0 %v4583
    %4587 = vmatprep.subr.bf16.mxu0 0
    %4588 = vmatpush1.bf16.msra.mxu0 0
    %4589 = vmatprep.subr.bf16.mxu0 0
    %4590 = vmatpush1.bf16.msra.mxu0 0
    %4591 = vmatprep.subr.bf16.mxu0 0
    %4592 = vmatpush1.bf16.msra.mxu0 0
    %4593 = vmatprep.subr.bf16.mxu0 0
    %4594 = vmatpush1.bf16.msra.mxu0 0
    %4595 = vmatprep.subr.bf16.mxu0 0
    %4596 = vmatpush1.bf16.msra.mxu0 0
    %4597 = vmatprep.subr.bf16.mxu0 0
    %4598 = vmatpush1.bf16.msra.mxu0 0
    %4599 = vmatprep.subr.bf16.mxu0 0
    %4600 = vmatpush1.bf16.msra.mxu0 0
    %4601 = vmatprep.subr.bf16.mxu0 0
    %4602 = vmatpush1.bf16.msra.mxu0 0
    %4603 = vmatprep.subr.bf16.mxu0 0
    %4604 = vmatpush1.bf16.msra.mxu0 0
    %4605 = vmatprep.subr.bf16.mxu0 0
    %4606 = vmatpush1.bf16.msra.mxu0 0
    %4607 = vmatprep.subr.bf16.mxu0 0
    %4608 = vmatpush1.bf16.msra.mxu0 0
    %4609 = vmatprep.subr.bf16.mxu0 0
    %4610 = vmatpush1.bf16.msra.mxu0 0
    %4611 = vmatprep.subr.bf16.mxu0 0
    %4612 = vmatpush1.bf16.msra.mxu0 0
    %4613 = vmatprep.subr.bf16.mxu0 0
    %4614 = vmatpush1.bf16.msra.mxu0 0
    %4615 = vmatprep.subr.bf16.mxu0 0
    %4616 = vmatpush1.bf16.msra.mxu0 0
    %4617 = vmatprep.mubr.bf16.mxu0 0
    %4618 = vmatmul.mubr.bf16.gmra.mrb[0].mxu0 %v4580
    %v4619 = vpop.f32.mrb[0].mxu0
    %v4620 = vadd.f32 0.0, %v4619
    %v4621 = vpop.f32.mrb[0].mxu0
    %v4622 = vpop.f32.mrb[0].mxu0
    %v4623 = vpop.f32.mrb[0].mxu0
    %4624 = vdwg.mxu0
    %4625 = vrot.lane.b32.xlu0 %v3091, 48
    %v4626 = vpop.permute.xlu0 %4625
    %v4628 = vsel %vm666, %v4576, 0
    %v4631 = vsel %vm694, %v4626, 0
    %4633 = vmatprep.subr.bf16.mxu0 0
    %4634 = vmatpush1.bf16.msra.mxu0 %v4631
    %4635 = vmatprep.subr.bf16.mxu0 0
    %4636 = vmatpush1.bf16.msra.mxu0 0
    %4637 = vmatprep.subr.bf16.mxu0 0
    %4638 = vmatpush1.bf16.msra.mxu0 0
    %4639 = vmatprep.subr.bf16.mxu0 0
    %4640 = vmatpush1.bf16.msra.mxu0 0
    %4641 = vmatprep.subr.bf16.mxu0 0
    %4642 = vmatpush1.bf16.msra.mxu0 0
    %4643 = vmatprep.subr.bf16.mxu0 0
    %4644 = vmatpush1.bf16.msra.mxu0 0
    %4645 = vmatprep.subr.bf16.mxu0 0
    %4646 = vmatpush1.bf16.msra.mxu0 0
    %4647 = vmatprep.subr.bf16.mxu0 0
    %4648 = vmatpush1.bf16.msra.mxu0 0
    %4649 = vmatprep.subr.bf16.mxu0 0
    %4650 = vmatpush1.bf16.msra.mxu0 0
    %4651 = vmatprep.subr.bf16.mxu0 0
    %4652 = vmatpush1.bf16.msra.mxu0 0
    %4653 = vmatprep.subr.bf16.mxu0 0
    %4654 = vmatpush1.bf16.msra.mxu0 0
    %4655 = vmatprep.subr.bf16.mxu0 0
    %4656 = vmatpush1.bf16.msra.mxu0 0
    %4657 = vmatprep.subr.bf16.mxu0 0
    %4658 = vmatpush1.bf16.msra.mxu0 0
    %4659 = vmatprep.subr.bf16.mxu0 0
    %4660 = vmatpush1.bf16.msra.mxu0 0
    %4661 = vmatprep.subr.bf16.mxu0 0
    %4662 = vmatpush1.bf16.msra.mxu0 0
    %4663 = vmatprep.subr.bf16.mxu0 0
    %4664 = vmatpush1.bf16.msra.mxu0 0
    %4665 = vmatprep.mubr.bf16.mxu0 0
    %4666 = vmatmul.mubr.bf16.gmra.mrb[0].mxu0 %v4628
    %v4667 = vpop.f32.mrb[0].mxu0
    %v4668 = vadd.f32 0.0, %v4667
    %v4669 = vpop.f32.mrb[0].mxu0
    %v4670 = vpop.f32.mrb[0].mxu0
    %v4671 = vpop.f32.mrb[0].mxu0
    %4672 = vdwg.mxu0
    %v4673 = vpack.c.bf16 %v4668, %v4620
    %v4676 = vunpack.c.l.b16 %v263
    %v4677 = vunpack.c.l.b16 %v264
    %v4678 = vpack.c.b16 %v4677, %v4676
    %v4681 = vsel %vm573, %v4673, 0
    %4683 = vmatprep.subr.bf16.mxu0 0
    %4684 = vmatpush1.bf16.msra.mxu0 %v4678
    %4685 = vmatprep.subr.bf16.mxu0 0
    %4686 = vmatpush1.bf16.msra.mxu0 0
    %4687 = vmatprep.subr.bf16.mxu0 0
    %4688 = vmatpush1.bf16.msra.mxu0 0
    %4689 = vmatprep.subr.bf16.mxu0 0
    %4690 = vmatpush1.bf16.msra.mxu0 0
    %4691 = vmatprep.subr.bf16.mxu0 0
    %4692 = vmatpush1.bf16.msra.mxu0 0
    %4693 = vmatprep.subr.bf16.mxu0 0
    %4694 = vmatpush1.bf16.msra.mxu0 0
    %4695 = vmatprep.subr.bf16.mxu0 0
    %4696 = vmatpush1.bf16.msra.mxu0 0
    %4697 = vmatprep.subr.bf16.mxu0 0
    %4698 = vmatpush1.bf16.msra.mxu0 0
    %4699 = vmatprep.subr.bf16.mxu0 0
    %4700 = vmatpush1.bf16.msra.mxu0 0
    %4701 = vmatprep.subr.bf16.mxu0 0
    %4702 = vmatpush1.bf16.msra.mxu0 0
    %4703 = vmatprep.subr.bf16.mxu0 0
    %4704 = vmatpush1.bf16.msra.mxu0 0
    %4705 = vmatprep.subr.bf16.mxu0 0
    %4706 = vmatpush1.bf16.msra.mxu0 0
    %4707 = vmatprep.subr.bf16.mxu0 0
    %4708 = vmatpush1.bf16.msra.mxu0 0
    %4709 = vmatprep.subr.bf16.mxu0 0
    %4710 = vmatpush1.bf16.msra.mxu0 0
    %4711 = vmatprep.subr.bf16.mxu0 0
    %4712 = vmatpush1.bf16.msra.mxu0 0
    %4713 = vmatprep.subr.bf16.mxu0 0
    %4714 = vmatpush1.bf16.msra.mxu0 0
    %4715 = vmatprep.mubr.bf16.mxu0 0
    %4716 = vmatmul.mubr.bf16.gmra.mrb[0].mxu0 %v4681
    %v4717 = vpop.f32.mrb[0].mxu0
    %v4718 = vadd.f32 0.0, %v4717
    %v4719 = vpop.f32.mrb[0].mxu0
    %v4720 = vpop.f32.mrb[0].mxu0
    %v4721 = vadd.f32 0.0, %v4720
    %v4722 = vpop.f32.mrb[0].mxu0
    %4723 = vdwg.mxu0
    %v4724 = vadd.f32 %v4451, %v4718
    %v4725 = vadd.f32 %v4452, %v4721
    %4726 = vrot.lane.b32.xlu0 %v3080, 32
    %v4727 = vpop.permute.xlu0 %4726
    %4728 = vrot.lane.b32.xlu0 %v3085, 32
    %v4729 = vpop.permute.xlu0 %4728
    %v4731 = vsel %vm573, %v4727, 0
    %v4734 = vsel %vm573, %v4729, 0
    %4736 = vmatprep.subr.bf16.mxu0 0
    %4737 = vmatpush1.bf16.xpose.msra.mxu0 %v4734
    %4738 = vmatprep.subr.bf16.mxu0 0
    %4739 = vmatpush1.bf16.xpose.msra.mxu0 0
    %4740 = vmatprep.subr.bf16.mxu0 0
    %4741 = vmatpush1.bf16.xpose.msra.mxu0 0
    %4742 = vmatprep.subr.bf16.mxu0 0
    %4743 = vmatpush1.bf16.xpose.msra.mxu0 0
    %4744 = vmatprep.subr.bf16.mxu0 0
    %4745 = vmatpush1.bf16.xpose.msra.mxu0 0
    %4746 = vmatprep.subr.bf16.mxu0 0
    %4747 = vmatpush1.bf16.xpose.msra.mxu0 0
    %4748 = vmatprep.subr.bf16.mxu0 0
    %4749 = vmatpush1.bf16.xpose.msra.mxu0 0
    %4750 = vmatprep.subr.bf16.mxu0 0
    %4751 = vmatpush1.bf16.xpose.msra.mxu0 0
    %4752 = vmatprep.subr.bf16.mxu0 0
    %4753 = vmatpush1.bf16.xpose.msra.mxu0 0
    %4754 = vmatprep.subr.bf16.mxu0 0
    %4755 = vmatpush1.bf16.xpose.msra.mxu0 0
    %4756 = vmatprep.subr.bf16.mxu0 0
    %4757 = vmatpush1.bf16.xpose.msra.mxu0 0
    %4758 = vmatprep.subr.bf16.mxu0 0
    %4759 = vmatpush1.bf16.xpose.msra.mxu0 0
    %4760 = vmatprep.subr.bf16.mxu0 0
    %4761 = vmatpush1.bf16.xpose.msra.mxu0 0
    %4762 = vmatprep.subr.bf16.mxu0 0
    %4763 = vmatpush1.bf16.xpose.msra.mxu0 0
    %4764 = vmatprep.subr.bf16.mxu0 0
    %4765 = vmatpush1.bf16.xpose.msra.mxu0 0
    %4766 = vmatprep.subr.bf16.mxu0 0
    %4767 = vmatpush1.bf16.xpose.msra.mxu0 0
    %4768 = vmatprep.mubr.bf16.mxu0 0
    %4769 = vmatmul.mubr.bf16.gmra.mrb[0].mxu0 %v4731
    %v4770 = vpop.f32.mrb[0].mxu0
    %v4771 = vadd.f32 %v3097, %v4770
    %v4772 = vpop.f32.mrb[0].mxu0
    %v4773 = vpop.f32.mrb[0].mxu0
    %v4774 = vpop.f32.mrb[0].mxu0
    %4775 = vdwg.mxu0
    %4776 = vrot.lane.b32.xlu0 %v3081, 32
    %v4777 = vpop.permute.xlu0 %4776
    %4778 = vrot.lane.b32.xlu0 %v3086, 32
    %v4779 = vpop.permute.xlu0 %4778
    %v4781 = vsel %vm573, %v4777, 0
    %v4784 = vsel %vm573, %v4779, 0
    %4786 = vmatprep.subr.bf16.mxu0 0
    %4787 = vmatpush1.bf16.xpose.msra.mxu0 %v4784
    %4788 = vmatprep.subr.bf16.mxu0 0
    %4789 = vmatpush1.bf16.xpose.msra.mxu0 0
    %4790 = vmatprep.subr.bf16.mxu0 0
    %4791 = vmatpush1.bf16.xpose.msra.mxu0 0
    %4792 = vmatprep.subr.bf16.mxu0 0
    %4793 = vmatpush1.bf16.xpose.msra.mxu0 0
    %4794 = vmatprep.subr.bf16.mxu0 0
    %4795 = vmatpush1.bf16.xpose.msra.mxu0 0
    %4796 = vmatprep.subr.bf16.mxu0 0
    %4797 = vmatpush1.bf16.xpose.msra.mxu0 0
    %4798 = vmatprep.subr.bf16.mxu0 0
    %4799 = vmatpush1.bf16.xpose.msra.mxu0 0
    %4800 = vmatprep.subr.bf16.mxu0 0
    %4801 = vmatpush1.bf16.xpose.msra.mxu0 0
    %4802 = vmatprep.subr.bf16.mxu0 0
    %4803 = vmatpush1.bf16.xpose.msra.mxu0 0
    %4804 = vmatprep.subr.bf16.mxu0 0
    %4805 = vmatpush1.bf16.xpose.msra.mxu0 0
    %4806 = vmatprep.subr.bf16.mxu0 0
    %4807 = vmatpush1.bf16.xpose.msra.mxu0 0
    %4808 = vmatprep.subr.bf16.mxu0 0
    %4809 = vmatpush1.bf16.xpose.msra.mxu0 0
    %4810 = vmatprep.subr.bf16.mxu0 0
    %4811 = vmatpush1.bf16.xpose.msra.mxu0 0
    %4812 = vmatprep.subr.bf16.mxu0 0
    %4813 = vmatpush1.bf16.xpose.msra.mxu0 0
    %4814 = vmatprep.subr.bf16.mxu0 0
    %4815 = vmatpush1.bf16.xpose.msra.mxu0 0
    %4816 = vmatprep.subr.bf16.mxu0 0
    %4817 = vmatpush1.bf16.xpose.msra.mxu0 0
    %4818 = vmatprep.mubr.bf16.mxu0 0
    %4819 = vmatmul.mubr.bf16.gmra.mrb[0].mxu0 %v4781
    %v4820 = vpop.f32.mrb[0].mxu0
    %v4821 = vadd.f32 %v3101, %v4820
    %v4822 = vpop.f32.mrb[0].mxu0
    %v4823 = vpop.f32.mrb[0].mxu0
    %v4824 = vpop.f32.mrb[0].mxu0
    %4825 = vdwg.mxu0
    %v4826 = vsel %vm666, %v4771, -inf
    %4827 = vmax.xlane.f32.xlu0 %v4826
    %v4828 = vpop.xlane.xlu0 %4827
    %v4829 = vsel %vm666, %v4821, -inf
    %4830 = vmax.xlane.f32.xlu0 %v4829
    %v4831 = vpop.xlane.xlu0 %4830
    %v4832 = vsub.f32 %v4771, %v4828
    %v4833 = vsub.f32 %v4821, %v4831
    %v4834 = vmul.f32 %v4832, 1.442695
    %v4835 = vpow.pop %v4834
    %v4836 = vmul.f32 %v4833, 1.442695
    %v4837 = vpow.pop %v4836
    %v4838 = vsel %vm666, %v4835, 0.0
    %4839 = vadd.xlane.f32.xlu0 %v4838
    %v4840 = vpop.xlane.xlu0 %4839
    %v4841 = vsel %vm666, %v4837, 0.0
    %4842 = vadd.xlane.f32.xlu0 %v4841
    %v4843 = vpop.xlane.xlu0 %4842
    %v4844 = vrcp.pop %v4840
    %v4845 = vrcp.pop %v4843
    %v4846 = vmul.f32 %v4835, %v4844
    %v4847 = vmul.f32 %v4837, %v4845
    %v4848 = vpack.c.bf16 %v4846, %v4846
    %v4849 = vpack.c.bf16 %v4847, %v4847
    %4850 = vrot.lane.b32.xlu0 %v3090, 32
    %v4851 = vpop.permute.xlu0 %4850
    %v4853 = vsel %vm666, %v4848, 0
    %v4856 = vsel %vm694, %v4851, 0
    %4858 = vmatprep.subr.bf16.mxu0 0
    %4859 = vmatpush1.bf16.msra.mxu0 %v4856
    %4860 = vmatprep.subr.bf16.mxu0 0
    %4861 = vmatpush1.bf16.msra.mxu0 0
    %4862 = vmatprep.subr.bf16.mxu0 0
    %4863 = vmatpush1.bf16.msra.mxu0 0
    %4864 = vmatprep.subr.bf16.mxu0 0
    %4865 = vmatpush1.bf16.msra.mxu0 0
    %4866 = vmatprep.subr.bf16.mxu0 0
    %4867 = vmatpush1.bf16.msra.mxu0 0
    %4868 = vmatprep.subr.bf16.mxu0 0
    %4869 = vmatpush1.bf16.msra.mxu0 0
    %4870 = vmatprep.subr.bf16.mxu0 0
    %4871 = vmatpush1.bf16.msra.mxu0 0
    %4872 = vmatprep.subr.bf16.mxu0 0
    %4873 = vmatpush1.bf16.msra.mxu0 0
    %4874 = vmatprep.subr.bf16.mxu0 0
    %4875 = vmatpush1.bf16.msra.mxu0 0
    %4876 = vmatprep.subr.bf16.mxu0 0
    %4877 = vmatpush1.bf16.msra.mxu0 0
    %4878 = vmatprep.subr.bf16.mxu0 0
    %4879 = vmatpush1.bf16.msra.mxu0 0
    %4880 = vmatprep.subr.bf16.mxu0 0
    %4881 = vmatpush1.bf16.msra.mxu0 0
    %4882 = vmatprep.subr.bf16.mxu0 0
    %4883 = vmatpush1.bf16.msra.mxu0 0
    %4884 = vmatprep.subr.bf16.mxu0 0
    %4885 = vmatpush1.bf16.msra.mxu0 0
    %4886 = vmatprep.subr.bf16.mxu0 0
    %4887 = vmatpush1.bf16.msra.mxu0 0
    %4888 = vmatprep.subr.bf16.mxu0 0
    %4889 = vmatpush1.bf16.msra.mxu0 0
    %4890 = vmatprep.mubr.bf16.mxu0 0
    %4891 = vmatmul.mubr.bf16.gmra.mrb[0].mxu0 %v4853
    %v4892 = vpop.f32.mrb[0].mxu0
    %v4893 = vadd.f32 0.0, %v4892
    %v4894 = vpop.f32.mrb[0].mxu0
    %v4895 = vpop.f32.mrb[0].mxu0
    %v4896 = vpop.f32.mrb[0].mxu0
    %4897 = vdwg.mxu0
    %4898 = vrot.lane.b32.xlu0 %v3091, 32
    %v4899 = vpop.permute.xlu0 %4898
    %v4901 = vsel %vm666, %v4849, 0
    %v4904 = vsel %vm694, %v4899, 0
    %4906 = vmatprep.subr.bf16.mxu0 0
    %4907 = vmatpush1.bf16.msra.mxu0 %v4904
    %4908 = vmatprep.subr.bf16.mxu0 0
    %4909 = vmatpush1.bf16.msra.mxu0 0
    %4910 = vmatprep.subr.bf16.mxu0 0
    %4911 = vmatpush1.bf16.msra.mxu0 0
    %4912 = vmatprep.subr.bf16.mxu0 0
    %4913 = vmatpush1.bf16.msra.mxu0 0
    %4914 = vmatprep.subr.bf16.mxu0 0
    %4915 = vmatpush1.bf16.msra.mxu0 0
    %4916 = vmatprep.subr.bf16.mxu0 0
    %4917 = vmatpush1.bf16.msra.mxu0 0
    %4918 = vmatprep.subr.bf16.mxu0 0
    %4919 = vmatpush1.bf16.msra.mxu0 0
    %4920 = vmatprep.subr.bf16.mxu0 0
    %4921 = vmatpush1.bf16.msra.mxu0 0
    %4922 = vmatprep.subr.bf16.mxu0 0
    %4923 = vmatpush1.bf16.msra.mxu0 0
    %4924 = vmatprep.subr.bf16.mxu0 0
    %4925 = vmatpush1.bf16.msra.mxu0 0
    %4926 = vmatprep.subr.bf16.mxu0 0
    %4927 = vmatpush1.bf16.msra.mxu0 0
    %4928 = vmatprep.subr.bf16.mxu0 0
    %4929 = vmatpush1.bf16.msra.mxu0 0
    %4930 = vmatprep.subr.bf16.mxu0 0
    %4931 = vmatpush1.bf16.msra.mxu0 0
    %4932 = vmatprep.subr.bf16.mxu0 0
    %4933 = vmatpush1.bf16.msra.mxu0 0
    %4934 = vmatprep.subr.bf16.mxu0 0
    %4935 = vmatpush1.bf16.msra.mxu0 0
    %4936 = vmatprep.subr.bf16.mxu0 0
    %4937 = vmatpush1.bf16.msra.mxu0 0
    %4938 = vmatprep.mubr.bf16.mxu0 0
    %4939 = vmatmul.mubr.bf16.gmra.mrb[0].mxu0 %v4901
    %v4940 = vpop.f32.mrb[0].mxu0
    %v4941 = vadd.f32 0.0, %v4940
    %v4942 = vpop.f32.mrb[0].mxu0
    %v4943 = vpop.f32.mrb[0].mxu0
    %v4944 = vpop.f32.mrb[0].mxu0
    %4945 = vdwg.mxu0
    %v4946 = vpack.c.bf16 %v4941, %v4893
    %v4949 = vunpack.c.l.b16 %v265
    %v4950 = vunpack.c.l.b16 %v266
    %v4951 = vpack.c.b16 %v4950, %v4949
    %v4954 = vsel %vm573, %v4946, 0
    %4956 = vmatprep.subr.bf16.mxu0 0
    %4957 = vmatpush1.bf16.msra.mxu0 %v4951
    %4958 = vmatprep.subr.bf16.mxu0 0
    %4959 = vmatpush1.bf16.msra.mxu0 0
    %4960 = vmatprep.subr.bf16.mxu0 0
    %4961 = vmatpush1.bf16.msra.mxu0 0
    %4962 = vmatprep.subr.bf16.mxu0 0
    %4963 = vmatpush1.bf16.msra.mxu0 0
    %4964 = vmatprep.subr.bf16.mxu0 0
    %4965 = vmatpush1.bf16.msra.mxu0 0
    %4966 = vmatprep.subr.bf16.mxu0 0
    %4967 = vmatpush1.bf16.msra.mxu0 0
    %4968 = vmatprep.subr.bf16.mxu0 0
    %4969 = vmatpush1.bf16.msra.mxu0 0
    %4970 = vmatprep.subr.bf16.mxu0 0
    %4971 = vmatpush1.bf16.msra.mxu0 0
    %4972 = vmatprep.subr.bf16.mxu0 0
    %4973 = vmatpush1.bf16.msra.mxu0 0
    %4974 = vmatprep.subr.bf16.mxu0 0
    %4975 = vmatpush1.bf16.msra.mxu0 0
    %4976 = vmatprep.subr.bf16.mxu0 0
    %4977 = vmatpush1.bf16.msra.mxu0 0
    %4978 = vmatprep.subr.bf16.mxu0 0
    %4979 = vmatpush1.bf16.msra.mxu0 0
    %4980 = vmatprep.subr.bf16.mxu0 0
    %4981 = vmatpush1.bf16.msra.mxu0 0
    %4982 = vmatprep.subr.bf16.mxu0 0
    %4983 = vmatpush1.bf16.msra.mxu0 0
    %4984 = vmatprep.subr.bf16.mxu0 0
    %4985 = vmatpush1.bf16.msra.mxu0 0
    %4986 = vmatprep.subr.bf16.mxu0 0
    %4987 = vmatpush1.bf16.msra.mxu0 0
    %4988 = vmatprep.mubr.bf16.mxu0 0
    %4989 = vmatmul.mubr.bf16.gmra.mrb[0].mxu0 %v4954
    %v4990 = vpop.f32.mrb[0].mxu0
    %v4991 = vadd.f32 0.0, %v4990
    %v4992 = vpop.f32.mrb[0].mxu0
    %v4993 = vpop.f32.mrb[0].mxu0
    %v4994 = vadd.f32 0.0, %v4993
    %v4995 = vpop.f32.mrb[0].mxu0
    %4996 = vdwg.mxu0
    %v4997 = vadd.f32 %v4724, %v4991
    %v4998 = vadd.f32 %v4725, %v4994
    %4999 = vrot.lane.b32.xlu0 %v3080, 16
    %v5000 = vpop.permute.xlu0 %4999
    %5001 = vrot.lane.b32.xlu0 %v3085, 16
    %v5002 = vpop.permute.xlu0 %5001
    %v5004 = vsel %vm573, %v5000, 0
    %v5007 = vsel %vm573, %v5002, 0
    %5009 = vmatprep.subr.bf16.mxu0 0
    %5010 = vmatpush1.bf16.xpose.msra.mxu0 %v5007
    %5011 = vmatprep.subr.bf16.mxu0 0
    %5012 = vmatpush1.bf16.xpose.msra.mxu0 0
    %5013 = vmatprep.subr.bf16.mxu0 0
    %5014 = vmatpush1.bf16.xpose.msra.mxu0 0
    %5015 = vmatprep.subr.bf16.mxu0 0
    %5016 = vmatpush1.bf16.xpose.msra.mxu0 0
    %5017 = vmatprep.subr.bf16.mxu0 0
    %5018 = vmatpush1.bf16.xpose.msra.mxu0 0
    %5019 = vmatprep.subr.bf16.mxu0 0
    %5020 = vmatpush1.bf16.xpose.msra.mxu0 0
    %5021 = vmatprep.subr.bf16.mxu0 0
    %5022 = vmatpush1.bf16.xpose.msra.mxu0 0
    %5023 = vmatprep.subr.bf16.mxu0 0
    %5024 = vmatpush1.bf16.xpose.msra.mxu0 0
    %5025 = vmatprep.subr.bf16.mxu0 0
    %5026 = vmatpush1.bf16.xpose.msra.mxu0 0
    %5027 = vmatprep.subr.bf16.mxu0 0
    %5028 = vmatpush1.bf16.xpose.msra.mxu0 0
    %5029 = vmatprep.subr.bf16.mxu0 0
    %5030 = vmatpush1.bf16.xpose.msra.mxu0 0
    %5031 = vmatprep.subr.bf16.mxu0 0
    %5032 = vmatpush1.bf16.xpose.msra.mxu0 0
    %5033 = vmatprep.subr.bf16.mxu0 0
    %5034 = vmatpush1.bf16.xpose.msra.mxu0 0
    %5035 = vmatprep.subr.bf16.mxu0 0
    %5036 = vmatpush1.bf16.xpose.msra.mxu0 0
    %5037 = vmatprep.subr.bf16.mxu0 0
    %5038 = vmatpush1.bf16.xpose.msra.mxu0 0
    %5039 = vmatprep.subr.bf16.mxu0 0
    %5040 = vmatpush1.bf16.xpose.msra.mxu0 0
    %5041 = vmatprep.mubr.bf16.mxu0 0
    %5042 = vmatmul.mubr.bf16.gmra.mrb[0].mxu0 %v5004
    %v5043 = vpop.f32.mrb[0].mxu0
    %v5044 = vadd.f32 %v3097, %v5043
    %v5045 = vpop.f32.mrb[0].mxu0
    %v5046 = vpop.f32.mrb[0].mxu0
    %v5047 = vpop.f32.mrb[0].mxu0
    %5048 = vdwg.mxu0
    %5049 = vrot.lane.b32.xlu0 %v3081, 16
    %v5050 = vpop.permute.xlu0 %5049
    %5051 = vrot.lane.b32.xlu0 %v3086, 16
    %v5052 = vpop.permute.xlu0 %5051
    %v5054 = vsel %vm573, %v5050, 0
    %v5057 = vsel %vm573, %v5052, 0
    %5059 = vmatprep.subr.bf16.mxu0 0
    %5060 = vmatpush1.bf16.xpose.msra.mxu0 %v5057
    %5061 = vmatprep.subr.bf16.mxu0 0
    %5062 = vmatpush1.bf16.xpose.msra.mxu0 0
    %5063 = vmatprep.subr.bf16.mxu0 0
    %5064 = vmatpush1.bf16.xpose.msra.mxu0 0
    %5065 = vmatprep.subr.bf16.mxu0 0
    %5066 = vmatpush1.bf16.xpose.msra.mxu0 0
    %5067 = vmatprep.subr.bf16.mxu0 0
    %5068 = vmatpush1.bf16.xpose.msra.mxu0 0
    %5069 = vmatprep.subr.bf16.mxu0 0
    %5070 = vmatpush1.bf16.xpose.msra.mxu0 0
    %5071 = vmatprep.subr.bf16.mxu0 0
    %5072 = vmatpush1.bf16.xpose.msra.mxu0 0
    %5073 = vmatprep.subr.bf16.mxu0 0
    %5074 = vmatpush1.bf16.xpose.msra.mxu0 0
    %5075 = vmatprep.subr.bf16.mxu0 0
    %5076 = vmatpush1.bf16.xpose.msra.mxu0 0
    %5077 = vmatprep.subr.bf16.mxu0 0
    %5078 = vmatpush1.bf16.xpose.msra.mxu0 0
    %5079 = vmatprep.subr.bf16.mxu0 0
    %5080 = vmatpush1.bf16.xpose.msra.mxu0 0
    %5081 = vmatprep.subr.bf16.mxu0 0
    %5082 = vmatpush1.bf16.xpose.msra.mxu0 0
    %5083 = vmatprep.subr.bf16.mxu0 0
    %5084 = vmatpush1.bf16.xpose.msra.mxu0 0
    %5085 = vmatprep.subr.bf16.mxu0 0
    %5086 = vmatpush1.bf16.xpose.msra.mxu0 0
    %5087 = vmatprep.subr.bf16.mxu0 0
    %5088 = vmatpush1.bf16.xpose.msra.mxu0 0
    %5089 = vmatprep.subr.bf16.mxu0 0
    %5090 = vmatpush1.bf16.xpose.msra.mxu0 0
    %5091 = vmatprep.mubr.bf16.mxu0 0
    %5092 = vmatmul.mubr.bf16.gmra.mrb[0].mxu0 %v5054
    %v5093 = vpop.f32.mrb[0].mxu0
    %v5094 = vadd.f32 %v3101, %v5093
    %v5095 = vpop.f32.mrb[0].mxu0
    %v5096 = vpop.f32.mrb[0].mxu0
    %v5097 = vpop.f32.mrb[0].mxu0
    %5098 = vdwg.mxu0
    %v5099 = vsel %vm666, %v5044, -inf
    %5100 = vmax.xlane.f32.xlu0 %v5099
    %v5101 = vpop.xlane.xlu0 %5100
    %v5102 = vsel %vm666, %v5094, -inf
    %5103 = vmax.xlane.f32.xlu0 %v5102
    %v5104 = vpop.xlane.xlu0 %5103
    %v5105 = vsub.f32 %v5044, %v5101
    %v5106 = vsub.f32 %v5094, %v5104
    %v5107 = vmul.f32 %v5105, 1.442695
    %v5108 = vpow.pop %v5107
    %v5109 = vmul.f32 %v5106, 1.442695
    %v5110 = vpow.pop %v5109
    %v5111 = vsel %vm666, %v5108, 0.0
    %5112 = vadd.xlane.f32.xlu0 %v5111
    %v5113 = vpop.xlane.xlu0 %5112
    %v5114 = vsel %vm666, %v5110, 0.0
    %5115 = vadd.xlane.f32.xlu0 %v5114
    %v5116 = vpop.xlane.xlu0 %5115
    %v5117 = vrcp.pop %v5113
    %v5118 = vrcp.pop %v5116
    %v5119 = vmul.f32 %v5108, %v5117
    %v5120 = vmul.f32 %v5110, %v5118
    %v5121 = vpack.c.bf16 %v5119, %v5119
    %v5122 = vpack.c.bf16 %v5120, %v5120
    %5123 = vrot.lane.b32.xlu0 %v3090, 16
    %v5124 = vpop.permute.xlu0 %5123
    %v5126 = vsel %vm666, %v5121, 0
    %v5129 = vsel %vm694, %v5124, 0
    %5131 = vmatprep.subr.bf16.mxu0 0
    %5132 = vmatpush1.bf16.msra.mxu0 %v5129
    %5133 = vmatprep.subr.bf16.mxu0 0
    %5134 = vmatpush1.bf16.msra.mxu0 0
    %5135 = vmatprep.subr.bf16.mxu0 0
    %5136 = vmatpush1.bf16.msra.mxu0 0
    %5137 = vmatprep.subr.bf16.mxu0 0
    %5138 = vmatpush1.bf16.msra.mxu0 0
    %5139 = vmatprep.subr.bf16.mxu0 0
    %5140 = vmatpush1.bf16.msra.mxu0 0
    %5141 = vmatprep.subr.bf16.mxu0 0
    %5142 = vmatpush1.bf16.msra.mxu0 0
    %5143 = vmatprep.subr.bf16.mxu0 0
    %5144 = vmatpush1.bf16.msra.mxu0 0
    %5145 = vmatprep.subr.bf16.mxu0 0
    %5146 = vmatpush1.bf16.msra.mxu0 0
    %5147 = vmatprep.subr.bf16.mxu0 0
    %5148 = vmatpush1.bf16.msra.mxu0 0
    %5149 = vmatprep.subr.bf16.mxu0 0
    %5150 = vmatpush1.bf16.msra.mxu0 0
    %5151 = vmatprep.subr.bf16.mxu0 0
    %5152 = vmatpush1.bf16.msra.mxu0 0
    %5153 = vmatprep.subr.bf16.mxu0 0
    %5154 = vmatpush1.bf16.msra.mxu0 0
    %5155 = vmatprep.subr.bf16.mxu0 0
    %5156 = vmatpush1.bf16.msra.mxu0 0
    %5157 = vmatprep.subr.bf16.mxu0 0
    %5158 = vmatpush1.bf16.msra.mxu0 0
    %5159 = vmatprep.subr.bf16.mxu0 0
    %5160 = vmatpush1.bf16.msra.mxu0 0
    %5161 = vmatprep.subr.bf16.mxu0 0
    %5162 = vmatpush1.bf16.msra.mxu0 0
    %5163 = vmatprep.mubr.bf16.mxu0 0
    %5164 = vmatmul.mubr.bf16.gmra.mrb[0].mxu0 %v5126
    %v5165 = vpop.f32.mrb[0].mxu0
    %v5166 = vadd.f32 0.0, %v5165
    %v5167 = vpop.f32.mrb[0].mxu0
    %v5168 = vpop.f32.mrb[0].mxu0
    %v5169 = vpop.f32.mrb[0].mxu0
    %5170 = vdwg.mxu0
    %5171 = vrot.lane.b32.xlu0 %v3091, 16
    %v5172 = vpop.permute.xlu0 %5171
    %v5174 = vsel %vm666, %v5122, 0
    %v5177 = vsel %vm694, %v5172, 0
    %5179 = vmatprep.subr.bf16.mxu0 0
    %5180 = vmatpush1.bf16.msra.mxu0 %v5177
    %5181 = vmatprep.subr.bf16.mxu0 0
    %5182 = vmatpush1.bf16.msra.mxu0 0
    %5183 = vmatprep.subr.bf16.mxu0 0
    %5184 = vmatpush1.bf16.msra.mxu0 0
    %5185 = vmatprep.subr.bf16.mxu0 0
    %5186 = vmatpush1.bf16.msra.mxu0 0
    %5187 = vmatprep.subr.bf16.mxu0 0
    %5188 = vmatpush1.bf16.msra.mxu0 0
    %5189 = vmatprep.subr.bf16.mxu0 0
    %5190 = vmatpush1.bf16.msra.mxu0 0
    %5191 = vmatprep.subr.bf16.mxu0 0
    %5192 = vmatpush1.bf16.msra.mxu0 0
    %5193 = vmatprep.subr.bf16.mxu0 0
    %5194 = vmatpush1.bf16.msra.mxu0 0
    %5195 = vmatprep.subr.bf16.mxu0 0
    %5196 = vmatpush1.bf16.msra.mxu0 0
    %5197 = vmatprep.subr.bf16.mxu0 0
    %5198 = vmatpush1.bf16.msra.mxu0 0
    %5199 = vmatprep.subr.bf16.mxu0 0
    %5200 = vmatpush1.bf16.msra.mxu0 0
    %5201 = vmatprep.subr.bf16.mxu0 0
    %5202 = vmatpush1.bf16.msra.mxu0 0
    %5203 = vmatprep.subr.bf16.mxu0 0
    %5204 = vmatpush1.bf16.msra.mxu0 0
    %5205 = vmatprep.subr.bf16.mxu0 0
    %5206 = vmatpush1.bf16.msra.mxu0 0
    %5207 = vmatprep.subr.bf16.mxu0 0
    %5208 = vmatpush1.bf16.msra.mxu0 0
    %5209 = vmatprep.subr.bf16.mxu0 0
    %5210 = vmatpush1.bf16.msra.mxu0 0
    %5211 = vmatprep.mubr.bf16.mxu0 0
    %5212 = vmatmul.mubr.bf16.gmra.mrb[0].mxu0 %v5174
    %v5213 = vpop.f32.mrb[0].mxu0
    %v5214 = vadd.f32 0.0, %v5213
    %v5215 = vpop.f32.mrb[0].mxu0
    %v5216 = vpop.f32.mrb[0].mxu0
    %v5217 = vpop.f32.mrb[0].mxu0
    %5218 = vdwg.mxu0
    %v5219 = vpack.c.bf16 %v5214, %v5166
    %v5222 = vunpack.c.l.b16 %v267
    %v5223 = vunpack.c.l.b16 %v268
    %v5224 = vpack.c.b16 %v5223, %v5222
    %v5227 = vsel %vm573, %v5219, 0
    %5229 = vmatprep.subr.bf16.mxu0 0
    %5230 = vmatpush1.bf16.msra.mxu0 %v5224
    %5231 = vmatprep.subr.bf16.mxu0 0
    %5232 = vmatpush1.bf16.msra.mxu0 0
    %5233 = vmatprep.subr.bf16.mxu0 0
    %5234 = vmatpush1.bf16.msra.mxu0 0
    %5235 = vmatprep.subr.bf16.mxu0 0
    %5236 = vmatpush1.bf16.msra.mxu0 0
    %5237 = vmatprep.subr.bf16.mxu0 0
    %5238 = vmatpush1.bf16.msra.mxu0 0
    %5239 = vmatprep.subr.bf16.mxu0 0
    %5240 = vmatpush1.bf16.msra.mxu0 0
    %5241 = vmatprep.subr.bf16.mxu0 0
    %5242 = vmatpush1.bf16.msra.mxu0 0
    %5243 = vmatprep.subr.bf16.mxu0 0
    %5244 = vmatpush1.bf16.msra.mxu0 0
    %5245 = vmatprep.subr.bf16.mxu0 0
    %5246 = vmatpush1.bf16.msra.mxu0 0
    %5247 = vmatprep.subr.bf16.mxu0 0
    %5248 = vmatpush1.bf16.msra.mxu0 0
    %5249 = vmatprep.subr.bf16.mxu0 0
    %5250 = vmatpush1.bf16.msra.mxu0 0
    %5251 = vmatprep.subr.bf16.mxu0 0
    %5252 = vmatpush1.bf16.msra.mxu0 0
    %5253 = vmatprep.subr.bf16.mxu0 0
    %5254 = vmatpush1.bf16.msra.mxu0 0
    %5255 = vmatprep.subr.bf16.mxu0 0
    %5256 = vmatpush1.bf16.msra.mxu0 0
    %5257 = vmatprep.subr.bf16.mxu0 0
    %5258 = vmatpush1.bf16.msra.mxu0 0
    %5259 = vmatprep.subr.bf16.mxu0 0
    %5260 = vmatpush1.bf16.msra.mxu0 0
    %5261 = vmatprep.mubr.bf16.mxu0 0
    %5262 = vmatmul.mubr.bf16.gmra.mrb[0].mxu0 %v5227
    %v5263 = vpop.f32.mrb[0].mxu0
    %v5264 = vadd.f32 0.0, %v5263
    %v5265 = vpop.f32.mrb[0].mxu0
    %v5266 = vpop.f32.mrb[0].mxu0
    %v5267 = vadd.f32 0.0, %v5266
    %v5268 = vpop.f32.mrb[0].mxu0
    %5269 = vdwg.mxu0
    %v5270 = vadd.f32 %v4997, %v5264
    %v5271 = vadd.f32 %v4998, %v5267
    %v5272 = vlaneseq
    %v5273 = vshrl.u32 %v5272, 7
    %v5274 = vsub.s32 3, %v5273
    %v5275 = vrot.slane %v270, %v5274
    %v5276 = vadd.f32 %v5270, %v5275
    %v5277 = vadd.f32 %v5271, %v5275
    %v5278 = vadd.f32 %v2789, %v5276
    %v5279 = vadd.f32 %v2790, %v5277
    %5280 = vadd.xlane.f32.xlu0 %v5278
    %v5281 = vpop.xlane.xlu0 %5280
    %5282 = vadd.xlane.f32.xlu0 %v5279
    %v5283 = vpop.xlane.xlu0 %5282
    %v5284 = vmul.f32 %v5281, %v2756
    %v5285 = vmul.f32 %v5283, %v2756
    %v5286 = vsub.f32 %v5278, %v5284
    %v5287 = vsub.f32 %v5279, %v5285
    %v5288 = vmul.f32 %v5286, %v5286
    %v5289 = vmul.f32 %v5287, %v5287
    %5290 = vadd.xlane.f32.xlu0 %v5288
    %v5291 = vpop.xlane.xlu0 %5290
    %5292 = vadd.xlane.f32.xlu0 %v5289
    %v5293 = vpop.xlane.xlu0 %5292
    %v5294 = vmul.f32 %v5291, %v2756
    %v5295 = vmul.f32 %v5293, %v2756
    %v5296 = vadd.f32 %v5294, 1e-05
    %v5297 = vadd.f32 %v5295, 1e-05
    %v5298 = vrsqrt.pop %v5296
    %v5299 = vrsqrt.pop %v5297
    %v5300 = vmul.f32 %v5286, %v5298
    %v5301 = vmul.f32 %v5287, %v5299
    %v5302 = vmul.f32 %v5300, %v2779
    %v5303 = vmul.f32 %v5301, %v2779
    %v5304 = vadd.f32 %v5302, %v2787
    %v5305 = vadd.f32 %v5303, %v2787
    %v5306 = vpack.c.bf16 %v5305, %v5304
    %v5307 = vld [vmem:[#allocation10] sm:$0xff]
    %v5308 = vld [vmem:[#allocation10 + $0x8] sm:$0xff]
    %v5309 = vld [vmem:[#allocation10 + $0x10] sm:$0xff]
    %v5310 = vld [vmem:[#allocation10 + $0x18] sm:$0xff]
    %v5311 = vld [vmem:[#allocation10 + $0x20] sm:$0xff]
    %v5312 = vld [vmem:[#allocation10 + $0x28] sm:$0xff]
    %v5313 = vld [vmem:[#allocation10 + $0x30] sm:$0xff]
    %v5314 = vld [vmem:[#allocation10 + $0x38] sm:$0xff]
    %v5315 = vld [vmem:[#allocation10 + $0x40] sm:$0xff]
    %v5316 = vld [vmem:[#allocation10 + $0x48] sm:$0xff]
    %v5317 = vld [vmem:[#allocation10 + $0x50] sm:$0xff]
    %v5318 = vld [vmem:[#allocation10 + $0x58] sm:$0xff]
    %v5319 = vld [vmem:[#allocation10 + $0x60] sm:$0xff]
    %v5320 = vld [vmem:[#allocation10 + $0x68] sm:$0xff]
    %v5321 = vld [vmem:[#allocation10 + $0x70] sm:$0xff]
    %v5322 = vld [vmem:[#allocation10 + $0x78] sm:$0xff]
    %v5323 = vld [vmem:[#allocation10 + $0x80] sm:$0xff]
    %v5324 = vld [vmem:[#allocation10 + $0x88] sm:$0xff]
    %v5325 = vld [vmem:[#allocation10 + $0x90] sm:$0xff]
    %v5326 = vld [vmem:[#allocation10 + $0x98] sm:$0xff]
    %v5327 = vld [vmem:[#allocation10 + $0xa0] sm:$0xff]
    %v5328 = vld [vmem:[#allocation10 + $0xa8] sm:$0xff]
    %v5329 = vld [vmem:[#allocation10 + $0xb0] sm:$0xff]
    %v5330 = vld [vmem:[#allocation10 + $0xb8] sm:$0xff]
    %v5331 = vld [vmem:[#allocation10 + $0xc0] sm:$0xff]
    %v5332 = vld [vmem:[#allocation10 + $0xc8] sm:$0xff]
    %v5333 = vld [vmem:[#allocation10 + $0xd0] sm:$0xff]
    %v5334 = vld [vmem:[#allocation10 + $0xd8] sm:$0xff]
    %v5335 = vld [vmem:[#allocation10 + $0xe0] sm:$0xff]
    %v5336 = vld [vmem:[#allocation10 + $0xe8] sm:$0xff]
    %v5337 = vld [vmem:[#allocation10 + $0xf0] sm:$0xff]
    %v5338 = vld [vmem:[#allocation10 + $0xf8] sm:$0xff]
    %v5339 = vld [vmem:[#allocation10 + $0x100] sm:$0xff]
    %v5340 = vld [vmem:[#allocation10 + $0x108] sm:$0xff]
    %v5341 = vld [vmem:[#allocation10 + $0x110] sm:$0xff]
    %v5342 = vld [vmem:[#allocation10 + $0x118] sm:$0xff]
    %v5343 = vld [vmem:[#allocation10 + $0x120] sm:$0xff]
    %v5344 = vld [vmem:[#allocation10 + $0x128] sm:$0xff]
    %v5345 = vld [vmem:[#allocation10 + $0x130] sm:$0xff]
    %v5346 = vld [vmem:[#allocation10 + $0x138] sm:$0xff]
    %v5347 = vld [vmem:[#allocation10 + $0x140] sm:$0xff]
    %v5348 = vld [vmem:[#allocation10 + $0x148] sm:$0xff]
    %v5349 = vld [vmem:[#allocation10 + $0x150] sm:$0xff]
    %v5350 = vld [vmem:[#allocation10 + $0x158] sm:$0xff]
    %v5351 = vld [vmem:[#allocation10 + $0x160] sm:$0xff]
    %v5352 = vld [vmem:[#allocation10 + $0x168] sm:$0xff]
    %v5353 = vld [vmem:[#allocation10 + $0x170] sm:$0xff]
    %v5354 = vld [vmem:[#allocation10 + $0x178] sm:$0xff]
    %v5355 = vld [vmem:[#allocation10 + $0x180] sm:$0xff]
    %v5356 = vld [vmem:[#allocation10 + $0x188] sm:$0xff]
    %v5357 = vld [vmem:[#allocation10 + $0x190] sm:$0xff]
    %v5358 = vld [vmem:[#allocation10 + $0x198] sm:$0xff]
    %v5359 = vld [vmem:[#allocation10 + $0x1a0] sm:$0xff]
    %v5360 = vld [vmem:[#allocation10 + $0x1a8] sm:$0xff]
    %v5361 = vld [vmem:[#allocation10 + $0x1b0] sm:$0xff]
    %v5362 = vld [vmem:[#allocation10 + $0x1b8] sm:$0xff]
    %v5363 = vld [vmem:[#allocation10 + $0x1c0] sm:$0xff]
    %v5364 = vld [vmem:[#allocation10 + $0x1c8] sm:$0xff]
    %v5365 = vld [vmem:[#allocation10 + $0x1d0] sm:$0xff]
    %v5366 = vld [vmem:[#allocation10 + $0x1d8] sm:$0xff]
    %v5367 = vld [vmem:[#allocation10 + $0x1e0] sm:$0xff]
    %v5368 = vld [vmem:[#allocation10 + $0x1e8] sm:$0xff]
    %v5369 = vld [vmem:[#allocation10 + $0x1f0] sm:$0xff]
    %v5370 = vld [vmem:[#allocation10 + $0x1f8] sm:$0xff]
    %v5371 = vld [vmem:[#allocation10 + $0x200] sm:$0xff]
    %v5372 = vld [vmem:[#allocation10 + $0x208] sm:$0xff]
    %v5373 = vld [vmem:[#allocation10 + $0x210] sm:$0xff]
    %v5374 = vld [vmem:[#allocation10 + $0x218] sm:$0xff]
    %v5375 = vld [vmem:[#allocation10 + $0x220] sm:$0xff]
    %v5376 = vld [vmem:[#allocation10 + $0x228] sm:$0xff]
    %v5377 = vld [vmem:[#allocation10 + $0x230] sm:$0xff]
    %v5378 = vld [vmem:[#allocation10 + $0x238] sm:$0xff]
    %v5379 = vld [vmem:[#allocation10 + $0x240] sm:$0xff]
    %v5380 = vld [vmem:[#allocation10 + $0x248] sm:$0xff]
    %v5381 = vld [vmem:[#allocation10 + $0x250] sm:$0xff]
    %v5382 = vld [vmem:[#allocation10 + $0x258] sm:$0xff]
    %v5383 = vld [vmem:[#allocation10 + $0x260] sm:$0xff]
    %v5384 = vld [vmem:[#allocation10 + $0x268] sm:$0xff]
    %v5385 = vld [vmem:[#allocation10 + $0x270] sm:$0xff]
    %v5386 = vld [vmem:[#allocation10 + $0x278] sm:$0xff]
    %v5387 = vld [vmem:[#allocation10 + $0x280] sm:$0xff]
    %v5388 = vld [vmem:[#allocation10 + $0x288] sm:$0xff]
    %v5389 = vld [vmem:[#allocation10 + $0x290] sm:$0xff]
    %v5390 = vld [vmem:[#allocation10 + $0x298] sm:$0xff]
    %v5391 = vld [vmem:[#allocation10 + $0x2a0] sm:$0xff]
    %v5392 = vld [vmem:[#allocation10 + $0x2a8] sm:$0xff]
    %v5393 = vld [vmem:[#allocation10 + $0x2b0] sm:$0xff]
    %v5394 = vld [vmem:[#allocation10 + $0x2b8] sm:$0xff]
    %v5395 = vld [vmem:[#allocation10 + $0x2c0] sm:$0xff]
    %v5396 = vld [vmem:[#allocation10 + $0x2c8] sm:$0xff]
    %v5397 = vld [vmem:[#allocation10 + $0x2d0] sm:$0xff]
    %v5398 = vld [vmem:[#allocation10 + $0x2d8] sm:$0xff]
    %v5399 = vld [vmem:[#allocation10 + $0x2e0] sm:$0xff]
    %v5400 = vld [vmem:[#allocation10 + $0x2e8] sm:$0xff]
    %v5401 = vld [vmem:[#allocation10 + $0x2f0] sm:$0xff]
    %v5402 = vld [vmem:[#allocation10 + $0x2f8] sm:$0xff]
    %v5403 = vld [vmem:[#allocation10 + $0x300] sm:$0xff]
    %v5404 = vld [vmem:[#allocation10 + $0x308] sm:$0xff]
    %v5405 = vld [vmem:[#allocation10 + $0x310] sm:$0xff]
    %v5406 = vld [vmem:[#allocation10 + $0x318] sm:$0xff]
    %v5407 = vld [vmem:[#allocation10 + $0x320] sm:$0xff]
    %v5408 = vld [vmem:[#allocation10 + $0x328] sm:$0xff]
    %v5409 = vld [vmem:[#allocation10 + $0x330] sm:$0xff]
    %v5410 = vld [vmem:[#allocation10 + $0x338] sm:$0xff]
    %v5411 = vld [vmem:[#allocation10 + $0x340] sm:$0xff]
    %v5412 = vld [vmem:[#allocation10 + $0x348] sm:$0xff]
    %v5413 = vld [vmem:[#allocation10 + $0x350] sm:$0xff]
    %v5414 = vld [vmem:[#allocation10 + $0x358] sm:$0xff]
    %v5415 = vld [vmem:[#allocation10 + $0x360] sm:$0xff]
    %v5416 = vld [vmem:[#allocation10 + $0x368] sm:$0xff]
    %v5417 = vld [vmem:[#allocation10 + $0x370] sm:$0xff]
    %v5418 = vld [vmem:[#allocation10 + $0x378] sm:$0xff]
    %v5419 = vld [vmem:[#allocation10 + $0x380] sm:$0xff]
    %v5420 = vld [vmem:[#allocation10 + $0x388] sm:$0xff]
    %v5421 = vld [vmem:[#allocation10 + $0x390] sm:$0xff]
    %v5422 = vld [vmem:[#allocation10 + $0x398] sm:$0xff]
    %v5423 = vld [vmem:[#allocation10 + $0x3a0] sm:$0xff]
    %v5424 = vld [vmem:[#allocation10 + $0x3a8] sm:$0xff]
    %v5425 = vld [vmem:[#allocation10 + $0x3b0] sm:$0xff]
    %v5426 = vld [vmem:[#allocation10 + $0x3b8] sm:$0xff]
    %v5427 = vld [vmem:[#allocation10 + $0x3c0] sm:$0xff]
    %v5428 = vld [vmem:[#allocation10 + $0x3c8] sm:$0xff]
    %v5429 = vld [vmem:[#allocation10 + $0x3d0] sm:$0xff]
    %v5430 = vld [vmem:[#allocation10 + $0x3d8] sm:$0xff]
    %v5431 = vld [vmem:[#allocation10 + $0x3e0] sm:$0xff]
    %v5432 = vld [vmem:[#allocation10 + $0x3e8] sm:$0xff]
    %v5433 = vld [vmem:[#allocation10 + $0x3f0] sm:$0xff]
    %v5434 = vld [vmem:[#allocation10 + $0x3f8] sm:$0xff]
    %v5435 = vld [vmem:[%s9] sm:$0xff]
    %v5436 = vld [vmem:[%s9 + $0x8] sm:$0xff]
    %v5439 = vlaneseq
    %v5440 = vshrl.u32 %v5439, 7
    %v5441 = vsub.s32 0, %v5440
    %v5442 = vrot.slane %v5435, %v5441
    %v5443 = vlaneseq
    %v5444 = vshrl.u32 %v5443, 7
    %v5445 = vsub.s32 1, %v5444
    %v5446 = vrot.slane %v5435, %v5445
    %v5447 = vlaneseq
    %v5448 = vshrl.u32 %v5447, 7
    %v5449 = vsub.s32 2, %v5448
    %v5450 = vrot.slane %v5435, %v5449
    %v5451 = vlaneseq
    %v5452 = vshrl.u32 %v5451, 7
    %v5453 = vsub.s32 3, %v5452
    %v5454 = vrot.slane %v5435, %v5453
    %v5455 = vlaneseq
    %v5456 = vshrl.u32 %v5455, 7
    %v5457 = vsub.s32 4, %v5456
    %v5458 = vrot.slane %v5435, %v5457
    %v5459 = vlaneseq
    %v5460 = vshrl.u32 %v5459, 7
    %v5461 = vsub.s32 5, %v5460
    %v5462 = vrot.slane %v5435, %v5461
    %v5463 = vlaneseq
    %v5464 = vshrl.u32 %v5463, 7
    %v5465 = vsub.s32 6, %v5464
    %v5466 = vrot.slane %v5435, %v5465
    %v5467 = vlaneseq
    %v5468 = vshrl.u32 %v5467, 7
    %v5469 = vsub.s32 7, %v5468
    %v5470 = vrot.slane %v5435, %v5469
    %v5471 = vlaneseq
    %v5472 = vshrl.u32 %v5471, 7
    %v5473 = vsub.s32 0, %v5472
    %v5474 = vrot.slane %v5436, %v5473
    %v5475 = vlaneseq
    %v5476 = vshrl.u32 %v5475, 7
    %v5477 = vsub.s32 1, %v5476
    %v5478 = vrot.slane %v5436, %v5477
    %v5479 = vlaneseq
    %v5480 = vshrl.u32 %v5479, 7
    %v5481 = vsub.s32 2, %v5480
    %v5482 = vrot.slane %v5436, %v5481
    %v5483 = vlaneseq
    %v5484 = vshrl.u32 %v5483, 7
    %v5485 = vsub.s32 3, %v5484
    %v5486 = vrot.slane %v5436, %v5485
    %v5487 = vlaneseq
    %v5488 = vshrl.u32 %v5487, 7
    %v5489 = vsub.s32 4, %v5488
    %v5490 = vrot.slane %v5436, %v5489
    %v5491 = vlaneseq
    %v5492 = vshrl.u32 %v5491, 7
    %v5493 = vsub.s32 5, %v5492
    %v5494 = vrot.slane %v5436, %v5493
    %v5495 = vlaneseq
    %v5496 = vshrl.u32 %v5495, 7
    %v5497 = vsub.s32 6, %v5496
    %v5498 = vrot.slane %v5436, %v5497
    %v5499 = vlaneseq
    %v5500 = vshrl.u32 %v5499, 7
    %v5501 = vsub.s32 7, %v5500
    %v5502 = vrot.slane %v5436, %v5501
    %v5647 = vunpack.c.l.b16 %v5307
    %v5648 = vunpack.c.h.b16 %v5307
    %v5649 = vunpack.c.l.b16 %v5308
    %v5650 = vunpack.c.h.b16 %v5308
    %v5651 = vunpack.c.l.b16 %v5309
    %v5652 = vunpack.c.h.b16 %v5309
    %v5653 = vunpack.c.l.b16 %v5310
    %v5654 = vunpack.c.h.b16 %v5310
    %v5655 = vunpack.c.l.b16 %v5311
    %v5656 = vunpack.c.h.b16 %v5311
    %v5657 = vunpack.c.l.b16 %v5312
    %v5658 = vunpack.c.h.b16 %v5312
    %v5659 = vunpack.c.l.b16 %v5313
    %v5660 = vunpack.c.h.b16 %v5313
    %v5661 = vunpack.c.l.b16 %v5314
    %v5662 = vunpack.c.h.b16 %v5314
    %v5663 = vunpack.c.l.b16 %v5315
    %v5664 = vunpack.c.h.b16 %v5315
    %v5665 = vunpack.c.l.b16 %v5316
    %v5666 = vunpack.c.h.b16 %v5316
    %v5667 = vunpack.c.l.b16 %v5317
    %v5668 = vunpack.c.h.b16 %v5317
    %v5669 = vunpack.c.l.b16 %v5318
    %v5670 = vunpack.c.h.b16 %v5318
    %v5671 = vunpack.c.l.b16 %v5319
    %v5672 = vunpack.c.h.b16 %v5319
    %v5673 = vunpack.c.l.b16 %v5320
    %v5674 = vunpack.c.h.b16 %v5320
    %v5675 = vunpack.c.l.b16 %v5321
    %v5676 = vunpack.c.h.b16 %v5321
    %v5677 = vunpack.c.l.b16 %v5322
    %v5678 = vunpack.c.h.b16 %v5322
    %v5679 = vunpack.c.l.b16 %v5323
    %v5680 = vunpack.c.h.b16 %v5323
    %v5681 = vunpack.c.l.b16 %v5324
    %v5682 = vunpack.c.h.b16 %v5324
    %v5683 = vunpack.c.l.b16 %v5325
    %v5684 = vunpack.c.h.b16 %v5325
    %v5685 = vunpack.c.l.b16 %v5326
    %v5686 = vunpack.c.h.b16 %v5326
    %v5687 = vunpack.c.l.b16 %v5327
    %v5688 = vunpack.c.h.b16 %v5327
    %v5689 = vunpack.c.l.b16 %v5328
    %v5690 = vunpack.c.h.b16 %v5328
    %v5691 = vunpack.c.l.b16 %v5329
    %v5692 = vunpack.c.h.b16 %v5329
    %v5693 = vunpack.c.l.b16 %v5330
    %v5694 = vunpack.c.h.b16 %v5330
    %v5695 = vunpack.c.l.b16 %v5331
    %v5696 = vunpack.c.h.b16 %v5331
    %v5697 = vunpack.c.l.b16 %v5332
    %v5698 = vunpack.c.h.b16 %v5332
    %v5699 = vunpack.c.l.b16 %v5333
    %v5700 = vunpack.c.h.b16 %v5333
    %v5701 = vunpack.c.l.b16 %v5334
    %v5702 = vunpack.c.h.b16 %v5334
    %v5703 = vunpack.c.l.b16 %v5335
    %v5704 = vunpack.c.h.b16 %v5335
    %v5705 = vunpack.c.l.b16 %v5336
    %v5706 = vunpack.c.h.b16 %v5336
    %v5707 = vunpack.c.l.b16 %v5337
    %v5708 = vunpack.c.h.b16 %v5337
    %v5709 = vunpack.c.l.b16 %v5338
    %v5710 = vunpack.c.h.b16 %v5338
    %v5711 = vunpack.c.l.b16 %v5339
    %v5712 = vunpack.c.h.b16 %v5339
    %v5713 = vunpack.c.l.b16 %v5340
    %v5714 = vunpack.c.h.b16 %v5340
    %v5715 = vunpack.c.l.b16 %v5341
    %v5716 = vunpack.c.h.b16 %v5341
    %v5717 = vunpack.c.l.b16 %v5342
    %v5718 = vunpack.c.h.b16 %v5342
    %v5719 = vunpack.c.l.b16 %v5343
    %v5720 = vunpack.c.h.b16 %v5343
    %v5721 = vunpack.c.l.b16 %v5344
    %v5722 = vunpack.c.h.b16 %v5344
    %v5723 = vunpack.c.l.b16 %v5345
    %v5724 = vunpack.c.h.b16 %v5345
    %v5725 = vunpack.c.l.b16 %v5346
    %v5726 = vunpack.c.h.b16 %v5346
    %v5727 = vunpack.c.l.b16 %v5347
    %v5728 = vunpack.c.h.b16 %v5347
    %v5729 = vunpack.c.l.b16 %v5348
    %v5730 = vunpack.c.h.b16 %v5348
    %v5731 = vunpack.c.l.b16 %v5349
    %v5732 = vunpack.c.h.b16 %v5349
    %v5733 = vunpack.c.l.b16 %v5350
    %v5734 = vunpack.c.h.b16 %v5350
    %v5735 = vunpack.c.l.b16 %v5351
    %v5736 = vunpack.c.h.b16 %v5351
    %v5737 = vunpack.c.l.b16 %v5352
    %v5738 = vunpack.c.h.b16 %v5352
    %v5739 = vunpack.c.l.b16 %v5353
    %v5740 = vunpack.c.h.b16 %v5353
    %v5741 = vunpack.c.l.b16 %v5354
    %v5742 = vunpack.c.h.b16 %v5354
    %v5743 = vunpack.c.l.b16 %v5355
    %v5744 = vunpack.c.h.b16 %v5355
    %v5745 = vunpack.c.l.b16 %v5356
    %v5746 = vunpack.c.h.b16 %v5356
    %v5747 = vunpack.c.l.b16 %v5357
    %v5748 = vunpack.c.h.b16 %v5357
    %v5749 = vunpack.c.l.b16 %v5358
    %v5750 = vunpack.c.h.b16 %v5358
    %v5751 = vunpack.c.l.b16 %v5359
    %v5752 = vunpack.c.h.b16 %v5359
    %v5753 = vunpack.c.l.b16 %v5360
    %v5754 = vunpack.c.h.b16 %v5360
    %v5755 = vunpack.c.l.b16 %v5361
    %v5756 = vunpack.c.h.b16 %v5361
    %v5757 = vunpack.c.l.b16 %v5362
    %v5758 = vunpack.c.h.b16 %v5362
    %v5759 = vunpack.c.l.b16 %v5363
    %v5760 = vunpack.c.h.b16 %v5363
    %v5761 = vunpack.c.l.b16 %v5364
    %v5762 = vunpack.c.h.b16 %v5364
    %v5763 = vunpack.c.l.b16 %v5365
    %v5764 = vunpack.c.h.b16 %v5365
    %v5765 = vunpack.c.l.b16 %v5366
    %v5766 = vunpack.c.h.b16 %v5366
    %v5767 = vunpack.c.l.b16 %v5367
    %v5768 = vunpack.c.h.b16 %v5367
    %v5769 = vunpack.c.l.b16 %v5368
    %v5770 = vunpack.c.h.b16 %v5368
    %v5771 = vunpack.c.l.b16 %v5369
    %v5772 = vunpack.c.h.b16 %v5369
    %v5773 = vunpack.c.l.b16 %v5370
    %v5774 = vunpack.c.h.b16 %v5370
    %v5775 = vunpack.c.l.b16 %v5371
    %v5776 = vunpack.c.h.b16 %v5371
    %v5777 = vunpack.c.l.b16 %v5372
    %v5778 = vunpack.c.h.b16 %v5372
    %v5779 = vunpack.c.l.b16 %v5373
    %v5780 = vunpack.c.h.b16 %v5373
    %v5781 = vunpack.c.l.b16 %v5374
    %v5782 = vunpack.c.h.b16 %v5374
    %v5783 = vunpack.c.l.b16 %v5375
    %v5784 = vunpack.c.h.b16 %v5375
    %v5785 = vunpack.c.l.b16 %v5376
    %v5786 = vunpack.c.h.b16 %v5376
    %v5787 = vunpack.c.l.b16 %v5377
    %v5788 = vunpack.c.h.b16 %v5377
    %v5789 = vunpack.c.l.b16 %v5378
    %v5790 = vunpack.c.h.b16 %v5378
    %v5791 = vunpack.c.l.b16 %v5379
    %v5792 = vunpack.c.h.b16 %v5379
    %v5793 = vunpack.c.l.b16 %v5380
    %v5794 = vunpack.c.h.b16 %v5380
    %v5795 = vunpack.c.l.b16 %v5381
    %v5796 = vunpack.c.h.b16 %v5381
    %v5797 = vunpack.c.l.b16 %v5382
    %v5798 = vunpack.c.h.b16 %v5382
    %v5799 = vunpack.c.l.b16 %v5383
    %v5800 = vunpack.c.h.b16 %v5383
    %v5801 = vunpack.c.l.b16 %v5384
    %v5802 = vunpack.c.h.b16 %v5384
    %v5803 = vunpack.c.l.b16 %v5385
    %v5804 = vunpack.c.h.b16 %v5385
    %v5805 = vunpack.c.l.b16 %v5386
    %v5806 = vunpack.c.h.b16 %v5386
    %v5807 = vunpack.c.l.b16 %v5387
    %v5808 = vunpack.c.h.b16 %v5387
    %v5809 = vunpack.c.l.b16 %v5388
    %v5810 = vunpack.c.h.b16 %v5388
    %v5811 = vunpack.c.l.b16 %v5389
    %v5812 = vunpack.c.h.b16 %v5389
    %v5813 = vunpack.c.l.b16 %v5390
    %v5814 = vunpack.c.h.b16 %v5390
    %v5815 = vunpack.c.l.b16 %v5391
    %v5816 = vunpack.c.h.b16 %v5391
    %v5817 = vunpack.c.l.b16 %v5392
    %v5818 = vunpack.c.h.b16 %v5392
    %v5819 = vunpack.c.l.b16 %v5393
    %v5820 = vunpack.c.h.b16 %v5393
    %v5821 = vunpack.c.l.b16 %v5394
    %v5822 = vunpack.c.h.b16 %v5394
    %v5823 = vunpack.c.l.b16 %v5395
    %v5824 = vunpack.c.h.b16 %v5395
    %v5825 = vunpack.c.l.b16 %v5396
    %v5826 = vunpack.c.h.b16 %v5396
    %v5827 = vunpack.c.l.b16 %v5397
    %v5828 = vunpack.c.h.b16 %v5397
    %v5829 = vunpack.c.l.b16 %v5398
    %v5830 = vunpack.c.h.b16 %v5398
    %v5831 = vunpack.c.l.b16 %v5399
    %v5832 = vunpack.c.h.b16 %v5399
    %v5833 = vunpack.c.l.b16 %v5400
    %v5834 = vunpack.c.h.b16 %v5400
    %v5835 = vunpack.c.l.b16 %v5401
    %v5836 = vunpack.c.h.b16 %v5401
    %v5837 = vunpack.c.l.b16 %v5402
    %v5838 = vunpack.c.h.b16 %v5402
    %v5839 = vunpack.c.l.b16 %v5403
    %v5840 = vunpack.c.h.b16 %v5403
    %v5841 = vunpack.c.l.b16 %v5404
    %v5842 = vunpack.c.h.b16 %v5404
    %v5843 = vunpack.c.l.b16 %v5405
    %v5844 = vunpack.c.h.b16 %v5405
    %v5845 = vunpack.c.l.b16 %v5406
    %v5846 = vunpack.c.h.b16 %v5406
    %v5847 = vunpack.c.l.b16 %v5407
    %v5848 = vunpack.c.h.b16 %v5407
    %v5849 = vunpack.c.l.b16 %v5408
    %v5850 = vunpack.c.h.b16 %v5408
    %v5851 = vunpack.c.l.b16 %v5409
    %v5852 = vunpack.c.h.b16 %v5409
    %v5853 = vunpack.c.l.b16 %v5410
    %v5854 = vunpack.c.h.b16 %v5410
    %v5855 = vunpack.c.l.b16 %v5411
    %v5856 = vunpack.c.h.b16 %v5411
    %v5857 = vunpack.c.l.b16 %v5412
    %v5858 = vunpack.c.h.b16 %v5412
    %v5859 = vunpack.c.l.b16 %v5413
    %v5860 = vunpack.c.h.b16 %v5413
    %v5861 = vunpack.c.l.b16 %v5414
    %v5862 = vunpack.c.h.b16 %v5414
    %v5863 = vunpack.c.l.b16 %v5415
    %v5864 = vunpack.c.h.b16 %v5415
    %v5865 = vunpack.c.l.b16 %v5416
    %v5866 = vunpack.c.h.b16 %v5416
    %v5867 = vunpack.c.l.b16 %v5417
    %v5868 = vunpack.c.h.b16 %v5417
    %v5869 = vunpack.c.l.b16 %v5418
    %v5870 = vunpack.c.h.b16 %v5418
    %v5871 = vunpack.c.l.b16 %v5419
    %v5872 = vunpack.c.h.b16 %v5419
    %v5873 = vunpack.c.l.b16 %v5420
    %v5874 = vunpack.c.h.b16 %v5420
    %v5875 = vunpack.c.l.b16 %v5421
    %v5876 = vunpack.c.h.b16 %v5421
    %v5877 = vunpack.c.l.b16 %v5422
    %v5878 = vunpack.c.h.b16 %v5422
    %v5879 = vunpack.c.l.b16 %v5423
    %v5880 = vunpack.c.h.b16 %v5423
    %v5881 = vunpack.c.l.b16 %v5424
    %v5882 = vunpack.c.h.b16 %v5424
    %v5883 = vunpack.c.l.b16 %v5425
    %v5884 = vunpack.c.h.b16 %v5425
    %v5885 = vunpack.c.l.b16 %v5426
    %v5886 = vunpack.c.h.b16 %v5426
    %v5887 = vunpack.c.l.b16 %v5427
    %v5888 = vunpack.c.h.b16 %v5427
    %v5889 = vunpack.c.l.b16 %v5428
    %v5890 = vunpack.c.h.b16 %v5428
    %v5891 = vunpack.c.l.b16 %v5429
    %v5892 = vunpack.c.h.b16 %v5429
    %v5893 = vunpack.c.l.b16 %v5430
    %v5894 = vunpack.c.h.b16 %v5430
    %v5895 = vunpack.c.l.b16 %v5431
    %v5896 = vunpack.c.h.b16 %v5431
    %v5897 = vunpack.c.l.b16 %v5432
    %v5898 = vunpack.c.h.b16 %v5432
    %v5899 = vunpack.c.l.b16 %v5433
    %v5900 = vunpack.c.h.b16 %v5433
    %v5901 = vunpack.c.l.b16 %v5434
    %v5902 = vunpack.c.h.b16 %v5434
    %v5903 = vpack.c.b16 %v5663, %v5647
    %v5904 = vpack.c.b16 %v5664, %v5648
    %v5905 = vpack.c.b16 %v5665, %v5649
    %v5906 = vpack.c.b16 %v5666, %v5650
    %v5907 = vpack.c.b16 %v5667, %v5651
    %v5908 = vpack.c.b16 %v5668, %v5652
    %v5909 = vpack.c.b16 %v5669, %v5653
    %v5910 = vpack.c.b16 %v5670, %v5654
    %v5911 = vpack.c.b16 %v5671, %v5655
    %v5912 = vpack.c.b16 %v5672, %v5656
    %v5913 = vpack.c.b16 %v5673, %v5657
    %v5914 = vpack.c.b16 %v5674, %v5658
    %v5915 = vpack.c.b16 %v5675, %v5659
    %v5916 = vpack.c.b16 %v5676, %v5660
    %v5917 = vpack.c.b16 %v5677, %v5661
    %v5918 = vpack.c.b16 %v5678, %v5662
    %v5919 = vpack.c.b16 %v5695, %v5679
    %v5920 = vpack.c.b16 %v5696, %v5680
    %v5921 = vpack.c.b16 %v5697, %v5681
    %v5922 = vpack.c.b16 %v5698, %v5682
    %v5923 = vpack.c.b16 %v5699, %v5683
    %v5924 = vpack.c.b16 %v5700, %v5684
    %v5925 = vpack.c.b16 %v5701, %v5685
    %v5926 = vpack.c.b16 %v5702, %v5686
    %v5927 = vpack.c.b16 %v5703, %v5687
    %v5928 = vpack.c.b16 %v5704, %v5688
    %v5929 = vpack.c.b16 %v5705, %v5689
    %v5930 = vpack.c.b16 %v5706, %v5690
    %v5931 = vpack.c.b16 %v5707, %v5691
    %v5932 = vpack.c.b16 %v5708, %v5692
    %v5933 = vpack.c.b16 %v5709, %v5693
    %v5934 = vpack.c.b16 %v5710, %v5694
    %v5935 = vpack.c.b16 %v5727, %v5711
    %v5936 = vpack.c.b16 %v5728, %v5712
    %v5937 = vpack.c.b16 %v5729, %v5713
    %v5938 = vpack.c.b16 %v5730, %v5714
    %v5939 = vpack.c.b16 %v5731, %v5715
    %v5940 = vpack.c.b16 %v5732, %v5716
    %v5941 = vpack.c.b16 %v5733, %v5717
    %v5942 = vpack.c.b16 %v5734, %v5718
    %v5943 = vpack.c.b16 %v5735, %v5719
    %v5944 = vpack.c.b16 %v5736, %v5720
    %v5945 = vpack.c.b16 %v5737, %v5721
    %v5946 = vpack.c.b16 %v5738, %v5722
    %v5947 = vpack.c.b16 %v5739, %v5723
    %v5948 = vpack.c.b16 %v5740, %v5724
    %v5949 = vpack.c.b16 %v5741, %v5725
    %v5950 = vpack.c.b16 %v5742, %v5726
    %v5951 = vpack.c.b16 %v5759, %v5743
    %v5952 = vpack.c.b16 %v5760, %v5744
    %v5953 = vpack.c.b16 %v5761, %v5745
    %v5954 = vpack.c.b16 %v5762, %v5746
    %v5955 = vpack.c.b16 %v5763, %v5747
    %v5956 = vpack.c.b16 %v5764, %v5748
    %v5957 = vpack.c.b16 %v5765, %v5749
    %v5958 = vpack.c.b16 %v5766, %v5750
    %v5959 = vpack.c.b16 %v5767, %v5751
    %v5960 = vpack.c.b16 %v5768, %v5752
    %v5961 = vpack.c.b16 %v5769, %v5753
    %v5962 = vpack.c.b16 %v5770, %v5754
    %v5963 = vpack.c.b16 %v5771, %v5755
    %v5964 = vpack.c.b16 %v5772, %v5756
    %v5965 = vpack.c.b16 %v5773, %v5757
    %v5966 = vpack.c.b16 %v5774, %v5758
    %v5967 = vpack.c.b16 %v5791, %v5775
    %v5968 = vpack.c.b16 %v5792, %v5776
    %v5969 = vpack.c.b16 %v5793, %v5777
    %v5970 = vpack.c.b16 %v5794, %v5778
    %v5971 = vpack.c.b16 %v5795, %v5779
    %v5972 = vpack.c.b16 %v5796, %v5780
    %v5973 = vpack.c.b16 %v5797, %v5781
    %v5974 = vpack.c.b16 %v5798, %v5782
    %v5975 = vpack.c.b16 %v5799, %v5783
    %v5976 = vpack.c.b16 %v5800, %v5784
    %v5977 = vpack.c.b16 %v5801, %v5785
    %v5978 = vpack.c.b16 %v5802, %v5786
    %v5979 = vpack.c.b16 %v5803, %v5787
    %v5980 = vpack.c.b16 %v5804, %v5788
    %v5981 = vpack.c.b16 %v5805, %v5789
    %v5982 = vpack.c.b16 %v5806, %v5790
    %v5983 = vpack.c.b16 %v5823, %v5807
    %v5984 = vpack.c.b16 %v5824, %v5808
    %v5985 = vpack.c.b16 %v5825, %v5809
    %v5986 = vpack.c.b16 %v5826, %v5810
    %v5987 = vpack.c.b16 %v5827, %v5811
    %v5988 = vpack.c.b16 %v5828, %v5812
    %v5989 = vpack.c.b16 %v5829, %v5813
    %v5990 = vpack.c.b16 %v5830, %v5814
    %v5991 = vpack.c.b16 %v5831, %v5815
    %v5992 = vpack.c.b16 %v5832, %v5816
    %v5993 = vpack.c.b16 %v5833, %v5817
    %v5994 = vpack.c.b16 %v5834, %v5818
    %v5995 = vpack.c.b16 %v5835, %v5819
    %v5996 = vpack.c.b16 %v5836, %v5820
    %v5997 = vpack.c.b16 %v5837, %v5821
    %v5998 = vpack.c.b16 %v5838, %v5822
    %v5999 = vpack.c.b16 %v5855, %v5839
    %v6000 = vpack.c.b16 %v5856, %v5840
    %v6001 = vpack.c.b16 %v5857, %v5841
    %v6002 = vpack.c.b16 %v5858, %v5842
    %v6003 = vpack.c.b16 %v5859, %v5843
    %v6004 = vpack.c.b16 %v5860, %v5844
    %v6005 = vpack.c.b16 %v5861, %v5845
    %v6006 = vpack.c.b16 %v5862, %v5846
    %v6007 = vpack.c.b16 %v5863, %v5847
    %v6008 = vpack.c.b16 %v5864, %v5848
    %v6009 = vpack.c.b16 %v5865, %v5849
    %v6010 = vpack.c.b16 %v5866, %v5850
    %v6011 = vpack.c.b16 %v5867, %v5851
    %v6012 = vpack.c.b16 %v5868, %v5852
    %v6013 = vpack.c.b16 %v5869, %v5853
    %v6014 = vpack.c.b16 %v5870, %v5854
    %v6015 = vpack.c.b16 %v5887, %v5871
    %v6016 = vpack.c.b16 %v5888, %v5872
    %v6017 = vpack.c.b16 %v5889, %v5873
    %v6018 = vpack.c.b16 %v5890, %v5874
    %v6019 = vpack.c.b16 %v5891, %v5875
    %v6020 = vpack.c.b16 %v5892, %v5876
    %v6021 = vpack.c.b16 %v5893, %v5877
    %v6022 = vpack.c.b16 %v5894, %v5878
    %v6023 = vpack.c.b16 %v5895, %v5879
    %v6024 = vpack.c.b16 %v5896, %v5880
    %v6025 = vpack.c.b16 %v5897, %v5881
    %v6026 = vpack.c.b16 %v5898, %v5882
    %v6027 = vpack.c.b16 %v5899, %v5883
    %v6028 = vpack.c.b16 %v5900, %v5884
    %v6029 = vpack.c.b16 %v5901, %v5885
    %v6030 = vpack.c.b16 %v5902, %v5886
    %6159 = vmatprep.subr.bf16.mxu0 %v5904
    %6160 = vmatpush1.bf16.msra.mxu0 %v5903
    %6161 = vmatprep.subr.bf16.mxu0 %v5920
    %6162 = vmatpush1.bf16.msra.mxu0 %v5919
    %6163 = vmatprep.subr.bf16.mxu0 %v5936
    %6164 = vmatpush1.bf16.msra.mxu0 %v5935
    %6165 = vmatprep.subr.bf16.mxu0 %v5952
    %6166 = vmatpush1.bf16.msra.mxu0 %v5951
    %6167 = vmatprep.subr.bf16.mxu0 %v5968
    %6168 = vmatpush1.bf16.msra.mxu0 %v5967
    %6169 = vmatprep.subr.bf16.mxu0 %v5984
    %6170 = vmatpush1.bf16.msra.mxu0 %v5983
    %6171 = vmatprep.subr.bf16.mxu0 %v6000
    %6172 = vmatpush1.bf16.msra.mxu0 %v5999
    %6173 = vmatprep.subr.bf16.mxu0 %v6016
    %6174 = vmatpush1.bf16.msra.mxu0 %v6015
    %6175 = vmatprep.subr.bf16.mxu0 0
    %6176 = vmatpush1.bf16.msra.mxu0 0
    %6177 = vmatprep.subr.bf16.mxu0 0
    %6178 = vmatpush1.bf16.msra.mxu0 0
    %6179 = vmatprep.subr.bf16.mxu0 0
    %6180 = vmatpush1.bf16.msra.mxu0 0
    %6181 = vmatprep.subr.bf16.mxu0 0
    %6182 = vmatpush1.bf16.msra.mxu0 0
    %6183 = vmatprep.subr.bf16.mxu0 0
    %6184 = vmatpush1.bf16.msra.mxu0 0
    %6185 = vmatprep.subr.bf16.mxu0 0
    %6186 = vmatpush1.bf16.msra.mxu0 0
    %6187 = vmatprep.subr.bf16.mxu0 0
    %6188 = vmatpush1.bf16.msra.mxu0 0
    %6189 = vmatprep.subr.bf16.mxu0 0
    %6190 = vmatpush1.bf16.msra.mxu0 0
    %6191 = vmatprep.mubr.bf16.mxu0 0
    %6192 = vmatmul.mubr.bf16.gmra.mrb[0].mxu0 %v5306
    %v6193 = vpop.f32.mrb[0].mxu0
    %v6194 = vadd.f32 %v5442, %v6193
    %v6195 = vpop.f32.mrb[0].mxu0
    %v6196 = vadd.f32 %v5446, %v6195
    %v6197 = vpop.f32.mrb[0].mxu0
    %v6198 = vadd.f32 %v5442, %v6197
    %v6199 = vpop.f32.mrb[0].mxu0
    %v6200 = vadd.f32 %v5446, %v6199
    %6201 = vdwg.mxu0
    %6202 = vmatprep.subr.bf16.mxu0 %v5906
    %6203 = vmatpush1.bf16.msra.mxu0 %v5905
    %6204 = vmatprep.subr.bf16.mxu0 %v5922
    %6205 = vmatpush1.bf16.msra.mxu0 %v5921
    %6206 = vmatprep.subr.bf16.mxu0 %v5938
    %6207 = vmatpush1.bf16.msra.mxu0 %v5937
    %6208 = vmatprep.subr.bf16.mxu0 %v5954
    %6209 = vmatpush1.bf16.msra.mxu0 %v5953
    %6210 = vmatprep.subr.bf16.mxu0 %v5970
    %6211 = vmatpush1.bf16.msra.mxu0 %v5969
    %6212 = vmatprep.subr.bf16.mxu0 %v5986
    %6213 = vmatpush1.bf16.msra.mxu0 %v5985
    %6214 = vmatprep.subr.bf16.mxu0 %v6002
    %6215 = vmatpush1.bf16.msra.mxu0 %v6001
    %6216 = vmatprep.subr.bf16.mxu0 %v6018
    %6217 = vmatpush1.bf16.msra.mxu0 %v6017
    %6218 = vmatprep.subr.bf16.mxu0 0
    %6219 = vmatpush1.bf16.msra.mxu0 0
    %6220 = vmatprep.subr.bf16.mxu0 0
    %6221 = vmatpush1.bf16.msra.mxu0 0
    %6222 = vmatprep.subr.bf16.mxu0 0
    %6223 = vmatpush1.bf16.msra.mxu0 0
    %6224 = vmatprep.subr.bf16.mxu0 0
    %6225 = vmatpush1.bf16.msra.mxu0 0
    %6226 = vmatprep.subr.bf16.mxu0 0
    %6227 = vmatpush1.bf16.msra.mxu0 0
    %6228 = vmatprep.subr.bf16.mxu0 0
    %6229 = vmatpush1.bf16.msra.mxu0 0
    %6230 = vmatprep.subr.bf16.mxu0 0
    %6231 = vmatpush1.bf16.msra.mxu0 0
    %6232 = vmatprep.subr.bf16.mxu0 0
    %6233 = vmatpush1.bf16.msra.mxu0 0
    %6234 = vmatprep.mubr.bf16.mxu0 0
    %6235 = vmatmul.mubr.bf16.gmra.mrb[0].mxu0 %v5306
    %v6236 = vpop.f32.mrb[0].mxu0
    %v6237 = vadd.f32 %v5450, %v6236
    %v6238 = vpop.f32.mrb[0].mxu0
    %v6239 = vadd.f32 %v5454, %v6238
    %v6240 = vpop.f32.mrb[0].mxu0
    %v6241 = vadd.f32 %v5450, %v6240
    %v6242 = vpop.f32.mrb[0].mxu0
    %v6243 = vadd.f32 %v5454, %v6242
    %6244 = vdwg.mxu0
    %6245 = vmatprep.subr.bf16.mxu0 %v5908
    %6246 = vmatpush1.bf16.msra.mxu0 %v5907
    %6247 = vmatprep.subr.bf16.mxu0 %v5924
    %6248 = vmatpush1.bf16.msra.mxu0 %v5923
    %6249 = vmatprep.subr.bf16.mxu0 %v5940
    %6250 = vmatpush1.bf16.msra.mxu0 %v5939
    %6251 = vmatprep.subr.bf16.mxu0 %v5956
    %6252 = vmatpush1.bf16.msra.mxu0 %v5955
    %6253 = vmatprep.subr.bf16.mxu0 %v5972
    %6254 = vmatpush1.bf16.msra.mxu0 %v5971
    %6255 = vmatprep.subr.bf16.mxu0 %v5988
    %6256 = vmatpush1.bf16.msra.mxu0 %v5987
    %6257 = vmatprep.subr.bf16.mxu0 %v6004
    %6258 = vmatpush1.bf16.msra.mxu0 %v6003
    %6259 = vmatprep.subr.bf16.mxu0 %v6020
    %6260 = vmatpush1.bf16.msra.mxu0 %v6019
    %6261 = vmatprep.subr.bf16.mxu0 0
    %6262 = vmatpush1.bf16.msra.mxu0 0
    %6263 = vmatprep.subr.bf16.mxu0 0
    %6264 = vmatpush1.bf16.msra.mxu0 0
    %6265 = vmatprep.subr.bf16.mxu0 0
    %6266 = vmatpush1.bf16.msra.mxu0 0
    %6267 = vmatprep.subr.bf16.mxu0 0
    %6268 = vmatpush1.bf16.msra.mxu0 0
    %6269 = vmatprep.subr.bf16.mxu0 0
    %6270 = vmatpush1.bf16.msra.mxu0 0
    %6271 = vmatprep.subr.bf16.mxu0 0
    %6272 = vmatpush1.bf16.msra.mxu0 0
    %6273 = vmatprep.subr.bf16.mxu0 0
    %6274 = vmatpush1.bf16.msra.mxu0 0
    %6275 = vmatprep.subr.bf16.mxu0 0
    %6276 = vmatpush1.bf16.msra.mxu0 0
    %6277 = vmatprep.mubr.bf16.mxu0 0
    %6278 = vmatmul.mubr.bf16.gmra.mrb[0].mxu0 %v5306
    %v6279 = vpop.f32.mrb[0].mxu0
    %v6280 = vadd.f32 %v5458, %v6279
    %v6281 = vpop.f32.mrb[0].mxu0
    %v6282 = vadd.f32 %v5462, %v6281
    %v6283 = vpop.f32.mrb[0].mxu0
    %v6284 = vadd.f32 %v5458, %v6283
    %v6285 = vpop.f32.mrb[0].mxu0
    %v6286 = vadd.f32 %v5462, %v6285
    %6287 = vdwg.mxu0
    %6288 = vmatprep.subr.bf16.mxu0 %v5910
    %6289 = vmatpush1.bf16.msra.mxu0 %v5909
    %6290 = vmatprep.subr.bf16.mxu0 %v5926
    %6291 = vmatpush1.bf16.msra.mxu0 %v5925
    %6292 = vmatprep.subr.bf16.mxu0 %v5942
    %6293 = vmatpush1.bf16.msra.mxu0 %v5941
    %6294 = vmatprep.subr.bf16.mxu0 %v5958
    %6295 = vmatpush1.bf16.msra.mxu0 %v5957
    %6296 = vmatprep.subr.bf16.mxu0 %v5974
    %6297 = vmatpush1.bf16.msra.mxu0 %v5973
    %6298 = vmatprep.subr.bf16.mxu0 %v5990
    %6299 = vmatpush1.bf16.msra.mxu0 %v5989
    %6300 = vmatprep.subr.bf16.mxu0 %v6006
    %6301 = vmatpush1.bf16.msra.mxu0 %v6005
    %6302 = vmatprep.subr.bf16.mxu0 %v6022
    %6303 = vmatpush1.bf16.msra.mxu0 %v6021
    %6304 = vmatprep.subr.bf16.mxu0 0
    %6305 = vmatpush1.bf16.msra.mxu0 0
    %6306 = vmatprep.subr.bf16.mxu0 0
    %6307 = vmatpush1.bf16.msra.mxu0 0
    %6308 = vmatprep.subr.bf16.mxu0 0
    %6309 = vmatpush1.bf16.msra.mxu0 0
    %6310 = vmatprep.subr.bf16.mxu0 0
    %6311 = vmatpush1.bf16.msra.mxu0 0
    %6312 = vmatprep.subr.bf16.mxu0 0
    %6313 = vmatpush1.bf16.msra.mxu0 0
    %6314 = vmatprep.subr.bf16.mxu0 0
    %6315 = vmatpush1.bf16.msra.mxu0 0
    %6316 = vmatprep.subr.bf16.mxu0 0
    %6317 = vmatpush1.bf16.msra.mxu0 0
    %6318 = vmatprep.subr.bf16.mxu0 0
    %6319 = vmatpush1.bf16.msra.mxu0 0
    %6320 = vmatprep.mubr.bf16.mxu0 0
    %6321 = vmatmul.mubr.bf16.gmra.mrb[0].mxu0 %v5306
    %v6322 = vpop.f32.mrb[0].mxu0
    %v6323 = vadd.f32 %v5466, %v6322
    %v6324 = vpop.f32.mrb[0].mxu0
    %v6325 = vadd.f32 %v5470, %v6324
    %v6326 = vpop.f32.mrb[0].mxu0
    %v6327 = vadd.f32 %v5466, %v6326
    %v6328 = vpop.f32.mrb[0].mxu0
    %v6329 = vadd.f32 %v5470, %v6328
    %6330 = vdwg.mxu0
    %6331 = vmatprep.subr.bf16.mxu0 %v5912
    %6332 = vmatpush1.bf16.msra.mxu0 %v5911
    %6333 = vmatprep.subr.bf16.mxu0 %v5928
    %6334 = vmatpush1.bf16.msra.mxu0 %v5927
    %6335 = vmatprep.subr.bf16.mxu0 %v5944
    %6336 = vmatpush1.bf16.msra.mxu0 %v5943
    %6337 = vmatprep.subr.bf16.mxu0 %v5960
    %6338 = vmatpush1.bf16.msra.mxu0 %v5959
    %6339 = vmatprep.subr.bf16.mxu0 %v5976
    %6340 = vmatpush1.bf16.msra.mxu0 %v5975
    %6341 = vmatprep.subr.bf16.mxu0 %v5992
    %6342 = vmatpush1.bf16.msra.mxu0 %v5991
    %6343 = vmatprep.subr.bf16.mxu0 %v6008
    %6344 = vmatpush1.bf16.msra.mxu0 %v6007
    %6345 = vmatprep.subr.bf16.mxu0 %v6024
    %6346 = vmatpush1.bf16.msra.mxu0 %v6023
    %6347 = vmatprep.subr.bf16.mxu0 0
    %6348 = vmatpush1.bf16.msra.mxu0 0
    %6349 = vmatprep.subr.bf16.mxu0 0
    %6350 = vmatpush1.bf16.msra.mxu0 0
    %6351 = vmatprep.subr.bf16.mxu0 0
    %6352 = vmatpush1.bf16.msra.mxu0 0
    %6353 = vmatprep.subr.bf16.mxu0 0
    %6354 = vmatpush1.bf16.msra.mxu0 0
    %6355 = vmatprep.subr.bf16.mxu0 0
    %6356 = vmatpush1.bf16.msra.mxu0 0
    %6357 = vmatprep.subr.bf16.mxu0 0
    %6358 = vmatpush1.bf16.msra.mxu0 0
    %6359 = vmatprep.subr.bf16.mxu0 0
    %6360 = vmatpush1.bf16.msra.mxu0 0
    %6361 = vmatprep.subr.bf16.mxu0 0
    %6362 = vmatpush1.bf16.msra.mxu0 0
    %6363 = vmatprep.mubr.bf16.mxu0 0
    %6364 = vmatmul.mubr.bf16.gmra.mrb[0].mxu0 %v5306
    %v6365 = vpop.f32.mrb[0].mxu0
    %v6366 = vadd.f32 %v5474, %v6365
    %v6367 = vpop.f32.mrb[0].mxu0
    %v6368 = vadd.f32 %v5478, %v6367
    %v6369 = vpop.f32.mrb[0].mxu0
    %v6370 = vadd.f32 %v5474, %v6369
    %v6371 = vpop.f32.mrb[0].mxu0
    %v6372 = vadd.f32 %v5478, %v6371
    %6373 = vdwg.mxu0
    %6374 = vmatprep.subr.bf16.mxu0 %v5914
    %6375 = vmatpush1.bf16.msra.mxu0 %v5913
    %6376 = vmatprep.subr.bf16.mxu0 %v5930
    %6377 = vmatpush1.bf16.msra.mxu0 %v5929
    %6378 = vmatprep.subr.bf16.mxu0 %v5946
    %6379 = vmatpush1.bf16.msra.mxu0 %v5945
    %6380 = vmatprep.subr.bf16.mxu0 %v5962
    %6381 = vmatpush1.bf16.msra.mxu0 %v5961
    %6382 = vmatprep.subr.bf16.mxu0 %v5978
    %6383 = vmatpush1.bf16.msra.mxu0 %v5977
    %6384 = vmatprep.subr.bf16.mxu0 %v5994
    %6385 = vmatpush1.bf16.msra.mxu0 %v5993
    %6386 = vmatprep.subr.bf16.mxu0 %v6010
    %6387 = vmatpush1.bf16.msra.mxu0 %v6009
    %6388 = vmatprep.subr.bf16.mxu0 %v6026
    %6389 = vmatpush1.bf16.msra.mxu0 %v6025
    %6390 = vmatprep.subr.bf16.mxu0 0
    %6391 = vmatpush1.bf16.msra.mxu0 0
    %6392 = vmatprep.subr.bf16.mxu0 0
    %6393 = vmatpush1.bf16.msra.mxu0 0
    %6394 = vmatprep.subr.bf16.mxu0 0
    %6395 = vmatpush1.bf16.msra.mxu0 0
    %6396 = vmatprep.subr.bf16.mxu0 0
    %6397 = vmatpush1.bf16.msra.mxu0 0
    %6398 = vmatprep.subr.bf16.mxu0 0
    %6399 = vmatpush1.bf16.msra.mxu0 0
    %6400 = vmatprep.subr.bf16.mxu0 0
    %6401 = vmatpush1.bf16.msra.mxu0 0
    %6402 = vmatprep.subr.bf16.mxu0 0
    %6403 = vmatpush1.bf16.msra.mxu0 0
    %6404 = vmatprep.subr.bf16.mxu0 0
    %6405 = vmatpush1.bf16.msra.mxu0 0
    %6406 = vmatprep.mubr.bf16.mxu0 0
    %6407 = vmatmul.mubr.bf16.gmra.mrb[0].mxu0 %v5306
    %v6408 = vpop.f32.mrb[0].mxu0
    %v6409 = vadd.f32 %v5482, %v6408
    %v6410 = vpop.f32.mrb[0].mxu0
    %v6411 = vadd.f32 %v5486, %v6410
    %v6412 = vpop.f32.mrb[0].mxu0
    %v6413 = vadd.f32 %v5482, %v6412
    %v6414 = vpop.f32.mrb[0].mxu0
    %v6415 = vadd.f32 %v5486, %v6414
    %6416 = vdwg.mxu0
    %6417 = vmatprep.subr.bf16.mxu0 %v5916
    %6418 = vmatpush1.bf16.msra.mxu0 %v5915
    %6419 = vmatprep.subr.bf16.mxu0 %v5932
    %6420 = vmatpush1.bf16.msra.mxu0 %v5931
    %6421 = vmatprep.subr.bf16.mxu0 %v5948
    %6422 = vmatpush1.bf16.msra.mxu0 %v5947
    %6423 = vmatprep.subr.bf16.mxu0 %v5964
    %6424 = vmatpush1.bf16.msra.mxu0 %v5963
    %6425 = vmatprep.subr.bf16.mxu0 %v5980
    %6426 = vmatpush1.bf16.msra.mxu0 %v5979
    %6427 = vmatprep.subr.bf16.mxu0 %v5996
    %6428 = vmatpush1.bf16.msra.mxu0 %v5995
    %6429 = vmatprep.subr.bf16.mxu0 %v6012
    %6430 = vmatpush1.bf16.msra.mxu0 %v6011
    %6431 = vmatprep.subr.bf16.mxu0 %v6028
    %6432 = vmatpush1.bf16.msra.mxu0 %v6027
    %6433 = vmatprep.subr.bf16.mxu0 0
    %6434 = vmatpush1.bf16.msra.mxu0 0
    %6435 = vmatprep.subr.bf16.mxu0 0
    %6436 = vmatpush1.bf16.msra.mxu0 0
    %6437 = vmatprep.subr.bf16.mxu0 0
    %6438 = vmatpush1.bf16.msra.mxu0 0
    %6439 = vmatprep.subr.bf16.mxu0 0
    %6440 = vmatpush1.bf16.msra.mxu0 0
    %6441 = vmatprep.subr.bf16.mxu0 0
    %6442 = vmatpush1.bf16.msra.mxu0 0
    %6443 = vmatprep.subr.bf16.mxu0 0
    %6444 = vmatpush1.bf16.msra.mxu0 0
    %6445 = vmatprep.subr.bf16.mxu0 0
    %6446 = vmatpush1.bf16.msra.mxu0 0
    %6447 = vmatprep.subr.bf16.mxu0 0
    %6448 = vmatpush1.bf16.msra.mxu0 0
    %6449 = vmatprep.mubr.bf16.mxu0 0
    %6450 = vmatmul.mubr.bf16.gmra.mrb[0].mxu0 %v5306
    %v6451 = vpop.f32.mrb[0].mxu0
    %v6452 = vadd.f32 %v5490, %v6451
    %v6453 = vpop.f32.mrb[0].mxu0
    %v6454 = vadd.f32 %v5494, %v6453
    %v6455 = vpop.f32.mrb[0].mxu0
    %v6456 = vadd.f32 %v5490, %v6455
    %v6457 = vpop.f32.mrb[0].mxu0
    %v6458 = vadd.f32 %v5494, %v6457
    %6459 = vdwg.mxu0
    %6460 = vmatprep.subr.bf16.mxu0 %v5918
    %6461 = vmatpush1.bf16.msra.mxu0 %v5917
    %6462 = vmatprep.subr.bf16.mxu0 %v5934
    %6463 = vmatpush1.bf16.msra.mxu0 %v5933
    %6464 = vmatprep.subr.bf16.mxu0 %v5950
    %6465 = vmatpush1.bf16.msra.mxu0 %v5949
    %6466 = vmatprep.subr.bf16.mxu0 %v5966
    %6467 = vmatpush1.bf16.msra.mxu0 %v5965
    %6468 = vmatprep.subr.bf16.mxu0 %v5982
    %6469 = vmatpush1.bf16.msra.mxu0 %v5981
    %6470 = vmatprep.subr.bf16.mxu0 %v5998
    %6471 = vmatpush1.bf16.msra.mxu0 %v5997
    %6472 = vmatprep.subr.bf16.mxu0 %v6014
    %6473 = vmatpush1.bf16.msra.mxu0 %v6013
    %6474 = vmatprep.subr.bf16.mxu0 %v6030
    %6475 = vmatpush1.bf16.msra.mxu0 %v6029
    %6476 = vmatprep.subr.bf16.mxu0 0
    %6477 = vmatpush1.bf16.msra.mxu0 0
    %6478 = vmatprep.subr.bf16.mxu0 0
    %6479 = vmatpush1.bf16.msra.mxu0 0
    %6480 = vmatprep.subr.bf16.mxu0 0
    %6481 = vmatpush1.bf16.msra.mxu0 0
    %6482 = vmatprep.subr.bf16.mxu0 0
    %6483 = vmatpush1.bf16.msra.mxu0 0
    %6484 = vmatprep.subr.bf16.mxu0 0
    %6485 = vmatpush1.bf16.msra.mxu0 0
    %6486 = vmatprep.subr.bf16.mxu0 0
    %6487 = vmatpush1.bf16.msra.mxu0 0
    %6488 = vmatprep.subr.bf16.mxu0 0
    %6489 = vmatpush1.bf16.msra.mxu0 0
    %6490 = vmatprep.subr.bf16.mxu0 0
    %6491 = vmatpush1.bf16.msra.mxu0 0
    %6492 = vmatprep.mubr.bf16.mxu0 0
    %6493 = vmatmul.mubr.bf16.gmra.mrb[0].mxu0 %v5306
    %v6494 = vpop.f32.mrb[0].mxu0
    %v6495 = vadd.f32 %v5498, %v6494
    %v6496 = vpop.f32.mrb[0].mxu0
    %v6497 = vadd.f32 %v5502, %v6496
    %v6498 = vpop.f32.mrb[0].mxu0
    %v6499 = vadd.f32 %v5498, %v6498
    %v6500 = vpop.f32.mrb[0].mxu0
    %v6501 = vadd.f32 %v5502, %v6500
    %6502 = vdwg.mxu0
    %v6503 = vmax.f32 %v6194, 0.0
    %v6504 = vmax.f32 %v6196, 0.0
    %v6505 = vmax.f32 %v6237, 0.0
    %v6506 = vmax.f32 %v6239, 0.0
    %v6507 = vmax.f32 %v6280, 0.0
    %v6508 = vmax.f32 %v6282, 0.0
    %v6509 = vmax.f32 %v6323, 0.0
    %v6510 = vmax.f32 %v6325, 0.0
    %v6511 = vmax.f32 %v6366, 0.0
    %v6512 = vmax.f32 %v6368, 0.0
    %v6513 = vmax.f32 %v6409, 0.0
    %v6514 = vmax.f32 %v6411, 0.0
    %v6515 = vmax.f32 %v6452, 0.0
    %v6516 = vmax.f32 %v6454, 0.0
    %v6517 = vmax.f32 %v6495, 0.0
    %v6518 = vmax.f32 %v6497, 0.0
    %v6519 = vmax.f32 %v6198, 0.0
    %v6520 = vmax.f32 %v6200, 0.0
    %v6521 = vmax.f32 %v6241, 0.0
    %v6522 = vmax.f32 %v6243, 0.0
    %v6523 = vmax.f32 %v6284, 0.0
    %v6524 = vmax.f32 %v6286, 0.0
    %v6525 = vmax.f32 %v6327, 0.0
    %v6526 = vmax.f32 %v6329, 0.0
    %v6527 = vmax.f32 %v6370, 0.0
    %v6528 = vmax.f32 %v6372, 0.0
    %v6529 = vmax.f32 %v6413, 0.0
    %v6530 = vmax.f32 %v6415, 0.0
    %v6531 = vmax.f32 %v6456, 0.0
    %v6532 = vmax.f32 %v6458, 0.0
    %v6533 = vmax.f32 %v6499, 0.0
    %v6534 = vmax.f32 %v6501, 0.0
    %v6535 = vpack.c.bf16 %v6519, %v6503
    %v6536 = vpack.c.bf16 %v6520, %v6504
    %v6537 = vpack.c.bf16 %v6521, %v6505
    %v6538 = vpack.c.bf16 %v6522, %v6506
    %v6539 = vpack.c.bf16 %v6523, %v6507
    %v6540 = vpack.c.bf16 %v6524, %v6508
    %v6541 = vpack.c.bf16 %v6525, %v6509
    %v6542 = vpack.c.bf16 %v6526, %v6510
    %v6543 = vpack.c.bf16 %v6527, %v6511
    %v6544 = vpack.c.bf16 %v6528, %v6512
    %v6545 = vpack.c.bf16 %v6529, %v6513
    %v6546 = vpack.c.bf16 %v6530, %v6514
    %v6547 = vpack.c.bf16 %v6531, %v6515
    %v6548 = vpack.c.bf16 %v6532, %v6516
    %v6549 = vpack.c.bf16 %v6533, %v6517
    %v6550 = vpack.c.bf16 %v6534, %v6518
    %v6551 = vld [vmem:[#allocation11] sm:$0xf]
    %v6552 = vld [vmem:[#allocation11 + $0x4] sm:$0xf]
    %v6553 = vld [vmem:[#allocation11 + $0x8] sm:$0xf]
    %v6554 = vld [vmem:[#allocation11 + $0xc] sm:$0xf]
    %v6555 = vld [vmem:[#allocation11 + $0x10] sm:$0xf]
    %v6556 = vld [vmem:[#allocation11 + $0x14] sm:$0xf]
    %v6557 = vld [vmem:[#allocation11 + $0x18] sm:$0xf]
    %v6558 = vld [vmem:[#allocation11 + $0x1c] sm:$0xf]
    %v6559 = vld [vmem:[#allocation11 + $0x20] sm:$0xf]
    %v6560 = vld [vmem:[#allocation11 + $0x24] sm:$0xf]
    %v6561 = vld [vmem:[#allocation11 + $0x28] sm:$0xf]
    %v6562 = vld [vmem:[#allocation11 + $0x2c] sm:$0xf]
    %v6563 = vld [vmem:[#allocation11 + $0x30] sm:$0xf]
    %v6564 = vld [vmem:[#allocation11 + $0x34] sm:$0xf]
    %v6565 = vld [vmem:[#allocation11 + $0x38] sm:$0xf]
    %v6566 = vld [vmem:[#allocation11 + $0x3c] sm:$0xf]
    %v6567 = vld [vmem:[#allocation11 + $0x40] sm:$0xf]
    %v6568 = vld [vmem:[#allocation11 + $0x44] sm:$0xf]
    %v6569 = vld [vmem:[#allocation11 + $0x48] sm:$0xf]
    %v6570 = vld [vmem:[#allocation11 + $0x4c] sm:$0xf]
    %v6571 = vld [vmem:[#allocation11 + $0x50] sm:$0xf]
    %v6572 = vld [vmem:[#allocation11 + $0x54] sm:$0xf]
    %v6573 = vld [vmem:[#allocation11 + $0x58] sm:$0xf]
    %v6574 = vld [vmem:[#allocation11 + $0x5c] sm:$0xf]
    %v6575 = vld [vmem:[#allocation11 + $0x60] sm:$0xf]
    %v6576 = vld [vmem:[#allocation11 + $0x64] sm:$0xf]
    %v6577 = vld [vmem:[#allocation11 + $0x68] sm:$0xf]
    %v6578 = vld [vmem:[#allocation11 + $0x6c] sm:$0xf]
    %v6579 = vld [vmem:[#allocation11 + $0x70] sm:$0xf]
    %v6580 = vld [vmem:[#allocation11 + $0x74] sm:$0xf]
    %v6581 = vld [vmem:[#allocation11 + $0x78] sm:$0xf]
    %v6582 = vld [vmem:[#allocation11 + $0x7c] sm:$0xf]
    %v6583 = vld [vmem:[#allocation11 + $0x80] sm:$0xf]
    %v6584 = vld [vmem:[#allocation11 + $0x84] sm:$0xf]
    %v6585 = vld [vmem:[#allocation11 + $0x88] sm:$0xf]
    %v6586 = vld [vmem:[#allocation11 + $0x8c] sm:$0xf]
    %v6587 = vld [vmem:[#allocation11 + $0x90] sm:$0xf]
    %v6588 = vld [vmem:[#allocation11 + $0x94] sm:$0xf]
    %v6589 = vld [vmem:[#allocation11 + $0x98] sm:$0xf]
    %v6590 = vld [vmem:[#allocation11 + $0x9c] sm:$0xf]
    %v6591 = vld [vmem:[#allocation11 + $0xa0] sm:$0xf]
    %v6592 = vld [vmem:[#allocation11 + $0xa4] sm:$0xf]
    %v6593 = vld [vmem:[#allocation11 + $0xa8] sm:$0xf]
    %v6594 = vld [vmem:[#allocation11 + $0xac] sm:$0xf]
    %v6595 = vld [vmem:[#allocation11 + $0xb0] sm:$0xf]
    %v6596 = vld [vmem:[#allocation11 + $0xb4] sm:$0xf]
    %v6597 = vld [vmem:[#allocation11 + $0xb8] sm:$0xf]
    %v6598 = vld [vmem:[#allocation11 + $0xbc] sm:$0xf]
    %v6599 = vld [vmem:[#allocation11 + $0xc0] sm:$0xf]
    %v6600 = vld [vmem:[#allocation11 + $0xc4] sm:$0xf]
    %v6601 = vld [vmem:[#allocation11 + $0xc8] sm:$0xf]
    %v6602 = vld [vmem:[#allocation11 + $0xcc] sm:$0xf]
    %v6603 = vld [vmem:[#allocation11 + $0xd0] sm:$0xf]
    %v6604 = vld [vmem:[#allocation11 + $0xd4] sm:$0xf]
    %v6605 = vld [vmem:[#allocation11 + $0xd8] sm:$0xf]
    %v6606 = vld [vmem:[#allocation11 + $0xdc] sm:$0xf]
    %v6607 = vld [vmem:[#allocation11 + $0xe0] sm:$0xf]
    %v6608 = vld [vmem:[#allocation11 + $0xe4] sm:$0xf]
    %v6609 = vld [vmem:[#allocation11 + $0xe8] sm:$0xf]
    %v6610 = vld [vmem:[#allocation11 + $0xec] sm:$0xf]
    %v6611 = vld [vmem:[#allocation11 + $0xf0] sm:$0xf]
    %v6612 = vld [vmem:[#allocation11 + $0xf4] sm:$0xf]
    %v6613 = vld [vmem:[#allocation11 + $0xf8] sm:$0xf]
    %v6614 = vld [vmem:[#allocation11 + $0xfc] sm:$0xf]
    %v6615 = vld [vmem:[#allocation11 + $0x100] sm:$0xf]
    %v6616 = vld [vmem:[#allocation11 + $0x104] sm:$0xf]
    %v6617 = vld [vmem:[#allocation11 + $0x108] sm:$0xf]
    %v6618 = vld [vmem:[#allocation11 + $0x10c] sm:$0xf]
    %v6619 = vld [vmem:[#allocation11 + $0x110] sm:$0xf]
    %v6620 = vld [vmem:[#allocation11 + $0x114] sm:$0xf]
    %v6621 = vld [vmem:[#allocation11 + $0x118] sm:$0xf]
    %v6622 = vld [vmem:[#allocation11 + $0x11c] sm:$0xf]
    %v6623 = vld [vmem:[#allocation11 + $0x120] sm:$0xf]
    %v6624 = vld [vmem:[#allocation11 + $0x124] sm:$0xf]
    %v6625 = vld [vmem:[#allocation11 + $0x128] sm:$0xf]
    %v6626 = vld [vmem:[#allocation11 + $0x12c] sm:$0xf]
    %v6627 = vld [vmem:[#allocation11 + $0x130] sm:$0xf]
    %v6628 = vld [vmem:[#allocation11 + $0x134] sm:$0xf]
    %v6629 = vld [vmem:[#allocation11 + $0x138] sm:$0xf]
    %v6630 = vld [vmem:[#allocation11 + $0x13c] sm:$0xf]
    %v6631 = vld [vmem:[#allocation11 + $0x140] sm:$0xf]
    %v6632 = vld [vmem:[#allocation11 + $0x144] sm:$0xf]
    %v6633 = vld [vmem:[#allocation11 + $0x148] sm:$0xf]
    %v6634 = vld [vmem:[#allocation11 + $0x14c] sm:$0xf]
    %v6635 = vld [vmem:[#allocation11 + $0x150] sm:$0xf]
    %v6636 = vld [vmem:[#allocation11 + $0x154] sm:$0xf]
    %v6637 = vld [vmem:[#allocation11 + $0x158] sm:$0xf]
    %v6638 = vld [vmem:[#allocation11 + $0x15c] sm:$0xf]
    %v6639 = vld [vmem:[#allocation11 + $0x160] sm:$0xf]
    %v6640 = vld [vmem:[#allocation11 + $0x164] sm:$0xf]
    %v6641 = vld [vmem:[#allocation11 + $0x168] sm:$0xf]
    %v6642 = vld [vmem:[#allocation11 + $0x16c] sm:$0xf]
    %v6643 = vld [vmem:[#allocation11 + $0x170] sm:$0xf]
    %v6644 = vld [vmem:[#allocation11 + $0x174] sm:$0xf]
    %v6645 = vld [vmem:[#allocation11 + $0x178] sm:$0xf]
    %v6646 = vld [vmem:[#allocation11 + $0x17c] sm:$0xf]
    %v6647 = vld [vmem:[#allocation11 + $0x180] sm:$0xf]
    %v6648 = vld [vmem:[#allocation11 + $0x184] sm:$0xf]
    %v6649 = vld [vmem:[#allocation11 + $0x188] sm:$0xf]
    %v6650 = vld [vmem:[#allocation11 + $0x18c] sm:$0xf]
    %v6651 = vld [vmem:[#allocation11 + $0x190] sm:$0xf]
    %v6652 = vld [vmem:[#allocation11 + $0x194] sm:$0xf]
    %v6653 = vld [vmem:[#allocation11 + $0x198] sm:$0xf]
    %v6654 = vld [vmem:[#allocation11 + $0x19c] sm:$0xf]
    %v6655 = vld [vmem:[#allocation11 + $0x1a0] sm:$0xf]
    %v6656 = vld [vmem:[#allocation11 + $0x1a4] sm:$0xf]
    %v6657 = vld [vmem:[#allocation11 + $0x1a8] sm:$0xf]
    %v6658 = vld [vmem:[#allocation11 + $0x1ac] sm:$0xf]
    %v6659 = vld [vmem:[#allocation11 + $0x1b0] sm:$0xf]
    %v6660 = vld [vmem:[#allocation11 + $0x1b4] sm:$0xf]
    %v6661 = vld [vmem:[#allocation11 + $0x1b8] sm:$0xf]
    %v6662 = vld [vmem:[#allocation11 + $0x1bc] sm:$0xf]
    %v6663 = vld [vmem:[#allocation11 + $0x1c0] sm:$0xf]
    %v6664 = vld [vmem:[#allocation11 + $0x1c4] sm:$0xf]
    %v6665 = vld [vmem:[#allocation11 + $0x1c8] sm:$0xf]
    %v6666 = vld [vmem:[#allocation11 + $0x1cc] sm:$0xf]
    %v6667 = vld [vmem:[#allocation11 + $0x1d0] sm:$0xf]
    %v6668 = vld [vmem:[#allocation11 + $0x1d4] sm:$0xf]
    %v6669 = vld [vmem:[#allocation11 + $0x1d8] sm:$0xf]
    %v6670 = vld [vmem:[#allocation11 + $0x1dc] sm:$0xf]
    %v6671 = vld [vmem:[#allocation11 + $0x1e0] sm:$0xf]
    %v6672 = vld [vmem:[#allocation11 + $0x1e4] sm:$0xf]
    %v6673 = vld [vmem:[#allocation11 + $0x1e8] sm:$0xf]
    %v6674 = vld [vmem:[#allocation11 + $0x1ec] sm:$0xf]
    %v6675 = vld [vmem:[#allocation11 + $0x1f0] sm:$0xf]
    %v6676 = vld [vmem:[#allocation11 + $0x1f4] sm:$0xf]
    %v6677 = vld [vmem:[#allocation11 + $0x1f8] sm:$0xf]
    %v6678 = vld [vmem:[#allocation11 + $0x1fc] sm:$0xf]
    %v6679 = vld [vmem:[#allocation11 + $0x200] sm:$0xf]
    %v6680 = vld [vmem:[#allocation11 + $0x204] sm:$0xf]
    %v6681 = vld [vmem:[#allocation11 + $0x208] sm:$0xf]
    %v6682 = vld [vmem:[#allocation11 + $0x20c] sm:$0xf]
    %v6683 = vld [vmem:[#allocation11 + $0x210] sm:$0xf]
    %v6684 = vld [vmem:[#allocation11 + $0x214] sm:$0xf]
    %v6685 = vld [vmem:[#allocation11 + $0x218] sm:$0xf]
    %v6686 = vld [vmem:[#allocation11 + $0x21c] sm:$0xf]
    %v6687 = vld [vmem:[#allocation11 + $0x220] sm:$0xf]
    %v6688 = vld [vmem:[#allocation11 + $0x224] sm:$0xf]
    %v6689 = vld [vmem:[#allocation11 + $0x228] sm:$0xf]
    %v6690 = vld [vmem:[#allocation11 + $0x22c] sm:$0xf]
    %v6691 = vld [vmem:[#allocation11 + $0x230] sm:$0xf]
    %v6692 = vld [vmem:[#allocation11 + $0x234] sm:$0xf]
    %v6693 = vld [vmem:[#allocation11 + $0x238] sm:$0xf]
    %v6694 = vld [vmem:[#allocation11 + $0x23c] sm:$0xf]
    %v6695 = vld [vmem:[#allocation11 + $0x240] sm:$0xf]
    %v6696 = vld [vmem:[#allocation11 + $0x244] sm:$0xf]
    %v6697 = vld [vmem:[#allocation11 + $0x248] sm:$0xf]
    %v6698 = vld [vmem:[#allocation11 + $0x24c] sm:$0xf]
    %v6699 = vld [vmem:[#allocation11 + $0x250] sm:$0xf]
    %v6700 = vld [vmem:[#allocation11 + $0x254] sm:$0xf]
    %v6701 = vld [vmem:[#allocation11 + $0x258] sm:$0xf]
    %v6702 = vld [vmem:[#allocation11 + $0x25c] sm:$0xf]
    %v6703 = vld [vmem:[#allocation11 + $0x260] sm:$0xf]
    %v6704 = vld [vmem:[#allocation11 + $0x264] sm:$0xf]
    %v6705 = vld [vmem:[#allocation11 + $0x268] sm:$0xf]
    %v6706 = vld [vmem:[#allocation11 + $0x26c] sm:$0xf]
    %v6707 = vld [vmem:[#allocation11 + $0x270] sm:$0xf]
    %v6708 = vld [vmem:[#allocation11 + $0x274] sm:$0xf]
    %v6709 = vld [vmem:[#allocation11 + $0x278] sm:$0xf]
    %v6710 = vld [vmem:[#allocation11 + $0x27c] sm:$0xf]
    %v6711 = vld [vmem:[#allocation11 + $0x280] sm:$0xf]
    %v6712 = vld [vmem:[#allocation11 + $0x284] sm:$0xf]
    %v6713 = vld [vmem:[#allocation11 + $0x288] sm:$0xf]
    %v6714 = vld [vmem:[#allocation11 + $0x28c] sm:$0xf]
    %v6715 = vld [vmem:[#allocation11 + $0x290] sm:$0xf]
    %v6716 = vld [vmem:[#allocation11 + $0x294] sm:$0xf]
    %v6717 = vld [vmem:[#allocation11 + $0x298] sm:$0xf]
    %v6718 = vld [vmem:[#allocation11 + $0x29c] sm:$0xf]
    %v6719 = vld [vmem:[#allocation11 + $0x2a0] sm:$0xf]
    %v6720 = vld [vmem:[#allocation11 + $0x2a4] sm:$0xf]
    %v6721 = vld [vmem:[#allocation11 + $0x2a8] sm:$0xf]
    %v6722 = vld [vmem:[#allocation11 + $0x2ac] sm:$0xf]
    %v6723 = vld [vmem:[#allocation11 + $0x2b0] sm:$0xf]
    %v6724 = vld [vmem:[#allocation11 + $0x2b4] sm:$0xf]
    %v6725 = vld [vmem:[#allocation11 + $0x2b8] sm:$0xf]
    %v6726 = vld [vmem:[#allocation11 + $0x2bc] sm:$0xf]
    %v6727 = vld [vmem:[#allocation11 + $0x2c0] sm:$0xf]
    %v6728 = vld [vmem:[#allocation11 + $0x2c4] sm:$0xf]
    %v6729 = vld [vmem:[#allocation11 + $0x2c8] sm:$0xf]
    %v6730 = vld [vmem:[#allocation11 + $0x2cc] sm:$0xf]
    %v6731 = vld [vmem:[#allocation11 + $0x2d0] sm:$0xf]
    %v6732 = vld [vmem:[#allocation11 + $0x2d4] sm:$0xf]
    %v6733 = vld [vmem:[#allocation11 + $0x2d8] sm:$0xf]
    %v6734 = vld [vmem:[#allocation11 + $0x2dc] sm:$0xf]
    %v6735 = vld [vmem:[#allocation11 + $0x2e0] sm:$0xf]
    %v6736 = vld [vmem:[#allocation11 + $0x2e4] sm:$0xf]
    %v6737 = vld [vmem:[#allocation11 + $0x2e8] sm:$0xf]
    %v6738 = vld [vmem:[#allocation11 + $0x2ec] sm:$0xf]
    %v6739 = vld [vmem:[#allocation11 + $0x2f0] sm:$0xf]
    %v6740 = vld [vmem:[#allocation11 + $0x2f4] sm:$0xf]
    %v6741 = vld [vmem:[#allocation11 + $0x2f8] sm:$0xf]
    %v6742 = vld [vmem:[#allocation11 + $0x2fc] sm:$0xf]
    %v6743 = vld [vmem:[#allocation11 + $0x300] sm:$0xf]
    %v6744 = vld [vmem:[#allocation11 + $0x304] sm:$0xf]
    %v6745 = vld [vmem:[#allocation11 + $0x308] sm:$0xf]
    %v6746 = vld [vmem:[#allocation11 + $0x30c] sm:$0xf]
    %v6747 = vld [vmem:[#allocation11 + $0x310] sm:$0xf]
    %v6748 = vld [vmem:[#allocation11 + $0x314] sm:$0xf]
    %v6749 = vld [vmem:[#allocation11 + $0x318] sm:$0xf]
    %v6750 = vld [vmem:[#allocation11 + $0x31c] sm:$0xf]
    %v6751 = vld [vmem:[#allocation11 + $0x320] sm:$0xf]
    %v6752 = vld [vmem:[#allocation11 + $0x324] sm:$0xf]
    %v6753 = vld [vmem:[#allocation11 + $0x328] sm:$0xf]
    %v6754 = vld [vmem:[#allocation11 + $0x32c] sm:$0xf]
    %v6755 = vld [vmem:[#allocation11 + $0x330] sm:$0xf]
    %v6756 = vld [vmem:[#allocation11 + $0x334] sm:$0xf]
    %v6757 = vld [vmem:[#allocation11 + $0x338] sm:$0xf]
    %v6758 = vld [vmem:[#allocation11 + $0x33c] sm:$0xf]
    %v6759 = vld [vmem:[#allocation11 + $0x340] sm:$0xf]
    %v6760 = vld [vmem:[#allocation11 + $0x344] sm:$0xf]
    %v6761 = vld [vmem:[#allocation11 + $0x348] sm:$0xf]
    %v6762 = vld [vmem:[#allocation11 + $0x34c] sm:$0xf]
    %v6763 = vld [vmem:[#allocation11 + $0x350] sm:$0xf]
    %v6764 = vld [vmem:[#allocation11 + $0x354] sm:$0xf]
    %v6765 = vld [vmem:[#allocation11 + $0x358] sm:$0xf]
    %v6766 = vld [vmem:[#allocation11 + $0x35c] sm:$0xf]
    %v6767 = vld [vmem:[#allocation11 + $0x360] sm:$0xf]
    %v6768 = vld [vmem:[#allocation11 + $0x364] sm:$0xf]
    %v6769 = vld [vmem:[#allocation11 + $0x368] sm:$0xf]
    %v6770 = vld [vmem:[#allocation11 + $0x36c] sm:$0xf]
    %v6771 = vld [vmem:[#allocation11 + $0x370] sm:$0xf]
    %v6772 = vld [vmem:[#allocation11 + $0x374] sm:$0xf]
    %v6773 = vld [vmem:[#allocation11 + $0x378] sm:$0xf]
    %v6774 = vld [vmem:[#allocation11 + $0x37c] sm:$0xf]
    %v6775 = vld [vmem:[#allocation11 + $0x380] sm:$0xf]
    %v6776 = vld [vmem:[#allocation11 + $0x384] sm:$0xf]
    %v6777 = vld [vmem:[#allocation11 + $0x388] sm:$0xf]
    %v6778 = vld [vmem:[#allocation11 + $0x38c] sm:$0xf]
    %v6779 = vld [vmem:[#allocation11 + $0x390] sm:$0xf]
    %v6780 = vld [vmem:[#allocation11 + $0x394] sm:$0xf]
    %v6781 = vld [vmem:[#allocation11 + $0x398] sm:$0xf]
    %v6782 = vld [vmem:[#allocation11 + $0x39c] sm:$0xf]
    %v6783 = vld [vmem:[#allocation11 + $0x3a0] sm:$0xf]
    %v6784 = vld [vmem:[#allocation11 + $0x3a4] sm:$0xf]
    %v6785 = vld [vmem:[#allocation11 + $0x3a8] sm:$0xf]
    %v6786 = vld [vmem:[#allocation11 + $0x3ac] sm:$0xf]
    %v6787 = vld [vmem:[#allocation11 + $0x3b0] sm:$0xf]
    %v6788 = vld [vmem:[#allocation11 + $0x3b4] sm:$0xf]
    %v6789 = vld [vmem:[#allocation11 + $0x3b8] sm:$0xf]
    %v6790 = vld [vmem:[#allocation11 + $0x3bc] sm:$0xf]
    %v6791 = vld [vmem:[#allocation11 + $0x3c0] sm:$0xf]
    %v6792 = vld [vmem:[#allocation11 + $0x3c4] sm:$0xf]
    %v6793 = vld [vmem:[#allocation11 + $0x3c8] sm:$0xf]
    %v6794 = vld [vmem:[#allocation11 + $0x3cc] sm:$0xf]
    %v6795 = vld [vmem:[#allocation11 + $0x3d0] sm:$0xf]
    %v6796 = vld [vmem:[#allocation11 + $0x3d4] sm:$0xf]
    %v6797 = vld [vmem:[#allocation11 + $0x3d8] sm:$0xf]
    %v6798 = vld [vmem:[#allocation11 + $0x3dc] sm:$0xf]
    %v6799 = vld [vmem:[#allocation11 + $0x3e0] sm:$0xf]
    %v6800 = vld [vmem:[#allocation11 + $0x3e4] sm:$0xf]
    %v6801 = vld [vmem:[#allocation11 + $0x3e8] sm:$0xf]
    %v6802 = vld [vmem:[#allocation11 + $0x3ec] sm:$0xf]
    %v6803 = vld [vmem:[#allocation11 + $0x3f0] sm:$0xf]
    %v6804 = vld [vmem:[#allocation11 + $0x3f4] sm:$0xf]
    %v6805 = vld [vmem:[#allocation11 + $0x3f8] sm:$0xf]
    %v6806 = vld [vmem:[#allocation11 + $0x3fc] sm:$0xf]
    %v6807 = vld [vmem:[%s11] sm:$0x1]
    %v6809 = vlaneseq
    %v6810 = vshrl.u32 %v6809, 7
    %v6811 = vsub.s32 0, %v6810
    %v6812 = vrot.slane %v6807, %v6811
    %v7070 = vunpack.c.l.b16 %v6551
    %v7071 = vunpack.c.l.b16 %v6552
    %v7072 = vunpack.c.l.b16 %v6553
    %v7073 = vunpack.c.l.b16 %v6554
    %v7074 = vunpack.c.l.b16 %v6555
    %v7075 = vunpack.c.l.b16 %v6556
    %v7076 = vunpack.c.l.b16 %v6557
    %v7077 = vunpack.c.l.b16 %v6558
    %v7078 = vunpack.c.l.b16 %v6559
    %v7079 = vunpack.c.l.b16 %v6560
    %v7080 = vunpack.c.l.b16 %v6561
    %v7081 = vunpack.c.l.b16 %v6562
    %v7082 = vunpack.c.l.b16 %v6563
    %v7083 = vunpack.c.l.b16 %v6564
    %v7084 = vunpack.c.l.b16 %v6565
    %v7085 = vunpack.c.l.b16 %v6566
    %v7086 = vunpack.c.l.b16 %v6567
    %v7087 = vunpack.c.l.b16 %v6568
    %v7088 = vunpack.c.l.b16 %v6569
    %v7089 = vunpack.c.l.b16 %v6570
    %v7090 = vunpack.c.l.b16 %v6571
    %v7091 = vunpack.c.l.b16 %v6572
    %v7092 = vunpack.c.l.b16 %v6573
    %v7093 = vunpack.c.l.b16 %v6574
    %v7094 = vunpack.c.l.b16 %v6575
    %v7095 = vunpack.c.l.b16 %v6576
    %v7096 = vunpack.c.l.b16 %v6577
    %v7097 = vunpack.c.l.b16 %v6578
    %v7098 = vunpack.c.l.b16 %v6579
    %v7099 = vunpack.c.l.b16 %v6580
    %v7100 = vunpack.c.l.b16 %v6581
    %v7101 = vunpack.c.l.b16 %v6582
    %v7102 = vunpack.c.l.b16 %v6583
    %v7103 = vunpack.c.l.b16 %v6584
    %v7104 = vunpack.c.l.b16 %v6585
    %v7105 = vunpack.c.l.b16 %v6586
    %v7106 = vunpack.c.l.b16 %v6587
    %v7107 = vunpack.c.l.b16 %v6588
    %v7108 = vunpack.c.l.b16 %v6589
    %v7109 = vunpack.c.l.b16 %v6590
    %v7110 = vunpack.c.l.b16 %v6591
    %v7111 = vunpack.c.l.b16 %v6592
    %v7112 = vunpack.c.l.b16 %v6593
    %v7113 = vunpack.c.l.b16 %v6594
    %v7114 = vunpack.c.l.b16 %v6595
    %v7115 = vunpack.c.l.b16 %v6596
    %v7116 = vunpack.c.l.b16 %v6597
    %v7117 = vunpack.c.l.b16 %v6598
    %v7118 = vunpack.c.l.b16 %v6599
    %v7119 = vunpack.c.l.b16 %v6600
    %v7120 = vunpack.c.l.b16 %v6601
    %v7121 = vunpack.c.l.b16 %v6602
    %v7122 = vunpack.c.l.b16 %v6603
    %v7123 = vunpack.c.l.b16 %v6604
    %v7124 = vunpack.c.l.b16 %v6605
    %v7125 = vunpack.c.l.b16 %v6606
    %v7126 = vunpack.c.l.b16 %v6607
    %v7127 = vunpack.c.l.b16 %v6608
    %v7128 = vunpack.c.l.b16 %v6609
    %v7129 = vunpack.c.l.b16 %v6610
    %v7130 = vunpack.c.l.b16 %v6611
    %v7131 = vunpack.c.l.b16 %v6612
    %v7132 = vunpack.c.l.b16 %v6613
    %v7133 = vunpack.c.l.b16 %v6614
    %v7134 = vunpack.c.l.b16 %v6615
    %v7135 = vunpack.c.l.b16 %v6616
    %v7136 = vunpack.c.l.b16 %v6617
    %v7137 = vunpack.c.l.b16 %v6618
    %v7138 = vunpack.c.l.b16 %v6619
    %v7139 = vunpack.c.l.b16 %v6620
    %v7140 = vunpack.c.l.b16 %v6621
    %v7141 = vunpack.c.l.b16 %v6622
    %v7142 = vunpack.c.l.b16 %v6623
    %v7143 = vunpack.c.l.b16 %v6624
    %v7144 = vunpack.c.l.b16 %v6625
    %v7145 = vunpack.c.l.b16 %v6626
    %v7146 = vunpack.c.l.b16 %v6627
    %v7147 = vunpack.c.l.b16 %v6628
    %v7148 = vunpack.c.l.b16 %v6629
    %v7149 = vunpack.c.l.b16 %v6630
    %v7150 = vunpack.c.l.b16 %v6631
    %v7151 = vunpack.c.l.b16 %v6632
    %v7152 = vunpack.c.l.b16 %v6633
    %v7153 = vunpack.c.l.b16 %v6634
    %v7154 = vunpack.c.l.b16 %v6635
    %v7155 = vunpack.c.l.b16 %v6636
    %v7156 = vunpack.c.l.b16 %v6637
    %v7157 = vunpack.c.l.b16 %v6638
    %v7158 = vunpack.c.l.b16 %v6639
    %v7159 = vunpack.c.l.b16 %v6640
    %v7160 = vunpack.c.l.b16 %v6641
    %v7161 = vunpack.c.l.b16 %v6642
    %v7162 = vunpack.c.l.b16 %v6643
    %v7163 = vunpack.c.l.b16 %v6644
    %v7164 = vunpack.c.l.b16 %v6645
    %v7165 = vunpack.c.l.b16 %v6646
    %v7166 = vunpack.c.l.b16 %v6647
    %v7167 = vunpack.c.l.b16 %v6648
    %v7168 = vunpack.c.l.b16 %v6649
    %v7169 = vunpack.c.l.b16 %v6650
    %v7170 = vunpack.c.l.b16 %v6651
    %v7171 = vunpack.c.l.b16 %v6652
    %v7172 = vunpack.c.l.b16 %v6653
    %v7173 = vunpack.c.l.b16 %v6654
    %v7174 = vunpack.c.l.b16 %v6655
    %v7175 = vunpack.c.l.b16 %v6656
    %v7176 = vunpack.c.l.b16 %v6657
    %v7177 = vunpack.c.l.b16 %v6658
    %v7178 = vunpack.c.l.b16 %v6659
    %v7179 = vunpack.c.l.b16 %v6660
    %v7180 = vunpack.c.l.b16 %v6661
    %v7181 = vunpack.c.l.b16 %v6662
    %v7182 = vunpack.c.l.b16 %v6663
    %v7183 = vunpack.c.l.b16 %v6664
    %v7184 = vunpack.c.l.b16 %v6665
    %v7185 = vunpack.c.l.b16 %v6666
    %v7186 = vunpack.c.l.b16 %v6667
    %v7187 = vunpack.c.l.b16 %v6668
    %v7188 = vunpack.c.l.b16 %v6669
    %v7189 = vunpack.c.l.b16 %v6670
    %v7190 = vunpack.c.l.b16 %v6671
    %v7191 = vunpack.c.l.b16 %v6672
    %v7192 = vunpack.c.l.b16 %v6673
    %v7193 = vunpack.c.l.b16 %v6674
    %v7194 = vunpack.c.l.b16 %v6675
    %v7195 = vunpack.c.l.b16 %v6676
    %v7196 = vunpack.c.l.b16 %v6677
    %v7197 = vunpack.c.l.b16 %v6678
    %v7198 = vunpack.c.l.b16 %v6679
    %v7199 = vunpack.c.l.b16 %v6680
    %v7200 = vunpack.c.l.b16 %v6681
    %v7201 = vunpack.c.l.b16 %v6682
    %v7202 = vunpack.c.l.b16 %v6683
    %v7203 = vunpack.c.l.b16 %v6684
    %v7204 = vunpack.c.l.b16 %v6685
    %v7205 = vunpack.c.l.b16 %v6686
    %v7206 = vunpack.c.l.b16 %v6687
    %v7207 = vunpack.c.l.b16 %v6688
    %v7208 = vunpack.c.l.b16 %v6689
    %v7209 = vunpack.c.l.b16 %v6690
    %v7210 = vunpack.c.l.b16 %v6691
    %v7211 = vunpack.c.l.b16 %v6692
    %v7212 = vunpack.c.l.b16 %v6693
    %v7213 = vunpack.c.l.b16 %v6694
    %v7214 = vunpack.c.l.b16 %v6695
    %v7215 = vunpack.c.l.b16 %v6696
    %v7216 = vunpack.c.l.b16 %v6697
    %v7217 = vunpack.c.l.b16 %v6698
    %v7218 = vunpack.c.l.b16 %v6699
    %v7219 = vunpack.c.l.b16 %v6700
    %v7220 = vunpack.c.l.b16 %v6701
    %v7221 = vunpack.c.l.b16 %v6702
    %v7222 = vunpack.c.l.b16 %v6703
    %v7223 = vunpack.c.l.b16 %v6704
    %v7224 = vunpack.c.l.b16 %v6705
    %v7225 = vunpack.c.l.b16 %v6706
    %v7226 = vunpack.c.l.b16 %v6707
    %v7227 = vunpack.c.l.b16 %v6708
    %v7228 = vunpack.c.l.b16 %v6709
    %v7229 = vunpack.c.l.b16 %v6710
    %v7230 = vunpack.c.l.b16 %v6711
    %v7231 = vunpack.c.l.b16 %v6712
    %v7232 = vunpack.c.l.b16 %v6713
    %v7233 = vunpack.c.l.b16 %v6714
    %v7234 = vunpack.c.l.b16 %v6715
    %v7235 = vunpack.c.l.b16 %v6716
    %v7236 = vunpack.c.l.b16 %v6717
    %v7237 = vunpack.c.l.b16 %v6718
    %v7238 = vunpack.c.l.b16 %v6719
    %v7239 = vunpack.c.l.b16 %v6720
    %v7240 = vunpack.c.l.b16 %v6721
    %v7241 = vunpack.c.l.b16 %v6722
    %v7242 = vunpack.c.l.b16 %v6723
    %v7243 = vunpack.c.l.b16 %v6724
    %v7244 = vunpack.c.l.b16 %v6725
    %v7245 = vunpack.c.l.b16 %v6726
    %v7246 = vunpack.c.l.b16 %v6727
    %v7247 = vunpack.c.l.b16 %v6728
    %v7248 = vunpack.c.l.b16 %v6729
    %v7249 = vunpack.c.l.b16 %v6730
    %v7250 = vunpack.c.l.b16 %v6731
    %v7251 = vunpack.c.l.b16 %v6732
    %v7252 = vunpack.c.l.b16 %v6733
    %v7253 = vunpack.c.l.b16 %v6734
    %v7254 = vunpack.c.l.b16 %v6735
    %v7255 = vunpack.c.l.b16 %v6736
    %v7256 = vunpack.c.l.b16 %v6737
    %v7257 = vunpack.c.l.b16 %v6738
    %v7258 = vunpack.c.l.b16 %v6739
    %v7259 = vunpack.c.l.b16 %v6740
    %v7260 = vunpack.c.l.b16 %v6741
    %v7261 = vunpack.c.l.b16 %v6742
    %v7262 = vunpack.c.l.b16 %v6743
    %v7263 = vunpack.c.l.b16 %v6744
    %v7264 = vunpack.c.l.b16 %v6745
    %v7265 = vunpack.c.l.b16 %v6746
    %v7266 = vunpack.c.l.b16 %v6747
    %v7267 = vunpack.c.l.b16 %v6748
    %v7268 = vunpack.c.l.b16 %v6749
    %v7269 = vunpack.c.l.b16 %v6750
    %v7270 = vunpack.c.l.b16 %v6751
    %v7271 = vunpack.c.l.b16 %v6752
    %v7272 = vunpack.c.l.b16 %v6753
    %v7273 = vunpack.c.l.b16 %v6754
    %v7274 = vunpack.c.l.b16 %v6755
    %v7275 = vunpack.c.l.b16 %v6756
    %v7276 = vunpack.c.l.b16 %v6757
    %v7277 = vunpack.c.l.b16 %v6758
    %v7278 = vunpack.c.l.b16 %v6759
    %v7279 = vunpack.c.l.b16 %v6760
    %v7280 = vunpack.c.l.b16 %v6761
    %v7281 = vunpack.c.l.b16 %v6762
    %v7282 = vunpack.c.l.b16 %v6763
    %v7283 = vunpack.c.l.b16 %v6764
    %v7284 = vunpack.c.l.b16 %v6765
    %v7285 = vunpack.c.l.b16 %v6766
    %v7286 = vunpack.c.l.b16 %v6767
    %v7287 = vunpack.c.l.b16 %v6768
    %v7288 = vunpack.c.l.b16 %v6769
    %v7289 = vunpack.c.l.b16 %v6770
    %v7290 = vunpack.c.l.b16 %v6771
    %v7291 = vunpack.c.l.b16 %v6772
    %v7292 = vunpack.c.l.b16 %v6773
    %v7293 = vunpack.c.l.b16 %v6774
    %v7294 = vunpack.c.l.b16 %v6775
    %v7295 = vunpack.c.l.b16 %v6776
    %v7296 = vunpack.c.l.b16 %v6777
    %v7297 = vunpack.c.l.b16 %v6778
    %v7298 = vunpack.c.l.b16 %v6779
    %v7299 = vunpack.c.l.b16 %v6780
    %v7300 = vunpack.c.l.b16 %v6781
    %v7301 = vunpack.c.l.b16 %v6782
    %v7302 = vunpack.c.l.b16 %v6783
    %v7303 = vunpack.c.l.b16 %v6784
    %v7304 = vunpack.c.l.b16 %v6785
    %v7305 = vunpack.c.l.b16 %v6786
    %v7306 = vunpack.c.l.b16 %v6787
    %v7307 = vunpack.c.l.b16 %v6788
    %v7308 = vunpack.c.l.b16 %v6789
    %v7309 = vunpack.c.l.b16 %v6790
    %v7310 = vunpack.c.l.b16 %v6791
    %v7311 = vunpack.c.l.b16 %v6792
    %v7312 = vunpack.c.l.b16 %v6793
    %v7313 = vunpack.c.l.b16 %v6794
    %v7314 = vunpack.c.l.b16 %v6795
    %v7315 = vunpack.c.l.b16 %v6796
    %v7316 = vunpack.c.l.b16 %v6797
    %v7317 = vunpack.c.l.b16 %v6798
    %v7318 = vunpack.c.l.b16 %v6799
    %v7319 = vunpack.c.l.b16 %v6800
    %v7320 = vunpack.c.l.b16 %v6801
    %v7321 = vunpack.c.l.b16 %v6802
    %v7322 = vunpack.c.l.b16 %v6803
    %v7323 = vunpack.c.l.b16 %v6804
    %v7324 = vunpack.c.l.b16 %v6805
    %v7325 = vunpack.c.l.b16 %v6806
    %v7326 = vpack.c.b16 %v7071, %v7070
    %v7327 = vpack.c.b16 %v7073, %v7072
    %v7328 = vpack.c.b16 %v7075, %v7074
    %v7329 = vpack.c.b16 %v7077, %v7076
    %v7330 = vpack.c.b16 %v7079, %v7078
    %v7331 = vpack.c.b16 %v7081, %v7080
    %v7332 = vpack.c.b16 %v7083, %v7082
    %v7333 = vpack.c.b16 %v7085, %v7084
    %v7334 = vpack.c.b16 %v7087, %v7086
    %v7335 = vpack.c.b16 %v7089, %v7088
    %v7336 = vpack.c.b16 %v7091, %v7090
    %v7337 = vpack.c.b16 %v7093, %v7092
    %v7338 = vpack.c.b16 %v7095, %v7094
    %v7339 = vpack.c.b16 %v7097, %v7096
    %v7340 = vpack.c.b16 %v7099, %v7098
    %v7341 = vpack.c.b16 %v7101, %v7100
    %v7342 = vpack.c.b16 %v7103, %v7102
    %v7343 = vpack.c.b16 %v7105, %v7104
    %v7344 = vpack.c.b16 %v7107, %v7106
    %v7345 = vpack.c.b16 %v7109, %v7108
    %v7346 = vpack.c.b16 %v7111, %v7110
    %v7347 = vpack.c.b16 %v7113, %v7112
    %v7348 = vpack.c.b16 %v7115, %v7114
    %v7349 = vpack.c.b16 %v7117, %v7116
    %v7350 = vpack.c.b16 %v7119, %v7118
    %v7351 = vpack.c.b16 %v7121, %v7120
    %v7352 = vpack.c.b16 %v7123, %v7122
    %v7353 = vpack.c.b16 %v7125, %v7124
    %v7354 = vpack.c.b16 %v7127, %v7126
    %v7355 = vpack.c.b16 %v7129, %v7128
    %v7356 = vpack.c.b16 %v7131, %v7130
    %v7357 = vpack.c.b16 %v7133, %v7132
    %v7358 = vpack.c.b16 %v7135, %v7134
    %v7359 = vpack.c.b16 %v7137, %v7136
    %v7360 = vpack.c.b16 %v7139, %v7138
    %v7361 = vpack.c.b16 %v7141, %v7140
    %v7362 = vpack.c.b16 %v7143, %v7142
    %v7363 = vpack.c.b16 %v7145, %v7144
    %v7364 = vpack.c.b16 %v7147, %v7146
    %v7365 = vpack.c.b16 %v7149, %v7148
    %v7366 = vpack.c.b16 %v7151, %v7150
    %v7367 = vpack.c.b16 %v7153, %v7152
    %v7368 = vpack.c.b16 %v7155, %v7154
    %v7369 = vpack.c.b16 %v7157, %v7156
    %v7370 = vpack.c.b16 %v7159, %v7158
    %v7371 = vpack.c.b16 %v7161, %v7160
    %v7372 = vpack.c.b16 %v7163, %v7162
    %v7373 = vpack.c.b16 %v7165, %v7164
    %v7374 = vpack.c.b16 %v7167, %v7166
    %v7375 = vpack.c.b16 %v7169, %v7168
    %v7376 = vpack.c.b16 %v7171, %v7170
    %v7377 = vpack.c.b16 %v7173, %v7172
    %v7378 = vpack.c.b16 %v7175, %v7174
    %v7379 = vpack.c.b16 %v7177, %v7176
    %v7380 = vpack.c.b16 %v7179, %v7178
    %v7381 = vpack.c.b16 %v7181, %v7180
    %v7382 = vpack.c.b16 %v7183, %v7182
    %v7383 = vpack.c.b16 %v7185, %v7184
    %v7384 = vpack.c.b16 %v7187, %v7186
    %v7385 = vpack.c.b16 %v7189, %v7188
    %v7386 = vpack.c.b16 %v7191, %v7190
    %v7387 = vpack.c.b16 %v7193, %v7192
    %v7388 = vpack.c.b16 %v7195, %v7194
    %v7389 = vpack.c.b16 %v7197, %v7196
    %v7390 = vpack.c.b16 %v7199, %v7198
    %v7391 = vpack.c.b16 %v7201, %v7200
    %v7392 = vpack.c.b16 %v7203, %v7202
    %v7393 = vpack.c.b16 %v7205, %v7204
    %v7394 = vpack.c.b16 %v7207, %v7206
    %v7395 = vpack.c.b16 %v7209, %v7208
    %v7396 = vpack.c.b16 %v7211, %v7210
    %v7397 = vpack.c.b16 %v7213, %v7212
    %v7398 = vpack.c.b16 %v7215, %v7214
    %v7399 = vpack.c.b16 %v7217, %v7216
    %v7400 = vpack.c.b16 %v7219, %v7218
    %v7401 = vpack.c.b16 %v7221, %v7220
    %v7402 = vpack.c.b16 %v7223, %v7222
    %v7403 = vpack.c.b16 %v7225, %v7224
    %v7404 = vpack.c.b16 %v7227, %v7226
    %v7405 = vpack.c.b16 %v7229, %v7228
    %v7406 = vpack.c.b16 %v7231, %v7230
    %v7407 = vpack.c.b16 %v7233, %v7232
    %v7408 = vpack.c.b16 %v7235, %v7234
    %v7409 = vpack.c.b16 %v7237, %v7236
    %v7410 = vpack.c.b16 %v7239, %v7238
    %v7411 = vpack.c.b16 %v7241, %v7240
    %v7412 = vpack.c.b16 %v7243, %v7242
    %v7413 = vpack.c.b16 %v7245, %v7244
    %v7414 = vpack.c.b16 %v7247, %v7246
    %v7415 = vpack.c.b16 %v7249, %v7248
    %v7416 = vpack.c.b16 %v7251, %v7250
    %v7417 = vpack.c.b16 %v7253, %v7252
    %v7418 = vpack.c.b16 %v7255, %v7254
    %v7419 = vpack.c.b16 %v7257, %v7256
    %v7420 = vpack.c.b16 %v7259, %v7258
    %v7421 = vpack.c.b16 %v7261, %v7260
    %v7422 = vpack.c.b16 %v7263, %v7262
    %v7423 = vpack.c.b16 %v7265, %v7264
    %v7424 = vpack.c.b16 %v7267, %v7266
    %v7425 = vpack.c.b16 %v7269, %v7268
    %v7426 = vpack.c.b16 %v7271, %v7270
    %v7427 = vpack.c.b16 %v7273, %v7272
    %v7428 = vpack.c.b16 %v7275, %v7274
    %v7429 = vpack.c.b16 %v7277, %v7276
    %v7430 = vpack.c.b16 %v7279, %v7278
    %v7431 = vpack.c.b16 %v7281, %v7280
    %v7432 = vpack.c.b16 %v7283, %v7282
    %v7433 = vpack.c.b16 %v7285, %v7284
    %v7434 = vpack.c.b16 %v7287, %v7286
    %v7435 = vpack.c.b16 %v7289, %v7288
    %v7436 = vpack.c.b16 %v7291, %v7290
    %v7437 = vpack.c.b16 %v7293, %v7292
    %v7438 = vpack.c.b16 %v7295, %v7294
    %v7439 = vpack.c.b16 %v7297, %v7296
    %v7440 = vpack.c.b16 %v7299, %v7298
    %v7441 = vpack.c.b16 %v7301, %v7300
    %v7442 = vpack.c.b16 %v7303, %v7302
    %v7443 = vpack.c.b16 %v7305, %v7304
    %v7444 = vpack.c.b16 %v7307, %v7306
    %v7445 = vpack.c.b16 %v7309, %v7308
    %v7446 = vpack.c.b16 %v7311, %v7310
    %v7447 = vpack.c.b16 %v7313, %v7312
    %v7448 = vpack.c.b16 %v7315, %v7314
    %v7449 = vpack.c.b16 %v7317, %v7316
    %v7450 = vpack.c.b16 %v7319, %v7318
    %v7451 = vpack.c.b16 %v7321, %v7320
    %v7452 = vpack.c.b16 %v7323, %v7322
    %v7453 = vpack.c.b16 %v7325, %v7324
    %7582 = vmatprep.subr.bf16.mxu0 0
    %7583 = vmatpush1.bf16.msra.mxu0 %v7326
    %7584 = vmatprep.subr.bf16.mxu0 0
    %7585 = vmatpush1.bf16.msra.mxu0 %v7327
    %7586 = vmatprep.subr.bf16.mxu0 0
    %7587 = vmatpush1.bf16.msra.mxu0 %v7328
    %7588 = vmatprep.subr.bf16.mxu0 0
    %7589 = vmatpush1.bf16.msra.mxu0 %v7329
    %7590 = vmatprep.subr.bf16.mxu0 0
    %7591 = vmatpush1.bf16.msra.mxu0 %v7330
    %7592 = vmatprep.subr.bf16.mxu0 0
    %7593 = vmatpush1.bf16.msra.mxu0 %v7331
    %7594 = vmatprep.subr.bf16.mxu0 0
    %7595 = vmatpush1.bf16.msra.mxu0 %v7332
    %7596 = vmatprep.subr.bf16.mxu0 0
    %7597 = vmatpush1.bf16.msra.mxu0 %v7333
    %7598 = vmatprep.subr.bf16.mxu0 0
    %7599 = vmatpush1.bf16.msra.mxu0 %v7334
    %7600 = vmatprep.subr.bf16.mxu0 0
    %7601 = vmatpush1.bf16.msra.mxu0 %v7335
    %7602 = vmatprep.subr.bf16.mxu0 0
    %7603 = vmatpush1.bf16.msra.mxu0 %v7336
    %7604 = vmatprep.subr.bf16.mxu0 0
    %7605 = vmatpush1.bf16.msra.mxu0 %v7337
    %7606 = vmatprep.subr.bf16.mxu0 0
    %7607 = vmatpush1.bf16.msra.mxu0 %v7338
    %7608 = vmatprep.subr.bf16.mxu0 0
    %7609 = vmatpush1.bf16.msra.mxu0 %v7339
    %7610 = vmatprep.subr.bf16.mxu0 0
    %7611 = vmatpush1.bf16.msra.mxu0 %v7340
    %7612 = vmatprep.subr.bf16.mxu0 0
    %7613 = vmatpush1.bf16.msra.mxu0 %v7341
    %7614 = vmatprep.mubr.bf16.mxu0 %v6536
    %7615 = vmatmul.mubr.bf16.gmra.mrb[0].mxu0 %v6535
    %v7616 = vpop.f32.mrb[0].mxu0
    %v7617 = vadd.f32 %v6812, %v7616
    %v7618 = vpop.f32.mrb[0].mxu0
    %v7619 = vpop.f32.mrb[0].mxu0
    %v7620 = vadd.f32 %v6812, %v7619
    %v7621 = vpop.f32.mrb[0].mxu0
    %7622 = vdwg.mxu0
    %7623 = vmatprep.subr.bf16.mxu0 0
    %7624 = vmatpush1.bf16.msra.mxu0 %v7342
    %7625 = vmatprep.subr.bf16.mxu0 0
    %7626 = vmatpush1.bf16.msra.mxu0 %v7343
    %7627 = vmatprep.subr.bf16.mxu0 0
    %7628 = vmatpush1.bf16.msra.mxu0 %v7344
    %7629 = vmatprep.subr.bf16.mxu0 0
    %7630 = vmatpush1.bf16.msra.mxu0 %v7345
    %7631 = vmatprep.subr.bf16.mxu0 0
    %7632 = vmatpush1.bf16.msra.mxu0 %v7346
    %7633 = vmatprep.subr.bf16.mxu0 0
    %7634 = vmatpush1.bf16.msra.mxu0 %v7347
    %7635 = vmatprep.subr.bf16.mxu0 0
    %7636 = vmatpush1.bf16.msra.mxu0 %v7348
    %7637 = vmatprep.subr.bf16.mxu0 0
    %7638 = vmatpush1.bf16.msra.mxu0 %v7349
    %7639 = vmatprep.subr.bf16.mxu0 0
    %7640 = vmatpush1.bf16.msra.mxu0 %v7350
    %7641 = vmatprep.subr.bf16.mxu0 0
    %7642 = vmatpush1.bf16.msra.mxu0 %v7351
    %7643 = vmatprep.subr.bf16.mxu0 0
    %7644 = vmatpush1.bf16.msra.mxu0 %v7352
    %7645 = vmatprep.subr.bf16.mxu0 0
    %7646 = vmatpush1.bf16.msra.mxu0 %v7353
    %7647 = vmatprep.subr.bf16.mxu0 0
    %7648 = vmatpush1.bf16.msra.mxu0 %v7354
    %7649 = vmatprep.subr.bf16.mxu0 0
    %7650 = vmatpush1.bf16.msra.mxu0 %v7355
    %7651 = vmatprep.subr.bf16.mxu0 0
    %7652 = vmatpush1.bf16.msra.mxu0 %v7356
    %7653 = vmatprep.subr.bf16.mxu0 0
    %7654 = vmatpush1.bf16.msra.mxu0 %v7357
    %7655 = vmatprep.mubr.bf16.mxu0 %v6538
    %7656 = vmatmul.mubr.bf16.gmra.mrb[0].mxu0 %v6537
    %v7657 = vpop.f32.mrb[0].mxu0
    %v7658 = vadd.f32 %v7617, %v7657
    %v7659 = vpop.f32.mrb[0].mxu0
    %v7660 = vpop.f32.mrb[0].mxu0
    %v7661 = vadd.f32 %v7620, %v7660
    %v7662 = vpop.f32.mrb[0].mxu0
    %7663 = vdwg.mxu0
    %7664 = vmatprep.subr.bf16.mxu0 0
    %7665 = vmatpush1.bf16.msra.mxu0 %v7358
    %7666 = vmatprep.subr.bf16.mxu0 0
    %7667 = vmatpush1.bf16.msra.mxu0 %v7359
    %7668 = vmatprep.subr.bf16.mxu0 0
    %7669 = vmatpush1.bf16.msra.mxu0 %v7360
    %7670 = vmatprep.subr.bf16.mxu0 0
    %7671 = vmatpush1.bf16.msra.mxu0 %v7361
    %7672 = vmatprep.subr.bf16.mxu0 0
    %7673 = vmatpush1.bf16.msra.mxu0 %v7362
    %7674 = vmatprep.subr.bf16.mxu0 0
    %7675 = vmatpush1.bf16.msra.mxu0 %v7363
    %7676 = vmatprep.subr.bf16.mxu0 0
    %7677 = vmatpush1.bf16.msra.mxu0 %v7364
    %7678 = vmatprep.subr.bf16.mxu0 0
    %7679 = vmatpush1.bf16.msra.mxu0 %v7365
    %7680 = vmatprep.subr.bf16.mxu0 0
    %7681 = vmatpush1.bf16.msra.mxu0 %v7366
    %7682 = vmatprep.subr.bf16.mxu0 0
    %7683 = vmatpush1.bf16.msra.mxu0 %v7367
    %7684 = vmatprep.subr.bf16.mxu0 0
    %7685 = vmatpush1.bf16.msra.mxu0 %v7368
    %7686 = vmatprep.subr.bf16.mxu0 0
    %7687 = vmatpush1.bf16.msra.mxu0 %v7369
    %7688 = vmatprep.subr.bf16.mxu0 0
    %7689 = vmatpush1.bf16.msra.mxu0 %v7370
    %7690 = vmatprep.subr.bf16.mxu0 0
    %7691 = vmatpush1.bf16.msra.mxu0 %v7371
    %7692 = vmatprep.subr.bf16.mxu0 0
    %7693 = vmatpush1.bf16.msra.mxu0 %v7372
    %7694 = vmatprep.subr.bf16.mxu0 0
    %7695 = vmatpush1.bf16.msra.mxu0 %v7373
    %7696 = vmatprep.mubr.bf16.mxu0 %v6540
    %7697 = vmatmul.mubr.bf16.gmra.mrb[0].mxu0 %v6539
    %v7698 = vpop.f32.mrb[0].mxu0
    %v7699 = vadd.f32 %v7658, %v7698
    %v7700 = vpop.f32.mrb[0].mxu0
    %v7701 = vpop.f32.mrb[0].mxu0
    %v7702 = vadd.f32 %v7661, %v7701
    %v7703 = vpop.f32.mrb[0].mxu0
    %7704 = vdwg.mxu0
    %7705 = vmatprep.subr.bf16.mxu0 0
    %7706 = vmatpush1.bf16.msra.mxu0 %v7374
    %7707 = vmatprep.subr.bf16.mxu0 0
    %7708 = vmatpush1.bf16.msra.mxu0 %v7375
    %7709 = vmatprep.subr.bf16.mxu0 0
    %7710 = vmatpush1.bf16.msra.mxu0 %v7376
    %7711 = vmatprep.subr.bf16.mxu0 0
    %7712 = vmatpush1.bf16.msra.mxu0 %v7377
    %7713 = vmatprep.subr.bf16.mxu0 0
    %7714 = vmatpush1.bf16.msra.mxu0 %v7378
    %7715 = vmatprep.subr.bf16.mxu0 0
    %7716 = vmatpush1.bf16.msra.mxu0 %v7379
    %7717 = vmatprep.subr.bf16.mxu0 0
    %7718 = vmatpush1.bf16.msra.mxu0 %v7380
    %7719 = vmatprep.subr.bf16.mxu0 0
    %7720 = vmatpush1.bf16.msra.mxu0 %v7381
    %7721 = vmatprep.subr.bf16.mxu0 0
    %7722 = vmatpush1.bf16.msra.mxu0 %v7382
    %7723 = vmatprep.subr.bf16.mxu0 0
    %7724 = vmatpush1.bf16.msra.mxu0 %v7383
    %7725 = vmatprep.subr.bf16.mxu0 0
    %7726 = vmatpush1.bf16.msra.mxu0 %v7384
    %7727 = vmatprep.subr.bf16.mxu0 0
    %7728 = vmatpush1.bf16.msra.mxu0 %v7385
    %7729 = vmatprep.subr.bf16.mxu0 0
    %7730 = vmatpush1.bf16.msra.mxu0 %v7386
    %7731 = vmatprep.subr.bf16.mxu0 0
    %7732 = vmatpush1.bf16.msra.mxu0 %v7387
    %7733 = vmatprep.subr.bf16.mxu0 0
    %7734 = vmatpush1.bf16.msra.mxu0 %v7388
    %7735 = vmatprep.subr.bf16.mxu0 0
    %7736 = vmatpush1.bf16.msra.mxu0 %v7389
    %7737 = vmatprep.mubr.bf16.mxu0 %v6542
    %7738 = vmatmul.mubr.bf16.gmra.mrb[0].mxu0 %v6541
    %v7739 = vpop.f32.mrb[0].mxu0
    %v7740 = vadd.f32 %v7699, %v7739
    %v7741 = vpop.f32.mrb[0].mxu0
    %v7742 = vpop.f32.mrb[0].mxu0
    %v7743 = vadd.f32 %v7702, %v7742
    %v7744 = vpop.f32.mrb[0].mxu0
    %7745 = vdwg.mxu0
    %7746 = vmatprep.subr.bf16.mxu0 0
    %7747 = vmatpush1.bf16.msra.mxu0 %v7390
    %7748 = vmatprep.subr.bf16.mxu0 0
    %7749 = vmatpush1.bf16.msra.mxu0 %v7391
    %7750 = vmatprep.subr.bf16.mxu0 0
    %7751 = vmatpush1.bf16.msra.mxu0 %v7392
    %7752 = vmatprep.subr.bf16.mxu0 0
    %7753 = vmatpush1.bf16.msra.mxu0 %v7393
    %7754 = vmatprep.subr.bf16.mxu0 0
    %7755 = vmatpush1.bf16.msra.mxu0 %v7394
    %7756 = vmatprep.subr.bf16.mxu0 0
    %7757 = vmatpush1.bf16.msra.mxu0 %v7395
    %7758 = vmatprep.subr.bf16.mxu0 0
    %7759 = vmatpush1.bf16.msra.mxu0 %v7396
    %7760 = vmatprep.subr.bf16.mxu0 0
    %7761 = vmatpush1.bf16.msra.mxu0 %v7397
    %7762 = vmatprep.subr.bf16.mxu0 0
    %7763 = vmatpush1.bf16.msra.mxu0 %v7398
    %7764 = vmatprep.subr.bf16.mxu0 0
    %7765 = vmatpush1.bf16.msra.mxu0 %v7399
    %7766 = vmatprep.subr.bf16.mxu0 0
    %7767 = vmatpush1.bf16.msra.mxu0 %v7400
    %7768 = vmatprep.subr.bf16.mxu0 0
    %7769 = vmatpush1.bf16.msra.mxu0 %v7401
    %7770 = vmatprep.subr.bf16.mxu0 0
    %7771 = vmatpush1.bf16.msra.mxu0 %v7402
    %7772 = vmatprep.subr.bf16.mxu0 0
    %7773 = vmatpush1.bf16.msra.mxu0 %v7403
    %7774 = vmatprep.subr.bf16.mxu0 0
    %7775 = vmatpush1.bf16.msra.mxu0 %v7404
    %7776 = vmatprep.subr.bf16.mxu0 0
    %7777 = vmatpush1.bf16.msra.mxu0 %v7405
    %7778 = vmatprep.mubr.bf16.mxu0 %v6544
    %7779 = vmatmul.mubr.bf16.gmra.mrb[0].mxu0 %v6543
    %v7780 = vpop.f32.mrb[0].mxu0
    %v7781 = vadd.f32 %v7740, %v7780
    %v7782 = vpop.f32.mrb[0].mxu0
    %v7783 = vpop.f32.mrb[0].mxu0
    %v7784 = vadd.f32 %v7743, %v7783
    %v7785 = vpop.f32.mrb[0].mxu0
    %7786 = vdwg.mxu0
    %7787 = vmatprep.subr.bf16.mxu0 0
    %7788 = vmatpush1.bf16.msra.mxu0 %v7406
    %7789 = vmatprep.subr.bf16.mxu0 0
    %7790 = vmatpush1.bf16.msra.mxu0 %v7407
    %7791 = vmatprep.subr.bf16.mxu0 0
    %7792 = vmatpush1.bf16.msra.mxu0 %v7408
    %7793 = vmatprep.subr.bf16.mxu0 0
    %7794 = vmatpush1.bf16.msra.mxu0 %v7409
    %7795 = vmatprep.subr.bf16.mxu0 0
    %7796 = vmatpush1.bf16.msra.mxu0 %v7410
    %7797 = vmatprep.subr.bf16.mxu0 0
    %7798 = vmatpush1.bf16.msra.mxu0 %v7411
    %7799 = vmatprep.subr.bf16.mxu0 0
    %7800 = vmatpush1.bf16.msra.mxu0 %v7412
    %7801 = vmatprep.subr.bf16.mxu0 0
    %7802 = vmatpush1.bf16.msra.mxu0 %v7413
    %7803 = vmatprep.subr.bf16.mxu0 0
    %7804 = vmatpush1.bf16.msra.mxu0 %v7414
    %7805 = vmatprep.subr.bf16.mxu0 0
    %7806 = vmatpush1.bf16.msra.mxu0 %v7415
    %7807 = vmatprep.subr.bf16.mxu0 0
    %7808 = vmatpush1.bf16.msra.mxu0 %v7416
    %7809 = vmatprep.subr.bf16.mxu0 0
    %7810 = vmatpush1.bf16.msra.mxu0 %v7417
    %7811 = vmatprep.subr.bf16.mxu0 0
    %7812 = vmatpush1.bf16.msra.mxu0 %v7418
    %7813 = vmatprep.subr.bf16.mxu0 0
    %7814 = vmatpush1.bf16.msra.mxu0 %v7419
    %7815 = vmatprep.subr.bf16.mxu0 0
    %7816 = vmatpush1.bf16.msra.mxu0 %v7420
    %7817 = vmatprep.subr.bf16.mxu0 0
    %7818 = vmatpush1.bf16.msra.mxu0 %v7421
    %7819 = vmatprep.mubr.bf16.mxu0 %v6546
    %7820 = vmatmul.mubr.bf16.gmra.mrb[0].mxu0 %v6545
    %v7821 = vpop.f32.mrb[0].mxu0
    %v7822 = vadd.f32 %v7781, %v7821
    %v7823 = vpop.f32.mrb[0].mxu0
    %v7824 = vpop.f32.mrb[0].mxu0
    %v7825 = vadd.f32 %v7784, %v7824
    %v7826 = vpop.f32.mrb[0].mxu0
    %7827 = vdwg.mxu0
    %7828 = vmatprep.subr.bf16.mxu0 0
    %7829 = vmatpush1.bf16.msra.mxu0 %v7422
    %7830 = vmatprep.subr.bf16.mxu0 0
    %7831 = vmatpush1.bf16.msra.mxu0 %v7423
    %7832 = vmatprep.subr.bf16.mxu0 0
    %7833 = vmatpush1.bf16.msra.mxu0 %v7424
    %7834 = vmatprep.subr.bf16.mxu0 0
    %7835 = vmatpush1.bf16.msra.mxu0 %v7425
    %7836 = vmatprep.subr.bf16.mxu0 0
    %7837 = vmatpush1.bf16.msra.mxu0 %v7426
    %7838 = vmatprep.subr.bf16.mxu0 0
    %7839 = vmatpush1.bf16.msra.mxu0 %v7427
    %7840 = vmatprep.subr.bf16.mxu0 0
    %7841 = vmatpush1.bf16.msra.mxu0 %v7428
    %7842 = vmatprep.subr.bf16.mxu0 0
    %7843 = vmatpush1.bf16.msra.mxu0 %v7429
    %7844 = vmatprep.subr.bf16.mxu0 0
    %7845 = vmatpush1.bf16.msra.mxu0 %v7430
    %7846 = vmatprep.subr.bf16.mxu0 0
    %7847 = vmatpush1.bf16.msra.mxu0 %v7431
    %7848 = vmatprep.subr.bf16.mxu0 0
    %7849 = vmatpush1.bf16.msra.mxu0 %v7432
    %7850 = vmatprep.subr.bf16.mxu0 0
    %7851 = vmatpush1.bf16.msra.mxu0 %v7433
    %7852 = vmatprep.subr.bf16.mxu0 0
    %7853 = vmatpush1.bf16.msra.mxu0 %v7434
    %7854 = vmatprep.subr.bf16.mxu0 0
    %7855 = vmatpush1.bf16.msra.mxu0 %v7435
    %7856 = vmatprep.subr.bf16.mxu0 0
    %7857 = vmatpush1.bf16.msra.mxu0 %v7436
    %7858 = vmatprep.subr.bf16.mxu0 0
    %7859 = vmatpush1.bf16.msra.mxu0 %v7437
    %7860 = vmatprep.mubr.bf16.mxu0 %v6548
    %7861 = vmatmul.mubr.bf16.gmra.mrb[0].mxu0 %v6547
    %v7862 = vpop.f32.mrb[0].mxu0
    %v7863 = vadd.f32 %v7822, %v7862
    %v7864 = vpop.f32.mrb[0].mxu0
    %v7865 = vpop.f32.mrb[0].mxu0
    %v7866 = vadd.f32 %v7825, %v7865
    %v7867 = vpop.f32.mrb[0].mxu0
    %7868 = vdwg.mxu0
    %7869 = vmatprep.subr.bf16.mxu0 0
    %7870 = vmatpush1.bf16.msra.mxu0 %v7438
    %7871 = vmatprep.subr.bf16.mxu0 0
    %7872 = vmatpush1.bf16.msra.mxu0 %v7439
    %7873 = vmatprep.subr.bf16.mxu0 0
    %7874 = vmatpush1.bf16.msra.mxu0 %v7440
    %7875 = vmatprep.subr.bf16.mxu0 0
    %7876 = vmatpush1.bf16.msra.mxu0 %v7441
    %7877 = vmatprep.subr.bf16.mxu0 0
    %7878 = vmatpush1.bf16.msra.mxu0 %v7442
    %7879 = vmatprep.subr.bf16.mxu0 0
    %7880 = vmatpush1.bf16.msra.mxu0 %v7443
    %7881 = vmatprep.subr.bf16.mxu0 0
    %7882 = vmatpush1.bf16.msra.mxu0 %v7444
    %7883 = vmatprep.subr.bf16.mxu0 0
    %7884 = vmatpush1.bf16.msra.mxu0 %v7445
    %7885 = vmatprep.subr.bf16.mxu0 0
    %7886 = vmatpush1.bf16.msra.mxu0 %v7446
    %7887 = vmatprep.subr.bf16.mxu0 0
    %7888 = vmatpush1.bf16.msra.mxu0 %v7447
    %7889 = vmatprep.subr.bf16.mxu0 0
    %7890 = vmatpush1.bf16.msra.mxu0 %v7448
    %7891 = vmatprep.subr.bf16.mxu0 0
    %7892 = vmatpush1.bf16.msra.mxu0 %v7449
    %7893 = vmatprep.subr.bf16.mxu0 0
    %7894 = vmatpush1.bf16.msra.mxu0 %v7450
    %7895 = vmatprep.subr.bf16.mxu0 0
    %7896 = vmatpush1.bf16.msra.mxu0 %v7451
    %7897 = vmatprep.subr.bf16.mxu0 0
    %7898 = vmatpush1.bf16.msra.mxu0 %v7452
    %7899 = vmatprep.subr.bf16.mxu0 0
    %7900 = vmatpush1.bf16.msra.mxu0 %v7453
    %7901 = vmatprep.mubr.bf16.mxu0 %v6550
    %7902 = vmatmul.mubr.bf16.gmra.mrb[0].mxu0 %v6549
    %v7903 = vpop.f32.mrb[0].mxu0
    %v7904 = vadd.f32 %v7863, %v7903
    %v7905 = vpop.f32.mrb[0].mxu0
    %v7906 = vpop.f32.mrb[0].mxu0
    %v7907 = vadd.f32 %v7866, %v7906
    %v7908 = vpop.f32.mrb[0].mxu0
    %7909 = vdwg.mxu0
    %v7910 = vadd.f32 %v5304, %v7904
    %v7911 = vadd.f32 %v5305, %v7907
    %7912 = vadd.xlane.f32.xlu0 %v7910
    %v7913 = vpop.xlane.xlu0 %7912
    %7914 = vadd.xlane.f32.xlu0 %v7911
    %v7915 = vpop.xlane.xlu0 %7914
    %v7916 = vmul.f32 %v7913, %v2756
    %v7917 = vmul.f32 %v7915, %v2756
    %v7918 = vsub.f32 %v7910, %v7916
    %v7919 = vsub.f32 %v7911, %v7917
    %v7920 = vmul.f32 %v7918, %v7918
    %v7921 = vmul.f32 %v7919, %v7919
    %7922 = vadd.xlane.f32.xlu0 %v7920
    %v7923 = vpop.xlane.xlu0 %7922
    %7924 = vadd.xlane.f32.xlu0 %v7921
    %v7925 = vpop.xlane.xlu0 %7924
    %v7926 = vmul.f32 %v7923, %v2756
    %v7927 = vmul.f32 %v7925, %v2756
    %v7928 = vadd.f32 %v7926, 1e-05
    %v7929 = vadd.f32 %v7927, 1e-05
    %v7930 = vrsqrt.pop %v7928
    %v7931 = vrsqrt.pop %v7929
    %v7932 = vmul.f32 %v7918, %v7930
    %v7933 = vmul.f32 %v7919, %v7931
    %v7934 = vmul.f32 %v7932, %v2779
    %v7935 = vmul.f32 %v7933, %v2779
    %v7936 = vadd.f32 %v7934, %v2787
    %v7937 = vadd.f32 %v7935, %v2787
    %7938 = vst [vmem:[#allocation13] sm:$0xff] %v7936
    %7939 = vst [vmem:[#allocation13 + $0x8] sm:$0xff] %v7937
    // Predicated region
    $region74: #{tpu_custom_call.1} parent=1 // pred_check
      _
    $region75: #{tpu_custom_call.1} parent=1 // pred_check_branch
      %7941 = sbr.rel (0) target = $region77
    $region76: #{tpu_custom_call.1} parent=1 // pred_region
      %s7943 = ssub.s32 256, 256
      %7944 = vsyncadd [#allocation4], %s7943
      %s7945 = sshll.u32 [#allocation13], 4
      %s7946 = int_to_ptr.vmem [resolvable:$true] %s7945
      %7951 = dma.vmem_to_hbm [thread:$0]  %s7946, 256, %s12, [#allocation4], 128, 128, 8
    $region77: #{tpu_custom_call.1} parent=1 // pred_fallthru
      _
    // Predicated region
    $region78: #{tpu_custom_call.1} parent=1 // pred_check
      _
    $region79: #{tpu_custom_call.1} parent=1 // pred_check_branch
      %7953 = sbr.rel (0) target = $region81
    $region80: #{tpu_custom_call.1} parent=1 // pred_region
      %7954 = dma.done [#allocation4], 256
    $region81: #{tpu_custom_call.1} parent=1 // pred_fallthru
      _
    %7955 = vsyncpa [#allocation3], 1
    %7956 = vsyncpa [#allocation6], 1
    %7957 = vsyncpa [#allocation9], 1
    %7958 = vsyncpa [#allocation12], 1
    %7959 = vsyncpa [#allocation4], 1

</llo_original>
